<compile_context>
chip_gen: v6e
topology: v6e:2x2x1
jax: 0.10.0
libtpu: 0.0.40
codegen_flags: <defaults>
</compile_context>

<pallas_src>
import math

import jax
import jax.numpy as jnp
from jax.experimental import pallas as pl
from jax.experimental.pallas import tpu as pltpu


# ---------------------------------------------------------------------------
# Kernel: grid = (batch, query_tile).  K/V cached per batch in VMEM scratch.
# ---------------------------------------------------------------------------
def encoder_block_kernel(
    valid_ref,                                   # (B,) int32, SMEM (scalar prefetch)
    xq_ref,                                      # (1, TQ, H) f32   query tile (also residual)
    xkv_ref,                                     # (1, S,  H) bf16  full sequence (keys/values)
    wq_ref, wk_ref, wv_ref, wo_ref,              # (H, H) bf16  (1/sqrt(d) folded into wq)
    ln1_g_ref, ln1_b_ref, ln2_g_ref, ln2_b_ref,  # (1, H) f32
    w1_ref, b1_ref,                              # (H, F) bf16, (1, F) f32
    w2_ref, b2_ref,                              # (F, H) bf16, (1, H) f32
    out_ref,                                     # (1, TQ, H)
    kh_ref, vh_ref,                              # (nh, S, d) bf16 VMEM scratch (per-batch K/V)
):
    b = pl.program_id(0)
    qi = pl.program_id(1)

    nh, S, d = kh_ref.shape
    H = nh * d

    # --- K/V projection + head split: once per batch element (hoisted) -------
    @pl.when(qi == 0)
    def _():
        xkv = xkv_ref[0]                                                  # (S, H) bf16
        k = jnp.dot(xkv, wk_ref[...], preferred_element_type=jnp.float32)
        v = jnp.dot(xkv, wv_ref[...], preferred_element_type=jnp.float32)
        kh_ref[...] = k.reshape(S, nh, d).transpose(1, 0, 2).astype(jnp.bfloat16)
        vh_ref[...] = v.reshape(S, nh, d).transpose(1, 0, 2).astype(jnp.bfloat16)

    # --- Q projection for this query tile (scale already folded into wq) -----
    xq_f32 = xq_ref[0]                                                    # (TQ, H) f32
    TQ = xq_f32.shape[0]
    q = jnp.dot(xq_f32.astype(jnp.bfloat16), wq_ref[...],
                preferred_element_type=jnp.float32)                       # (TQ, H)
    qh = q.reshape(TQ, nh, d).transpose(1, 0, 2).astype(jnp.bfloat16)     # (nh, TQ, d)

    # --- scores + masked softmax (f32, matches torch masked_fill -1e6) -------
    scores = jnp.einsum("hqd,hkd->hqk", qh, kh_ref[...],
                        preferred_element_type=jnp.float32)               # (nh, TQ, S)
    key_idx = jax.lax.broadcasted_iota(jnp.int32, (1, 1, S), 2)
    scores = jnp.where(key_idx < valid_ref[b], scores, jnp.float32(-1e6))
    scores = scores - jnp.max(scores, axis=-1, keepdims=True)
    p = jnp.exp(scores)
    p = p * pl.reciprocal(jnp.sum(p, axis=-1, keepdims=True), approx=True)

    ctx = jnp.einsum("hqk,hkd->hqd", p.astype(jnp.bfloat16), vh_ref[...],
                     preferred_element_type=jnp.float32)                  # (nh, TQ, d)
    attn = ctx.transpose(1, 0, 2).reshape(TQ, H)                          # transpose_output
    attn_out = jnp.dot(attn.astype(jnp.bfloat16), wo_ref[...],
                       preferred_element_type=jnp.float32)                # (TQ, H)

    # --- AddNorm 1 (f32) ------------------------------------------------------
    y = attn_out + xq_f32
    mu = jnp.mean(y, axis=-1, keepdims=True)
    var = jnp.mean((y - mu) ** 2, axis=-1, keepdims=True)
    y = (y - mu) * jax.lax.rsqrt(var + 1e-5) * ln1_g_ref[...] + ln1_b_ref[...]

    # --- Position-wise FFN (bf16 matmuls, f32 bias / ReLU) --------------------
    h1 = jnp.dot(y.astype(jnp.bfloat16), w1_ref[...],
                 preferred_element_type=jnp.float32) + b1_ref[...]
    h1 = jnp.maximum(h1, 0.0)
    f2 = jnp.dot(h1.astype(jnp.bfloat16), w2_ref[...],
                 preferred_element_type=jnp.float32) + b2_ref[...]

    # --- AddNorm 2 (f32) ------------------------------------------------------
    z = f2 + y
    mu2 = jnp.mean(z, axis=-1, keepdims=True)
    var2 = jnp.mean((z - mu2) ** 2, axis=-1, keepdims=True)
    z = (z - mu2) * jax.lax.rsqrt(var2 + 1e-5) * ln2_g_ref[...] + ln2_b_ref[...]

    out_ref[0] = z.astype(out_ref.dtype)


# ---------------------------------------------------------------------------
# Wrapper helpers
# ---------------------------------------------------------------------------
def _device_kind():
    try:
        return jax.devices()[0].device_kind.lower()
    except Exception:
        return ""


def _vmem_capacity_bytes():
    try:
        cap = getattr(pltpu.get_tpu_info(), "vmem_capacity_bytes", None)
        if cap:
            return int(cap)
    except Exception:
        pass
    kind = _device_kind()
    return 64 * 1024 * 1024 if "v7" in kind else 128 * 1024 * 1024


def _default_q_tile_target():
    kind = _device_kind()
    if "v5 lite" in kind or "v5e" in kind:
        return 128   # v5e: 128-wide MXU, likely HBM-bound -> keep tiles modest
    return 256       # v6e / v7x: 256-wide MXU


def _vmem_estimate(S, H, F, nh, tq, buffered_weights):
    bf, f32 = 2, 4
    wbuf = 1 if buffered_weights else 2
    weights = wbuf * bf * (4 * H * H + 2 * H * F)           # W_q/k/v/o + FFN weights
    small = wbuf * f32 * (5 * H + F)                         # LN params + biases
    io = 2 * (f32 * tq * H + bf * S * H + f32 * tq * H)      # dbl-buffered xq / xkv / out
    kv_scratch = 2 * bf * S * H                              # kh + vh caches
    live = f32 * (2 * S * H                                  # k, v (only at qi == 0)
                  + 2 * nh * tq * S                          # scores + probs
                  + tq * F                                   # FFN hidden
                  + 8 * tq * H)                              # q/ctx/attn/residual/LN temps
    return weights + small + io + kv_scratch + live


def _pick_q_tile(S, target, fits):
    if S <= target:
        return S
    cands = [t for t in (512, 256, 128, 64, 32, 16, 8) if t <= target and S % t == 0]
    for t in cands:
        if fits(t):
            return t
    return cands[-1] if cands else S


def _make_spec(shape, index_map, single_buffered):
    """BlockSpec; pinned single-buffered when supported (grid-constant operands)."""
    if single_buffered and hasattr(pl, "Buffered"):
        try:
            return pl.BlockSpec(shape, index_map, pipeline_mode=pl.Buffered(1))
        except TypeError:
            pass
    return pl.BlockSpec(shape, index_map)


# ---------------------------------------------------------------------------
# Public wrapper
# ---------------------------------------------------------------------------
def encoder_block(x, valid_lens, params, *, num_heads, q_tile=None):
    B, S, H = x.shape
    assert H % num_heads == 0, "num_hiddens must be divisible by num_heads"
    F = params["w1"].shape[1]
    d = H // num_heads

    bf16 = jnp.bfloat16
    scale = 1.0 / math.sqrt(d)
    wq = (params["wq"] * scale).astype(bf16)   # fold 1/sqrt(d) into W_q
    wk = params["wk"].astype(bf16)
    wv = params["wv"].astype(bf16)
    wo = params["wo"].astype(bf16)
    w1 = params["w1"].astype(bf16)
    w2 = params["w2"].astype(bf16)
    x_kv = x.astype(bf16)                      # bf16 K/V operand: half the DMA bytes

    budget = int(0.8 * _vmem_capacity_bytes())
    target = q_tile if q_tile is not None else _default_q_tile_target()
    tq = _pick_q_tile(
        S, target,
        lambda t: _vmem_estimate(S, H, F, num_heads, t, True) <= 0.7 * budget)
    n_q = S // tq

    full = lambda b, qi, vl: (0, 0)            # grid-constant weights / params
    q_blk = lambda b, qi, vl: (b, qi, 0)       # query / output tile
    kv_blk = lambda b, qi, vl: (b, 0, 0)       # full sequence, changes only with b

    def run(single_buf_weights):
        w = lambda shp: _make_spec(shp, full, single_buf_weights)
        grid_spec = pltpu.PrefetchScalarGridSpec(
            num_scalar_prefetch=1,
            grid=(B, n_q),
            in_specs=[
                pl.BlockSpec((1, tq, H), q_blk),   # x (query tile, f32)
                pl.BlockSpec((1, S, H), kv_blk),   # x (keys/values, bf16, full seq)
                w((H, H)), w((H, H)), w((H, H)), w((H, H)),   # wq wk wv wo
                w((1, H)), w((1, H)), w((1, H)), w((1, H)),   # ln1_g ln1_b ln2_g ln2_b
                w((H, F)), w((1, F)),                          # ffn w1 b1
                w((F, H)), w((1, H)),                          # ffn w2 b2
            ],
            out_specs=pl.BlockSpec((1, tq, H), q_blk),
            scratch_shapes=[
                pltpu.VMEM((num_heads, S, d), bf16),   # cached K heads (per batch)
                pltpu.VMEM((num_heads, S, d), bf16),   # cached V heads (per batch)
            ],
        )
        est = _vmem_estimate(S, H, F, num_heads, tq, single_buf_weights)
        vmem_limit = int(min(budget, max(int(1.5 * est), 32 * 1024 * 1024)))
        return pl.pallas_call(
            encoder_block_kernel,
            out_shape=jax.ShapeDtypeStruct((B, S, H), x.dtype),
            grid_spec=grid_spec,
            compiler_params=pltpu.CompilerParams(
                # batch axis parallel (megacore sharding on v7x); query-tile axis
                # must be "arbitrary" so the per-batch K/V scratch cache is valid.
                dimension_semantics=("parallel", "arbitrary"),
                vmem_limit_bytes=vmem_limit,
            ),
        )(
            valid_lens.astype(jnp.int32), x, x_kv,
            wq, wk, wv, wo,
            params["ln1_g"], params["ln1_b"], params["ln2_g"], params["ln2_b"],
            w1, params["b1"], w2, params["b2"],
        )

    try:
        return run(True)
    except Exception:
        # pl.Buffered(1) not supported on this JAX version -> default buffering.
        return run(False)


# ---------------------------------------------------------------------------
# Pure-JAX reference.  Mirrors the kernel's bf16-operand / f32-accumulate
# matmul numerics (same math as the PyTorch module otherwise).
# ---------------------------------------------------------------------------
def encoder_block_ref(x, valid_lens, params, *, num_heads):
    B, S, H = x.shape
    d = H // num_heads
    bf16 = jnp.bfloat16
    mm = lambda a, w: jnp.dot(a.astype(bf16), w.astype(bf16),
                              preferred_element_type=jnp.float32)
    scale = 1.0 / math.sqrt(d)

    q = mm(x, params["wq"] * scale)
    k = mm(x, params["wk"])
    v = mm(x, params["wv"])

    def split(t):  # (B,S,H) -> (B,nh,S,d)
        return t.reshape(B, S, num_heads, d).transpose(0, 2, 1, 3)

    qh, kh, vh = split(q), split(k), split(v)
    scores = jnp.einsum("bhqd,bhkd->bhqk", qh.astype(bf16), kh.astype(bf16),
                        preferred_element_type=jnp.float32)
    key_idx = jnp.arange(S)
    mask = key_idx[None, None, None, :] < valid_lens[:, None, None, None]
    scores = jnp.where(mask, scores, -1e6)
    p = jax.nn.softmax(scores, axis=-1)
    o = jnp.einsum("bhqk,bhkd->bhqd", p.astype(bf16), vh.astype(bf16),
                   preferred_element_type=jnp.float32)
    o = o.transpose(0, 2, 1, 3).reshape(B, S, H)
    attn_out = mm(o, params["wo"])

    def ln(t, g, b):
        mu = jnp.mean(t, axis=-1, keepdims=True)
        var = jnp.mean((t - mu) ** 2, axis=-1, keepdims=True)
        return (t - mu) * jax.lax.rsqrt(var + 1e-5) * g + b

    y = ln(attn_out + x, params["ln1_g"], params["ln1_b"])
    h1 = jnp.maximum(mm(y, params["w1"]) + params["b1"], 0.0)
    f = mm(h1, params["w2"]) + params["b2"]
    return ln(f + y, params["ln2_g"], params["ln2_b"])


# ---------------------------------------------------------------------------
if __name__ == "__main__":
    # batch, seq, num_hiddens, heads, ffn_hidden (small but lane-friendly)
    B, S, H, NH, F = 2, 64, 128, 4, 256

    key = jax.random.PRNGKey(0)
    ks = jax.random.split(key, 7)
    x = jax.random.normal(ks[0], (B, S, H), dtype=jnp.float32)
    valid_lens = jnp.array([37, S], dtype=jnp.int32)

    params = {
        "wq": jax.random.normal(ks[1], (H, H), jnp.float32) * 0.1,
        "wk": jax.random.normal(ks[2], (H, H), jnp.float32) * 0.1,
        "wv": jax.random.normal(ks[3], (H, H), jnp.float32) * 0.1,
        "wo": jax.random.normal(ks[4], (H, H), jnp.float32) * 0.1,
        "ln1_g": jnp.ones((1, H), jnp.float32),
        "ln1_b": jnp.zeros((1, H), jnp.float32),
        "ln2_g": jnp.ones((1, H), jnp.float32),
        "ln2_b": jnp.zeros((1, H), jnp.float32),
        "w1": jax.random.normal(ks[5], (H, F), jnp.float32) * 0.1,
        "b1": jnp.zeros((1, F), jnp.float32),
        "w2": jax.random.normal(ks[6], (F, H), jnp.float32) * 0.1,
        "b2": jnp.zeros((1, H), jnp.float32),
    }

    ref = encoder_block_ref(x, valid_lens, params, num_heads=NH)

    # Multi-tile run (q_tile=16 -> grid (B, 4)): exercises the per-batch K/V cache.
    out_tiled = jax.block_until_ready(
        encoder_block(x, valid_lens, params, num_heads=NH, q_tile=16))
    # Auto-tiled run (tq == S here): one grid step per batch element.
    out_auto = jax.block_until_ready(
        encoder_block(x, valid_lens, params, num_heads=NH))

    assert out_tiled.shape == (B, S, H)
    assert jnp.allclose(out_tiled, ref, atol=2e-2, rtol=2e-2), "tiled mismatch vs reference"
    assert jnp.allclose(out_auto, ref, atol=2e-2, rtol=2e-2), "auto mismatch vs reference"

    print("KERNEL_OK")
</pallas_src>

<mosaic_0001>
module attributes {stable_mosaic.version = 11 : i64} {
  func.func @encoder_block_kernel(%arg0: i32, %arg1: i32, %arg2: memref<2xi32, #tpu.memory_space<smem>>, %arg3: memref<1x16x128xf32, #tpu.memory_space<vmem>>, %arg4: memref<1x64x128xbf16, #tpu.memory_space<vmem>>, %arg5: memref<128x128xbf16, #tpu.memory_space<vmem>>, %arg6: memref<128x128xbf16, #tpu.memory_space<vmem>>, %arg7: memref<128x128xbf16, #tpu.memory_space<vmem>>, %arg8: memref<128x128xbf16, #tpu.memory_space<vmem>>, %arg9: memref<1x128xf32, #tpu.memory_space<vmem>>, %arg10: memref<1x128xf32, #tpu.memory_space<vmem>>, %arg11: memref<1x128xf32, #tpu.memory_space<vmem>>, %arg12: memref<1x128xf32, #tpu.memory_space<vmem>>, %arg13: memref<128x256xbf16, #tpu.memory_space<vmem>>, %arg14: memref<1x256xf32, #tpu.memory_space<vmem>>, %arg15: memref<256x128xbf16, #tpu.memory_space<vmem>>, %arg16: memref<1x128xf32, #tpu.memory_space<vmem>>, %arg17: memref<1x16x128xf32, #tpu.memory_space<vmem>>, %arg18: memref<4x64x32xbf16, #tpu.memory_space<vmem>>, %arg19: memref<4x64x32xbf16, #tpu.memory_space<vmem>>) attributes {dimension_semantics = [#tpu.dimension_semantics<parallel>, #tpu.dimension_semantics<arbitrary>], iteration_bounds = array<i64: 2, 4>, scalar_prefetch = 1 : i64, scratch_operands = 2 : i64, tpu.core_type = #tpu.core_type<tc>, window_params = [{transform_indices = @transform_0, window_bounds = array<i64: 1, 16, 128>}, {transform_indices = @transform_1, window_bounds = array<i64: 1, 64, 128>}, {pipeline_mode = #tpu.pipeline_mode<synchronous>, transform_indices = @transform_2, window_bounds = array<i64: 128, 128>}, {pipeline_mode = #tpu.pipeline_mode<synchronous>, transform_indices = @transform_3, window_bounds = array<i64: 128, 128>}, {pipeline_mode = #tpu.pipeline_mode<synchronous>, transform_indices = @transform_4, window_bounds = array<i64: 128, 128>}, {pipeline_mode = #tpu.pipeline_mode<synchronous>, transform_indices = @transform_5, window_bounds = array<i64: 128, 128>}, {pipeline_mode = #tpu.pipeline_mode<synchronous>, transform_indices = @transform_6, window_bounds = array<i64: 1, 128>}, {pipeline_mode = #tpu.pipeline_mode<synchronous>, transform_indices = @transform_7, window_bounds = array<i64: 1, 128>}, {pipeline_mode = #tpu.pipeline_mode<synchronous>, transform_indices = @transform_8, window_bounds = array<i64: 1, 128>}, {pipeline_mode = #tpu.pipeline_mode<synchronous>, transform_indices = @transform_9, window_bounds = array<i64: 1, 128>}, {pipeline_mode = #tpu.pipeline_mode<synchronous>, transform_indices = @transform_10, window_bounds = array<i64: 128, 256>}, {pipeline_mode = #tpu.pipeline_mode<synchronous>, transform_indices = @transform_11, window_bounds = array<i64: 1, 256>}, {pipeline_mode = #tpu.pipeline_mode<synchronous>, transform_indices = @transform_12, window_bounds = array<i64: 256, 128>}, {pipeline_mode = #tpu.pipeline_mode<synchronous>, transform_indices = @transform_13, window_bounds = array<i64: 1, 128>}, {transform_indices = @transform_14, window_bounds = array<i64: 1, 16, 128>}]} {
    %c0_i32 = arith.constant 0 : i32
    %0 = arith.cmpi eq, %arg1, %c0_i32 : i32
    %1 = arith.extui %0 : i1 to i32
    %c0_i32_0 = arith.constant 0 : i32
    %2 = arith.cmpi ne, %1, %c0_i32_0 : i32
    scf.if %2 {
      %c0_51 = arith.constant 0 : index
      %c0_52 = arith.constant 0 : index
      %c0_53 = arith.constant 0 : index
      %107 = vector.load %arg4[%c0_51, %c0_52, %c0_53] : memref<1x64x128xbf16, #tpu.memory_space<vmem>>, vector<1x64x128xbf16>
      %108 = vector.shape_cast %107 : vector<1x64x128xbf16> to vector<64x128xbf16>
      %c0_54 = arith.constant 0 : index
      %c0_55 = arith.constant 0 : index
      %109 = vector.load %arg6[%c0_54, %c0_55] : memref<128x128xbf16, #tpu.memory_space<vmem>>, vector<128x128xbf16>
      %cst_56 = arith.constant dense<0.000000e+00> : vector<64x128xf32>
      %110 = tpu.matmul %108, %109, %cst_56 {dimension_numbers = #tpu.dot_dimension_numbers<[1], [0], [0], [1], [0, 0, 1, 1], [], []>} : vector<64x128xbf16>, vector<128x128xbf16>, vector<64x128xf32> -> vector<64x128xf32>
      %c0_57 = arith.constant 0 : index
      %c0_58 = arith.constant 0 : index
      %111 = vector.load %arg7[%c0_57, %c0_58] : memref<128x128xbf16, #tpu.memory_space<vmem>>, vector<128x128xbf16>
      %cst_59 = arith.constant dense<0.000000e+00> : vector<64x128xf32>
      %112 = tpu.matmul %108, %111, %cst_59 {dimension_numbers = #tpu.dot_dimension_numbers<[1], [0], [0], [1], [0, 0, 1, 1], [], []>} : vector<64x128xbf16>, vector<128x128xbf16>, vector<64x128xf32> -> vector<64x128xf32>
      %113 = vector.shape_cast %110 : vector<64x128xf32> to vector<64x4x32xf32>
      %114 = tpu.transpose %113, [1, 0, 2] : vector<64x4x32xf32> -> vector<4x64x32xf32>
      %115 = arith.truncf %114 : vector<4x64x32xf32> to vector<4x64x32xbf16>
      %c0_60 = arith.constant 0 : index
      %c0_61 = arith.constant 0 : index
      %c0_62 = arith.constant 0 : index
      %116 = vector.load %arg18[%c0_60, %c0_61, %c0_62] : memref<4x64x32xbf16, #tpu.memory_space<vmem>>, vector<4x64x32xbf16>
      tpu.vector_store %arg18[%c0_60, %c0_61, %c0_62], %115 {strides = array<i32>} : memref<4x64x32xbf16, #tpu.memory_space<vmem>>, vector<4x64x32xbf16>,
      %117 = vector.shape_cast %112 : vector<64x128xf32> to vector<64x4x32xf32>
      %118 = tpu.transpose %117, [1, 0, 2] : vector<64x4x32xf32> -> vector<4x64x32xf32>
      %119 = arith.truncf %118 : vector<4x64x32xf32> to vector<4x64x32xbf16>
      %c0_63 = arith.constant 0 : index
      %c0_64 = arith.constant 0 : index
      %c0_65 = arith.constant 0 : index
      %120 = vector.load %arg19[%c0_63, %c0_64, %c0_65] : memref<4x64x32xbf16, #tpu.memory_space<vmem>>, vector<4x64x32xbf16>
      tpu.vector_store %arg19[%c0_63, %c0_64, %c0_65], %119 {strides = array<i32>} : memref<4x64x32xbf16, #tpu.memory_space<vmem>>, vector<4x64x32xbf16>,
    } else {
    }
    %c0 = arith.constant 0 : index
    %c0_1 = arith.constant 0 : index
    %c0_2 = arith.constant 0 : index
    %3 = vector.load %arg3[%c0, %c0_1, %c0_2] : memref<1x16x128xf32, #tpu.memory_space<vmem>>, vector<1x16x128xf32>
    %4 = vector.shape_cast %3 : vector<1x16x128xf32> to vector<16x128xf32>
    %5 = arith.truncf %4 : vector<16x128xf32> to vector<16x128xbf16>
    %c0_3 = arith.constant 0 : index
    %c0_4 = arith.constant 0 : index
    %6 = vector.load %arg5[%c0_3, %c0_4] : memref<128x128xbf16, #tpu.memory_space<vmem>>, vector<128x128xbf16>
    %cst = arith.constant dense<0.000000e+00> : vector<16x128xf32>
    %7 = tpu.matmul %5, %6, %cst {dimension_numbers = #tpu.dot_dimension_numbers<[1], [0], [0], [1], [0, 0, 1, 1], [], []>} : vector<16x128xbf16>, vector<128x128xbf16>, vector<16x128xf32> -> vector<16x128xf32>
    %8 = vector.shape_cast %7 : vector<16x128xf32> to vector<16x4x32xf32>
    %9 = tpu.transpose %8, [1, 0, 2] : vector<16x4x32xf32> -> vector<4x16x32xf32>
    %10 = arith.truncf %9 : vector<4x16x32xf32> to vector<4x16x32xbf16>
    %c0_5 = arith.constant 0 : index
    %c0_6 = arith.constant 0 : index
    %c0_7 = arith.constant 0 : index
    %11 = vector.load %arg18[%c0_5, %c0_6, %c0_7] : memref<4x64x32xbf16, #tpu.memory_space<vmem>>, vector<4x64x32xbf16>
    "tpu.trace_start"() <{level = 10 : i32, message = "hqd,hkd->hqk"}> : () -> ()
    %cst_8 = arith.constant dense<0.000000e+00> : vector<4x16x64xf32>
    %12 = tpu.matmul %10, %11, %cst_8 {dimension_numbers = #tpu.dot_dimension_numbers<[2], [2], [1], [1], [0, 0, 0, 1, 1, 1], [0], [0]>} : vector<4x16x32xbf16>, vector<4x64x32xbf16>, vector<4x16x64xf32> -> vector<4x16x64xf32>
    "tpu.trace_stop"() : () -> ()
    %13 = tpu.iota {dimensions = array<i32: 2>} : vector<1x1x64xi32>
    %14 = arith.index_cast %arg0 : i32 to index
    %15 = memref.load %arg2[%14] : memref<2xi32, #tpu.memory_space<smem>>
    %16 = vector.broadcast %15 : i32 to vector<1x1x64xi32>
    %17 = arith.cmpi slt, %13, %16 : vector<1x1x64xi32>
    %cst_9 = arith.constant -1.000000e+06 : f32
    %18 = vector.shape_cast %17 : vector<1x1x64xi1> to vector<1x1x64xi1>
    %19 = vector.broadcast %18 : vector<1x1x64xi1> to vector<4x16x64xi1>
    %20 = vector.broadcast %cst_9 : f32 to vector<4x16x64xf32>
    %21 = arith.select %19, %12, %20 : vector<4x16x64xi1>, vector<4x16x64xf32>
    %cst_10 = arith.constant dense<0xFF800000> : vector<4x16xf32>
    %22 = vector.multi_reduction <maximumf>, %21, %cst_10 [2] : vector<4x16x64xf32> to vector<4x16xf32>
    %23 = vector.shape_cast %22 : vector<4x16xf32> to vector<4x16x1xf32>
    %24 = vector.broadcast %23 : vector<4x16x1xf32> to vector<4x16x64xf32>
    %25 = arith.subf %21, %24 : vector<4x16x64xf32>
    %26 = math.exp %25 : vector<4x16x64xf32>
    %cst_11 = arith.constant dense<0.000000e+00> : vector<4x16xf32>
    %27 = vector.multi_reduction <add>, %26, %cst_11 [2] : vector<4x16x64xf32> to vector<4x16xf32>
    %28 = vector.shape_cast %27 : vector<4x16xf32> to vector<4x16x1xf32>
    %29 = tpu.reciprocal %28 {approx = true} : vector<4x16x1xf32> -> vector<4x16x1xf32>
    %30 = vector.broadcast %29 : vector<4x16x1xf32> to vector<4x16x64xf32>
    %31 = arith.mulf %26, %30 : vector<4x16x64xf32>
    %32 = arith.truncf %31 : vector<4x16x64xf32> to vector<4x16x64xbf16>
    %c0_12 = arith.constant 0 : index
    %c0_13 = arith.constant 0 : index
    %c0_14 = arith.constant 0 : index
    %33 = vector.load %arg19[%c0_12, %c0_13, %c0_14] : memref<4x64x32xbf16, #tpu.memory_space<vmem>>, vector<4x64x32xbf16>
    "tpu.trace_start"() <{level = 10 : i32, message = "hqk,hkd->hqd"}> : () -> ()
    %cst_15 = arith.constant dense<0.000000e+00> : vector<4x16x32xf32>
    %34 = tpu.matmul %32, %33, %cst_15 {dimension_numbers = #tpu.dot_dimension_numbers<[2], [1], [1], [2], [0, 0, 0, 1, 1, 2], [0], [0]>} : vector<4x16x64xbf16>, vector<4x64x32xbf16>, vector<4x16x32xf32> -> vector<4x16x32xf32>
    "tpu.trace_stop"() : () -> ()
    %35 = tpu.transpose %34, [1, 0, 2] : vector<4x16x32xf32> -> vector<16x4x32xf32>
    %36 = vector.shape_cast %35 : vector<16x4x32xf32> to vector<16x128xf32>
    %37 = arith.truncf %36 : vector<16x128xf32> to vector<16x128xbf16>
    %c0_16 = arith.constant 0 : index
    %c0_17 = arith.constant 0 : index
    %38 = vector.load %arg8[%c0_16, %c0_17] : memref<128x128xbf16, #tpu.memory_space<vmem>>, vector<128x128xbf16>
    %cst_18 = arith.constant dense<0.000000e+00> : vector<16x128xf32>
    %39 = tpu.matmul %37, %38, %cst_18 {dimension_numbers = #tpu.dot_dimension_numbers<[1], [0], [0], [1], [0, 0, 1, 1], [], []>} : vector<16x128xbf16>, vector<128x128xbf16>, vector<16x128xf32> -> vector<16x128xf32>
    %40 = arith.addf %39, %4 : vector<16x128xf32>
    %cst_19 = arith.constant dense<0.000000e+00> : vector<16xf32>
    %41 = vector.multi_reduction <add>, %40, %cst_19 [1] : vector<16x128xf32> to vector<16xf32>
    %42 = vector.shape_cast %41 : vector<16xf32> to vector<16x1xf32>
    %cst_20 = arith.constant 1.280000e+02 : f32
    %43 = vector.broadcast %cst_20 : f32 to vector<16x1xf32>
    %44 = arith.divf %42, %43 : vector<16x1xf32>
    %45 = vector.broadcast %44 : vector<16x1xf32> to vector<16x128xf32>
    %46 = arith.subf %40, %45 : vector<16x128xf32>
    %47 = arith.mulf %46, %46 : vector<16x128xf32>
    %cst_21 = arith.constant dense<0.000000e+00> : vector<16xf32>
    %48 = vector.multi_reduction <add>, %47, %cst_21 [1] : vector<16x128xf32> to vector<16xf32>
    %49 = vector.shape_cast %48 : vector<16xf32> to vector<16x1xf32>
    %cst_22 = arith.constant 1.280000e+02 : f32
    %50 = vector.broadcast %cst_22 : f32 to vector<16x1xf32>
    %51 = arith.divf %49, %50 : vector<16x1xf32>
    %52 = vector.broadcast %44 : vector<16x1xf32> to vector<16x128xf32>
    %53 = arith.subf %40, %52 : vector<16x128xf32>
    %cst_23 = arith.constant 9.99999974E-6 : f32
    %54 = vector.broadcast %cst_23 : f32 to vector<16x1xf32>
    %55 = arith.addf %51, %54 : vector<16x1xf32>
    %56 = math.rsqrt %55 : vector<16x1xf32>
    %57 = vector.broadcast %56 : vector<16x1xf32> to vector<16x128xf32>
    %58 = arith.mulf %53, %57 : vector<16x128xf32>
    %c0_24 = arith.constant 0 : index
    %c0_25 = arith.constant 0 : index
    %59 = vector.load %arg9[%c0_24, %c0_25] : memref<1x128xf32, #tpu.memory_space<vmem>>, vector<1x128xf32>
    %60 = vector.broadcast %59 : vector<1x128xf32> to vector<16x128xf32>
    %61 = arith.mulf %58, %60 : vector<16x128xf32>
    %c0_26 = arith.constant 0 : index
    %c0_27 = arith.constant 0 : index
    %62 = vector.load %arg10[%c0_26, %c0_27] : memref<1x128xf32, #tpu.memory_space<vmem>>, vector<1x128xf32>
    %63 = vector.broadcast %62 : vector<1x128xf32> to vector<16x128xf32>
    %64 = arith.addf %61, %63 : vector<16x128xf32>
    %65 = arith.truncf %64 : vector<16x128xf32> to vector<16x128xbf16>
    %c0_28 = arith.constant 0 : index
    %c0_29 = arith.constant 0 : index
    %66 = vector.load %arg13[%c0_28, %c0_29] : memref<128x256xbf16, #tpu.memory_space<vmem>>, vector<128x256xbf16>
    %cst_30 = arith.constant dense<0.000000e+00> : vector<16x256xf32>
    %67 = tpu.matmul %65, %66, %cst_30 {dimension_numbers = #tpu.dot_dimension_numbers<[1], [0], [0], [1], [0, 0, 1, 1], [], []>} : vector<16x128xbf16>, vector<128x256xbf16>, vector<16x256xf32> -> vector<16x256xf32>
    %c0_31 = arith.constant 0 : index
    %c0_32 = arith.constant 0 : index
    %68 = vector.load %arg14[%c0_31, %c0_32] : memref<1x256xf32, #tpu.memory_space<vmem>>, vector<1x256xf32>
    %69 = vector.broadcast %68 : vector<1x256xf32> to vector<16x256xf32>
    %70 = arith.addf %67, %69 : vector<16x256xf32>
    %cst_33 = arith.constant 0.000000e+00 : f32
    %71 = vector.broadcast %cst_33 : f32 to vector<16x256xf32>
    %72 = arith.maximumf %70, %71 : vector<16x256xf32>
    %73 = arith.truncf %72 : vector<16x256xf32> to vector<16x256xbf16>
    %c0_34 = arith.constant 0 : index
    %c0_35 = arith.constant 0 : index
    %74 = vector.load %arg15[%c0_34, %c0_35] : memref<256x128xbf16, #tpu.memory_space<vmem>>, vector<256x128xbf16>
    %cst_36 = arith.constant dense<0.000000e+00> : vector<16x128xf32>
    %75 = tpu.matmul %73, %74, %cst_36 {dimension_numbers = #tpu.dot_dimension_numbers<[1], [0], [0], [1], [0, 0, 1, 1], [], []>} : vector<16x256xbf16>, vector<256x128xbf16>, vector<16x128xf32> -> vector<16x128xf32>
    %c0_37 = arith.constant 0 : index
    %c0_38 = arith.constant 0 : index
    %76 = vector.load %arg16[%c0_37, %c0_38] : memref<1x128xf32, #tpu.memory_space<vmem>>, vector<1x128xf32>
    %77 = vector.broadcast %76 : vector<1x128xf32> to vector<16x128xf32>
    %78 = arith.addf %75, %77 : vector<16x128xf32>
    %79 = arith.addf %78, %64 : vector<16x128xf32>
    %cst_39 = arith.constant dense<0.000000e+00> : vector<16xf32>
    %80 = vector.multi_reduction <add>, %79, %cst_39 [1] : vector<16x128xf32> to vector<16xf32>
    %81 = vector.shape_cast %80 : vector<16xf32> to vector<16x1xf32>
    %cst_40 = arith.constant 1.280000e+02 : f32
    %82 = vector.broadcast %cst_40 : f32 to vector<16x1xf32>
    %83 = arith.divf %81, %82 : vector<16x1xf32>
    %84 = vector.broadcast %83 : vector<16x1xf32> to vector<16x128xf32>
    %85 = arith.subf %79, %84 : vector<16x128xf32>
    %86 = arith.mulf %85, %85 : vector<16x128xf32>
    %cst_41 = arith.constant dense<0.000000e+00> : vector<16xf32>
    %87 = vector.multi_reduction <add>, %86, %cst_41 [1] : vector<16x128xf32> to vector<16xf32>
    %88 = vector.shape_cast %87 : vector<16xf32> to vector<16x1xf32>
    %cst_42 = arith.constant 1.280000e+02 : f32
    %89 = vector.broadcast %cst_42 : f32 to vector<16x1xf32>
    %90 = arith.divf %88, %89 : vector<16x1xf32>
    %91 = vector.broadcast %83 : vector<16x1xf32> to vector<16x128xf32>
    %92 = arith.subf %79, %91 : vector<16x128xf32>
    %cst_43 = arith.constant 9.99999974E-6 : f32
    %93 = vector.broadcast %cst_43 : f32 to vector<16x1xf32>
    %94 = arith.addf %90, %93 : vector<16x1xf32>
    %95 = math.rsqrt %94 : vector<16x1xf32>
    %96 = vector.broadcast %95 : vector<16x1xf32> to vector<16x128xf32>
    %97 = arith.mulf %92, %96 : vector<16x128xf32>
    %c0_44 = arith.constant 0 : index
    %c0_45 = arith.constant 0 : index
    %98 = vector.load %arg11[%c0_44, %c0_45] : memref<1x128xf32, #tpu.memory_space<vmem>>, vector<1x128xf32>
    %99 = vector.broadcast %98 : vector<1x128xf32> to vector<16x128xf32>
    %100 = arith.mulf %97, %99 : vector<16x128xf32>
    %c0_46 = arith.constant 0 : index
    %c0_47 = arith.constant 0 : index
    %101 = vector.load %arg12[%c0_46, %c0_47] : memref<1x128xf32, #tpu.memory_space<vmem>>, vector<1x128xf32>
    %102 = vector.broadcast %101 : vector<1x128xf32> to vector<16x128xf32>
    %103 = arith.addf %100, %102 : vector<16x128xf32>
    %c0_48 = arith.constant 0 : index
    %c0_49 = arith.constant 0 : index
    %c0_50 = arith.constant 0 : index
    %104 = vector.load %arg17[%c0_48, %c0_49, %c0_50] : memref<1x16x128xf32, #tpu.memory_space<vmem>>, vector<1x16x128xf32>
    %105 = vector.shape_cast %104 : vector<1x16x128xf32> to vector<16x128xf32>
    %106 = vector.shape_cast %103 : vector<16x128xf32> to vector<1x16x128xf32>
    tpu.vector_store %arg17[%c0_48, %c0_49, %c0_50], %106 {strides = array<i32>} : memref<1x16x128xf32, #tpu.memory_space<vmem>>, vector<1x16x128xf32>,
    return
  }
  func.func @transform_0(%arg0: i32, %arg1: i32, %arg2: memref<2xi32, #tpu.memory_space<smem>>) -> (i32, i32, i32) {
    %c0_i32 = arith.constant 0 : i32
    %c0_i32_0 = arith.constant 0 : i32
    return %arg0, %arg1, %c0_i32 : i32, i32, i32
  }
  func.func @transform_1(%arg0: i32, %arg1: i32, %arg2: memref<2xi32, #tpu.memory_space<smem>>) -> (i32, i32, i32) {
    %c0_i32 = arith.constant 0 : i32
    %c0_i32_0 = arith.constant 0 : i32
    %c0_i32_1 = arith.constant 0 : i32
    return %arg0, %c0_i32, %c0_i32_0 : i32, i32, i32
  }
  func.func @transform_2(%arg0: i32, %arg1: i32, %arg2: memref<2xi32, #tpu.memory_space<smem>>) -> (i32, i32) {
    %c0_i32 = arith.constant 0 : i32
    %c0_i32_0 = arith.constant 0 : i32
    %c0_i32_1 = arith.constant 0 : i32
    return %c0_i32, %c0_i32_0 : i32, i32
  }
  func.func @transform_3(%arg0: i32, %arg1: i32, %arg2: memref<2xi32, #tpu.memory_space<smem>>) -> (i32, i32) {
    %c0_i32 = arith.constant 0 : i32
    %c0_i32_0 = arith.constant 0 : i32
    %c0_i32_1 = arith.constant 0 : i32
    return %c0_i32, %c0_i32_0 : i32, i32
  }
  func.func @transform_4(%arg0: i32, %arg1: i32, %arg2: memref<2xi32, #tpu.memory_space<smem>>) -> (i32, i32) {
    %c0_i32 = arith.constant 0 : i32
    %c0_i32_0 = arith.constant 0 : i32
    %c0_i32_1 = arith.constant 0 : i32
    return %c0_i32, %c0_i32_0 : i32, i32
  }
  func.func @transform_5(%arg0: i32, %arg1: i32, %arg2: memref<2xi32, #tpu.memory_space<smem>>) -> (i32, i32) {
    %c0_i32 = arith.constant 0 : i32
    %c0_i32_0 = arith.constant 0 : i32
    %c0_i32_1 = arith.constant 0 : i32
    return %c0_i32, %c0_i32_0 : i32, i32
  }
  func.func @transform_6(%arg0: i32, %arg1: i32, %arg2: memref<2xi32, #tpu.memory_space<smem>>) -> (i32, i32) {
    %c0_i32 = arith.constant 0 : i32
    %c0_i32_0 = arith.constant 0 : i32
    %c0_i32_1 = arith.constant 0 : i32
    return %c0_i32, %c0_i32_0 : i32, i32
  }
  func.func @transform_7(%arg0: i32, %arg1: i32, %arg2: memref<2xi32, #tpu.memory_space<smem>>) -> (i32, i32) {
    %c0_i32 = arith.constant 0 : i32
    %c0_i32_0 = arith.constant 0 : i32
    %c0_i32_1 = arith.constant 0 : i32
    return %c0_i32, %c0_i32_0 : i32, i32
  }
  func.func @transform_8(%arg0: i32, %arg1: i32, %arg2: memref<2xi32, #tpu.memory_space<smem>>) -> (i32, i32) {
    %c0_i32 = arith.constant 0 : i32
    %c0_i32_0 = arith.constant 0 : i32
    %c0_i32_1 = arith.constant 0 : i32
    return %c0_i32, %c0_i32_0 : i32, i32
  }
  func.func @transform_9(%arg0: i32, %arg1: i32, %arg2: memref<2xi32, #tpu.memory_space<smem>>) -> (i32, i32) {
    %c0_i32 = arith.constant 0 : i32
    %c0_i32_0 = arith.constant 0 : i32
    %c0_i32_1 = arith.constant 0 : i32
    return %c0_i32, %c0_i32_0 : i32, i32
  }
  func.func @transform_10(%arg0: i32, %arg1: i32, %arg2: memref<2xi32, #tpu.memory_space<smem>>) -> (i32, i32) {
    %c0_i32 = arith.constant 0 : i32
    %c0_i32_0 = arith.constant 0 : i32
    %c0_i32_1 = arith.constant 0 : i32
    return %c0_i32, %c0_i32_0 : i32, i32
  }
  func.func @transform_11(%arg0: i32, %arg1: i32, %arg2: memref<2xi32, #tpu.memory_space<smem>>) -> (i32, i32) {
    %c0_i32 = arith.constant 0 : i32
    %c0_i32_0 = arith.constant 0 : i32
    %c0_i32_1 = arith.constant 0 : i32
    return %c0_i32, %c0_i32_0 : i32, i32
  }
  func.func @transform_12(%arg0: i32, %arg1: i32, %arg2: memref<2xi32, #tpu.memory_space<smem>>) -> (i32, i32) {
    %c0_i32 = arith.constant 0 : i32
    %c0_i32_0 = arith.constant 0 : i32
    %c0_i32_1 = arith.constant 0 : i32
    return %c0_i32, %c0_i32_0 : i32, i32
  }
  func.func @transform_13(%arg0: i32, %arg1: i32, %arg2: memref<2xi32, #tpu.memory_space<smem>>) -> (i32, i32) {
    %c0_i32 = arith.constant 0 : i32
    %c0_i32_0 = arith.constant 0 : i32
    %c0_i32_1 = arith.constant 0 : i32
    return %c0_i32, %c0_i32_0 : i32, i32
  }
  func.func @transform_14(%arg0: i32, %arg1: i32, %arg2: memref<2xi32, #tpu.memory_space<smem>>) -> (i32, i32, i32) {
    %c0_i32 = arith.constant 0 : i32
    %c0_i32_0 = arith.constant 0 : i32
    return %arg0, %arg1, %c0_i32 : i32, i32, i32
  }
}

module attributes {stable_mosaic.version = 11 : i64} {
  func.func @encoder_block_kernel(%arg0: i32, %arg1: i32, %arg2: memref<2xi32, #tpu.memory_space<smem>>, %arg3: memref<1x16x128xf32, #tpu.memory_space<vmem>>, %arg4: memref<1x64x128xbf16, #tpu.memory_space<vmem>>, %arg5: memref<128x128xbf16, #tpu.memory_space<vmem>>, %arg6: memref<128x128xbf16, #tpu.memory_space<vmem>>, %arg7: memref<128x128xbf16, #tpu.memory_space<vmem>>, %arg8: memref<128x128xbf16, #tpu.memory_space<vmem>>, %arg9: memref<1x128xf32, #tpu.memory_space<vmem>>, %arg10: memref<1x128xf32, #tpu.memory_space<vmem>>, %arg11: memref<1x128xf32, #tpu.memory_space<vmem>>, %arg12: memref<1x128xf32, #tpu.memory_space<vmem>>, %arg13: memref<128x256xbf16, #tpu.memory_space<vmem>>, %arg14: memref<1x256xf32, #tpu.memory_space<vmem>>, %arg15: memref<256x128xbf16, #tpu.memory_space<vmem>>, %arg16: memref<1x128xf32, #tpu.memory_space<vmem>>, %arg17: memref<1x16x128xf32, #tpu.memory_space<vmem>>, %arg18: memref<4x64x32xbf16, #tpu.memory_space<vmem>>, %arg19: memref<4x64x32xbf16, #tpu.memory_space<vmem>>) attributes {dimension_semantics = [#tpu.dimension_semantics<parallel>, #tpu.dimension_semantics<arbitrary>], iteration_bounds = array<i64: 2, 4>, scalar_prefetch = 1 : i64, scratch_operands = 2 : i64, tpu.core_type = #tpu.core_type<tc>, window_params = [{transform_indices = @transform_0, window_bounds = array<i64: 1, 16, 128>}, {transform_indices = @transform_1, window_bounds = array<i64: 1, 64, 128>}, {pipeline_mode = #tpu.pipeline_mode<synchronous>, transform_indices = @transform_2, window_bounds = array<i64: 128, 128>}, {pipeline_mode = #tpu.pipeline_mode<synchronous>, transform_indices = @transform_3, window_bounds = array<i64: 128, 128>}, {pipeline_mode = #tpu.pipeline_mode<synchronous>, transform_indices = @transform_4, window_bounds = array<i64: 128, 128>}, {pipeline_mode = #tpu.pipeline_mode<synchronous>, transform_indices = @transform_5, window_bounds = array<i64: 128, 128>}, {pipeline_mode = #tpu.pipeline_mode<synchronous>, transform_indices = @transform_6, window_bounds = array<i64: 1, 128>}, {pipeline_mode = #tpu.pipeline_mode<synchronous>, transform_indices = @transform_7, window_bounds = array<i64: 1, 128>}, {pipeline_mode = #tpu.pipeline_mode<synchronous>, transform_indices = @transform_8, window_bounds = array<i64: 1, 128>}, {pipeline_mode = #tpu.pipeline_mode<synchronous>, transform_indices = @transform_9, window_bounds = array<i64: 1, 128>}, {pipeline_mode = #tpu.pipeline_mode<synchronous>, transform_indices = @transform_10, window_bounds = array<i64: 128, 256>}, {pipeline_mode = #tpu.pipeline_mode<synchronous>, transform_indices = @transform_11, window_bounds = array<i64: 1, 256>}, {pipeline_mode = #tpu.pipeline_mode<synchronous>, transform_indices = @transform_12, window_bounds = array<i64: 256, 128>}, {pipeline_mode = #tpu.pipeline_mode<synchronous>, transform_indices = @transform_13, window_bounds = array<i64: 1, 128>}, {transform_indices = @transform_14, window_bounds = array<i64: 1, 16, 128>}]} {
    %c0_i32 = arith.constant 0 : i32
    %0 = arith.cmpi eq, %arg1, %c0_i32 : i32
    %1 = arith.extui %0 : i1 to i32
    %c0_i32_0 = arith.constant 0 : i32
    %2 = arith.cmpi ne, %1, %c0_i32_0 : i32
    scf.if %2 {
      %c0_51 = arith.constant 0 : index
      %c0_52 = arith.constant 0 : index
      %c0_53 = arith.constant 0 : index
      %107 = vector.load %arg4[%c0_51, %c0_52, %c0_53] : memref<1x64x128xbf16, #tpu.memory_space<vmem>>, vector<1x64x128xbf16>
      %108 = vector.shape_cast %107 : vector<1x64x128xbf16> to vector<64x128xbf16>
      %c0_54 = arith.constant 0 : index
      %c0_55 = arith.constant 0 : index
      %109 = vector.load %arg6[%c0_54, %c0_55] : memref<128x128xbf16, #tpu.memory_space<vmem>>, vector<128x128xbf16>
      %cst_56 = arith.constant dense<0.000000e+00> : vector<64x128xf32>
      %110 = tpu.matmul %108, %109, %cst_56 {dimension_numbers = #tpu.dot_dimension_numbers<[1], [0], [0], [1], [0, 0, 1, 1], [], []>} : vector<64x128xbf16>, vector<128x128xbf16>, vector<64x128xf32> -> vector<64x128xf32>
      %c0_57 = arith.constant 0 : index
      %c0_58 = arith.constant 0 : index
      %111 = vector.load %arg7[%c0_57, %c0_58] : memref<128x128xbf16, #tpu.memory_space<vmem>>, vector<128x128xbf16>
      %cst_59 = arith.constant dense<0.000000e+00> : vector<64x128xf32>
      %112 = tpu.matmul %108, %111, %cst_59 {dimension_numbers = #tpu.dot_dimension_numbers<[1], [0], [0], [1], [0, 0, 1, 1], [], []>} : vector<64x128xbf16>, vector<128x128xbf16>, vector<64x128xf32> -> vector<64x128xf32>
      %113 = vector.shape_cast %110 : vector<64x128xf32> to vector<64x4x32xf32>
      %114 = tpu.transpose %113, [1, 0, 2] : vector<64x4x32xf32> -> vector<4x64x32xf32>
      %115 = arith.truncf %114 : vector<4x64x32xf32> to vector<4x64x32xbf16>
      %c0_60 = arith.constant 0 : index
      %c0_61 = arith.constant 0 : index
      %c0_62 = arith.constant 0 : index
      %116 = vector.load %arg18[%c0_60, %c0_61, %c0_62] : memref<4x64x32xbf16, #tpu.memory_space<vmem>>, vector<4x64x32xbf16>
      tpu.vector_store %arg18[%c0_60, %c0_61, %c0_62], %115 {strides = array<i32>} : memref<4x64x32xbf16, #tpu.memory_space<vmem>>, vector<4x64x32xbf16>,
      %117 = vector.shape_cast %112 : vector<64x128xf32> to vector<64x4x32xf32>
      %118 = tpu.transpose %117, [1, 0, 2] : vector<64x4x32xf32> -> vector<4x64x32xf32>
      %119 = arith.truncf %118 : vector<4x64x32xf32> to vector<4x64x32xbf16>
      %c0_63 = arith.constant 0 : index
      %c0_64 = arith.constant 0 : index
      %c0_65 = arith.constant 0 : index
      %120 = vector.load %arg19[%c0_63, %c0_64, %c0_65] : memref<4x64x32xbf16, #tpu.memory_space<vmem>>, vector<4x64x32xbf16>
      tpu.vector_store %arg19[%c0_63, %c0_64, %c0_65], %119 {strides = array<i32>} : memref<4x64x32xbf16, #tpu.memory_space<vmem>>, vector<4x64x32xbf16>,
    } else {
    }
    %c0 = arith.constant 0 : index
    %c0_1 = arith.constant 0 : index
    %c0_2 = arith.constant 0 : index
    %3 = vector.load %arg3[%c0, %c0_1, %c0_2] : memref<1x16x128xf32, #tpu.memory_space<vmem>>, vector<1x16x128xf32>
    %4 = vector.shape_cast %3 : vector<1x16x128xf32> to vector<16x128xf32>
    %5 = arith.truncf %4 : vector<16x128xf32> to vector<16x128xbf16>
    %c0_3 = arith.constant 0 : index
    %c0_4 = arith.constant 0 : index
    %6 = vector.load %arg5[%c0_3, %c0_4] : memref<128x128xbf16, #tpu.memory_space<vmem>>, vector<128x128xbf16>
    %cst = arith.constant dense<0.000000e+00> : vector<16x128xf32>
    %7 = tpu.matmul %5, %6, %cst {dimension_numbers = #tpu.dot_dimension_numbers<[1], [0], [0], [1], [0, 0, 1, 1], [], []>} : vector<16x128xbf16>, vector<128x128xbf16>, vector<16x128xf32> -> vector<16x128xf32>
    %8 = vector.shape_cast %7 : vector<16x128xf32> to vector<16x4x32xf32>
    %9 = tpu.transpose %8, [1, 0, 2] : vector<16x4x32xf32> -> vector<4x16x32xf32>
    %10 = arith.truncf %9 : vector<4x16x32xf32> to vector<4x16x32xbf16>
    %c0_5 = arith.constant 0 : index
    %c0_6 = arith.constant 0 : index
    %c0_7 = arith.constant 0 : index
    %11 = vector.load %arg18[%c0_5, %c0_6, %c0_7] : memref<4x64x32xbf16, #tpu.memory_space<vmem>>, vector<4x64x32xbf16>
    "tpu.trace_start"() <{level = 10 : i32, message = "hqd,hkd->hqk"}> : () -> ()
    %cst_8 = arith.constant dense<0.000000e+00> : vector<4x16x64xf32>
    %12 = tpu.matmul %10, %11, %cst_8 {dimension_numbers = #tpu.dot_dimension_numbers<[2], [2], [1], [1], [0, 0, 0, 1, 1, 1], [0], [0]>} : vector<4x16x32xbf16>, vector<4x64x32xbf16>, vector<4x16x64xf32> -> vector<4x16x64xf32>
    "tpu.trace_stop"() : () -> ()
    %13 = tpu.iota {dimensions = array<i32: 2>} : vector<1x1x64xi32>
    %14 = arith.index_cast %arg0 : i32 to index
    %15 = memref.load %arg2[%14] : memref<2xi32, #tpu.memory_space<smem>>
    %16 = vector.broadcast %15 : i32 to vector<1x1x64xi32>
    %17 = arith.cmpi slt, %13, %16 : vector<1x1x64xi32>
    %cst_9 = arith.constant -1.000000e+06 : f32
    %18 = vector.shape_cast %17 : vector<1x1x64xi1> to vector<1x1x64xi1>
    %19 = vector.broadcast %18 : vector<1x1x64xi1> to vector<4x16x64xi1>
    %20 = vector.broadcast %cst_9 : f32 to vector<4x16x64xf32>
    %21 = arith.select %19, %12, %20 : vector<4x16x64xi1>, vector<4x16x64xf32>
    %cst_10 = arith.constant dense<0xFF800000> : vector<4x16xf32>
    %22 = vector.multi_reduction <maximumf>, %21, %cst_10 [2] : vector<4x16x64xf32> to vector<4x16xf32>
    %23 = vector.shape_cast %22 : vector<4x16xf32> to vector<4x16x1xf32>
    %24 = vector.broadcast %23 : vector<4x16x1xf32> to vector<4x16x64xf32>
    %25 = arith.subf %21, %24 : vector<4x16x64xf32>
    %26 = math.exp %25 : vector<4x16x64xf32>
    %cst_11 = arith.constant dense<0.000000e+00> : vector<4x16xf32>
    %27 = vector.multi_reduction <add>, %26, %cst_11 [2] : vector<4x16x64xf32> to vector<4x16xf32>
    %28 = vector.shape_cast %27 : vector<4x16xf32> to vector<4x16x1xf32>
    %29 = tpu.reciprocal %28 {approx = true} : vector<4x16x1xf32> -> vector<4x16x1xf32>
    %30 = vector.broadcast %29 : vector<4x16x1xf32> to vector<4x16x64xf32>
    %31 = arith.mulf %26, %30 : vector<4x16x64xf32>
    %32 = arith.truncf %31 : vector<4x16x64xf32> to vector<4x16x64xbf16>
    %c0_12 = arith.constant 0 : index
    %c0_13 = arith.constant 0 : index
    %c0_14 = arith.constant 0 : index
    %33 = vector.load %arg19[%c0_12, %c0_13, %c0_14] : memref<4x64x32xbf16, #tpu.memory_space<vmem>>, vector<4x64x32xbf16>
    "tpu.trace_start"() <{level = 10 : i32, message = "hqk,hkd->hqd"}> : () -> ()
    %cst_15 = arith.constant dense<0.000000e+00> : vector<4x16x32xf32>
    %34 = tpu.matmul %32, %33, %cst_15 {dimension_numbers = #tpu.dot_dimension_numbers<[2], [1], [1], [2], [0, 0, 0, 1, 1, 2], [0], [0]>} : vector<4x16x64xbf16>, vector<4x64x32xbf16>, vector<4x16x32xf32> -> vector<4x16x32xf32>
    "tpu.trace_stop"() : () -> ()
    %35 = tpu.transpose %34, [1, 0, 2] : vector<4x16x32xf32> -> vector<16x4x32xf32>
    %36 = vector.shape_cast %35 : vector<16x4x32xf32> to vector<16x128xf32>
    %37 = arith.truncf %36 : vector<16x128xf32> to vector<16x128xbf16>
    %c0_16 = arith.constant 0 : index
    %c0_17 = arith.constant 0 : index
    %38 = vector.load %arg8[%c0_16, %c0_17] : memref<128x128xbf16, #tpu.memory_space<vmem>>, vector<128x128xbf16>
    %cst_18 = arith.constant dense<0.000000e+00> : vector<16x128xf32>
    %39 = tpu.matmul %37, %38, %cst_18 {dimension_numbers = #tpu.dot_dimension_numbers<[1], [0], [0], [1], [0, 0, 1, 1], [], []>} : vector<16x128xbf16>, vector<128x128xbf16>, vector<16x128xf32> -> vector<16x128xf32>
    %40 = arith.addf %39, %4 : vector<16x128xf32>
    %cst_19 = arith.constant dense<0.000000e+00> : vector<16xf32>
    %41 = vector.multi_reduction <add>, %40, %cst_19 [1] : vector<16x128xf32> to vector<16xf32>
    %42 = vector.shape_cast %41 : vector<16xf32> to vector<16x1xf32>
    %cst_20 = arith.constant 1.280000e+02 : f32
    %43 = vector.broadcast %cst_20 : f32 to vector<16x1xf32>
    %44 = arith.divf %42, %43 : vector<16x1xf32>
    %45 = vector.broadcast %44 : vector<16x1xf32> to vector<16x128xf32>
    %46 = arith.subf %40, %45 : vector<16x128xf32>
    %47 = arith.mulf %46, %46 : vector<16x128xf32>
    %cst_21 = arith.constant dense<0.000000e+00> : vector<16xf32>
    %48 = vector.multi_reduction <add>, %47, %cst_21 [1] : vector<16x128xf32> to vector<16xf32>
    %49 = vector.shape_cast %48 : vector<16xf32> to vector<16x1xf32>
    %cst_22 = arith.constant 1.280000e+02 : f32
    %50 = vector.broadcast %cst_22 : f32 to vector<16x1xf32>
    %51 = arith.divf %49, %50 : vector<16x1xf32>
    %52 = vector.broadcast %44 : vector<16x1xf32> to vector<16x128xf32>
    %53 = arith.subf %40, %52 : vector<16x128xf32>
    %cst_23 = arith.constant 9.99999974E-6 : f32
    %54 = vector.broadcast %cst_23 : f32 to vector<16x1xf32>
    %55 = arith.addf %51, %54 : vector<16x1xf32>
    %56 = math.rsqrt %55 : vector<16x1xf32>
    %57 = vector.broadcast %56 : vector<16x1xf32> to vector<16x128xf32>
    %58 = arith.mulf %53, %57 : vector<16x128xf32>
    %c0_24 = arith.constant 0 : index
    %c0_25 = arith.constant 0 : index
    %59 = vector.load %arg9[%c0_24, %c0_25] : memref<1x128xf32, #tpu.memory_space<vmem>>, vector<1x128xf32>
    %60 = vector.broadcast %59 : vector<1x128xf32> to vector<16x128xf32>
    %61 = arith.mulf %58, %60 : vector<16x128xf32>
    %c0_26 = arith.constant 0 : index
    %c0_27 = arith.constant 0 : index
    %62 = vector.load %arg10[%c0_26, %c0_27] : memref<1x128xf32, #tpu.memory_space<vmem>>, vector<1x128xf32>
    %63 = vector.broadcast %62 : vector<1x128xf32> to vector<16x128xf32>
    %64 = arith.addf %61, %63 : vector<16x128xf32>
    %65 = arith.truncf %64 : vector<16x128xf32> to vector<16x128xbf16>
    %c0_28 = arith.constant 0 : index
    %c0_29 = arith.constant 0 : index
    %66 = vector.load %arg13[%c0_28, %c0_29] : memref<128x256xbf16, #tpu.memory_space<vmem>>, vector<128x256xbf16>
    %cst_30 = arith.constant dense<0.000000e+00> : vector<16x256xf32>
    %67 = tpu.matmul %65, %66, %cst_30 {dimension_numbers = #tpu.dot_dimension_numbers<[1], [0], [0], [1], [0, 0, 1, 1], [], []>} : vector<16x128xbf16>, vector<128x256xbf16>, vector<16x256xf32> -> vector<16x256xf32>
    %c0_31 = arith.constant 0 : index
    %c0_32 = arith.constant 0 : index
    %68 = vector.load %arg14[%c0_31, %c0_32] : memref<1x256xf32, #tpu.memory_space<vmem>>, vector<1x256xf32>
    %69 = vector.broadcast %68 : vector<1x256xf32> to vector<16x256xf32>
    %70 = arith.addf %67, %69 : vector<16x256xf32>
    %cst_33 = arith.constant 0.000000e+00 : f32
    %71 = vector.broadcast %cst_33 : f32 to vector<16x256xf32>
    %72 = arith.maximumf %70, %71 : vector<16x256xf32>
    %73 = arith.truncf %72 : vector<16x256xf32> to vector<16x256xbf16>
    %c0_34 = arith.constant 0 : index
    %c0_35 = arith.constant 0 : index
    %74 = vector.load %arg15[%c0_34, %c0_35] : memref<256x128xbf16, #tpu.memory_space<vmem>>, vector<256x128xbf16>
    %cst_36 = arith.constant dense<0.000000e+00> : vector<16x128xf32>
    %75 = tpu.matmul %73, %74, %cst_36 {dimension_numbers = #tpu.dot_dimension_numbers<[1], [0], [0], [1], [0, 0, 1, 1], [], []>} : vector<16x256xbf16>, vector<256x128xbf16>, vector<16x128xf32> -> vector<16x128xf32>
    %c0_37 = arith.constant 0 : index
    %c0_38 = arith.constant 0 : index
    %76 = vector.load %arg16[%c0_37, %c0_38] : memref<1x128xf32, #tpu.memory_space<vmem>>, vector<1x128xf32>
    %77 = vector.broadcast %76 : vector<1x128xf32> to vector<16x128xf32>
    %78 = arith.addf %75, %77 : vector<16x128xf32>
    %79 = arith.addf %78, %64 : vector<16x128xf32>
    %cst_39 = arith.constant dense<0.000000e+00> : vector<16xf32>
    %80 = vector.multi_reduction <add>, %79, %cst_39 [1] : vector<16x128xf32> to vector<16xf32>
    %81 = vector.shape_cast %80 : vector<16xf32> to vector<16x1xf32>
    %cst_40 = arith.constant 1.280000e+02 : f32
    %82 = vector.broadcast %cst_40 : f32 to vector<16x1xf32>
    %83 = arith.divf %81, %82 : vector<16x1xf32>
    %84 = vector.broadcast %83 : vector<16x1xf32> to vector<16x128xf32>
    %85 = arith.subf %79, %84 : vector<16x128xf32>
    %86 = arith.mulf %85, %85 : vector<16x128xf32>
    %cst_41 = arith.constant dense<0.000000e+00> : vector<16xf32>
    %87 = vector.multi_reduction <add>, %86, %cst_41 [1] : vector<16x128xf32> to vector<16xf32>
    %88 = vector.shape_cast %87 : vector<16xf32> to vector<16x1xf32>
    %cst_42 = arith.constant 1.280000e+02 : f32
    %89 = vector.broadcast %cst_42 : f32 to vector<16x1xf32>
    %90 = arith.divf %88, %89 : vector<16x1xf32>
    %91 = vector.broadcast %83 : vector<16x1xf32> to vector<16x128xf32>
    %92 = arith.subf %79, %91 : vector<16x128xf32>
    %cst_43 = arith.constant 9.99999974E-6 : f32
    %93 = vector.broadcast %cst_43 : f32 to vector<16x1xf32>
    %94 = arith.addf %90, %93 : vector<16x1xf32>
    %95 = math.rsqrt %94 : vector<16x1xf32>
    %96 = vector.broadcast %95 : vector<16x1xf32> to vector<16x128xf32>
    %97 = arith.mulf %92, %96 : vector<16x128xf32>
    %c0_44 = arith.constant 0 : index
    %c0_45 = arith.constant 0 : index
    %98 = vector.load %arg11[%c0_44, %c0_45] : memref<1x128xf32, #tpu.memory_space<vmem>>, vector<1x128xf32>
    %99 = vector.broadcast %98 : vector<1x128xf32> to vector<16x128xf32>
    %100 = arith.mulf %97, %99 : vector<16x128xf32>
    %c0_46 = arith.constant 0 : index
    %c0_47 = arith.constant 0 : index
    %101 = vector.load %arg12[%c0_46, %c0_47] : memref<1x128xf32, #tpu.memory_space<vmem>>, vector<1x128xf32>
    %102 = vector.broadcast %101 : vector<1x128xf32> to vector<16x128xf32>
    %103 = arith.addf %100, %102 : vector<16x128xf32>
    %c0_48 = arith.constant 0 : index
    %c0_49 = arith.constant 0 : index
    %c0_50 = arith.constant 0 : index
    %104 = vector.load %arg17[%c0_48, %c0_49, %c0_50] : memref<1x16x128xf32, #tpu.memory_space<vmem>>, vector<1x16x128xf32>
    %105 = vector.shape_cast %104 : vector<1x16x128xf32> to vector<16x128xf32>
    %106 = vector.shape_cast %103 : vector<16x128xf32> to vector<1x16x128xf32>
    tpu.vector_store %arg17[%c0_48, %c0_49, %c0_50], %106 {strides = array<i32>} : memref<1x16x128xf32, #tpu.memory_space<vmem>>, vector<1x16x128xf32>,
    return
  }
  func.func @transform_0(%arg0: i32, %arg1: i32, %arg2: memref<2xi32, #tpu.memory_space<smem>>) -> (i32, i32, i32) {
    %c0_i32 = arith.constant 0 : i32
    %c0_i32_0 = arith.constant 0 : i32
    return %arg0, %arg1, %c0_i32 : i32, i32, i32
  }
  func.func @transform_1(%arg0: i32, %arg1: i32, %arg2: memref<2xi32, #tpu.memory_space<smem>>) -> (i32, i32, i32) {
    %c0_i32 = arith.constant 0 : i32
    %c0_i32_0 = arith.constant 0 : i32
    %c0_i32_1 = arith.constant 0 : i32
    return %arg0, %c0_i32, %c0_i32_0 : i32, i32, i32
  }
  func.func @transform_2(%arg0: i32, %arg1: i32, %arg2: memref<2xi32, #tpu.memory_space<smem>>) -> (i32, i32) {
    %c0_i32 = arith.constant 0 : i32
    %c0_i32_0 = arith.constant 0 : i32
    %c0_i32_1 = arith.constant 0 : i32
    return %c0_i32, %c0_i32_0 : i32, i32
  }
  func.func @transform_3(%arg0: i32, %arg1: i32, %arg2: memref<2xi32, #tpu.memory_space<smem>>) -> (i32, i32) {
    %c0_i32 = arith.constant 0 : i32
    %c0_i32_0 = arith.constant 0 : i32
    %c0_i32_1 = arith.constant 0 : i32
    return %c0_i32, %c0_i32_0 : i32, i32
  }
  func.func @transform_4(%arg0: i32, %arg1: i32, %arg2: memref<2xi32, #tpu.memory_space<smem>>) -> (i32, i32) {
    %c0_i32 = arith.constant 0 : i32
    %c0_i32_0 = arith.constant 0 : i32
    %c0_i32_1 = arith.constant 0 : i32
    return %c0_i32, %c0_i32_0 : i32, i32
  }
  func.func @transform_5(%arg0: i32, %arg1: i32, %arg2: memref<2xi32, #tpu.memory_space<smem>>) -> (i32, i32) {
    %c0_i32 = arith.constant 0 : i32
    %c0_i32_0 = arith.constant 0 : i32
    %c0_i32_1 = arith.constant 0 : i32
    return %c0_i32, %c0_i32_0 : i32, i32
  }
  func.func @transform_6(%arg0: i32, %arg1: i32, %arg2: memref<2xi32, #tpu.memory_space<smem>>) -> (i32, i32) {
    %c0_i32 = arith.constant 0 : i32
    %c0_i32_0 = arith.constant 0 : i32
    %c0_i32_1 = arith.constant 0 : i32
    return %c0_i32, %c0_i32_0 : i32, i32
  }
  func.func @transform_7(%arg0: i32, %arg1: i32, %arg2: memref<2xi32, #tpu.memory_space<smem>>) -> (i32, i32) {
    %c0_i32 = arith.constant 0 : i32
    %c0_i32_0 = arith.constant 0 : i32
    %c0_i32_1 = arith.constant 0 : i32
    return %c0_i32, %c0_i32_0 : i32, i32
  }
  func.func @transform_8(%arg0: i32, %arg1: i32, %arg2: memref<2xi32, #tpu.memory_space<smem>>) -> (i32, i32) {
    %c0_i32 = arith.constant 0 : i32
    %c0_i32_0 = arith.constant 0 : i32
    %c0_i32_1 = arith.constant 0 : i32
    return %c0_i32, %c0_i32_0 : i32, i32
  }
  func.func @transform_9(%arg0: i32, %arg1: i32, %arg2: memref<2xi32, #tpu.memory_space<smem>>) -> (i32, i32) {
    %c0_i32 = arith.constant 0 : i32
    %c0_i32_0 = arith.constant 0 : i32
    %c0_i32_1 = arith.constant 0 : i32
    return %c0_i32, %c0_i32_0 : i32, i32
  }
  func.func @transform_10(%arg0: i32, %arg1: i32, %arg2: memref<2xi32, #tpu.memory_space<smem>>) -> (i32, i32) {
    %c0_i32 = arith.constant 0 : i32
    %c0_i32_0 = arith.constant 0 : i32
    %c0_i32_1 = arith.constant 0 : i32
    return %c0_i32, %c0_i32_0 : i32, i32
  }
  func.func @transform_11(%arg0: i32, %arg1: i32, %arg2: memref<2xi32, #tpu.memory_space<smem>>) -> (i32, i32) {
    %c0_i32 = arith.constant 0 : i32
    %c0_i32_0 = arith.constant 0 : i32
    %c0_i32_1 = arith.constant 0 : i32
    return %c0_i32, %c0_i32_0 : i32, i32
  }
  func.func @transform_12(%arg0: i32, %arg1: i32, %arg2: memref<2xi32, #tpu.memory_space<smem>>) -> (i32, i32) {
    %c0_i32 = arith.constant 0 : i32
    %c0_i32_0 = arith.constant 0 : i32
    %c0_i32_1 = arith.constant 0 : i32
    return %c0_i32, %c0_i32_0 : i32, i32
  }
  func.func @transform_13(%arg0: i32, %arg1: i32, %arg2: memref<2xi32, #tpu.memory_space<smem>>) -> (i32, i32) {
    %c0_i32 = arith.constant 0 : i32
    %c0_i32_0 = arith.constant 0 : i32
    %c0_i32_1 = arith.constant 0 : i32
    return %c0_i32, %c0_i32_0 : i32, i32
  }
  func.func @transform_14(%arg0: i32, %arg1: i32, %arg2: memref<2xi32, #tpu.memory_space<smem>>) -> (i32, i32, i32) {
    %c0_i32 = arith.constant 0 : i32
    %c0_i32_0 = arith.constant 0 : i32
    return %arg0, %arg1, %c0_i32 : i32, i32, i32
  }
}

</mosaic_0001>

<llo_original>
// kernel: tpu_custom_call.1
$region0: #{tpu_custom_call.1}
  #allocation0 [shape = 'u32[]', space=smem, size = 0x4, offset = 0x4, fixed_abs, tag = 'smem constant byte address 0x4 - core index']
  #allocation1 [shape = 'u32[144,128]{1,0:T(1,128)}', space=vmem, size = 0x12000, scoped, tag = 'internal scratch']
  #allocation2 [shape = 'bf16[4,64,32]{2,1,0:T(8,128)(2,1)}', space=vmem, size = 0x10000, scoped, tag = 'scratch operand']
  #allocation3 [shape = 'bf16[4,64,32]{2,1,0:T(8,128)(2,1)}', space=vmem, size = 0x10000, scoped, tag = 'scratch operand']
  #allocation4 [shape = 's32[1]{0}', space=sflag, size = 0x4, scoped, tag = 'scoped memory for tpu_custom_call.1']
  #allocation5 [shape = 'u8[512]{0}', space=smem, size = 0x200, scoped, tag = 'prefetched SMEM operand 0']
  %s0 = inlined_call_operand.hbm [shape: s32[2], index: 0, kind: input, shape index: {}]
  %s1 = inlined_call_operand.hbm [shape: f32[2,64,128], index: 1, kind: input, shape index: {}]
  %s2 = inlined_call_operand.hbm [shape: bf16[2,64,128], index: 2, kind: input, shape index: {}]
  %s3 = inlined_call_operand.hbm [shape: bf16[128,128], index: 3, kind: input, shape index: {}]
  %s4 = inlined_call_operand.hbm [shape: bf16[128,128], index: 4, kind: input, shape index: {}]
  %s5 = inlined_call_operand.hbm [shape: bf16[128,128], index: 5, kind: input, shape index: {}]
  %s6 = inlined_call_operand.hbm [shape: bf16[128,128], index: 6, kind: input, shape index: {}]
  %s7 = inlined_call_operand.vmem [shape: f32[1,128], index: 7, kind: input, shape index: {}]
  %s8 = inlined_call_operand.vmem [shape: f32[1,128], index: 8, kind: input, shape index: {}]
  %s9 = inlined_call_operand.vmem [shape: f32[1,128], index: 9, kind: input, shape index: {}]
  %s10 = inlined_call_operand.vmem [shape: f32[1,128], index: 10, kind: input, shape index: {}]
  %s11 = inlined_call_operand.hbm [shape: bf16[128,256], index: 11, kind: input, shape index: {}]
  %s12 = inlined_call_operand.vmem [shape: f32[1,256], index: 12, kind: input, shape index: {}]
  %s13 = inlined_call_operand.hbm [shape: bf16[256,128], index: 13, kind: input, shape index: {}]
  %s14 = inlined_call_operand.vmem [shape: f32[1,128], index: 14, kind: input, shape index: {}]
  %s15 = inlined_call_operand.hbm [shape: f32[2,64,128], index: 15, kind: output, shape index: {}]
  %s16 = sld [smem:[#allocation0]]
  $region125: #{tpu_custom_call.1} parent=0
    _
  %s18 = ssub.s32 1, %s16
  %s19 = scalar_select 0, %s18, %s16
  %21 = dma.hbm_to_smem %s0, 16, [#allocation5], [#allocation4]
  %22 = dma.done [#allocation4], 16
  %23 = sfence
  $region1: #{tpu_custom_call.1} parent=0
    #allocation6 [shape = 'u8[16384]{0}', space=vmem, size = 0x4000, scoped, tag = 'input window, operand 1']
    #allocation7 [shape = 's32[2]{0}', space=sflag, size = 0x8, scoped, tag = 'scoped memory for tpu_custom_call.1']
    #allocation8 [shape = 's32[2]{0}', space=sflag, size = 0x8, scoped, tag = 'scoped memory for tpu_custom_call.1']
    #allocation9 [shape = 'u8[32768]{0}', space=vmem, size = 0x8000, scoped, tag = 'input window, operand 2']
    #allocation10 [shape = 's32[2]{0}', space=sflag, size = 0x8, scoped, tag = 'scoped memory for tpu_custom_call.1']
    #allocation11 [shape = 'u8[32768]{0}', space=vmem, size = 0x8000, scoped, tag = 'input window, operand 3, single buffered']
    #allocation12 [shape = 'u8[32768]{0}', space=vmem, size = 0x8000, scoped, tag = 'input window, operand 4, single buffered']
    #allocation13 [shape = 's32[1]{0}', space=sflag, size = 0x4, scoped, tag = 'scoped memory for tpu_custom_call.1']
    #allocation14 [shape = 'u8[32768]{0}', space=vmem, size = 0x8000, scoped, tag = 'input window, operand 5, single buffered']
    #allocation15 [shape = 'u8[32768]{0}', space=vmem, size = 0x8000, scoped, tag = 'input window, operand 6, single buffered']
    #allocation16 [shape = 's32[1]{0}', space=sflag, size = 0x4, scoped, tag = 'scoped memory for tpu_custom_call.1']
    #allocation17 [shape = 'u8[65536]{0}', space=vmem, size = 0x10000, scoped, tag = 'input window, operand 11, single buffered']
    #allocation18 [shape = 'u8[65536]{0}', space=vmem, size = 0x10000, scoped, tag = 'input window, operand 13, single buffered']
    #allocation19 [shape = 's32[1]{0}', space=sflag, size = 0x4, scoped, tag = 'scoped memory for tpu_custom_call.1']
    #allocation20 [shape = 'u8[16384]{0}', space=vmem, size = 0x4000, scoped, tag = 'output window, operand 0']
    %24 = vsyncpa [#allocation7], 0
    %s25 = scalar_lea.sflag [#allocation7], 1
    %26 = vsyncpa %s25, 0
    %27 = vsyncpa [#allocation10], 0
    %s28 = scalar_lea.sflag [#allocation10], 1
    %29 = vsyncpa %s28, 0
    %30 = vsyncpa [#allocation13], 0
    %31 = vsyncpa [#allocation16], 0
    %32 = vsyncpa [#allocation19], 0
    %33 = vsyncpa [#allocation8], 0
    %s34 = scalar_lea.sflag [#allocation8], 1
    %35 = vsyncpa %s34, 0
    loop: start=0, step=1, limit=10
    $region2: #{tpu_custom_call.1} parent=1 // loop_pre_header
      _
    $region3: #{tpu_custom_call.1} parent=1 // loop_header
      %s37 = sphi 0, %s41
      %p38 = scmp.ge.s32.totalorder %s37, 10
      %s44 = sphi 0, %s56
      %s45 = sphi 0, %s52
      %s46 = sphi 0, %s44
      %s47 = sphi 0, %s45
      %s48 = sphi 0, %s46
      %s49 = sphi 0, %s47
      %s61 = sphi 0, %s63
      %s64 = sphi 0, %s61
      %s65 = sphi 0, %s64
      %s81 = sphi 0, %s65
      %s87 = sphi 0, %s89
      %s90 = sphi 0, %s87
      %s91 = sphi 0, %s90
      %s107 = sphi 0, %s91
      %s111 = sphi 0, %s111
      %s113 = sphi 0, %s111
      %s114 = sphi 0, %s113
      %s128 = sphi 0, %s114
      %s132 = sphi 0, %s132
      %s134 = sphi 0, %s132
      %s135 = sphi 0, %s134
      %s149 = sphi 0, %s135
      %s153 = sphi 0, %s153
      %s155 = sphi 0, %s153
      %s156 = sphi 0, %s155
      %s170 = sphi 0, %s156
      %s174 = sphi 0, %s174
      %s176 = sphi 0, %s174
      %s177 = sphi 0, %s176
      %s191 = sphi 0, %s177
      %s195 = sphi 0, %s195
      %s197 = sphi 0, %s195
      %s198 = sphi 0, %s197
      %s212 = sphi 0, %s198
      %s216 = sphi 0, %s216
      %s218 = sphi 0, %s216
      %s219 = sphi 0, %s218
      %s233 = sphi 0, %s219
      %s237 = sphi 0, %s237
      %s239 = sphi 0, %s237
      %s240 = sphi 0, %s239
      %s254 = sphi 0, %s240
      %s258 = sphi 0, %s258
      %s260 = sphi 0, %s258
      %s261 = sphi 0, %s260
      %s275 = sphi 0, %s261
      %s279 = sphi 0, %s279
      %s281 = sphi 0, %s279
      %s282 = sphi 0, %s281
      %s296 = sphi 0, %s282
      %s300 = sphi 0, %s300
      %s302 = sphi 0, %s300
      %s303 = sphi 0, %s302
      %s317 = sphi 0, %s303
      %s321 = sphi 0, %s321
      %s323 = sphi 0, %s321
      %s324 = sphi 0, %s323
      %s338 = sphi 0, %s324
      %s342 = sphi 0, %s342
      %s344 = sphi 0, %s342
      %s345 = sphi 0, %s344
      %s359 = sphi 0, %s345
      %s367 = sphi 0, %s369
      %s370 = sphi 0, %s367
      %s371 = sphi 0, %s370
      %s387 = sphi 0, %s371
    $region4: #{tpu_custom_call.1} parent=1 // loop_header_branch
      %40 = sbr.rel (%p38) target = $region8
    $region5: #{tpu_custom_call.1} parent=1 // loop_body
      %s42 = ssub.s32 %s37, 1
      %s43 = ssub.s32 %s37, 2
      %s50 = sadd.s32 1, %s45
      %p51 = scmp.ge.s32.totalorder %s50, 4
      %s52 = scalar_select %p51, 0, %s50
      %s53 = sadd.s32 1, %s44
      %s54 = scalar_select %p51, %s53, %s44
      %p55 = scmp.ge.s32.totalorder %s54, 2
      %s56 = scalar_select %p55, 0, %s54
      %s57 = ssub.s32 %s44, %s56
      %s58 = ssub.s32 %s45, %s52
      %s59 = sor.u32 %s57, %s58
      %p60 = scmp.eq.s32.totalorder %s59, 0
      %s62 = sadd.s32 %s61, 1
      %s63 = scalar_select %p60, %s61, %s62
      %p66 = pneg %p60
      %p67 = scmp.eq.s32.totalorder %s37, 7
      %p68 = por %p66, %p67
      %p69 = scmp.ne.s32.totalorder %s61, %s64
      %p70 = scmp.eq.s32.totalorder %s37, 0
      %p71 = por %p69, %p70
      %p72 = scmp.ne.s32.totalorder %s61, %s64
      %p73 = scmp.eq.s32.totalorder %s42, 7
      %p74 = por %p72, %p73
      %p75 = scmp.ne.s32.totalorder %s64, %s65
      %p76 = scmp.eq.s32.totalorder %s42, 0
      %p77 = por %p75, %p76
      %p78 = scmp.ne.s32.totalorder %s64, %s65
      %p79 = scmp.eq.s32.totalorder %s43, 7
      %p80 = por %p78, %p79
      %p82 = scmp.ne.s32.totalorder %s65, %s81
      %p83 = scmp.eq.s32.totalorder %s43, 0
      %p84 = por %p82, %p83
      %s85 = ssub.s32 %s44, %s56
      %p86 = scmp.eq.s32.totalorder %s85, 0
      %s88 = sadd.s32 %s87, 1
      %s89 = scalar_select %p86, %s87, %s88
      %p92 = pneg %p86
      %p93 = scmp.eq.s32.totalorder %s37, 7
      %p94 = por %p92, %p93
      %p95 = scmp.ne.s32.totalorder %s87, %s90
      %p96 = scmp.eq.s32.totalorder %s37, 0
      %p97 = por %p95, %p96
      %p98 = scmp.ne.s32.totalorder %s87, %s90
      %p99 = scmp.eq.s32.totalorder %s42, 7
      %p100 = por %p98, %p99
      %p101 = scmp.ne.s32.totalorder %s90, %s91
      %p102 = scmp.eq.s32.totalorder %s42, 0
      %p103 = por %p101, %p102
      %p104 = scmp.ne.s32.totalorder %s90, %s91
      %p105 = scmp.eq.s32.totalorder %s43, 7
      %p106 = por %p104, %p105
      %p108 = scmp.ne.s32.totalorder %s91, %s107
      %p109 = scmp.eq.s32.totalorder %s43, 0
      %p110 = por %p108, %p109
      %s112 = sadd.s32 %s111, 1
      %p115 = scmp.eq.s32.totalorder %s37, 7
      %p116 = scmp.ne.s32.totalorder %s111, %s113
      %p117 = scmp.eq.s32.totalorder %s37, 0
      %p118 = por %p116, %p117
      %p119 = scmp.ne.s32.totalorder %s111, %s113
      %p120 = scmp.eq.s32.totalorder %s42, 7
      %p121 = por %p119, %p120
      %p122 = scmp.ne.s32.totalorder %s113, %s114
      %p123 = scmp.eq.s32.totalorder %s42, 0
      %p124 = por %p122, %p123
      %p125 = scmp.ne.s32.totalorder %s113, %s114
      %p126 = scmp.eq.s32.totalorder %s43, 7
      %p127 = por %p125, %p126
      %p129 = scmp.ne.s32.totalorder %s114, %s128
      %p130 = scmp.eq.s32.totalorder %s43, 0
      %p131 = por %p129, %p130
      %s133 = sadd.s32 %s132, 1
      %p136 = scmp.eq.s32.totalorder %s37, 7
      %p137 = scmp.ne.s32.totalorder %s132, %s134
      %p138 = scmp.eq.s32.totalorder %s37, 0
      %p139 = por %p137, %p138
      %p140 = scmp.ne.s32.totalorder %s132, %s134
      %p141 = scmp.eq.s32.totalorder %s42, 7
      %p142 = por %p140, %p141
      %p143 = scmp.ne.s32.totalorder %s134, %s135
      %p144 = scmp.eq.s32.totalorder %s42, 0
      %p145 = por %p143, %p144
      %p146 = scmp.ne.s32.totalorder %s134, %s135
      %p147 = scmp.eq.s32.totalorder %s43, 7
      %p148 = por %p146, %p147
      %p150 = scmp.ne.s32.totalorder %s135, %s149
      %p151 = scmp.eq.s32.totalorder %s43, 0
      %p152 = por %p150, %p151
      %s154 = sadd.s32 %s153, 1
      %p157 = scmp.eq.s32.totalorder %s37, 7
      %p158 = scmp.ne.s32.totalorder %s153, %s155
      %p159 = scmp.eq.s32.totalorder %s37, 0
      %p160 = por %p158, %p159
      %p161 = scmp.ne.s32.totalorder %s153, %s155
      %p162 = scmp.eq.s32.totalorder %s42, 7
      %p163 = por %p161, %p162
      %p164 = scmp.ne.s32.totalorder %s155, %s156
      %p165 = scmp.eq.s32.totalorder %s42, 0
      %p166 = por %p164, %p165
      %p167 = scmp.ne.s32.totalorder %s155, %s156
      %p168 = scmp.eq.s32.totalorder %s43, 7
      %p169 = por %p167, %p168
      %p171 = scmp.ne.s32.totalorder %s156, %s170
      %p172 = scmp.eq.s32.totalorder %s43, 0
      %p173 = por %p171, %p172
      %s175 = sadd.s32 %s174, 1
      %p178 = scmp.eq.s32.totalorder %s37, 7
      %p179 = scmp.ne.s32.totalorder %s174, %s176
      %p180 = scmp.eq.s32.totalorder %s37, 0
      %p181 = por %p179, %p180
      %p182 = scmp.ne.s32.totalorder %s174, %s176
      %p183 = scmp.eq.s32.totalorder %s42, 7
      %p184 = por %p182, %p183
      %p185 = scmp.ne.s32.totalorder %s176, %s177
      %p186 = scmp.eq.s32.totalorder %s42, 0
      %p187 = por %p185, %p186
      %p188 = scmp.ne.s32.totalorder %s176, %s177
      %p189 = scmp.eq.s32.totalorder %s43, 7
      %p190 = por %p188, %p189
      %p192 = scmp.ne.s32.totalorder %s177, %s191
      %p193 = scmp.eq.s32.totalorder %s43, 0
      %p194 = por %p192, %p193
      %s196 = sadd.s32 %s195, 1
      %p199 = scmp.eq.s32.totalorder %s37, 7
      %p200 = scmp.ne.s32.totalorder %s195, %s197
      %p201 = scmp.eq.s32.totalorder %s37, 0
      %p202 = por %p200, %p201
      %p203 = scmp.ne.s32.totalorder %s195, %s197
      %p204 = scmp.eq.s32.totalorder %s42, 7
      %p205 = por %p203, %p204
      %p206 = scmp.ne.s32.totalorder %s197, %s198
      %p207 = scmp.eq.s32.totalorder %s42, 0
      %p208 = por %p206, %p207
      %p209 = scmp.ne.s32.totalorder %s197, %s198
      %p210 = scmp.eq.s32.totalorder %s43, 7
      %p211 = por %p209, %p210
      %p213 = scmp.ne.s32.totalorder %s198, %s212
      %p214 = scmp.eq.s32.totalorder %s43, 0
      %p215 = por %p213, %p214
      %s217 = sadd.s32 %s216, 1
      %p220 = scmp.eq.s32.totalorder %s37, 7
      %p221 = scmp.ne.s32.totalorder %s216, %s218
      %p222 = scmp.eq.s32.totalorder %s37, 0
      %p223 = por %p221, %p222
      %p224 = scmp.ne.s32.totalorder %s216, %s218
      %p225 = scmp.eq.s32.totalorder %s42, 7
      %p226 = por %p224, %p225
      %p227 = scmp.ne.s32.totalorder %s218, %s219
      %p228 = scmp.eq.s32.totalorder %s42, 0
      %p229 = por %p227, %p228
      %p230 = scmp.ne.s32.totalorder %s218, %s219
      %p231 = scmp.eq.s32.totalorder %s43, 7
      %p232 = por %p230, %p231
      %p234 = scmp.ne.s32.totalorder %s219, %s233
      %p235 = scmp.eq.s32.totalorder %s43, 0
      %p236 = por %p234, %p235
      %s238 = sadd.s32 %s237, 1
      %p241 = scmp.eq.s32.totalorder %s37, 7
      %p242 = scmp.ne.s32.totalorder %s237, %s239
      %p243 = scmp.eq.s32.totalorder %s37, 0
      %p244 = por %p242, %p243
      %p245 = scmp.ne.s32.totalorder %s237, %s239
      %p246 = scmp.eq.s32.totalorder %s42, 7
      %p247 = por %p245, %p246
      %p248 = scmp.ne.s32.totalorder %s239, %s240
      %p249 = scmp.eq.s32.totalorder %s42, 0
      %p250 = por %p248, %p249
      %p251 = scmp.ne.s32.totalorder %s239, %s240
      %p252 = scmp.eq.s32.totalorder %s43, 7
      %p253 = por %p251, %p252
      %p255 = scmp.ne.s32.totalorder %s240, %s254
      %p256 = scmp.eq.s32.totalorder %s43, 0
      %p257 = por %p255, %p256
      %s259 = sadd.s32 %s258, 1
      %p262 = scmp.eq.s32.totalorder %s37, 7
      %p263 = scmp.ne.s32.totalorder %s258, %s260
      %p264 = scmp.eq.s32.totalorder %s37, 0
      %p265 = por %p263, %p264
      %p266 = scmp.ne.s32.totalorder %s258, %s260
      %p267 = scmp.eq.s32.totalorder %s42, 7
      %p268 = por %p266, %p267
      %p269 = scmp.ne.s32.totalorder %s260, %s261
      %p270 = scmp.eq.s32.totalorder %s42, 0
      %p271 = por %p269, %p270
      %p272 = scmp.ne.s32.totalorder %s260, %s261
      %p273 = scmp.eq.s32.totalorder %s43, 7
      %p274 = por %p272, %p273
      %p276 = scmp.ne.s32.totalorder %s261, %s275
      %p277 = scmp.eq.s32.totalorder %s43, 0
      %p278 = por %p276, %p277
      %s280 = sadd.s32 %s279, 1
      %p283 = scmp.eq.s32.totalorder %s37, 7
      %p284 = scmp.ne.s32.totalorder %s279, %s281
      %p285 = scmp.eq.s32.totalorder %s37, 0
      %p286 = por %p284, %p285
      %p287 = scmp.ne.s32.totalorder %s279, %s281
      %p288 = scmp.eq.s32.totalorder %s42, 7
      %p289 = por %p287, %p288
      %p290 = scmp.ne.s32.totalorder %s281, %s282
      %p291 = scmp.eq.s32.totalorder %s42, 0
      %p292 = por %p290, %p291
      %p293 = scmp.ne.s32.totalorder %s281, %s282
      %p294 = scmp.eq.s32.totalorder %s43, 7
      %p295 = por %p293, %p294
      %p297 = scmp.ne.s32.totalorder %s282, %s296
      %p298 = scmp.eq.s32.totalorder %s43, 0
      %p299 = por %p297, %p298
      %s301 = sadd.s32 %s300, 1
      %p304 = scmp.eq.s32.totalorder %s37, 7
      %p305 = scmp.ne.s32.totalorder %s300, %s302
      %p306 = scmp.eq.s32.totalorder %s37, 0
      %p307 = por %p305, %p306
      %p308 = scmp.ne.s32.totalorder %s300, %s302
      %p309 = scmp.eq.s32.totalorder %s42, 7
      %p310 = por %p308, %p309
      %p311 = scmp.ne.s32.totalorder %s302, %s303
      %p312 = scmp.eq.s32.totalorder %s42, 0
      %p313 = por %p311, %p312
      %p314 = scmp.ne.s32.totalorder %s302, %s303
      %p315 = scmp.eq.s32.totalorder %s43, 7
      %p316 = por %p314, %p315
      %p318 = scmp.ne.s32.totalorder %s303, %s317
      %p319 = scmp.eq.s32.totalorder %s43, 0
      %p320 = por %p318, %p319
      %s322 = sadd.s32 %s321, 1
      %p325 = scmp.eq.s32.totalorder %s37, 7
      %p326 = scmp.ne.s32.totalorder %s321, %s323
      %p327 = scmp.eq.s32.totalorder %s37, 0
      %p328 = por %p326, %p327
      %p329 = scmp.ne.s32.totalorder %s321, %s323
      %p330 = scmp.eq.s32.totalorder %s42, 7
      %p331 = por %p329, %p330
      %p332 = scmp.ne.s32.totalorder %s323, %s324
      %p333 = scmp.eq.s32.totalorder %s42, 0
      %p334 = por %p332, %p333
      %p335 = scmp.ne.s32.totalorder %s323, %s324
      %p336 = scmp.eq.s32.totalorder %s43, 7
      %p337 = por %p335, %p336
      %p339 = scmp.ne.s32.totalorder %s324, %s338
      %p340 = scmp.eq.s32.totalorder %s43, 0
      %p341 = por %p339, %p340
      %s343 = sadd.s32 %s342, 1
      %p346 = scmp.eq.s32.totalorder %s37, 7
      %p347 = scmp.ne.s32.totalorder %s342, %s344
      %p348 = scmp.eq.s32.totalorder %s37, 0
      %p349 = por %p347, %p348
      %p350 = scmp.ne.s32.totalorder %s342, %s344
      %p351 = scmp.eq.s32.totalorder %s42, 7
      %p352 = por %p350, %p351
      %p353 = scmp.ne.s32.totalorder %s344, %s345
      %p354 = scmp.eq.s32.totalorder %s42, 0
      %p355 = por %p353, %p354
      %p356 = scmp.ne.s32.totalorder %s344, %s345
      %p357 = scmp.eq.s32.totalorder %s43, 7
      %p358 = por %p356, %p357
      %p360 = scmp.ne.s32.totalorder %s345, %s359
      %p361 = scmp.eq.s32.totalorder %s43, 0
      %p362 = por %p360, %p361
      %s363 = ssub.s32 %s44, %s56
      %s364 = ssub.s32 %s45, %s52
      %s365 = sor.u32 %s363, %s364
      %p366 = scmp.eq.s32.totalorder %s365, 0
      %s368 = sadd.s32 %s367, 1
      %s369 = scalar_select %p366, %s367, %s368
      %p372 = pneg %p366
      %p373 = scmp.eq.s32.totalorder %s37, 7
      %p374 = por %p372, %p373
      %p375 = scmp.ne.s32.totalorder %s367, %s370
      %p376 = scmp.eq.s32.totalorder %s37, 0
      %p377 = por %p375, %p376
      %p378 = scmp.ne.s32.totalorder %s367, %s370
      %p379 = scmp.eq.s32.totalorder %s42, 7
      %p380 = por %p378, %p379
      %p381 = scmp.ne.s32.totalorder %s370, %s371
      %p382 = scmp.eq.s32.totalorder %s42, 0
      %p383 = por %p381, %p382
      %p384 = scmp.ne.s32.totalorder %s370, %s371
      %p385 = scmp.eq.s32.totalorder %s43, 7
      %p386 = por %p384, %p385
      %p388 = scmp.ne.s32.totalorder %s371, %s387
      %p389 = scmp.eq.s32.totalorder %s43, 0
      %p390 = por %p388, %p389
      %p391 = scmp.le.s32.totalorder 1, %s37
      %p392 = scmp.lt.s32.totalorder %s37, 9
      %p393 = pnand %p391, %p392
      %p394 = pneg %p393
      // Predicated region
      $region9: #{tpu_custom_call.1} parent=5 // pred_check
        _
      $region10: #{tpu_custom_call.1} parent=5 // pred_check_branch
        %396 = sbr.rel (%p393) target = $region12
      $region11: #{tpu_custom_call.1} parent=5 // pred_region
        %s397 = ssub.s32 %s37, 1
        // Predicated region
        $region13: #{tpu_custom_call.1} parent=11 // pred_check
          %p398 = pneg %p124
        $region14: #{tpu_custom_call.1} parent=11 // pred_check_branch
          %400 = sbr.rel (%p398) target = $region16
        $region15: #{tpu_custom_call.1} parent=11 // pred_region
          %s402 = ssub.s32 1024, 1024
          %403 = vsyncadd [#allocation10], %s402
          %s404 = sshll.u32 [#allocation11], 4
          %s405 = int_to_ptr.vmem [resolvable:$true] %s404
          %410 = dma.hbm_to_vmem [thread:$0]  %s3, 1024, %s405, [#allocation10], 64, 64, 4
        $region16: #{tpu_custom_call.1} parent=11 // pred_fallthru
          _
        // Predicated region
        $region17: #{tpu_custom_call.1} parent=11 // pred_check
          %p411 = pneg %p145
        $region18: #{tpu_custom_call.1} parent=11 // pred_check_branch
          %413 = sbr.rel (%p411) target = $region20
        $region19: #{tpu_custom_call.1} parent=11 // pred_region
          %s415 = ssub.s32 1024, 1024
          %416 = vsyncadd [#allocation13], %s415
          %s417 = sshll.u32 [#allocation12], 4
          %s418 = int_to_ptr.vmem [resolvable:$true] %s417
          %423 = dma.hbm_to_vmem [thread:$0]  %s4, 1024, %s418, [#allocation13], 64, 64, 4
        $region20: #{tpu_custom_call.1} parent=11 // pred_fallthru
          _
        // Predicated region
        $region21: #{tpu_custom_call.1} parent=11 // pred_check
          %p424 = pneg %p166
        $region22: #{tpu_custom_call.1} parent=11 // pred_check_branch
          %426 = sbr.rel (%p424) target = $region24
        $region23: #{tpu_custom_call.1} parent=11 // pred_region
          %s428 = ssub.s32 1024, 1024
          %429 = vsyncadd [#allocation13], %s428
          %s430 = sshll.u32 [#allocation14], 4
          %s431 = int_to_ptr.vmem [resolvable:$true] %s430
          %436 = dma.hbm_to_vmem [thread:$0]  %s5, 1024, %s431, [#allocation13], 64, 64, 4
        $region24: #{tpu_custom_call.1} parent=11 // pred_fallthru
          _
        // Predicated region
        $region25: #{tpu_custom_call.1} parent=11 // pred_check
          %p437 = pneg %p187
        $region26: #{tpu_custom_call.1} parent=11 // pred_check_branch
          %439 = sbr.rel (%p437) target = $region28
        $region27: #{tpu_custom_call.1} parent=11 // pred_region
          %s441 = ssub.s32 1024, 1024
          %442 = vsyncadd [#allocation16], %s441
          %s443 = sshll.u32 [#allocation15], 4
          %s444 = int_to_ptr.vmem [resolvable:$true] %s443
          %449 = dma.hbm_to_vmem [thread:$0]  %s6, 1024, %s444, [#allocation16], 64, 64, 4
        $region28: #{tpu_custom_call.1} parent=11 // pred_fallthru
          _
        // Predicated region
        $region29: #{tpu_custom_call.1} parent=11 // pred_check
          %p450 = pneg %p208
        $region30: #{tpu_custom_call.1} parent=11 // pred_check_branch
          %452 = sbr.rel (%p450) target = $region32
        $region31: #{tpu_custom_call.1} parent=11 // pred_region
          _
        $region32: #{tpu_custom_call.1} parent=11 // pred_fallthru
          _
        // Predicated region
        $region33: #{tpu_custom_call.1} parent=11 // pred_check
          %p453 = pneg %p229
        $region34: #{tpu_custom_call.1} parent=11 // pred_check_branch
          %455 = sbr.rel (%p453) target = $region36
        $region35: #{tpu_custom_call.1} parent=11 // pred_region
          _
        $region36: #{tpu_custom_call.1} parent=11 // pred_fallthru
          _
        // Predicated region
        $region37: #{tpu_custom_call.1} parent=11 // pred_check
          %p456 = pneg %p250
        $region38: #{tpu_custom_call.1} parent=11 // pred_check_branch
          %458 = sbr.rel (%p456) target = $region40
        $region39: #{tpu_custom_call.1} parent=11 // pred_region
          _
        $region40: #{tpu_custom_call.1} parent=11 // pred_fallthru
          _
        // Predicated region
        $region41: #{tpu_custom_call.1} parent=11 // pred_check
          %p459 = pneg %p271
        $region42: #{tpu_custom_call.1} parent=11 // pred_check_branch
          %461 = sbr.rel (%p459) target = $region44
        $region43: #{tpu_custom_call.1} parent=11 // pred_region
          _
        $region44: #{tpu_custom_call.1} parent=11 // pred_fallthru
          _
        // Predicated region
        $region45: #{tpu_custom_call.1} parent=11 // pred_check
          %p462 = pneg %p292
        $region46: #{tpu_custom_call.1} parent=11 // pred_check_branch
          %464 = sbr.rel (%p462) target = $region48
        $region47: #{tpu_custom_call.1} parent=11 // pred_region
          %s466 = ssub.s32 2048, 2048
          %467 = vsyncadd [#allocation16], %s466
          %s468 = sshll.u32 [#allocation17], 4
          %s469 = int_to_ptr.vmem [resolvable:$true] %s468
          %474 = dma.hbm_to_vmem [thread:$0]  %s11, 2048, %s469, [#allocation16], 128, 128, 8
        $region48: #{tpu_custom_call.1} parent=11 // pred_fallthru
          _
        // Predicated region
        $region49: #{tpu_custom_call.1} parent=11 // pred_check
          %p475 = pneg %p313
        $region50: #{tpu_custom_call.1} parent=11 // pred_check_branch
          %477 = sbr.rel (%p475) target = $region52
        $region51: #{tpu_custom_call.1} parent=11 // pred_region
          _
        $region52: #{tpu_custom_call.1} parent=11 // pred_fallthru
          _
        // Predicated region
        $region53: #{tpu_custom_call.1} parent=11 // pred_check
          %p478 = pneg %p334
        $region54: #{tpu_custom_call.1} parent=11 // pred_check_branch
          %480 = sbr.rel (%p478) target = $region56
        $region55: #{tpu_custom_call.1} parent=11 // pred_region
          %s482 = ssub.s32 2048, 2048
          %483 = vsyncadd [#allocation19], %s482
          %s484 = sshll.u32 [#allocation18], 4
          %s485 = int_to_ptr.vmem [resolvable:$true] %s484
          %490 = dma.hbm_to_vmem [thread:$0]  %s13, 2048, %s485, [#allocation19], 64, 64, 4
        $region56: #{tpu_custom_call.1} parent=11 // pred_fallthru
          _
        // Predicated region
        $region57: #{tpu_custom_call.1} parent=11 // pred_check
          %p491 = pneg %p355
        $region58: #{tpu_custom_call.1} parent=11 // pred_check_branch
          %493 = sbr.rel (%p491) target = $region60
        $region59: #{tpu_custom_call.1} parent=11 // pred_region
          _
        $region60: #{tpu_custom_call.1} parent=11 // pred_fallthru
          _
      $region12: #{tpu_custom_call.1} parent=5 // pred_fallthru
        _
      %p494 = scmp.lt.s32.totalorder %s37, 8
      // Predicated region
      $region61: #{tpu_custom_call.1} parent=5 // pred_check
        %p495 = pneg %p494
      $region62: #{tpu_custom_call.1} parent=5 // pred_check_branch
        %497 = sbr.rel (%p495) target = $region64
      $region63: #{tpu_custom_call.1} parent=5 // pred_region
        // Predicated region
        $region65: #{tpu_custom_call.1} parent=63 // pred_check
          %p498 = pneg %p71
        $region66: #{tpu_custom_call.1} parent=63 // pred_check_branch
          %500 = sbr.rel (%p498) target = $region68
        $region67: #{tpu_custom_call.1} parent=63 // pred_region
          %s501 = sand.u32 %s61, 1
          %s502 = scalar_lea.sflag [#allocation7], %s501
          %s503 = sand.u32 %s61, 1
          %s504 = smul.addr %s503, 16
          %s505 = scalar_lea.vmem [#allocation6], %s504
          %s506 = smul.u32 2, %s45
          %s508 = ssub.s32 256, 256
          %509 = vsyncadd %s502, %s508
          %s510 = smul.addr %s44, 8
          %s511 = sadd.s32 %s506, %s510
          %s512 = smul.addr %s511, 128
          %s513 = scalar_lea.hbm %s1, %s512
          %s514 = sshll.u32 %s505, 4
          %s515 = int_to_ptr.vmem [resolvable:$true] %s514
          %520 = dma.hbm_to_vmem [thread:$0]  %s513, 256, %s515, %s502, 128, 128, 8
        $region68: #{tpu_custom_call.1} parent=63 // pred_fallthru
          _
        // Predicated region
        $region69: #{tpu_custom_call.1} parent=63 // pred_check
          %p521 = pneg %p97
        $region70: #{tpu_custom_call.1} parent=63 // pred_check_branch
          %523 = sbr.rel (%p521) target = $region72
        $region71: #{tpu_custom_call.1} parent=63 // pred_region
          %s524 = sand.u32 %s37, 1
          %s525 = scalar_lea.sflag [#allocation10], %s524
          %s526 = sand.u32 %s87, 1
          %s527 = smul.addr %s526, 32
          %s528 = scalar_lea.vmem [#allocation9], %s527
          %s530 = ssub.s32 512, 512
          %531 = vsyncadd %s525, %s530
          %s532 = smul.addr %s44, 8
          %s533 = smul.addr %s532, 64
          %s534 = scalar_lea.hbm %s2, %s533
          %s535 = sshll.u32 %s528, 4
          %s536 = int_to_ptr.vmem [resolvable:$true] %s535
          %541 = dma.hbm_to_vmem [thread:$0]  %s534, 512, %s536, %s525, 64, 64, 4
        $region72: #{tpu_custom_call.1} parent=63 // pred_fallthru
          _
      $region64: #{tpu_custom_call.1} parent=5 // pred_fallthru
        _
      %p542 = scmp.le.s32.totalorder 1, %s37
      %p543 = scmp.lt.s32.totalorder %s37, 9
      %p544 = pnand %p542, %p543
      %p545 = pneg %p544
      // Predicated region
      $region73: #{tpu_custom_call.1} parent=5 // pred_check
        _
      $region74: #{tpu_custom_call.1} parent=5 // pred_check_branch
        %547 = sbr.rel (%p544) target = $region76
      $region75: #{tpu_custom_call.1} parent=5 // pred_region
        %s548 = ssub.s32 %s37, 1
        %s549 = sand.u32 %s64, 1
        %s550 = scalar_lea.sflag [#allocation7], %s549
        %s551 = sand.u32 %s64, 1
        %s552 = smul.addr %s551, 16
        %s553 = scalar_lea.vmem [#allocation6], %s552
        // Predicated region
        $region77: #{tpu_custom_call.1} parent=75 // pred_check
          %p554 = pneg %p77
        $region78: #{tpu_custom_call.1} parent=75 // pred_check_branch
          %556 = sbr.rel (%p554) target = $region80
        $region79: #{tpu_custom_call.1} parent=75 // pred_region
          %557 = dma.done %s550, 256
        $region80: #{tpu_custom_call.1} parent=75 // pred_fallthru
          _
        %s558 = sand.u32 %s42, 1
        %s559 = scalar_lea.sflag [#allocation10], %s558
        %s560 = sand.u32 %s90, 1
        %s561 = smul.addr %s560, 32
        %s562 = scalar_lea.vmem [#allocation9], %s561
        // Predicated region
        $region81: #{tpu_custom_call.1} parent=75 // pred_check
          %p563 = pneg %p103
        $region82: #{tpu_custom_call.1} parent=75 // pred_check_branch
          %565 = sbr.rel (%p563) target = $region84
        $region83: #{tpu_custom_call.1} parent=75 // pred_region
          %566 = dma.done %s559, 512
        $region84: #{tpu_custom_call.1} parent=75 // pred_fallthru
          _
        // Predicated region
        $region85: #{tpu_custom_call.1} parent=75 // pred_check
          %p567 = pneg %p124
        $region86: #{tpu_custom_call.1} parent=75 // pred_check_branch
          %569 = sbr.rel (%p567) target = $region88
        $region87: #{tpu_custom_call.1} parent=75 // pred_region
          %570 = dma.done [#allocation10], 1024
        $region88: #{tpu_custom_call.1} parent=75 // pred_fallthru
          _
        // Predicated region
        $region89: #{tpu_custom_call.1} parent=75 // pred_check
          %p571 = pneg %p145
        $region90: #{tpu_custom_call.1} parent=75 // pred_check_branch
          %573 = sbr.rel (%p571) target = $region92
        $region91: #{tpu_custom_call.1} parent=75 // pred_region
          %574 = dma.done [#allocation13], 1024
        $region92: #{tpu_custom_call.1} parent=75 // pred_fallthru
          _
        // Predicated region
        $region93: #{tpu_custom_call.1} parent=75 // pred_check
          %p575 = pneg %p166
        $region94: #{tpu_custom_call.1} parent=75 // pred_check_branch
          %577 = sbr.rel (%p575) target = $region96
        $region95: #{tpu_custom_call.1} parent=75 // pred_region
          %578 = dma.done [#allocation13], 1024
        $region96: #{tpu_custom_call.1} parent=75 // pred_fallthru
          _
        // Predicated region
        $region97: #{tpu_custom_call.1} parent=75 // pred_check
          %p579 = pneg %p187
        $region98: #{tpu_custom_call.1} parent=75 // pred_check_branch
          %581 = sbr.rel (%p579) target = $region100
        $region99: #{tpu_custom_call.1} parent=75 // pred_region
          %582 = dma.done [#allocation16], 1024
        $region100: #{tpu_custom_call.1} parent=75 // pred_fallthru
          _
        // Predicated region
        $region101: #{tpu_custom_call.1} parent=75 // pred_check
          %p583 = pneg %p292
        $region102: #{tpu_custom_call.1} parent=75 // pred_check_branch
          %585 = sbr.rel (%p583) target = $region104
        $region103: #{tpu_custom_call.1} parent=75 // pred_region
          %586 = dma.done [#allocation16], 2048
        $region104: #{tpu_custom_call.1} parent=75 // pred_fallthru
          _
        // Predicated region
        $region105: #{tpu_custom_call.1} parent=75 // pred_check
          %p587 = pneg %p334
        $region106: #{tpu_custom_call.1} parent=75 // pred_check_branch
          %589 = sbr.rel (%p587) target = $region108
        $region107: #{tpu_custom_call.1} parent=75 // pred_region
          %590 = dma.done [#allocation19], 2048
        $region108: #{tpu_custom_call.1} parent=75 // pred_fallthru
          _
        %s591 = sand.u32 %s64, 1
        %s592 = scalar_lea.sflag [#allocation7], %s591
        %s593 = sand.u32 %s64, 1
        %s594 = smul.addr %s593, 16
        %s595 = scalar_lea.vmem [#allocation6], %s594
        %p596 = pneg %p77
        %p597 = pneg %p74
        %s598 = sand.u32 %s42, 1
        %s599 = scalar_lea.sflag [#allocation10], %s598
        %s600 = sand.u32 %s90, 1
        %s601 = smul.addr %s600, 32
        %s602 = scalar_lea.vmem [#allocation9], %s601
        %p603 = pneg %p103
        %p604 = pneg %p100
        %p605 = pneg %p124
        %p606 = pneg %p121
        %p607 = pneg %p145
        %p608 = pneg %p142
        %p609 = pneg %p166
        %p610 = pneg %p163
        %p611 = pneg %p187
        %p612 = pneg %p184
        %p613 = pneg %p208
        %p614 = pneg %p205
        %p615 = pneg %p229
        %p616 = pneg %p226
        %p617 = pneg %p250
        %p618 = pneg %p247
        %p619 = pneg %p271
        %p620 = pneg %p268
        %p621 = pneg %p292
        %p622 = pneg %p289
        %p623 = pneg %p313
        %p624 = pneg %p310
        %p625 = pneg %p334
        %p626 = pneg %p331
        %p627 = pneg %p355
        %p628 = pneg %p352
        %p629 = pneg %p383
        %p630 = pneg %p380
        %s631 = sand.u32 %s370, 1
        %s632 = scalar_lea.sflag [#allocation8], %s631
        %s633 = sand.u32 %s370, 1
        %s634 = smul.addr %s633, 16
        %s635 = scalar_lea.vmem [#allocation20], %s634
        %s636 = smul.u32 2, %s47
        %s637 = smul.u32 2, %s47
        %p639 = scmp.eq.s32.totalorder %s47, 0
        // Predicated region
        $region109: #{tpu_custom_call.1} parent=75 // pred_check
          %p640 = pneg %p639
        $region110: #{tpu_custom_call.1} parent=75 // pred_check_branch
          %642 = sbr.rel (%p640) target = $region112
        $region111: #{tpu_custom_call.1} parent=75 // pred_region
          %v643 = vld [vmem:[%s562] sm:$0xf]
          %v644 = vld [vmem:[%s562 + $0x4] sm:$0xf]
          %v645 = vld [vmem:[%s562 + $0x8] sm:$0xf]
          %v646 = vld [vmem:[%s562 + $0xc] sm:$0xf]
          %v647 = vld [vmem:[%s562 + $0x10] sm:$0xf]
          %v648 = vld [vmem:[%s562 + $0x14] sm:$0xf]
          %v649 = vld [vmem:[%s562 + $0x18] sm:$0xf]
          %v650 = vld [vmem:[%s562 + $0x1c] sm:$0xf]
          %v651 = vld [vmem:[#allocation12] sm:$0xf]
          %v652 = vld [vmem:[#allocation12 + $0x4] sm:$0xf]
          %v653 = vld [vmem:[#allocation12 + $0x8] sm:$0xf]
          %v654 = vld [vmem:[#allocation12 + $0xc] sm:$0xf]
          %v655 = vld [vmem:[#allocation12 + $0x10] sm:$0xf]
          %v656 = vld [vmem:[#allocation12 + $0x14] sm:$0xf]
          %v657 = vld [vmem:[#allocation12 + $0x18] sm:$0xf]
          %v658 = vld [vmem:[#allocation12 + $0x1c] sm:$0xf]
          %v659 = vld [vmem:[#allocation12 + $0x20] sm:$0xf]
          %v660 = vld [vmem:[#allocation12 + $0x24] sm:$0xf]
          %v661 = vld [vmem:[#allocation12 + $0x28] sm:$0xf]
          %v662 = vld [vmem:[#allocation12 + $0x2c] sm:$0xf]
          %v663 = vld [vmem:[#allocation12 + $0x30] sm:$0xf]
          %v664 = vld [vmem:[#allocation12 + $0x34] sm:$0xf]
          %v665 = vld [vmem:[#allocation12 + $0x38] sm:$0xf]
          %v666 = vld [vmem:[#allocation12 + $0x3c] sm:$0xf]
          %v675 = vunpack.c.l.b16 %v643
          %v676 = vunpack.c.l.b16 %v644
          %v677 = vunpack.c.l.b16 %v645
          %v678 = vunpack.c.l.b16 %v646
          %v679 = vunpack.c.l.b16 %v647
          %v680 = vunpack.c.l.b16 %v648
          %v681 = vunpack.c.l.b16 %v649
          %v682 = vunpack.c.l.b16 %v650
          %v683 = vpack.c.b16 %v676, %v675
          %v684 = vpack.c.b16 %v678, %v677
          %v685 = vpack.c.b16 %v680, %v679
          %v686 = vpack.c.b16 %v682, %v681
          %v707 = vunpack.c.l.b16 %v651
          %v708 = vunpack.c.l.b16 %v652
          %v709 = vunpack.c.l.b16 %v653
          %v710 = vunpack.c.l.b16 %v654
          %v711 = vunpack.c.l.b16 %v655
          %v712 = vunpack.c.l.b16 %v656
          %v713 = vunpack.c.l.b16 %v657
          %v714 = vunpack.c.l.b16 %v658
          %v715 = vunpack.c.l.b16 %v659
          %v716 = vunpack.c.l.b16 %v660
          %v717 = vunpack.c.l.b16 %v661
          %v718 = vunpack.c.l.b16 %v662
          %v719 = vunpack.c.l.b16 %v663
          %v720 = vunpack.c.l.b16 %v664
          %v721 = vunpack.c.l.b16 %v665
          %v722 = vunpack.c.l.b16 %v666
          %v723 = vpack.c.b16 %v708, %v707
          %v724 = vpack.c.b16 %v710, %v709
          %v725 = vpack.c.b16 %v712, %v711
          %v726 = vpack.c.b16 %v714, %v713
          %v727 = vpack.c.b16 %v716, %v715
          %v728 = vpack.c.b16 %v718, %v717
          %v729 = vpack.c.b16 %v720, %v719
          %v730 = vpack.c.b16 %v722, %v721
          %739 = vmatprep.subr.bf16.mxu0 0
          %740 = vmatpush1.bf16.msra.mxu0 %v730
          %741 = vmatprep.subr.bf16.mxu0 0
          %742 = vmatpush1.bf16.msra.mxu0 %v729
          %743 = vmatprep.subr.bf16.mxu0 0
          %744 = vmatpush1.bf16.msra.mxu0 %v728
          %745 = vmatprep.subr.bf16.mxu0 0
          %746 = vmatpush1.bf16.msra.mxu0 %v727
          %747 = vmatprep.subr.bf16.mxu0 0
          %748 = vmatpush1.bf16.msra.mxu0 %v726
          %749 = vmatprep.subr.bf16.mxu0 0
          %750 = vmatpush1.bf16.msra.mxu0 %v725
          %751 = vmatprep.subr.bf16.mxu0 0
          %752 = vmatpush1.bf16.msra.mxu0 %v724
          %753 = vmatprep.subr.bf16.mxu0 0
          %754 = vmatpush1.bf16.msra.mxu0 %v723
          %755 = vmatprep.subr.bf16.mxu0 0
          %756 = vmatpush2.bf16.msra.mxu0 0
          %757 = vmatprep.subr.bf16.mxu0 0
          %758 = vmatpush2.bf16.msra.mxu0 0
          %759 = vmatprep.subr.bf16.mxu0 0
          %760 = vmatpush2.bf16.msra.mxu0 0
          %761 = vmatprep.subr.bf16.mxu0 0
          %762 = vmatpush2.bf16.msra.mxu0 0
          %763 = vmatprep.subr.bf16.mxu0 0
          %764 = vmatpush2.bf16.msra.mxu0 0
          %765 = vmatprep.subr.bf16.mxu0 0
          %766 = vmatpush2.bf16.msra.mxu0 0
          %767 = vmatprep.subr.bf16.mxu0 0
          %768 = vmatpush2.bf16.msra.mxu0 0
          %769 = vmatprep.subr.bf16.mxu0 0
          %770 = vmatpush2.bf16.msra.mxu0 0
          %771 = vmatprep.mubr.bf16.mxu0 0
          %772 = vmatmul.mubr.bf16.gmra.mxu0 %v683
          %v773 = vpop.f32.mrf.mxu0
          %v774 = vadd.f32 0.0, %v773
          %v775 = vpop.f32.mrf.mxu0
          %v776 = vpop.f32.mrf.mxu0
          %v777 = vadd.f32 0.0, %v776
          %v778 = vpop.f32.mrf.mxu0
          %779 = vmatprep.mubr.bf16.mxu0 0
          %780 = vmatmul.mubr.bf16.gmra.mxu0 %v684
          %v781 = vpop.f32.mrf.mxu0
          %v782 = vadd.f32 0.0, %v781
          %v783 = vpop.f32.mrf.mxu0
          %v784 = vpop.f32.mrf.mxu0
          %v785 = vadd.f32 0.0, %v784
          %v786 = vpop.f32.mrf.mxu0
          %787 = vmatprep.mubr.bf16.mxu0 0
          %788 = vmatmul.mubr.bf16.gmra.mxu0 %v685
          %v789 = vpop.f32.mrf.mxu0
          %v790 = vadd.f32 0.0, %v789
          %v791 = vpop.f32.mrf.mxu0
          %v792 = vpop.f32.mrf.mxu0
          %v793 = vadd.f32 0.0, %v792
          %v794 = vpop.f32.mrf.mxu0
          %795 = vmatprep.mubr.bf16.mxu0 0
          %796 = vmatmul.mubr.bf16.gmra.mxu0 %v686
          %v797 = vpop.f32.mrf.mxu0
          %v798 = vadd.f32 0.0, %v797
          %v799 = vpop.f32.mrf.mxu0
          %v800 = vpop.f32.mrf.mxu0
          %v801 = vadd.f32 0.0, %v800
          %v802 = vpop.f32.mrf.mxu0
          %803 = vdwg.mxu0
          %v804 = vld [vmem:[#allocation14] sm:$0xf]
          %v805 = vld [vmem:[#allocation14 + $0x4] sm:$0xf]
          %v806 = vld [vmem:[#allocation14 + $0x8] sm:$0xf]
          %v807 = vld [vmem:[#allocation14 + $0xc] sm:$0xf]
          %v808 = vld [vmem:[#allocation14 + $0x10] sm:$0xf]
          %v809 = vld [vmem:[#allocation14 + $0x14] sm:$0xf]
          %v810 = vld [vmem:[#allocation14 + $0x18] sm:$0xf]
          %v811 = vld [vmem:[#allocation14 + $0x1c] sm:$0xf]
          %v812 = vld [vmem:[#allocation14 + $0x20] sm:$0xf]
          %v813 = vld [vmem:[#allocation14 + $0x24] sm:$0xf]
          %v814 = vld [vmem:[#allocation14 + $0x28] sm:$0xf]
          %v815 = vld [vmem:[#allocation14 + $0x2c] sm:$0xf]
          %v816 = vld [vmem:[#allocation14 + $0x30] sm:$0xf]
          %v817 = vld [vmem:[#allocation14 + $0x34] sm:$0xf]
          %v818 = vld [vmem:[#allocation14 + $0x38] sm:$0xf]
          %v819 = vld [vmem:[#allocation14 + $0x3c] sm:$0xf]
          %v836 = vunpack.c.l.b16 %v804
          %v837 = vunpack.c.l.b16 %v805
          %v838 = vunpack.c.l.b16 %v806
          %v839 = vunpack.c.l.b16 %v807
          %v840 = vunpack.c.l.b16 %v808
          %v841 = vunpack.c.l.b16 %v809
          %v842 = vunpack.c.l.b16 %v810
          %v843 = vunpack.c.l.b16 %v811
          %v844 = vunpack.c.l.b16 %v812
          %v845 = vunpack.c.l.b16 %v813
          %v846 = vunpack.c.l.b16 %v814
          %v847 = vunpack.c.l.b16 %v815
          %v848 = vunpack.c.l.b16 %v816
          %v849 = vunpack.c.l.b16 %v817
          %v850 = vunpack.c.l.b16 %v818
          %v851 = vunpack.c.l.b16 %v819
          %v852 = vpack.c.b16 %v837, %v836
          %v853 = vpack.c.b16 %v839, %v838
          %v854 = vpack.c.b16 %v841, %v840
          %v855 = vpack.c.b16 %v843, %v842
          %v856 = vpack.c.b16 %v845, %v844
          %v857 = vpack.c.b16 %v847, %v846
          %v858 = vpack.c.b16 %v849, %v848
          %v859 = vpack.c.b16 %v851, %v850
          %868 = vmatprep.subr.bf16.mxu0 0
          %869 = vmatpush1.bf16.msra.mxu0 %v859
          %870 = vmatprep.subr.bf16.mxu0 0
          %871 = vmatpush1.bf16.msra.mxu0 %v858
          %872 = vmatprep.subr.bf16.mxu0 0
          %873 = vmatpush1.bf16.msra.mxu0 %v857
          %874 = vmatprep.subr.bf16.mxu0 0
          %875 = vmatpush1.bf16.msra.mxu0 %v856
          %876 = vmatprep.subr.bf16.mxu0 0
          %877 = vmatpush1.bf16.msra.mxu0 %v855
          %878 = vmatprep.subr.bf16.mxu0 0
          %879 = vmatpush1.bf16.msra.mxu0 %v854
          %880 = vmatprep.subr.bf16.mxu0 0
          %881 = vmatpush1.bf16.msra.mxu0 %v853
          %882 = vmatprep.subr.bf16.mxu0 0
          %883 = vmatpush1.bf16.msra.mxu0 %v852
          %884 = vmatprep.subr.bf16.mxu0 0
          %885 = vmatpush2.bf16.msra.mxu0 0
          %886 = vmatprep.subr.bf16.mxu0 0
          %887 = vmatpush2.bf16.msra.mxu0 0
          %888 = vmatprep.subr.bf16.mxu0 0
          %889 = vmatpush2.bf16.msra.mxu0 0
          %890 = vmatprep.subr.bf16.mxu0 0
          %891 = vmatpush2.bf16.msra.mxu0 0
          %892 = vmatprep.subr.bf16.mxu0 0
          %893 = vmatpush2.bf16.msra.mxu0 0
          %894 = vmatprep.subr.bf16.mxu0 0
          %895 = vmatpush2.bf16.msra.mxu0 0
          %896 = vmatprep.subr.bf16.mxu0 0
          %897 = vmatpush2.bf16.msra.mxu0 0
          %898 = vmatprep.subr.bf16.mxu0 0
          %899 = vmatpush2.bf16.msra.mxu0 0
          %900 = vmatprep.mubr.bf16.mxu0 0
          %901 = vmatmul.mubr.bf16.gmra.mxu0 %v683
          %v902 = vpop.f32.mrf.mxu0
          %v903 = vadd.f32 0.0, %v902
          %v904 = vpop.f32.mrf.mxu0
          %v905 = vpop.f32.mrf.mxu0
          %v906 = vadd.f32 0.0, %v905
          %v907 = vpop.f32.mrf.mxu0
          %908 = vmatprep.mubr.bf16.mxu0 0
          %909 = vmatmul.mubr.bf16.gmra.mxu0 %v684
          %v910 = vpop.f32.mrf.mxu0
          %v911 = vadd.f32 0.0, %v910
          %v912 = vpop.f32.mrf.mxu0
          %v913 = vpop.f32.mrf.mxu0
          %v914 = vadd.f32 0.0, %v913
          %v915 = vpop.f32.mrf.mxu0
          %916 = vmatprep.mubr.bf16.mxu0 0
          %917 = vmatmul.mubr.bf16.gmra.mxu0 %v685
          %v918 = vpop.f32.mrf.mxu0
          %v919 = vadd.f32 0.0, %v918
          %v920 = vpop.f32.mrf.mxu0
          %v921 = vpop.f32.mrf.mxu0
          %v922 = vadd.f32 0.0, %v921
          %v923 = vpop.f32.mrf.mxu0
          %924 = vmatprep.mubr.bf16.mxu0 0
          %925 = vmatmul.mubr.bf16.gmra.mxu0 %v686
          %v926 = vpop.f32.mrf.mxu0
          %v927 = vadd.f32 0.0, %v926
          %v928 = vpop.f32.mrf.mxu0
          %v929 = vpop.f32.mrf.mxu0
          %v930 = vadd.f32 0.0, %v929
          %v931 = vpop.f32.mrf.mxu0
          %932 = vdwg.mxu0
          %941 = vrot.lane.b32.xlu0 %v774, 96
          %v942 = vpop.permute.xlu0 %941
          %943 = vrot.lane.b32.xlu0 %v777, 96
          %v944 = vpop.permute.xlu0 %943
          %945 = vrot.lane.b32.xlu0 %v782, 96
          %v946 = vpop.permute.xlu0 %945
          %947 = vrot.lane.b32.xlu0 %v785, 96
          %v948 = vpop.permute.xlu0 %947
          %949 = vrot.lane.b32.xlu0 %v790, 96
          %v950 = vpop.permute.xlu0 %949
          %951 = vrot.lane.b32.xlu0 %v793, 96
          %v952 = vpop.permute.xlu0 %951
          %953 = vrot.lane.b32.xlu0 %v798, 96
          %v954 = vpop.permute.xlu0 %953
          %955 = vrot.lane.b32.xlu0 %v801, 96
          %v956 = vpop.permute.xlu0 %955
          %965 = vrot.lane.b32.xlu0 %v774, 64
          %v966 = vpop.permute.xlu0 %965
          %967 = vrot.lane.b32.xlu0 %v777, 64
          %v968 = vpop.permute.xlu0 %967
          %969 = vrot.lane.b32.xlu0 %v782, 64
          %v970 = vpop.permute.xlu0 %969
          %971 = vrot.lane.b32.xlu0 %v785, 64
          %v972 = vpop.permute.xlu0 %971
          %973 = vrot.lane.b32.xlu0 %v790, 64
          %v974 = vpop.permute.xlu0 %973
          %975 = vrot.lane.b32.xlu0 %v793, 64
          %v976 = vpop.permute.xlu0 %975
          %977 = vrot.lane.b32.xlu0 %v798, 64
          %v978 = vpop.permute.xlu0 %977
          %979 = vrot.lane.b32.xlu0 %v801, 64
          %v980 = vpop.permute.xlu0 %979
          %989 = vrot.lane.b32.xlu0 %v774, 32
          %v990 = vpop.permute.xlu0 %989
          %991 = vrot.lane.b32.xlu0 %v777, 32
          %v992 = vpop.permute.xlu0 %991
          %993 = vrot.lane.b32.xlu0 %v782, 32
          %v994 = vpop.permute.xlu0 %993
          %995 = vrot.lane.b32.xlu0 %v785, 32
          %v996 = vpop.permute.xlu0 %995
          %997 = vrot.lane.b32.xlu0 %v790, 32
          %v998 = vpop.permute.xlu0 %997
          %999 = vrot.lane.b32.xlu0 %v793, 32
          %v1000 = vpop.permute.xlu0 %999
          %1001 = vrot.lane.b32.xlu0 %v798, 32
          %v1002 = vpop.permute.xlu0 %1001
          %1003 = vrot.lane.b32.xlu0 %v801, 32
          %v1004 = vpop.permute.xlu0 %1003
          %v1013 = vcombine.low %v774, %v966
          %v1014 = vcombine.high %v774, %v966
          %v1016 = vunpack.c.l.s4 1983009808
          %v1017 = vunpack.c.0.s8 %v1016
          %v1018 = vlaneseq
          %v1019 = vshrl.u32 %v1018, 7
          %v1020 = vsub.s32 %v1017, %v1019
          %v1021 = vrot.slane %v1013, %v1020
          %v1023 = vunpack.c.l.s4 1983009808
          %v1024 = vunpack.c.0.s8 %v1023
          %v1025 = vlaneseq
          %v1026 = vshrl.u32 %v1025, 7
          %v1027 = vsub.s32 %v1024, %v1026
          %v1028 = vrot.slane %v1014, %v1027
          %v1029 = vcombine.low %v942, %v990
          %v1030 = vcombine.high %v942, %v990
          %v1032 = vunpack.c.l.s4 1983009808
          %v1033 = vunpack.c.0.s8 %v1032
          %v1034 = vlaneseq
          %v1035 = vshrl.u32 %v1034, 7
          %v1036 = vsub.s32 %v1033, %v1035
          %v1037 = vrot.slane %v1029, %v1036
          %v1039 = vunpack.c.l.s4 1983009808
          %v1040 = vunpack.c.0.s8 %v1039
          %v1041 = vlaneseq
          %v1042 = vshrl.u32 %v1041, 7
          %v1043 = vsub.s32 %v1040, %v1042
          %v1044 = vrot.slane %v1030, %v1043
          %v1045 = vcombine.low %v1021, %v1037
          %v1046 = vcombine.high %v1021, %v1037
          %v1048 = vunpack.c.l.s4 1934713408
          %v1049 = vunpack.c.0.s8 %v1048
          %v1050 = vlaneseq
          %v1051 = vshrl.u32 %v1050, 7
          %v1052 = vsub.s32 %v1049, %v1051
          %v1053 = vrot.slane %v1045, %v1052
          %v1055 = vunpack.c.l.s4 1934713408
          %v1056 = vunpack.c.0.s8 %v1055
          %v1057 = vlaneseq
          %v1058 = vshrl.u32 %v1057, 7
          %v1059 = vsub.s32 %v1056, %v1058
          %v1060 = vrot.slane %v1046, %v1059
          %v1061 = vcombine.low %v1028, %v1044
          %v1062 = vcombine.high %v1028, %v1044
          %v1064 = vunpack.c.l.s4 1934713408
          %v1065 = vunpack.c.0.s8 %v1064
          %v1066 = vlaneseq
          %v1067 = vshrl.u32 %v1066, 7
          %v1068 = vsub.s32 %v1065, %v1067
          %v1069 = vrot.slane %v1061, %v1068
          %v1071 = vunpack.c.l.s4 1934713408
          %v1072 = vunpack.c.0.s8 %v1071
          %v1073 = vlaneseq
          %v1074 = vshrl.u32 %v1073, 7
          %v1075 = vsub.s32 %v1072, %v1074
          %v1076 = vrot.slane %v1062, %v1075
          %v1077 = vcombine.high %v1053, 0.0
          %v1078 = vcombine.high %v1060, 0.0
          %v1079 = vcombine.high %v1069, 0.0
          %v1080 = vcombine.high %v1076, 0.0
          %v1081 = vcombine.low %v777, %v968
          %v1082 = vcombine.high %v777, %v968
          %v1084 = vunpack.c.l.s4 1983009808
          %v1085 = vunpack.c.0.s8 %v1084
          %v1086 = vlaneseq
          %v1087 = vshrl.u32 %v1086, 7
          %v1088 = vsub.s32 %v1085, %v1087
          %v1089 = vrot.slane %v1081, %v1088
          %v1091 = vunpack.c.l.s4 1983009808
          %v1092 = vunpack.c.0.s8 %v1091
          %v1093 = vlaneseq
          %v1094 = vshrl.u32 %v1093, 7
          %v1095 = vsub.s32 %v1092, %v1094
          %v1096 = vrot.slane %v1082, %v1095
          %v1097 = vcombine.low %v944, %v992
          %v1098 = vcombine.high %v944, %v992
          %v1100 = vunpack.c.l.s4 1983009808
          %v1101 = vunpack.c.0.s8 %v1100
          %v1102 = vlaneseq
          %v1103 = vshrl.u32 %v1102, 7
          %v1104 = vsub.s32 %v1101, %v1103
          %v1105 = vrot.slane %v1097, %v1104
          %v1107 = vunpack.c.l.s4 1983009808
          %v1108 = vunpack.c.0.s8 %v1107
          %v1109 = vlaneseq
          %v1110 = vshrl.u32 %v1109, 7
          %v1111 = vsub.s32 %v1108, %v1110
          %v1112 = vrot.slane %v1098, %v1111
          %v1113 = vcombine.low %v1089, %v1105
          %v1114 = vcombine.high %v1089, %v1105
          %v1116 = vunpack.c.l.s4 1934713408
          %v1117 = vunpack.c.0.s8 %v1116
          %v1118 = vlaneseq
          %v1119 = vshrl.u32 %v1118, 7
          %v1120 = vsub.s32 %v1117, %v1119
          %v1121 = vrot.slane %v1113, %v1120
          %v1123 = vunpack.c.l.s4 1934713408
          %v1124 = vunpack.c.0.s8 %v1123
          %v1125 = vlaneseq
          %v1126 = vshrl.u32 %v1125, 7
          %v1127 = vsub.s32 %v1124, %v1126
          %v1128 = vrot.slane %v1114, %v1127
          %v1129 = vcombine.low %v1096, %v1112
          %v1130 = vcombine.high %v1096, %v1112
          %v1132 = vunpack.c.l.s4 1934713408
          %v1133 = vunpack.c.0.s8 %v1132
          %v1134 = vlaneseq
          %v1135 = vshrl.u32 %v1134, 7
          %v1136 = vsub.s32 %v1133, %v1135
          %v1137 = vrot.slane %v1129, %v1136
          %v1139 = vunpack.c.l.s4 1934713408
          %v1140 = vunpack.c.0.s8 %v1139
          %v1141 = vlaneseq
          %v1142 = vshrl.u32 %v1141, 7
          %v1143 = vsub.s32 %v1140, %v1142
          %v1144 = vrot.slane %v1130, %v1143
          %v1145 = vcombine.high %v1121, 0.0
          %v1146 = vcombine.high %v1128, 0.0
          %v1147 = vcombine.high %v1137, 0.0
          %v1148 = vcombine.high %v1144, 0.0
          %v1149 = vcombine.low %v782, %v970
          %v1150 = vcombine.high %v782, %v970
          %v1152 = vunpack.c.l.s4 1983009808
          %v1153 = vunpack.c.0.s8 %v1152
          %v1154 = vlaneseq
          %v1155 = vshrl.u32 %v1154, 7
          %v1156 = vsub.s32 %v1153, %v1155
          %v1157 = vrot.slane %v1149, %v1156
          %v1159 = vunpack.c.l.s4 1983009808
          %v1160 = vunpack.c.0.s8 %v1159
          %v1161 = vlaneseq
          %v1162 = vshrl.u32 %v1161, 7
          %v1163 = vsub.s32 %v1160, %v1162
          %v1164 = vrot.slane %v1150, %v1163
          %v1165 = vcombine.low %v946, %v994
          %v1166 = vcombine.high %v946, %v994
          %v1168 = vunpack.c.l.s4 1983009808
          %v1169 = vunpack.c.0.s8 %v1168
          %v1170 = vlaneseq
          %v1171 = vshrl.u32 %v1170, 7
          %v1172 = vsub.s32 %v1169, %v1171
          %v1173 = vrot.slane %v1165, %v1172
          %v1175 = vunpack.c.l.s4 1983009808
          %v1176 = vunpack.c.0.s8 %v1175
          %v1177 = vlaneseq
          %v1178 = vshrl.u32 %v1177, 7
          %v1179 = vsub.s32 %v1176, %v1178
          %v1180 = vrot.slane %v1166, %v1179
          %v1181 = vcombine.low %v1157, %v1173
          %v1182 = vcombine.high %v1157, %v1173
          %v1184 = vunpack.c.l.s4 1934713408
          %v1185 = vunpack.c.0.s8 %v1184
          %v1186 = vlaneseq
          %v1187 = vshrl.u32 %v1186, 7
          %v1188 = vsub.s32 %v1185, %v1187
          %v1189 = vrot.slane %v1181, %v1188
          %v1191 = vunpack.c.l.s4 1934713408
          %v1192 = vunpack.c.0.s8 %v1191
          %v1193 = vlaneseq
          %v1194 = vshrl.u32 %v1193, 7
          %v1195 = vsub.s32 %v1192, %v1194
          %v1196 = vrot.slane %v1182, %v1195
          %v1197 = vcombine.low %v1164, %v1180
          %v1198 = vcombine.high %v1164, %v1180
          %v1200 = vunpack.c.l.s4 1934713408
          %v1201 = vunpack.c.0.s8 %v1200
          %v1202 = vlaneseq
          %v1203 = vshrl.u32 %v1202, 7
          %v1204 = vsub.s32 %v1201, %v1203
          %v1205 = vrot.slane %v1197, %v1204
          %v1207 = vunpack.c.l.s4 1934713408
          %v1208 = vunpack.c.0.s8 %v1207
          %v1209 = vlaneseq
          %v1210 = vshrl.u32 %v1209, 7
          %v1211 = vsub.s32 %v1208, %v1210
          %v1212 = vrot.slane %v1198, %v1211
          %v1213 = vcombine.high %v1189, 0.0
          %v1214 = vcombine.high %v1196, 0.0
          %v1215 = vcombine.high %v1205, 0.0
          %v1216 = vcombine.high %v1212, 0.0
          %v1217 = vcombine.low %v785, %v972
          %v1218 = vcombine.high %v785, %v972
          %v1220 = vunpack.c.l.s4 1983009808
          %v1221 = vunpack.c.0.s8 %v1220
          %v1222 = vlaneseq
          %v1223 = vshrl.u32 %v1222, 7
          %v1224 = vsub.s32 %v1221, %v1223
          %v1225 = vrot.slane %v1217, %v1224
          %v1227 = vunpack.c.l.s4 1983009808
          %v1228 = vunpack.c.0.s8 %v1227
          %v1229 = vlaneseq
          %v1230 = vshrl.u32 %v1229, 7
          %v1231 = vsub.s32 %v1228, %v1230
          %v1232 = vrot.slane %v1218, %v1231
          %v1233 = vcombine.low %v948, %v996
          %v1234 = vcombine.high %v948, %v996
          %v1236 = vunpack.c.l.s4 1983009808
          %v1237 = vunpack.c.0.s8 %v1236
          %v1238 = vlaneseq
          %v1239 = vshrl.u32 %v1238, 7
          %v1240 = vsub.s32 %v1237, %v1239
          %v1241 = vrot.slane %v1233, %v1240
          %v1243 = vunpack.c.l.s4 1983009808
          %v1244 = vunpack.c.0.s8 %v1243
          %v1245 = vlaneseq
          %v1246 = vshrl.u32 %v1245, 7
          %v1247 = vsub.s32 %v1244, %v1246
          %v1248 = vrot.slane %v1234, %v1247
          %v1249 = vcombine.low %v1225, %v1241
          %v1250 = vcombine.high %v1225, %v1241
          %v1252 = vunpack.c.l.s4 1934713408
          %v1253 = vunpack.c.0.s8 %v1252
          %v1254 = vlaneseq
          %v1255 = vshrl.u32 %v1254, 7
          %v1256 = vsub.s32 %v1253, %v1255
          %v1257 = vrot.slane %v1249, %v1256
          %v1259 = vunpack.c.l.s4 1934713408
          %v1260 = vunpack.c.0.s8 %v1259
          %v1261 = vlaneseq
          %v1262 = vshrl.u32 %v1261, 7
          %v1263 = vsub.s32 %v1260, %v1262
          %v1264 = vrot.slane %v1250, %v1263
          %v1265 = vcombine.low %v1232, %v1248
          %v1266 = vcombine.high %v1232, %v1248
          %v1268 = vunpack.c.l.s4 1934713408
          %v1269 = vunpack.c.0.s8 %v1268
          %v1270 = vlaneseq
          %v1271 = vshrl.u32 %v1270, 7
          %v1272 = vsub.s32 %v1269, %v1271
          %v1273 = vrot.slane %v1265, %v1272
          %v1275 = vunpack.c.l.s4 1934713408
          %v1276 = vunpack.c.0.s8 %v1275
          %v1277 = vlaneseq
          %v1278 = vshrl.u32 %v1277, 7
          %v1279 = vsub.s32 %v1276, %v1278
          %v1280 = vrot.slane %v1266, %v1279
          %v1281 = vcombine.high %v1257, 0.0
          %v1282 = vcombine.high %v1264, 0.0
          %v1283 = vcombine.high %v1273, 0.0
          %v1284 = vcombine.high %v1280, 0.0
          %v1285 = vcombine.low %v790, %v974
          %v1286 = vcombine.high %v790, %v974
          %v1288 = vunpack.c.l.s4 1983009808
          %v1289 = vunpack.c.0.s8 %v1288
          %v1290 = vlaneseq
          %v1291 = vshrl.u32 %v1290, 7
          %v1292 = vsub.s32 %v1289, %v1291
          %v1293 = vrot.slane %v1285, %v1292
          %v1295 = vunpack.c.l.s4 1983009808
          %v1296 = vunpack.c.0.s8 %v1295
          %v1297 = vlaneseq
          %v1298 = vshrl.u32 %v1297, 7
          %v1299 = vsub.s32 %v1296, %v1298
          %v1300 = vrot.slane %v1286, %v1299
          %v1301 = vcombine.low %v950, %v998
          %v1302 = vcombine.high %v950, %v998
          %v1304 = vunpack.c.l.s4 1983009808
          %v1305 = vunpack.c.0.s8 %v1304
          %v1306 = vlaneseq
          %v1307 = vshrl.u32 %v1306, 7
          %v1308 = vsub.s32 %v1305, %v1307
          %v1309 = vrot.slane %v1301, %v1308
          %v1311 = vunpack.c.l.s4 1983009808
          %v1312 = vunpack.c.0.s8 %v1311
          %v1313 = vlaneseq
          %v1314 = vshrl.u32 %v1313, 7
          %v1315 = vsub.s32 %v1312, %v1314
          %v1316 = vrot.slane %v1302, %v1315
          %v1317 = vcombine.low %v1293, %v1309
          %v1318 = vcombine.high %v1293, %v1309
          %v1320 = vunpack.c.l.s4 1934713408
          %v1321 = vunpack.c.0.s8 %v1320
          %v1322 = vlaneseq
          %v1323 = vshrl.u32 %v1322, 7
          %v1324 = vsub.s32 %v1321, %v1323
          %v1325 = vrot.slane %v1317, %v1324
          %v1327 = vunpack.c.l.s4 1934713408
          %v1328 = vunpack.c.0.s8 %v1327
          %v1329 = vlaneseq
          %v1330 = vshrl.u32 %v1329, 7
          %v1331 = vsub.s32 %v1328, %v1330
          %v1332 = vrot.slane %v1318, %v1331
          %v1333 = vcombine.low %v1300, %v1316
          %v1334 = vcombine.high %v1300, %v1316
          %v1336 = vunpack.c.l.s4 1934713408
          %v1337 = vunpack.c.0.s8 %v1336
          %v1338 = vlaneseq
          %v1339 = vshrl.u32 %v1338, 7
          %v1340 = vsub.s32 %v1337, %v1339
          %v1341 = vrot.slane %v1333, %v1340
          %v1343 = vunpack.c.l.s4 1934713408
          %v1344 = vunpack.c.0.s8 %v1343
          %v1345 = vlaneseq
          %v1346 = vshrl.u32 %v1345, 7
          %v1347 = vsub.s32 %v1344, %v1346
          %v1348 = vrot.slane %v1334, %v1347
          %v1349 = vcombine.high %v1325, 0.0
          %v1350 = vcombine.high %v1332, 0.0
          %v1351 = vcombine.high %v1341, 0.0
          %v1352 = vcombine.high %v1348, 0.0
          %v1353 = vcombine.low %v793, %v976
          %v1354 = vcombine.high %v793, %v976
          %v1356 = vunpack.c.l.s4 1983009808
          %v1357 = vunpack.c.0.s8 %v1356
          %v1358 = vlaneseq
          %v1359 = vshrl.u32 %v1358, 7
          %v1360 = vsub.s32 %v1357, %v1359
          %v1361 = vrot.slane %v1353, %v1360
          %v1363 = vunpack.c.l.s4 1983009808
          %v1364 = vunpack.c.0.s8 %v1363
          %v1365 = vlaneseq
          %v1366 = vshrl.u32 %v1365, 7
          %v1367 = vsub.s32 %v1364, %v1366
          %v1368 = vrot.slane %v1354, %v1367
          %v1369 = vcombine.low %v952, %v1000
          %v1370 = vcombine.high %v952, %v1000
          %v1372 = vunpack.c.l.s4 1983009808
          %v1373 = vunpack.c.0.s8 %v1372
          %v1374 = vlaneseq
          %v1375 = vshrl.u32 %v1374, 7
          %v1376 = vsub.s32 %v1373, %v1375
          %v1377 = vrot.slane %v1369, %v1376
          %v1379 = vunpack.c.l.s4 1983009808
          %v1380 = vunpack.c.0.s8 %v1379
          %v1381 = vlaneseq
          %v1382 = vshrl.u32 %v1381, 7
          %v1383 = vsub.s32 %v1380, %v1382
          %v1384 = vrot.slane %v1370, %v1383
          %v1385 = vcombine.low %v1361, %v1377
          %v1386 = vcombine.high %v1361, %v1377
          %v1388 = vunpack.c.l.s4 1934713408
          %v1389 = vunpack.c.0.s8 %v1388
          %v1390 = vlaneseq
          %v1391 = vshrl.u32 %v1390, 7
          %v1392 = vsub.s32 %v1389, %v1391
          %v1393 = vrot.slane %v1385, %v1392
          %v1395 = vunpack.c.l.s4 1934713408
          %v1396 = vunpack.c.0.s8 %v1395
          %v1397 = vlaneseq
          %v1398 = vshrl.u32 %v1397, 7
          %v1399 = vsub.s32 %v1396, %v1398
          %v1400 = vrot.slane %v1386, %v1399
          %v1401 = vcombine.low %v1368, %v1384
          %v1402 = vcombine.high %v1368, %v1384
          %v1404 = vunpack.c.l.s4 1934713408
          %v1405 = vunpack.c.0.s8 %v1404
          %v1406 = vlaneseq
          %v1407 = vshrl.u32 %v1406, 7
          %v1408 = vsub.s32 %v1405, %v1407
          %v1409 = vrot.slane %v1401, %v1408
          %v1411 = vunpack.c.l.s4 1934713408
          %v1412 = vunpack.c.0.s8 %v1411
          %v1413 = vlaneseq
          %v1414 = vshrl.u32 %v1413, 7
          %v1415 = vsub.s32 %v1412, %v1414
          %v1416 = vrot.slane %v1402, %v1415
          %v1417 = vcombine.high %v1393, 0.0
          %v1418 = vcombine.high %v1400, 0.0
          %v1419 = vcombine.high %v1409, 0.0
          %v1420 = vcombine.high %v1416, 0.0
          %v1421 = vcombine.low %v798, %v978
          %v1422 = vcombine.high %v798, %v978
          %v1424 = vunpack.c.l.s4 1983009808
          %v1425 = vunpack.c.0.s8 %v1424
          %v1426 = vlaneseq
          %v1427 = vshrl.u32 %v1426, 7
          %v1428 = vsub.s32 %v1425, %v1427
          %v1429 = vrot.slane %v1421, %v1428
          %v1431 = vunpack.c.l.s4 1983009808
          %v1432 = vunpack.c.0.s8 %v1431
          %v1433 = vlaneseq
          %v1434 = vshrl.u32 %v1433, 7
          %v1435 = vsub.s32 %v1432, %v1434
          %v1436 = vrot.slane %v1422, %v1435
          %v1437 = vcombine.low %v954, %v1002
          %v1438 = vcombine.high %v954, %v1002
          %v1440 = vunpack.c.l.s4 1983009808
          %v1441 = vunpack.c.0.s8 %v1440
          %v1442 = vlaneseq
          %v1443 = vshrl.u32 %v1442, 7
          %v1444 = vsub.s32 %v1441, %v1443
          %v1445 = vrot.slane %v1437, %v1444
          %v1447 = vunpack.c.l.s4 1983009808
          %v1448 = vunpack.c.0.s8 %v1447
          %v1449 = vlaneseq
          %v1450 = vshrl.u32 %v1449, 7
          %v1451 = vsub.s32 %v1448, %v1450
          %v1452 = vrot.slane %v1438, %v1451
          %v1453 = vcombine.low %v1429, %v1445
          %v1454 = vcombine.high %v1429, %v1445
          %v1456 = vunpack.c.l.s4 1934713408
          %v1457 = vunpack.c.0.s8 %v1456
          %v1458 = vlaneseq
          %v1459 = vshrl.u32 %v1458, 7
          %v1460 = vsub.s32 %v1457, %v1459
          %v1461 = vrot.slane %v1453, %v1460
          %v1463 = vunpack.c.l.s4 1934713408
          %v1464 = vunpack.c.0.s8 %v1463
          %v1465 = vlaneseq
          %v1466 = vshrl.u32 %v1465, 7
          %v1467 = vsub.s32 %v1464, %v1466
          %v1468 = vrot.slane %v1454, %v1467
          %v1469 = vcombine.low %v1436, %v1452
          %v1470 = vcombine.high %v1436, %v1452
          %v1472 = vunpack.c.l.s4 1934713408
          %v1473 = vunpack.c.0.s8 %v1472
          %v1474 = vlaneseq
          %v1475 = vshrl.u32 %v1474, 7
          %v1476 = vsub.s32 %v1473, %v1475
          %v1477 = vrot.slane %v1469, %v1476
          %v1479 = vunpack.c.l.s4 1934713408
          %v1480 = vunpack.c.0.s8 %v1479
          %v1481 = vlaneseq
          %v1482 = vshrl.u32 %v1481, 7
          %v1483 = vsub.s32 %v1480, %v1482
          %v1484 = vrot.slane %v1470, %v1483
          %v1485 = vcombine.high %v1461, 0.0
          %v1486 = vcombine.high %v1468, 0.0
          %v1487 = vcombine.high %v1477, 0.0
          %v1488 = vcombine.high %v1484, 0.0
          %v1489 = vcombine.low %v801, %v980
          %v1490 = vcombine.high %v801, %v980
          %v1492 = vunpack.c.l.s4 1983009808
          %v1493 = vunpack.c.0.s8 %v1492
          %v1494 = vlaneseq
          %v1495 = vshrl.u32 %v1494, 7
          %v1496 = vsub.s32 %v1493, %v1495
          %v1497 = vrot.slane %v1489, %v1496
          %v1499 = vunpack.c.l.s4 1983009808
          %v1500 = vunpack.c.0.s8 %v1499
          %v1501 = vlaneseq
          %v1502 = vshrl.u32 %v1501, 7
          %v1503 = vsub.s32 %v1500, %v1502
          %v1504 = vrot.slane %v1490, %v1503
          %v1505 = vcombine.low %v956, %v1004
          %v1506 = vcombine.high %v956, %v1004
          %v1508 = vunpack.c.l.s4 1983009808
          %v1509 = vunpack.c.0.s8 %v1508
          %v1510 = vlaneseq
          %v1511 = vshrl.u32 %v1510, 7
          %v1512 = vsub.s32 %v1509, %v1511
          %v1513 = vrot.slane %v1505, %v1512
          %v1515 = vunpack.c.l.s4 1983009808
          %v1516 = vunpack.c.0.s8 %v1515
          %v1517 = vlaneseq
          %v1518 = vshrl.u32 %v1517, 7
          %v1519 = vsub.s32 %v1516, %v1518
          %v1520 = vrot.slane %v1506, %v1519
          %v1521 = vcombine.low %v1497, %v1513
          %v1522 = vcombine.high %v1497, %v1513
          %v1524 = vunpack.c.l.s4 1934713408
          %v1525 = vunpack.c.0.s8 %v1524
          %v1526 = vlaneseq
          %v1527 = vshrl.u32 %v1526, 7
          %v1528 = vsub.s32 %v1525, %v1527
          %v1529 = vrot.slane %v1521, %v1528
          %v1531 = vunpack.c.l.s4 1934713408
          %v1532 = vunpack.c.0.s8 %v1531
          %v1533 = vlaneseq
          %v1534 = vshrl.u32 %v1533, 7
          %v1535 = vsub.s32 %v1532, %v1534
          %v1536 = vrot.slane %v1522, %v1535
          %v1537 = vcombine.low %v1504, %v1520
          %v1538 = vcombine.high %v1504, %v1520
          %v1540 = vunpack.c.l.s4 1934713408
          %v1541 = vunpack.c.0.s8 %v1540
          %v1542 = vlaneseq
          %v1543 = vshrl.u32 %v1542, 7
          %v1544 = vsub.s32 %v1541, %v1543
          %v1545 = vrot.slane %v1537, %v1544
          %v1547 = vunpack.c.l.s4 1934713408
          %v1548 = vunpack.c.0.s8 %v1547
          %v1549 = vlaneseq
          %v1550 = vshrl.u32 %v1549, 7
          %v1551 = vsub.s32 %v1548, %v1550
          %v1552 = vrot.slane %v1538, %v1551
          %v1553 = vcombine.high %v1529, 0.0
          %v1554 = vcombine.high %v1536, 0.0
          %v1555 = vcombine.high %v1545, 0.0
          %v1556 = vcombine.high %v1552, 0.0
          %v1557 = vcombine.low %v1053, %v1060
          %v1559 = vunpack.c.l.s4 1983009808
          %v1560 = vunpack.c.0.s8 %v1559
          %v1561 = vlaneseq
          %v1562 = vshrl.u32 %v1561, 7
          %v1563 = vsub.s32 %v1560, %v1562
          %v1564 = vrot.slane %v1557, %v1563
          %v1565 = vcombine.low %v1077, %v1078
          %v1567 = vunpack.c.l.s4 1983009808
          %v1568 = vunpack.c.0.s8 %v1567
          %v1569 = vlaneseq
          %v1570 = vshrl.u32 %v1569, 7
          %v1571 = vsub.s32 %v1568, %v1570
          %v1572 = vrot.slane %v1565, %v1571
          %v1573 = vcombine.low %v1069, %v1076
          %v1575 = vunpack.c.l.s4 1983009808
          %v1576 = vunpack.c.0.s8 %v1575
          %v1577 = vlaneseq
          %v1578 = vshrl.u32 %v1577, 7
          %v1579 = vsub.s32 %v1576, %v1578
          %v1580 = vrot.slane %v1573, %v1579
          %v1581 = vcombine.low %v1079, %v1080
          %v1583 = vunpack.c.l.s4 1983009808
          %v1584 = vunpack.c.0.s8 %v1583
          %v1585 = vlaneseq
          %v1586 = vshrl.u32 %v1585, 7
          %v1587 = vsub.s32 %v1584, %v1586
          %v1588 = vrot.slane %v1581, %v1587
          %v1589 = vcombine.low %v1564, %v1572
          %v1590 = vcombine.high %v1564, %v1572
          %v1592 = vunpack.c.l.s4 1934713408
          %v1593 = vunpack.c.0.s8 %v1592
          %v1594 = vlaneseq
          %v1595 = vshrl.u32 %v1594, 7
          %v1596 = vsub.s32 %v1593, %v1595
          %v1597 = vrot.slane %v1589, %v1596
          %v1599 = vunpack.c.l.s4 1934713408
          %v1600 = vunpack.c.0.s8 %v1599
          %v1601 = vlaneseq
          %v1602 = vshrl.u32 %v1601, 7
          %v1603 = vsub.s32 %v1600, %v1602
          %v1604 = vrot.slane %v1590, %v1603
          %v1605 = vcombine.low %v1580, %v1588
          %v1606 = vcombine.high %v1580, %v1588
          %v1608 = vunpack.c.l.s4 1934713408
          %v1609 = vunpack.c.0.s8 %v1608
          %v1610 = vlaneseq
          %v1611 = vshrl.u32 %v1610, 7
          %v1612 = vsub.s32 %v1609, %v1611
          %v1613 = vrot.slane %v1605, %v1612
          %v1615 = vunpack.c.l.s4 1934713408
          %v1616 = vunpack.c.0.s8 %v1615
          %v1617 = vlaneseq
          %v1618 = vshrl.u32 %v1617, 7
          %v1619 = vsub.s32 %v1616, %v1618
          %v1620 = vrot.slane %v1606, %v1619
          %v1621 = vcombine.low %v1597, %v1613
          %v1622 = vcombine.high %v1597, %v1613
          %v1623 = vcombine.low %v1604, %v1620
          %v1624 = vcombine.high %v1604, %v1620
          %v1625 = vcombine.low %v1121, %v1128
          %v1627 = vunpack.c.l.s4 1983009808
          %v1628 = vunpack.c.0.s8 %v1627
          %v1629 = vlaneseq
          %v1630 = vshrl.u32 %v1629, 7
          %v1631 = vsub.s32 %v1628, %v1630
          %v1632 = vrot.slane %v1625, %v1631
          %v1633 = vcombine.low %v1145, %v1146
          %v1635 = vunpack.c.l.s4 1983009808
          %v1636 = vunpack.c.0.s8 %v1635
          %v1637 = vlaneseq
          %v1638 = vshrl.u32 %v1637, 7
          %v1639 = vsub.s32 %v1636, %v1638
          %v1640 = vrot.slane %v1633, %v1639
          %v1641 = vcombine.low %v1137, %v1144
          %v1643 = vunpack.c.l.s4 1983009808
          %v1644 = vunpack.c.0.s8 %v1643
          %v1645 = vlaneseq
          %v1646 = vshrl.u32 %v1645, 7
          %v1647 = vsub.s32 %v1644, %v1646
          %v1648 = vrot.slane %v1641, %v1647
          %v1649 = vcombine.low %v1147, %v1148
          %v1651 = vunpack.c.l.s4 1983009808
          %v1652 = vunpack.c.0.s8 %v1651
          %v1653 = vlaneseq
          %v1654 = vshrl.u32 %v1653, 7
          %v1655 = vsub.s32 %v1652, %v1654
          %v1656 = vrot.slane %v1649, %v1655
          %v1657 = vcombine.low %v1632, %v1640
          %v1658 = vcombine.high %v1632, %v1640
          %v1660 = vunpack.c.l.s4 1934713408
          %v1661 = vunpack.c.0.s8 %v1660
          %v1662 = vlaneseq
          %v1663 = vshrl.u32 %v1662, 7
          %v1664 = vsub.s32 %v1661, %v1663
          %v1665 = vrot.slane %v1657, %v1664
          %v1667 = vunpack.c.l.s4 1934713408
          %v1668 = vunpack.c.0.s8 %v1667
          %v1669 = vlaneseq
          %v1670 = vshrl.u32 %v1669, 7
          %v1671 = vsub.s32 %v1668, %v1670
          %v1672 = vrot.slane %v1658, %v1671
          %v1673 = vcombine.low %v1648, %v1656
          %v1674 = vcombine.high %v1648, %v1656
          %v1676 = vunpack.c.l.s4 1934713408
          %v1677 = vunpack.c.0.s8 %v1676
          %v1678 = vlaneseq
          %v1679 = vshrl.u32 %v1678, 7
          %v1680 = vsub.s32 %v1677, %v1679
          %v1681 = vrot.slane %v1673, %v1680
          %v1683 = vunpack.c.l.s4 1934713408
          %v1684 = vunpack.c.0.s8 %v1683
          %v1685 = vlaneseq
          %v1686 = vshrl.u32 %v1685, 7
          %v1687 = vsub.s32 %v1684, %v1686
          %v1688 = vrot.slane %v1674, %v1687
          %v1689 = vcombine.low %v1665, %v1681
          %v1690 = vcombine.high %v1665, %v1681
          %v1691 = vcombine.low %v1672, %v1688
          %v1692 = vcombine.high %v1672, %v1688
          %v1693 = vcombine.low %v1189, %v1196
          %v1695 = vunpack.c.l.s4 1983009808
          %v1696 = vunpack.c.0.s8 %v1695
          %v1697 = vlaneseq
          %v1698 = vshrl.u32 %v1697, 7
          %v1699 = vsub.s32 %v1696, %v1698
          %v1700 = vrot.slane %v1693, %v1699
          %v1701 = vcombine.low %v1213, %v1214
          %v1703 = vunpack.c.l.s4 1983009808
          %v1704 = vunpack.c.0.s8 %v1703
          %v1705 = vlaneseq
          %v1706 = vshrl.u32 %v1705, 7
          %v1707 = vsub.s32 %v1704, %v1706
          %v1708 = vrot.slane %v1701, %v1707
          %v1709 = vcombine.low %v1205, %v1212
          %v1711 = vunpack.c.l.s4 1983009808
          %v1712 = vunpack.c.0.s8 %v1711
          %v1713 = vlaneseq
          %v1714 = vshrl.u32 %v1713, 7
          %v1715 = vsub.s32 %v1712, %v1714
          %v1716 = vrot.slane %v1709, %v1715
          %v1717 = vcombine.low %v1215, %v1216
          %v1719 = vunpack.c.l.s4 1983009808
          %v1720 = vunpack.c.0.s8 %v1719
          %v1721 = vlaneseq
          %v1722 = vshrl.u32 %v1721, 7
          %v1723 = vsub.s32 %v1720, %v1722
          %v1724 = vrot.slane %v1717, %v1723
          %v1725 = vcombine.low %v1700, %v1708
          %v1726 = vcombine.high %v1700, %v1708
          %v1728 = vunpack.c.l.s4 1934713408
          %v1729 = vunpack.c.0.s8 %v1728
          %v1730 = vlaneseq
          %v1731 = vshrl.u32 %v1730, 7
          %v1732 = vsub.s32 %v1729, %v1731
          %v1733 = vrot.slane %v1725, %v1732
          %v1735 = vunpack.c.l.s4 1934713408
          %v1736 = vunpack.c.0.s8 %v1735
          %v1737 = vlaneseq
          %v1738 = vshrl.u32 %v1737, 7
          %v1739 = vsub.s32 %v1736, %v1738
          %v1740 = vrot.slane %v1726, %v1739
          %v1741 = vcombine.low %v1716, %v1724
          %v1742 = vcombine.high %v1716, %v1724
          %v1744 = vunpack.c.l.s4 1934713408
          %v1745 = vunpack.c.0.s8 %v1744
          %v1746 = vlaneseq
          %v1747 = vshrl.u32 %v1746, 7
          %v1748 = vsub.s32 %v1745, %v1747
          %v1749 = vrot.slane %v1741, %v1748
          %v1751 = vunpack.c.l.s4 1934713408
          %v1752 = vunpack.c.0.s8 %v1751
          %v1753 = vlaneseq
          %v1754 = vshrl.u32 %v1753, 7
          %v1755 = vsub.s32 %v1752, %v1754
          %v1756 = vrot.slane %v1742, %v1755
          %v1757 = vcombine.low %v1733, %v1749
          %v1758 = vcombine.high %v1733, %v1749
          %v1759 = vcombine.low %v1740, %v1756
          %v1760 = vcombine.high %v1740, %v1756
          %v1761 = vcombine.low %v1257, %v1264
          %v1763 = vunpack.c.l.s4 1983009808
          %v1764 = vunpack.c.0.s8 %v1763
          %v1765 = vlaneseq
          %v1766 = vshrl.u32 %v1765, 7
          %v1767 = vsub.s32 %v1764, %v1766
          %v1768 = vrot.slane %v1761, %v1767
          %v1769 = vcombine.low %v1281, %v1282
          %v1771 = vunpack.c.l.s4 1983009808
          %v1772 = vunpack.c.0.s8 %v1771
          %v1773 = vlaneseq
          %v1774 = vshrl.u32 %v1773, 7
          %v1775 = vsub.s32 %v1772, %v1774
          %v1776 = vrot.slane %v1769, %v1775
          %v1777 = vcombine.low %v1273, %v1280
          %v1779 = vunpack.c.l.s4 1983009808
          %v1780 = vunpack.c.0.s8 %v1779
          %v1781 = vlaneseq
          %v1782 = vshrl.u32 %v1781, 7
          %v1783 = vsub.s32 %v1780, %v1782
          %v1784 = vrot.slane %v1777, %v1783
          %v1785 = vcombine.low %v1283, %v1284
          %v1787 = vunpack.c.l.s4 1983009808
          %v1788 = vunpack.c.0.s8 %v1787
          %v1789 = vlaneseq
          %v1790 = vshrl.u32 %v1789, 7
          %v1791 = vsub.s32 %v1788, %v1790
          %v1792 = vrot.slane %v1785, %v1791
          %v1793 = vcombine.low %v1768, %v1776
          %v1794 = vcombine.high %v1768, %v1776
          %v1796 = vunpack.c.l.s4 1934713408
          %v1797 = vunpack.c.0.s8 %v1796
          %v1798 = vlaneseq
          %v1799 = vshrl.u32 %v1798, 7
          %v1800 = vsub.s32 %v1797, %v1799
          %v1801 = vrot.slane %v1793, %v1800
          %v1803 = vunpack.c.l.s4 1934713408
          %v1804 = vunpack.c.0.s8 %v1803
          %v1805 = vlaneseq
          %v1806 = vshrl.u32 %v1805, 7
          %v1807 = vsub.s32 %v1804, %v1806
          %v1808 = vrot.slane %v1794, %v1807
          %v1809 = vcombine.low %v1784, %v1792
          %v1810 = vcombine.high %v1784, %v1792
          %v1812 = vunpack.c.l.s4 1934713408
          %v1813 = vunpack.c.0.s8 %v1812
          %v1814 = vlaneseq
          %v1815 = vshrl.u32 %v1814, 7
          %v1816 = vsub.s32 %v1813, %v1815
          %v1817 = vrot.slane %v1809, %v1816
          %v1819 = vunpack.c.l.s4 1934713408
          %v1820 = vunpack.c.0.s8 %v1819
          %v1821 = vlaneseq
          %v1822 = vshrl.u32 %v1821, 7
          %v1823 = vsub.s32 %v1820, %v1822
          %v1824 = vrot.slane %v1810, %v1823
          %v1825 = vcombine.low %v1801, %v1817
          %v1826 = vcombine.high %v1801, %v1817
          %v1827 = vcombine.low %v1808, %v1824
          %v1828 = vcombine.high %v1808, %v1824
          %v1829 = vcombine.low %v1325, %v1332
          %v1831 = vunpack.c.l.s4 1983009808
          %v1832 = vunpack.c.0.s8 %v1831
          %v1833 = vlaneseq
          %v1834 = vshrl.u32 %v1833, 7
          %v1835 = vsub.s32 %v1832, %v1834
          %v1836 = vrot.slane %v1829, %v1835
          %v1837 = vcombine.low %v1349, %v1350
          %v1839 = vunpack.c.l.s4 1983009808
          %v1840 = vunpack.c.0.s8 %v1839
          %v1841 = vlaneseq
          %v1842 = vshrl.u32 %v1841, 7
          %v1843 = vsub.s32 %v1840, %v1842
          %v1844 = vrot.slane %v1837, %v1843
          %v1845 = vcombine.low %v1341, %v1348
          %v1847 = vunpack.c.l.s4 1983009808
          %v1848 = vunpack.c.0.s8 %v1847
          %v1849 = vlaneseq
          %v1850 = vshrl.u32 %v1849, 7
          %v1851 = vsub.s32 %v1848, %v1850
          %v1852 = vrot.slane %v1845, %v1851
          %v1853 = vcombine.low %v1351, %v1352
          %v1855 = vunpack.c.l.s4 1983009808
          %v1856 = vunpack.c.0.s8 %v1855
          %v1857 = vlaneseq
          %v1858 = vshrl.u32 %v1857, 7
          %v1859 = vsub.s32 %v1856, %v1858
          %v1860 = vrot.slane %v1853, %v1859
          %v1861 = vcombine.low %v1836, %v1844
          %v1862 = vcombine.high %v1836, %v1844
          %v1864 = vunpack.c.l.s4 1934713408
          %v1865 = vunpack.c.0.s8 %v1864
          %v1866 = vlaneseq
          %v1867 = vshrl.u32 %v1866, 7
          %v1868 = vsub.s32 %v1865, %v1867
          %v1869 = vrot.slane %v1861, %v1868
          %v1871 = vunpack.c.l.s4 1934713408
          %v1872 = vunpack.c.0.s8 %v1871
          %v1873 = vlaneseq
          %v1874 = vshrl.u32 %v1873, 7
          %v1875 = vsub.s32 %v1872, %v1874
          %v1876 = vrot.slane %v1862, %v1875
          %v1877 = vcombine.low %v1852, %v1860
          %v1878 = vcombine.high %v1852, %v1860
          %v1880 = vunpack.c.l.s4 1934713408
          %v1881 = vunpack.c.0.s8 %v1880
          %v1882 = vlaneseq
          %v1883 = vshrl.u32 %v1882, 7
          %v1884 = vsub.s32 %v1881, %v1883
          %v1885 = vrot.slane %v1877, %v1884
          %v1887 = vunpack.c.l.s4 1934713408
          %v1888 = vunpack.c.0.s8 %v1887
          %v1889 = vlaneseq
          %v1890 = vshrl.u32 %v1889, 7
          %v1891 = vsub.s32 %v1888, %v1890
          %v1892 = vrot.slane %v1878, %v1891
          %v1893 = vcombine.low %v1869, %v1885
          %v1894 = vcombine.high %v1869, %v1885
          %v1895 = vcombine.low %v1876, %v1892
          %v1896 = vcombine.high %v1876, %v1892
          %v1897 = vcombine.low %v1393, %v1400
          %v1899 = vunpack.c.l.s4 1983009808
          %v1900 = vunpack.c.0.s8 %v1899
          %v1901 = vlaneseq
          %v1902 = vshrl.u32 %v1901, 7
          %v1903 = vsub.s32 %v1900, %v1902
          %v1904 = vrot.slane %v1897, %v1903
          %v1905 = vcombine.low %v1417, %v1418
          %v1907 = vunpack.c.l.s4 1983009808
          %v1908 = vunpack.c.0.s8 %v1907
          %v1909 = vlaneseq
          %v1910 = vshrl.u32 %v1909, 7
          %v1911 = vsub.s32 %v1908, %v1910
          %v1912 = vrot.slane %v1905, %v1911
          %v1913 = vcombine.low %v1409, %v1416
          %v1915 = vunpack.c.l.s4 1983009808
          %v1916 = vunpack.c.0.s8 %v1915
          %v1917 = vlaneseq
          %v1918 = vshrl.u32 %v1917, 7
          %v1919 = vsub.s32 %v1916, %v1918
          %v1920 = vrot.slane %v1913, %v1919
          %v1921 = vcombine.low %v1419, %v1420
          %v1923 = vunpack.c.l.s4 1983009808
          %v1924 = vunpack.c.0.s8 %v1923
          %v1925 = vlaneseq
          %v1926 = vshrl.u32 %v1925, 7
          %v1927 = vsub.s32 %v1924, %v1926
          %v1928 = vrot.slane %v1921, %v1927
          %v1929 = vcombine.low %v1904, %v1912
          %v1930 = vcombine.high %v1904, %v1912
          %v1932 = vunpack.c.l.s4 1934713408
          %v1933 = vunpack.c.0.s8 %v1932
          %v1934 = vlaneseq
          %v1935 = vshrl.u32 %v1934, 7
          %v1936 = vsub.s32 %v1933, %v1935
          %v1937 = vrot.slane %v1929, %v1936
          %v1939 = vunpack.c.l.s4 1934713408
          %v1940 = vunpack.c.0.s8 %v1939
          %v1941 = vlaneseq
          %v1942 = vshrl.u32 %v1941, 7
          %v1943 = vsub.s32 %v1940, %v1942
          %v1944 = vrot.slane %v1930, %v1943
          %v1945 = vcombine.low %v1920, %v1928
          %v1946 = vcombine.high %v1920, %v1928
          %v1948 = vunpack.c.l.s4 1934713408
          %v1949 = vunpack.c.0.s8 %v1948
          %v1950 = vlaneseq
          %v1951 = vshrl.u32 %v1950, 7
          %v1952 = vsub.s32 %v1949, %v1951
          %v1953 = vrot.slane %v1945, %v1952
          %v1955 = vunpack.c.l.s4 1934713408
          %v1956 = vunpack.c.0.s8 %v1955
          %v1957 = vlaneseq
          %v1958 = vshrl.u32 %v1957, 7
          %v1959 = vsub.s32 %v1956, %v1958
          %v1960 = vrot.slane %v1946, %v1959
          %v1961 = vcombine.low %v1937, %v1953
          %v1962 = vcombine.high %v1937, %v1953
          %v1963 = vcombine.low %v1944, %v1960
          %v1964 = vcombine.high %v1944, %v1960
          %v1965 = vcombine.low %v1461, %v1468
          %v1967 = vunpack.c.l.s4 1983009808
          %v1968 = vunpack.c.0.s8 %v1967
          %v1969 = vlaneseq
          %v1970 = vshrl.u32 %v1969, 7
          %v1971 = vsub.s32 %v1968, %v1970
          %v1972 = vrot.slane %v1965, %v1971
          %v1973 = vcombine.low %v1485, %v1486
          %v1975 = vunpack.c.l.s4 1983009808
          %v1976 = vunpack.c.0.s8 %v1975
          %v1977 = vlaneseq
          %v1978 = vshrl.u32 %v1977, 7
          %v1979 = vsub.s32 %v1976, %v1978
          %v1980 = vrot.slane %v1973, %v1979
          %v1981 = vcombine.low %v1477, %v1484
          %v1983 = vunpack.c.l.s4 1983009808
          %v1984 = vunpack.c.0.s8 %v1983
          %v1985 = vlaneseq
          %v1986 = vshrl.u32 %v1985, 7
          %v1987 = vsub.s32 %v1984, %v1986
          %v1988 = vrot.slane %v1981, %v1987
          %v1989 = vcombine.low %v1487, %v1488
          %v1991 = vunpack.c.l.s4 1983009808
          %v1992 = vunpack.c.0.s8 %v1991
          %v1993 = vlaneseq
          %v1994 = vshrl.u32 %v1993, 7
          %v1995 = vsub.s32 %v1992, %v1994
          %v1996 = vrot.slane %v1989, %v1995
          %v1997 = vcombine.low %v1972, %v1980
          %v1998 = vcombine.high %v1972, %v1980
          %v2000 = vunpack.c.l.s4 1934713408
          %v2001 = vunpack.c.0.s8 %v2000
          %v2002 = vlaneseq
          %v2003 = vshrl.u32 %v2002, 7
          %v2004 = vsub.s32 %v2001, %v2003
          %v2005 = vrot.slane %v1997, %v2004
          %v2007 = vunpack.c.l.s4 1934713408
          %v2008 = vunpack.c.0.s8 %v2007
          %v2009 = vlaneseq
          %v2010 = vshrl.u32 %v2009, 7
          %v2011 = vsub.s32 %v2008, %v2010
          %v2012 = vrot.slane %v1998, %v2011
          %v2013 = vcombine.low %v1988, %v1996
          %v2014 = vcombine.high %v1988, %v1996
          %v2016 = vunpack.c.l.s4 1934713408
          %v2017 = vunpack.c.0.s8 %v2016
          %v2018 = vlaneseq
          %v2019 = vshrl.u32 %v2018, 7
          %v2020 = vsub.s32 %v2017, %v2019
          %v2021 = vrot.slane %v2013, %v2020
          %v2023 = vunpack.c.l.s4 1934713408
          %v2024 = vunpack.c.0.s8 %v2023
          %v2025 = vlaneseq
          %v2026 = vshrl.u32 %v2025, 7
          %v2027 = vsub.s32 %v2024, %v2026
          %v2028 = vrot.slane %v2014, %v2027
          %v2029 = vcombine.low %v2005, %v2021
          %v2030 = vcombine.high %v2005, %v2021
          %v2031 = vcombine.low %v2012, %v2028
          %v2032 = vcombine.high %v2012, %v2028
          %v2033 = vcombine.low %v1529, %v1536
          %v2035 = vunpack.c.l.s4 1983009808
          %v2036 = vunpack.c.0.s8 %v2035
          %v2037 = vlaneseq
          %v2038 = vshrl.u32 %v2037, 7
          %v2039 = vsub.s32 %v2036, %v2038
          %v2040 = vrot.slane %v2033, %v2039
          %v2041 = vcombine.low %v1553, %v1554
          %v2043 = vunpack.c.l.s4 1983009808
          %v2044 = vunpack.c.0.s8 %v2043
          %v2045 = vlaneseq
          %v2046 = vshrl.u32 %v2045, 7
          %v2047 = vsub.s32 %v2044, %v2046
          %v2048 = vrot.slane %v2041, %v2047
          %v2049 = vcombine.low %v1545, %v1552
          %v2051 = vunpack.c.l.s4 1983009808
          %v2052 = vunpack.c.0.s8 %v2051
          %v2053 = vlaneseq
          %v2054 = vshrl.u32 %v2053, 7
          %v2055 = vsub.s32 %v2052, %v2054
          %v2056 = vrot.slane %v2049, %v2055
          %v2057 = vcombine.low %v1555, %v1556
          %v2059 = vunpack.c.l.s4 1983009808
          %v2060 = vunpack.c.0.s8 %v2059
          %v2061 = vlaneseq
          %v2062 = vshrl.u32 %v2061, 7
          %v2063 = vsub.s32 %v2060, %v2062
          %v2064 = vrot.slane %v2057, %v2063
          %v2065 = vcombine.low %v2040, %v2048
          %v2066 = vcombine.high %v2040, %v2048
          %v2068 = vunpack.c.l.s4 1934713408
          %v2069 = vunpack.c.0.s8 %v2068
          %v2070 = vlaneseq
          %v2071 = vshrl.u32 %v2070, 7
          %v2072 = vsub.s32 %v2069, %v2071
          %v2073 = vrot.slane %v2065, %v2072
          %v2075 = vunpack.c.l.s4 1934713408
          %v2076 = vunpack.c.0.s8 %v2075
          %v2077 = vlaneseq
          %v2078 = vshrl.u32 %v2077, 7
          %v2079 = vsub.s32 %v2076, %v2078
          %v2080 = vrot.slane %v2066, %v2079
          %v2081 = vcombine.low %v2056, %v2064
          %v2082 = vcombine.high %v2056, %v2064
          %v2084 = vunpack.c.l.s4 1934713408
          %v2085 = vunpack.c.0.s8 %v2084
          %v2086 = vlaneseq
          %v2087 = vshrl.u32 %v2086, 7
          %v2088 = vsub.s32 %v2085, %v2087
          %v2089 = vrot.slane %v2081, %v2088
          %v2091 = vunpack.c.l.s4 1934713408
          %v2092 = vunpack.c.0.s8 %v2091
          %v2093 = vlaneseq
          %v2094 = vshrl.u32 %v2093, 7
          %v2095 = vsub.s32 %v2092, %v2094
          %v2096 = vrot.slane %v2082, %v2095
          %v2097 = vcombine.low %v2073, %v2089
          %v2098 = vcombine.high %v2073, %v2089
          %v2099 = vcombine.low %v2080, %v2096
          %v2100 = vcombine.high %v2080, %v2096
          %v2101 = vpack.c.bf16 %v1689, %v1621
          %v2102 = vpack.c.bf16 %v1825, %v1757
          %v2103 = vpack.c.bf16 %v1961, %v1893
          %v2104 = vpack.c.bf16 %v2097, %v2029
          %v2105 = vpack.c.bf16 %v1690, %v1622
          %v2106 = vpack.c.bf16 %v1826, %v1758
          %v2107 = vpack.c.bf16 %v1962, %v1894
          %v2108 = vpack.c.bf16 %v2098, %v2030
          %v2109 = vpack.c.bf16 %v1691, %v1623
          %v2110 = vpack.c.bf16 %v1827, %v1759
          %v2111 = vpack.c.bf16 %v1963, %v1895
          %v2112 = vpack.c.bf16 %v2099, %v2031
          %v2113 = vpack.c.bf16 %v1692, %v1624
          %v2114 = vpack.c.bf16 %v1828, %v1760
          %v2115 = vpack.c.bf16 %v1964, %v1896
          %v2116 = vpack.c.bf16 %v2100, %v2032
          %v2133 = vunpack.c.l.b16 %v2101
          %v2134 = vunpack.c.h.b16 %v2101
          %v2135 = vunpack.c.l.b16 %v2102
          %v2136 = vunpack.c.h.b16 %v2102
          %v2137 = vunpack.c.l.b16 %v2103
          %v2138 = vunpack.c.h.b16 %v2103
          %v2139 = vunpack.c.l.b16 %v2104
          %v2140 = vunpack.c.h.b16 %v2104
          %v2141 = vunpack.c.l.b16 %v2105
          %v2142 = vunpack.c.h.b16 %v2105
          %v2143 = vunpack.c.l.b16 %v2106
          %v2144 = vunpack.c.h.b16 %v2106
          %v2145 = vunpack.c.l.b16 %v2107
          %v2146 = vunpack.c.h.b16 %v2107
          %v2147 = vunpack.c.l.b16 %v2108
          %v2148 = vunpack.c.h.b16 %v2108
          %v2149 = vunpack.c.l.b16 %v2109
          %v2150 = vunpack.c.h.b16 %v2109
          %v2151 = vunpack.c.l.b16 %v2110
          %v2152 = vunpack.c.h.b16 %v2110
          %v2153 = vunpack.c.l.b16 %v2111
          %v2154 = vunpack.c.h.b16 %v2111
          %v2155 = vunpack.c.l.b16 %v2112
          %v2156 = vunpack.c.h.b16 %v2112
          %v2157 = vunpack.c.l.b16 %v2113
          %v2158 = vunpack.c.h.b16 %v2113
          %v2159 = vunpack.c.l.b16 %v2114
          %v2160 = vunpack.c.h.b16 %v2114
          %v2161 = vunpack.c.l.b16 %v2115
          %v2162 = vunpack.c.h.b16 %v2115
          %v2163 = vunpack.c.l.b16 %v2116
          %v2164 = vunpack.c.h.b16 %v2116
          %v2165 = vpack.c.b16 %v2133, %v2133
          %v2166 = vpack.c.b16 %v2134, %v2134
          %v2167 = vpack.c.b16 %v2135, %v2135
          %v2168 = vpack.c.b16 %v2136, %v2136
          %v2169 = vpack.c.b16 %v2137, %v2137
          %v2170 = vpack.c.b16 %v2138, %v2138
          %v2171 = vpack.c.b16 %v2139, %v2139
          %v2172 = vpack.c.b16 %v2140, %v2140
          %v2173 = vpack.c.b16 %v2141, %v2141
          %v2174 = vpack.c.b16 %v2142, %v2142
          %v2175 = vpack.c.b16 %v2143, %v2143
          %v2176 = vpack.c.b16 %v2144, %v2144
          %v2177 = vpack.c.b16 %v2145, %v2145
          %v2178 = vpack.c.b16 %v2146, %v2146
          %v2179 = vpack.c.b16 %v2147, %v2147
          %v2180 = vpack.c.b16 %v2148, %v2148
          %v2181 = vpack.c.b16 %v2149, %v2149
          %v2182 = vpack.c.b16 %v2150, %v2150
          %v2183 = vpack.c.b16 %v2151, %v2151
          %v2184 = vpack.c.b16 %v2152, %v2152
          %v2185 = vpack.c.b16 %v2153, %v2153
          %v2186 = vpack.c.b16 %v2154, %v2154
          %v2187 = vpack.c.b16 %v2155, %v2155
          %v2188 = vpack.c.b16 %v2156, %v2156
          %v2189 = vpack.c.b16 %v2157, %v2157
          %v2190 = vpack.c.b16 %v2158, %v2158
          %v2191 = vpack.c.b16 %v2159, %v2159
          %v2192 = vpack.c.b16 %v2160, %v2160
          %v2193 = vpack.c.b16 %v2161, %v2161
          %v2194 = vpack.c.b16 %v2162, %v2162
          %v2195 = vpack.c.b16 %v2163, %v2163
          %v2196 = vpack.c.b16 %v2164, %v2164
          %vm2229 = vcmask 257024
          %2230 = vst.msk [vmem:[#allocation2] sm:$0xf] %vm2229, %v2165
          %2231 = vst.msk [vmem:[#allocation2 + $0x4] sm:$0xf] %vm2229, %v2166
          %2232 = vst.msk [vmem:[#allocation2 + $0x8] sm:$0xf] %vm2229, %v2167
          %2233 = vst.msk [vmem:[#allocation2 + $0xc] sm:$0xf] %vm2229, %v2168
          %2234 = vst.msk [vmem:[#allocation2 + $0x10] sm:$0xf] %vm2229, %v2169
          %2235 = vst.msk [vmem:[#allocation2 + $0x14] sm:$0xf] %vm2229, %v2170
          %2236 = vst.msk [vmem:[#allocation2 + $0x18] sm:$0xf] %vm2229, %v2171
          %2237 = vst.msk [vmem:[#allocation2 + $0x1c] sm:$0xf] %vm2229, %v2172
          %2238 = vst.msk [vmem:[#allocation2 + $0x20] sm:$0xf] %vm2229, %v2173
          %2239 = vst.msk [vmem:[#allocation2 + $0x24] sm:$0xf] %vm2229, %v2174
          %2240 = vst.msk [vmem:[#allocation2 + $0x28] sm:$0xf] %vm2229, %v2175
          %2241 = vst.msk [vmem:[#allocation2 + $0x2c] sm:$0xf] %vm2229, %v2176
          %2242 = vst.msk [vmem:[#allocation2 + $0x30] sm:$0xf] %vm2229, %v2177
          %2243 = vst.msk [vmem:[#allocation2 + $0x34] sm:$0xf] %vm2229, %v2178
          %2244 = vst.msk [vmem:[#allocation2 + $0x38] sm:$0xf] %vm2229, %v2179
          %2245 = vst.msk [vmem:[#allocation2 + $0x3c] sm:$0xf] %vm2229, %v2180
          %2246 = vst.msk [vmem:[#allocation2 + $0x40] sm:$0xf] %vm2229, %v2181
          %2247 = vst.msk [vmem:[#allocation2 + $0x44] sm:$0xf] %vm2229, %v2182
          %2248 = vst.msk [vmem:[#allocation2 + $0x48] sm:$0xf] %vm2229, %v2183
          %2249 = vst.msk [vmem:[#allocation2 + $0x4c] sm:$0xf] %vm2229, %v2184
          %2250 = vst.msk [vmem:[#allocation2 + $0x50] sm:$0xf] %vm2229, %v2185
          %2251 = vst.msk [vmem:[#allocation2 + $0x54] sm:$0xf] %vm2229, %v2186
          %2252 = vst.msk [vmem:[#allocation2 + $0x58] sm:$0xf] %vm2229, %v2187
          %2253 = vst.msk [vmem:[#allocation2 + $0x5c] sm:$0xf] %vm2229, %v2188
          %2254 = vst.msk [vmem:[#allocation2 + $0x60] sm:$0xf] %vm2229, %v2189
          %2255 = vst.msk [vmem:[#allocation2 + $0x64] sm:$0xf] %vm2229, %v2190
          %2256 = vst.msk [vmem:[#allocation2 + $0x68] sm:$0xf] %vm2229, %v2191
          %2257 = vst.msk [vmem:[#allocation2 + $0x6c] sm:$0xf] %vm2229, %v2192
          %2258 = vst.msk [vmem:[#allocation2 + $0x70] sm:$0xf] %vm2229, %v2193
          %2259 = vst.msk [vmem:[#allocation2 + $0x74] sm:$0xf] %vm2229, %v2194
          %2260 = vst.msk [vmem:[#allocation2 + $0x78] sm:$0xf] %vm2229, %v2195
          %2261 = vst.msk [vmem:[#allocation2 + $0x7c] sm:$0xf] %vm2229, %v2196
          %2270 = vrot.lane.b32.xlu0 %v903, 96
          %v2271 = vpop.permute.xlu0 %2270
          %2272 = vrot.lane.b32.xlu0 %v906, 96
          %v2273 = vpop.permute.xlu0 %2272
          %2274 = vrot.lane.b32.xlu0 %v911, 96
          %v2275 = vpop.permute.xlu0 %2274
          %2276 = vrot.lane.b32.xlu0 %v914, 96
          %v2277 = vpop.permute.xlu0 %2276
          %2278 = vrot.lane.b32.xlu0 %v919, 96
          %v2279 = vpop.permute.xlu0 %2278
          %2280 = vrot.lane.b32.xlu0 %v922, 96
          %v2281 = vpop.permute.xlu0 %2280
          %2282 = vrot.lane.b32.xlu0 %v927, 96
          %v2283 = vpop.permute.xlu0 %2282
          %2284 = vrot.lane.b32.xlu0 %v930, 96
          %v2285 = vpop.permute.xlu0 %2284
          %2294 = vrot.lane.b32.xlu0 %v903, 64
          %v2295 = vpop.permute.xlu0 %2294
          %2296 = vrot.lane.b32.xlu0 %v906, 64
          %v2297 = vpop.permute.xlu0 %2296
          %2298 = vrot.lane.b32.xlu0 %v911, 64
          %v2299 = vpop.permute.xlu0 %2298
          %2300 = vrot.lane.b32.xlu0 %v914, 64
          %v2301 = vpop.permute.xlu0 %2300
          %2302 = vrot.lane.b32.xlu0 %v919, 64
          %v2303 = vpop.permute.xlu0 %2302
          %2304 = vrot.lane.b32.xlu0 %v922, 64
          %v2305 = vpop.permute.xlu0 %2304
          %2306 = vrot.lane.b32.xlu0 %v927, 64
          %v2307 = vpop.permute.xlu0 %2306
          %2308 = vrot.lane.b32.xlu0 %v930, 64
          %v2309 = vpop.permute.xlu0 %2308
          %2318 = vrot.lane.b32.xlu0 %v903, 32
          %v2319 = vpop.permute.xlu0 %2318
          %2320 = vrot.lane.b32.xlu0 %v906, 32
          %v2321 = vpop.permute.xlu0 %2320
          %2322 = vrot.lane.b32.xlu0 %v911, 32
          %v2323 = vpop.permute.xlu0 %2322
          %2324 = vrot.lane.b32.xlu0 %v914, 32
          %v2325 = vpop.permute.xlu0 %2324
          %2326 = vrot.lane.b32.xlu0 %v919, 32
          %v2327 = vpop.permute.xlu0 %2326
          %2328 = vrot.lane.b32.xlu0 %v922, 32
          %v2329 = vpop.permute.xlu0 %2328
          %2330 = vrot.lane.b32.xlu0 %v927, 32
          %v2331 = vpop.permute.xlu0 %2330
          %2332 = vrot.lane.b32.xlu0 %v930, 32
          %v2333 = vpop.permute.xlu0 %2332
          %v2342 = vcombine.low %v903, %v2295
          %v2343 = vcombine.high %v903, %v2295
          %v2345 = vunpack.c.l.s4 1983009808
          %v2346 = vunpack.c.0.s8 %v2345
          %v2347 = vlaneseq
          %v2348 = vshrl.u32 %v2347, 7
          %v2349 = vsub.s32 %v2346, %v2348
          %v2350 = vrot.slane %v2342, %v2349
          %v2352 = vunpack.c.l.s4 1983009808
          %v2353 = vunpack.c.0.s8 %v2352
          %v2354 = vlaneseq
          %v2355 = vshrl.u32 %v2354, 7
          %v2356 = vsub.s32 %v2353, %v2355
          %v2357 = vrot.slane %v2343, %v2356
          %v2358 = vcombine.low %v2271, %v2319
          %v2359 = vcombine.high %v2271, %v2319
          %v2361 = vunpack.c.l.s4 1983009808
          %v2362 = vunpack.c.0.s8 %v2361
          %v2363 = vlaneseq
          %v2364 = vshrl.u32 %v2363, 7
          %v2365 = vsub.s32 %v2362, %v2364
          %v2366 = vrot.slane %v2358, %v2365
          %v2368 = vunpack.c.l.s4 1983009808
          %v2369 = vunpack.c.0.s8 %v2368
          %v2370 = vlaneseq
          %v2371 = vshrl.u32 %v2370, 7
          %v2372 = vsub.s32 %v2369, %v2371
          %v2373 = vrot.slane %v2359, %v2372
          %v2374 = vcombine.low %v2350, %v2366
          %v2375 = vcombine.high %v2350, %v2366
          %v2377 = vunpack.c.l.s4 1934713408
          %v2378 = vunpack.c.0.s8 %v2377
          %v2379 = vlaneseq
          %v2380 = vshrl.u32 %v2379, 7
          %v2381 = vsub.s32 %v2378, %v2380
          %v2382 = vrot.slane %v2374, %v2381
          %v2384 = vunpack.c.l.s4 1934713408
          %v2385 = vunpack.c.0.s8 %v2384
          %v2386 = vlaneseq
          %v2387 = vshrl.u32 %v2386, 7
          %v2388 = vsub.s32 %v2385, %v2387
          %v2389 = vrot.slane %v2375, %v2388
          %v2390 = vcombine.low %v2357, %v2373
          %v2391 = vcombine.high %v2357, %v2373
          %v2393 = vunpack.c.l.s4 1934713408
          %v2394 = vunpack.c.0.s8 %v2393
          %v2395 = vlaneseq
          %v2396 = vshrl.u32 %v2395, 7
          %v2397 = vsub.s32 %v2394, %v2396
          %v2398 = vrot.slane %v2390, %v2397
          %v2400 = vunpack.c.l.s4 1934713408
          %v2401 = vunpack.c.0.s8 %v2400
          %v2402 = vlaneseq
          %v2403 = vshrl.u32 %v2402, 7
          %v2404 = vsub.s32 %v2401, %v2403
          %v2405 = vrot.slane %v2391, %v2404
          %v2406 = vcombine.high %v2382, 0.0
          %v2407 = vcombine.high %v2389, 0.0
          %v2408 = vcombine.high %v2398, 0.0
          %v2409 = vcombine.high %v2405, 0.0
          %v2410 = vcombine.low %v906, %v2297
          %v2411 = vcombine.high %v906, %v2297
          %v2413 = vunpack.c.l.s4 1983009808
          %v2414 = vunpack.c.0.s8 %v2413
          %v2415 = vlaneseq
          %v2416 = vshrl.u32 %v2415, 7
          %v2417 = vsub.s32 %v2414, %v2416
          %v2418 = vrot.slane %v2410, %v2417
          %v2420 = vunpack.c.l.s4 1983009808
          %v2421 = vunpack.c.0.s8 %v2420
          %v2422 = vlaneseq
          %v2423 = vshrl.u32 %v2422, 7
          %v2424 = vsub.s32 %v2421, %v2423
          %v2425 = vrot.slane %v2411, %v2424
          %v2426 = vcombine.low %v2273, %v2321
          %v2427 = vcombine.high %v2273, %v2321
          %v2429 = vunpack.c.l.s4 1983009808
          %v2430 = vunpack.c.0.s8 %v2429
          %v2431 = vlaneseq
          %v2432 = vshrl.u32 %v2431, 7
          %v2433 = vsub.s32 %v2430, %v2432
          %v2434 = vrot.slane %v2426, %v2433
          %v2436 = vunpack.c.l.s4 1983009808
          %v2437 = vunpack.c.0.s8 %v2436
          %v2438 = vlaneseq
          %v2439 = vshrl.u32 %v2438, 7
          %v2440 = vsub.s32 %v2437, %v2439
          %v2441 = vrot.slane %v2427, %v2440
          %v2442 = vcombine.low %v2418, %v2434
          %v2443 = vcombine.high %v2418, %v2434
          %v2445 = vunpack.c.l.s4 1934713408
          %v2446 = vunpack.c.0.s8 %v2445
          %v2447 = vlaneseq
          %v2448 = vshrl.u32 %v2447, 7
          %v2449 = vsub.s32 %v2446, %v2448
          %v2450 = vrot.slane %v2442, %v2449
          %v2452 = vunpack.c.l.s4 1934713408
          %v2453 = vunpack.c.0.s8 %v2452
          %v2454 = vlaneseq
          %v2455 = vshrl.u32 %v2454, 7
          %v2456 = vsub.s32 %v2453, %v2455
          %v2457 = vrot.slane %v2443, %v2456
          %v2458 = vcombine.low %v2425, %v2441
          %v2459 = vcombine.high %v2425, %v2441
          %v2461 = vunpack.c.l.s4 1934713408
          %v2462 = vunpack.c.0.s8 %v2461
          %v2463 = vlaneseq
          %v2464 = vshrl.u32 %v2463, 7
          %v2465 = vsub.s32 %v2462, %v2464
          %v2466 = vrot.slane %v2458, %v2465
          %v2468 = vunpack.c.l.s4 1934713408
          %v2469 = vunpack.c.0.s8 %v2468
          %v2470 = vlaneseq
          %v2471 = vshrl.u32 %v2470, 7
          %v2472 = vsub.s32 %v2469, %v2471
          %v2473 = vrot.slane %v2459, %v2472
          %v2474 = vcombine.high %v2450, 0.0
          %v2475 = vcombine.high %v2457, 0.0
          %v2476 = vcombine.high %v2466, 0.0
          %v2477 = vcombine.high %v2473, 0.0
          %v2478 = vcombine.low %v911, %v2299
          %v2479 = vcombine.high %v911, %v2299
          %v2481 = vunpack.c.l.s4 1983009808
          %v2482 = vunpack.c.0.s8 %v2481
          %v2483 = vlaneseq
          %v2484 = vshrl.u32 %v2483, 7
          %v2485 = vsub.s32 %v2482, %v2484
          %v2486 = vrot.slane %v2478, %v2485
          %v2488 = vunpack.c.l.s4 1983009808
          %v2489 = vunpack.c.0.s8 %v2488
          %v2490 = vlaneseq
          %v2491 = vshrl.u32 %v2490, 7
          %v2492 = vsub.s32 %v2489, %v2491
          %v2493 = vrot.slane %v2479, %v2492
          %v2494 = vcombine.low %v2275, %v2323
          %v2495 = vcombine.high %v2275, %v2323
          %v2497 = vunpack.c.l.s4 1983009808
          %v2498 = vunpack.c.0.s8 %v2497
          %v2499 = vlaneseq
          %v2500 = vshrl.u32 %v2499, 7
          %v2501 = vsub.s32 %v2498, %v2500
          %v2502 = vrot.slane %v2494, %v2501
          %v2504 = vunpack.c.l.s4 1983009808
          %v2505 = vunpack.c.0.s8 %v2504
          %v2506 = vlaneseq
          %v2507 = vshrl.u32 %v2506, 7
          %v2508 = vsub.s32 %v2505, %v2507
          %v2509 = vrot.slane %v2495, %v2508
          %v2510 = vcombine.low %v2486, %v2502
          %v2511 = vcombine.high %v2486, %v2502
          %v2513 = vunpack.c.l.s4 1934713408
          %v2514 = vunpack.c.0.s8 %v2513
          %v2515 = vlaneseq
          %v2516 = vshrl.u32 %v2515, 7
          %v2517 = vsub.s32 %v2514, %v2516
          %v2518 = vrot.slane %v2510, %v2517
          %v2520 = vunpack.c.l.s4 1934713408
          %v2521 = vunpack.c.0.s8 %v2520
          %v2522 = vlaneseq
          %v2523 = vshrl.u32 %v2522, 7
          %v2524 = vsub.s32 %v2521, %v2523
          %v2525 = vrot.slane %v2511, %v2524
          %v2526 = vcombine.low %v2493, %v2509
          %v2527 = vcombine.high %v2493, %v2509
          %v2529 = vunpack.c.l.s4 1934713408
          %v2530 = vunpack.c.0.s8 %v2529
          %v2531 = vlaneseq
          %v2532 = vshrl.u32 %v2531, 7
          %v2533 = vsub.s32 %v2530, %v2532
          %v2534 = vrot.slane %v2526, %v2533
          %v2536 = vunpack.c.l.s4 1934713408
          %v2537 = vunpack.c.0.s8 %v2536
          %v2538 = vlaneseq
          %v2539 = vshrl.u32 %v2538, 7
          %v2540 = vsub.s32 %v2537, %v2539
          %v2541 = vrot.slane %v2527, %v2540
          %v2542 = vcombine.high %v2518, 0.0
          %v2543 = vcombine.high %v2525, 0.0
          %v2544 = vcombine.high %v2534, 0.0
          %v2545 = vcombine.high %v2541, 0.0
          %v2546 = vcombine.low %v914, %v2301
          %v2547 = vcombine.high %v914, %v2301
          %v2549 = vunpack.c.l.s4 1983009808
          %v2550 = vunpack.c.0.s8 %v2549
          %v2551 = vlaneseq
          %v2552 = vshrl.u32 %v2551, 7
          %v2553 = vsub.s32 %v2550, %v2552
          %v2554 = vrot.slane %v2546, %v2553
          %v2556 = vunpack.c.l.s4 1983009808
          %v2557 = vunpack.c.0.s8 %v2556
          %v2558 = vlaneseq
          %v2559 = vshrl.u32 %v2558, 7
          %v2560 = vsub.s32 %v2557, %v2559
          %v2561 = vrot.slane %v2547, %v2560
          %v2562 = vcombine.low %v2277, %v2325
          %v2563 = vcombine.high %v2277, %v2325
          %v2565 = vunpack.c.l.s4 1983009808
          %v2566 = vunpack.c.0.s8 %v2565
          %v2567 = vlaneseq
          %v2568 = vshrl.u32 %v2567, 7
          %v2569 = vsub.s32 %v2566, %v2568
          %v2570 = vrot.slane %v2562, %v2569
          %v2572 = vunpack.c.l.s4 1983009808
          %v2573 = vunpack.c.0.s8 %v2572
          %v2574 = vlaneseq
          %v2575 = vshrl.u32 %v2574, 7
          %v2576 = vsub.s32 %v2573, %v2575
          %v2577 = vrot.slane %v2563, %v2576
          %v2578 = vcombine.low %v2554, %v2570
          %v2579 = vcombine.high %v2554, %v2570
          %v2581 = vunpack.c.l.s4 1934713408
          %v2582 = vunpack.c.0.s8 %v2581
          %v2583 = vlaneseq
          %v2584 = vshrl.u32 %v2583, 7
          %v2585 = vsub.s32 %v2582, %v2584
          %v2586 = vrot.slane %v2578, %v2585
          %v2588 = vunpack.c.l.s4 1934713408
          %v2589 = vunpack.c.0.s8 %v2588
          %v2590 = vlaneseq
          %v2591 = vshrl.u32 %v2590, 7
          %v2592 = vsub.s32 %v2589, %v2591
          %v2593 = vrot.slane %v2579, %v2592
          %v2594 = vcombine.low %v2561, %v2577
          %v2595 = vcombine.high %v2561, %v2577
          %v2597 = vunpack.c.l.s4 1934713408
          %v2598 = vunpack.c.0.s8 %v2597
          %v2599 = vlaneseq
          %v2600 = vshrl.u32 %v2599, 7
          %v2601 = vsub.s32 %v2598, %v2600
          %v2602 = vrot.slane %v2594, %v2601
          %v2604 = vunpack.c.l.s4 1934713408
          %v2605 = vunpack.c.0.s8 %v2604
          %v2606 = vlaneseq
          %v2607 = vshrl.u32 %v2606, 7
          %v2608 = vsub.s32 %v2605, %v2607
          %v2609 = vrot.slane %v2595, %v2608
          %v2610 = vcombine.high %v2586, 0.0
          %v2611 = vcombine.high %v2593, 0.0
          %v2612 = vcombine.high %v2602, 0.0
          %v2613 = vcombine.high %v2609, 0.0
          %v2614 = vcombine.low %v919, %v2303
          %v2615 = vcombine.high %v919, %v2303
          %v2617 = vunpack.c.l.s4 1983009808
          %v2618 = vunpack.c.0.s8 %v2617
          %v2619 = vlaneseq
          %v2620 = vshrl.u32 %v2619, 7
          %v2621 = vsub.s32 %v2618, %v2620
          %v2622 = vrot.slane %v2614, %v2621
          %v2624 = vunpack.c.l.s4 1983009808
          %v2625 = vunpack.c.0.s8 %v2624
          %v2626 = vlaneseq
          %v2627 = vshrl.u32 %v2626, 7
          %v2628 = vsub.s32 %v2625, %v2627
          %v2629 = vrot.slane %v2615, %v2628
          %v2630 = vcombine.low %v2279, %v2327
          %v2631 = vcombine.high %v2279, %v2327
          %v2633 = vunpack.c.l.s4 1983009808
          %v2634 = vunpack.c.0.s8 %v2633
          %v2635 = vlaneseq
          %v2636 = vshrl.u32 %v2635, 7
          %v2637 = vsub.s32 %v2634, %v2636
          %v2638 = vrot.slane %v2630, %v2637
          %v2640 = vunpack.c.l.s4 1983009808
          %v2641 = vunpack.c.0.s8 %v2640
          %v2642 = vlaneseq
          %v2643 = vshrl.u32 %v2642, 7
          %v2644 = vsub.s32 %v2641, %v2643
          %v2645 = vrot.slane %v2631, %v2644
          %v2646 = vcombine.low %v2622, %v2638
          %v2647 = vcombine.high %v2622, %v2638
          %v2649 = vunpack.c.l.s4 1934713408
          %v2650 = vunpack.c.0.s8 %v2649
          %v2651 = vlaneseq
          %v2652 = vshrl.u32 %v2651, 7
          %v2653 = vsub.s32 %v2650, %v2652
          %v2654 = vrot.slane %v2646, %v2653
          %v2656 = vunpack.c.l.s4 1934713408
          %v2657 = vunpack.c.0.s8 %v2656
          %v2658 = vlaneseq
          %v2659 = vshrl.u32 %v2658, 7
          %v2660 = vsub.s32 %v2657, %v2659
          %v2661 = vrot.slane %v2647, %v2660
          %v2662 = vcombine.low %v2629, %v2645
          %v2663 = vcombine.high %v2629, %v2645
          %v2665 = vunpack.c.l.s4 1934713408
          %v2666 = vunpack.c.0.s8 %v2665
          %v2667 = vlaneseq
          %v2668 = vshrl.u32 %v2667, 7
          %v2669 = vsub.s32 %v2666, %v2668
          %v2670 = vrot.slane %v2662, %v2669
          %v2672 = vunpack.c.l.s4 1934713408
          %v2673 = vunpack.c.0.s8 %v2672
          %v2674 = vlaneseq
          %v2675 = vshrl.u32 %v2674, 7
          %v2676 = vsub.s32 %v2673, %v2675
          %v2677 = vrot.slane %v2663, %v2676
          %v2678 = vcombine.high %v2654, 0.0
          %v2679 = vcombine.high %v2661, 0.0
          %v2680 = vcombine.high %v2670, 0.0
          %v2681 = vcombine.high %v2677, 0.0
          %v2682 = vcombine.low %v922, %v2305
          %v2683 = vcombine.high %v922, %v2305
          %v2685 = vunpack.c.l.s4 1983009808
          %v2686 = vunpack.c.0.s8 %v2685
          %v2687 = vlaneseq
          %v2688 = vshrl.u32 %v2687, 7
          %v2689 = vsub.s32 %v2686, %v2688
          %v2690 = vrot.slane %v2682, %v2689
          %v2692 = vunpack.c.l.s4 1983009808
          %v2693 = vunpack.c.0.s8 %v2692
          %v2694 = vlaneseq
          %v2695 = vshrl.u32 %v2694, 7
          %v2696 = vsub.s32 %v2693, %v2695
          %v2697 = vrot.slane %v2683, %v2696
          %v2698 = vcombine.low %v2281, %v2329
          %v2699 = vcombine.high %v2281, %v2329
          %v2701 = vunpack.c.l.s4 1983009808
          %v2702 = vunpack.c.0.s8 %v2701
          %v2703 = vlaneseq
          %v2704 = vshrl.u32 %v2703, 7
          %v2705 = vsub.s32 %v2702, %v2704
          %v2706 = vrot.slane %v2698, %v2705
          %v2708 = vunpack.c.l.s4 1983009808
          %v2709 = vunpack.c.0.s8 %v2708
          %v2710 = vlaneseq
          %v2711 = vshrl.u32 %v2710, 7
          %v2712 = vsub.s32 %v2709, %v2711
          %v2713 = vrot.slane %v2699, %v2712
          %v2714 = vcombine.low %v2690, %v2706
          %v2715 = vcombine.high %v2690, %v2706
          %v2717 = vunpack.c.l.s4 1934713408
          %v2718 = vunpack.c.0.s8 %v2717
          %v2719 = vlaneseq
          %v2720 = vshrl.u32 %v2719, 7
          %v2721 = vsub.s32 %v2718, %v2720
          %v2722 = vrot.slane %v2714, %v2721
          %v2724 = vunpack.c.l.s4 1934713408
          %v2725 = vunpack.c.0.s8 %v2724
          %v2726 = vlaneseq
          %v2727 = vshrl.u32 %v2726, 7
          %v2728 = vsub.s32 %v2725, %v2727
          %v2729 = vrot.slane %v2715, %v2728
          %v2730 = vcombine.low %v2697, %v2713
          %v2731 = vcombine.high %v2697, %v2713
          %v2733 = vunpack.c.l.s4 1934713408
          %v2734 = vunpack.c.0.s8 %v2733
          %v2735 = vlaneseq
          %v2736 = vshrl.u32 %v2735, 7
          %v2737 = vsub.s32 %v2734, %v2736
          %v2738 = vrot.slane %v2730, %v2737
          %v2740 = vunpack.c.l.s4 1934713408
          %v2741 = vunpack.c.0.s8 %v2740
          %v2742 = vlaneseq
          %v2743 = vshrl.u32 %v2742, 7
          %v2744 = vsub.s32 %v2741, %v2743
          %v2745 = vrot.slane %v2731, %v2744
          %v2746 = vcombine.high %v2722, 0.0
          %v2747 = vcombine.high %v2729, 0.0
          %v2748 = vcombine.high %v2738, 0.0
          %v2749 = vcombine.high %v2745, 0.0
          %v2750 = vcombine.low %v927, %v2307
          %v2751 = vcombine.high %v927, %v2307
          %v2753 = vunpack.c.l.s4 1983009808
          %v2754 = vunpack.c.0.s8 %v2753
          %v2755 = vlaneseq
          %v2756 = vshrl.u32 %v2755, 7
          %v2757 = vsub.s32 %v2754, %v2756
          %v2758 = vrot.slane %v2750, %v2757
          %v2760 = vunpack.c.l.s4 1983009808
          %v2761 = vunpack.c.0.s8 %v2760
          %v2762 = vlaneseq
          %v2763 = vshrl.u32 %v2762, 7
          %v2764 = vsub.s32 %v2761, %v2763
          %v2765 = vrot.slane %v2751, %v2764
          %v2766 = vcombine.low %v2283, %v2331
          %v2767 = vcombine.high %v2283, %v2331
          %v2769 = vunpack.c.l.s4 1983009808
          %v2770 = vunpack.c.0.s8 %v2769
          %v2771 = vlaneseq
          %v2772 = vshrl.u32 %v2771, 7
          %v2773 = vsub.s32 %v2770, %v2772
          %v2774 = vrot.slane %v2766, %v2773
          %v2776 = vunpack.c.l.s4 1983009808
          %v2777 = vunpack.c.0.s8 %v2776
          %v2778 = vlaneseq
          %v2779 = vshrl.u32 %v2778, 7
          %v2780 = vsub.s32 %v2777, %v2779
          %v2781 = vrot.slane %v2767, %v2780
          %v2782 = vcombine.low %v2758, %v2774
          %v2783 = vcombine.high %v2758, %v2774
          %v2785 = vunpack.c.l.s4 1934713408
          %v2786 = vunpack.c.0.s8 %v2785
          %v2787 = vlaneseq
          %v2788 = vshrl.u32 %v2787, 7
          %v2789 = vsub.s32 %v2786, %v2788
          %v2790 = vrot.slane %v2782, %v2789
          %v2792 = vunpack.c.l.s4 1934713408
          %v2793 = vunpack.c.0.s8 %v2792
          %v2794 = vlaneseq
          %v2795 = vshrl.u32 %v2794, 7
          %v2796 = vsub.s32 %v2793, %v2795
          %v2797 = vrot.slane %v2783, %v2796
          %v2798 = vcombine.low %v2765, %v2781
          %v2799 = vcombine.high %v2765, %v2781
          %v2801 = vunpack.c.l.s4 1934713408
          %v2802 = vunpack.c.0.s8 %v2801
          %v2803 = vlaneseq
          %v2804 = vshrl.u32 %v2803, 7
          %v2805 = vsub.s32 %v2802, %v2804
          %v2806 = vrot.slane %v2798, %v2805
          %v2808 = vunpack.c.l.s4 1934713408
          %v2809 = vunpack.c.0.s8 %v2808
          %v2810 = vlaneseq
          %v2811 = vshrl.u32 %v2810, 7
          %v2812 = vsub.s32 %v2809, %v2811
          %v2813 = vrot.slane %v2799, %v2812
          %v2814 = vcombine.high %v2790, 0.0
          %v2815 = vcombine.high %v2797, 0.0
          %v2816 = vcombine.high %v2806, 0.0
          %v2817 = vcombine.high %v2813, 0.0
          %v2818 = vcombine.low %v930, %v2309
          %v2819 = vcombine.high %v930, %v2309
          %v2821 = vunpack.c.l.s4 1983009808
          %v2822 = vunpack.c.0.s8 %v2821
          %v2823 = vlaneseq
          %v2824 = vshrl.u32 %v2823, 7
          %v2825 = vsub.s32 %v2822, %v2824
          %v2826 = vrot.slane %v2818, %v2825
          %v2828 = vunpack.c.l.s4 1983009808
          %v2829 = vunpack.c.0.s8 %v2828
          %v2830 = vlaneseq
          %v2831 = vshrl.u32 %v2830, 7
          %v2832 = vsub.s32 %v2829, %v2831
          %v2833 = vrot.slane %v2819, %v2832
          %v2834 = vcombine.low %v2285, %v2333
          %v2835 = vcombine.high %v2285, %v2333
          %v2837 = vunpack.c.l.s4 1983009808
          %v2838 = vunpack.c.0.s8 %v2837
          %v2839 = vlaneseq
          %v2840 = vshrl.u32 %v2839, 7
          %v2841 = vsub.s32 %v2838, %v2840
          %v2842 = vrot.slane %v2834, %v2841
          %v2844 = vunpack.c.l.s4 1983009808
          %v2845 = vunpack.c.0.s8 %v2844
          %v2846 = vlaneseq
          %v2847 = vshrl.u32 %v2846, 7
          %v2848 = vsub.s32 %v2845, %v2847
          %v2849 = vrot.slane %v2835, %v2848
          %v2850 = vcombine.low %v2826, %v2842
          %v2851 = vcombine.high %v2826, %v2842
          %v2853 = vunpack.c.l.s4 1934713408
          %v2854 = vunpack.c.0.s8 %v2853
          %v2855 = vlaneseq
          %v2856 = vshrl.u32 %v2855, 7
          %v2857 = vsub.s32 %v2854, %v2856
          %v2858 = vrot.slane %v2850, %v2857
          %v2860 = vunpack.c.l.s4 1934713408
          %v2861 = vunpack.c.0.s8 %v2860
          %v2862 = vlaneseq
          %v2863 = vshrl.u32 %v2862, 7
          %v2864 = vsub.s32 %v2861, %v2863
          %v2865 = vrot.slane %v2851, %v2864
          %v2866 = vcombine.low %v2833, %v2849
          %v2867 = vcombine.high %v2833, %v2849
          %v2869 = vunpack.c.l.s4 1934713408
          %v2870 = vunpack.c.0.s8 %v2869
          %v2871 = vlaneseq
          %v2872 = vshrl.u32 %v2871, 7
          %v2873 = vsub.s32 %v2870, %v2872
          %v2874 = vrot.slane %v2866, %v2873
          %v2876 = vunpack.c.l.s4 1934713408
          %v2877 = vunpack.c.0.s8 %v2876
          %v2878 = vlaneseq
          %v2879 = vshrl.u32 %v2878, 7
          %v2880 = vsub.s32 %v2877, %v2879
          %v2881 = vrot.slane %v2867, %v2880
          %v2882 = vcombine.high %v2858, 0.0
          %v2883 = vcombine.high %v2865, 0.0
          %v2884 = vcombine.high %v2874, 0.0
          %v2885 = vcombine.high %v2881, 0.0
          %v2886 = vcombine.low %v2382, %v2389
          %v2888 = vunpack.c.l.s4 1983009808
          %v2889 = vunpack.c.0.s8 %v2888
          %v2890 = vlaneseq
          %v2891 = vshrl.u32 %v2890, 7
          %v2892 = vsub.s32 %v2889, %v2891
          %v2893 = vrot.slane %v2886, %v2892
          %v2894 = vcombine.low %v2406, %v2407
          %v2896 = vunpack.c.l.s4 1983009808
          %v2897 = vunpack.c.0.s8 %v2896
          %v2898 = vlaneseq
          %v2899 = vshrl.u32 %v2898, 7
          %v2900 = vsub.s32 %v2897, %v2899
          %v2901 = vrot.slane %v2894, %v2900
          %v2902 = vcombine.low %v2398, %v2405
          %v2904 = vunpack.c.l.s4 1983009808
          %v2905 = vunpack.c.0.s8 %v2904
          %v2906 = vlaneseq
          %v2907 = vshrl.u32 %v2906, 7
          %v2908 = vsub.s32 %v2905, %v2907
          %v2909 = vrot.slane %v2902, %v2908
          %v2910 = vcombine.low %v2408, %v2409
          %v2912 = vunpack.c.l.s4 1983009808
          %v2913 = vunpack.c.0.s8 %v2912
          %v2914 = vlaneseq
          %v2915 = vshrl.u32 %v2914, 7
          %v2916 = vsub.s32 %v2913, %v2915
          %v2917 = vrot.slane %v2910, %v2916
          %v2918 = vcombine.low %v2893, %v2901
          %v2919 = vcombine.high %v2893, %v2901
          %v2921 = vunpack.c.l.s4 1934713408
          %v2922 = vunpack.c.0.s8 %v2921
          %v2923 = vlaneseq
          %v2924 = vshrl.u32 %v2923, 7
          %v2925 = vsub.s32 %v2922, %v2924
          %v2926 = vrot.slane %v2918, %v2925
          %v2928 = vunpack.c.l.s4 1934713408
          %v2929 = vunpack.c.0.s8 %v2928
          %v2930 = vlaneseq
          %v2931 = vshrl.u32 %v2930, 7
          %v2932 = vsub.s32 %v2929, %v2931
          %v2933 = vrot.slane %v2919, %v2932
          %v2934 = vcombine.low %v2909, %v2917
          %v2935 = vcombine.high %v2909, %v2917
          %v2937 = vunpack.c.l.s4 1934713408
          %v2938 = vunpack.c.0.s8 %v2937
          %v2939 = vlaneseq
          %v2940 = vshrl.u32 %v2939, 7
          %v2941 = vsub.s32 %v2938, %v2940
          %v2942 = vrot.slane %v2934, %v2941
          %v2944 = vunpack.c.l.s4 1934713408
          %v2945 = vunpack.c.0.s8 %v2944
          %v2946 = vlaneseq
          %v2947 = vshrl.u32 %v2946, 7
          %v2948 = vsub.s32 %v2945, %v2947
          %v2949 = vrot.slane %v2935, %v2948
          %v2950 = vcombine.low %v2926, %v2942
          %v2951 = vcombine.high %v2926, %v2942
          %v2952 = vcombine.low %v2933, %v2949
          %v2953 = vcombine.high %v2933, %v2949
          %v2954 = vcombine.low %v2450, %v2457
          %v2956 = vunpack.c.l.s4 1983009808
          %v2957 = vunpack.c.0.s8 %v2956
          %v2958 = vlaneseq
          %v2959 = vshrl.u32 %v2958, 7
          %v2960 = vsub.s32 %v2957, %v2959
          %v2961 = vrot.slane %v2954, %v2960
          %v2962 = vcombine.low %v2474, %v2475
          %v2964 = vunpack.c.l.s4 1983009808
          %v2965 = vunpack.c.0.s8 %v2964
          %v2966 = vlaneseq
          %v2967 = vshrl.u32 %v2966, 7
          %v2968 = vsub.s32 %v2965, %v2967
          %v2969 = vrot.slane %v2962, %v2968
          %v2970 = vcombine.low %v2466, %v2473
          %v2972 = vunpack.c.l.s4 1983009808
          %v2973 = vunpack.c.0.s8 %v2972
          %v2974 = vlaneseq
          %v2975 = vshrl.u32 %v2974, 7
          %v2976 = vsub.s32 %v2973, %v2975
          %v2977 = vrot.slane %v2970, %v2976
          %v2978 = vcombine.low %v2476, %v2477
          %v2980 = vunpack.c.l.s4 1983009808
          %v2981 = vunpack.c.0.s8 %v2980
          %v2982 = vlaneseq
          %v2983 = vshrl.u32 %v2982, 7
          %v2984 = vsub.s32 %v2981, %v2983
          %v2985 = vrot.slane %v2978, %v2984
          %v2986 = vcombine.low %v2961, %v2969
          %v2987 = vcombine.high %v2961, %v2969
          %v2989 = vunpack.c.l.s4 1934713408
          %v2990 = vunpack.c.0.s8 %v2989
          %v2991 = vlaneseq
          %v2992 = vshrl.u32 %v2991, 7
          %v2993 = vsub.s32 %v2990, %v2992
          %v2994 = vrot.slane %v2986, %v2993
          %v2996 = vunpack.c.l.s4 1934713408
          %v2997 = vunpack.c.0.s8 %v2996
          %v2998 = vlaneseq
          %v2999 = vshrl.u32 %v2998, 7
          %v3000 = vsub.s32 %v2997, %v2999
          %v3001 = vrot.slane %v2987, %v3000
          %v3002 = vcombine.low %v2977, %v2985
          %v3003 = vcombine.high %v2977, %v2985
          %v3005 = vunpack.c.l.s4 1934713408
          %v3006 = vunpack.c.0.s8 %v3005
          %v3007 = vlaneseq
          %v3008 = vshrl.u32 %v3007, 7
          %v3009 = vsub.s32 %v3006, %v3008
          %v3010 = vrot.slane %v3002, %v3009
          %v3012 = vunpack.c.l.s4 1934713408
          %v3013 = vunpack.c.0.s8 %v3012
          %v3014 = vlaneseq
          %v3015 = vshrl.u32 %v3014, 7
          %v3016 = vsub.s32 %v3013, %v3015
          %v3017 = vrot.slane %v3003, %v3016
          %v3018 = vcombine.low %v2994, %v3010
          %v3019 = vcombine.high %v2994, %v3010
          %v3020 = vcombine.low %v3001, %v3017
          %v3021 = vcombine.high %v3001, %v3017
          %v3022 = vcombine.low %v2518, %v2525
          %v3024 = vunpack.c.l.s4 1983009808
          %v3025 = vunpack.c.0.s8 %v3024
          %v3026 = vlaneseq
          %v3027 = vshrl.u32 %v3026, 7
          %v3028 = vsub.s32 %v3025, %v3027
          %v3029 = vrot.slane %v3022, %v3028
          %v3030 = vcombine.low %v2542, %v2543
          %v3032 = vunpack.c.l.s4 1983009808
          %v3033 = vunpack.c.0.s8 %v3032
          %v3034 = vlaneseq
          %v3035 = vshrl.u32 %v3034, 7
          %v3036 = vsub.s32 %v3033, %v3035
          %v3037 = vrot.slane %v3030, %v3036
          %v3038 = vcombine.low %v2534, %v2541
          %v3040 = vunpack.c.l.s4 1983009808
          %v3041 = vunpack.c.0.s8 %v3040
          %v3042 = vlaneseq
          %v3043 = vshrl.u32 %v3042, 7
          %v3044 = vsub.s32 %v3041, %v3043
          %v3045 = vrot.slane %v3038, %v3044
          %v3046 = vcombine.low %v2544, %v2545
          %v3048 = vunpack.c.l.s4 1983009808
          %v3049 = vunpack.c.0.s8 %v3048
          %v3050 = vlaneseq
          %v3051 = vshrl.u32 %v3050, 7
          %v3052 = vsub.s32 %v3049, %v3051
          %v3053 = vrot.slane %v3046, %v3052
          %v3054 = vcombine.low %v3029, %v3037
          %v3055 = vcombine.high %v3029, %v3037
          %v3057 = vunpack.c.l.s4 1934713408
          %v3058 = vunpack.c.0.s8 %v3057
          %v3059 = vlaneseq
          %v3060 = vshrl.u32 %v3059, 7
          %v3061 = vsub.s32 %v3058, %v3060
          %v3062 = vrot.slane %v3054, %v3061
          %v3064 = vunpack.c.l.s4 1934713408
          %v3065 = vunpack.c.0.s8 %v3064
          %v3066 = vlaneseq
          %v3067 = vshrl.u32 %v3066, 7
          %v3068 = vsub.s32 %v3065, %v3067
          %v3069 = vrot.slane %v3055, %v3068
          %v3070 = vcombine.low %v3045, %v3053
          %v3071 = vcombine.high %v3045, %v3053
          %v3073 = vunpack.c.l.s4 1934713408
          %v3074 = vunpack.c.0.s8 %v3073
          %v3075 = vlaneseq
          %v3076 = vshrl.u32 %v3075, 7
          %v3077 = vsub.s32 %v3074, %v3076
          %v3078 = vrot.slane %v3070, %v3077
          %v3080 = vunpack.c.l.s4 1934713408
          %v3081 = vunpack.c.0.s8 %v3080
          %v3082 = vlaneseq
          %v3083 = vshrl.u32 %v3082, 7
          %v3084 = vsub.s32 %v3081, %v3083
          %v3085 = vrot.slane %v3071, %v3084
          %v3086 = vcombine.low %v3062, %v3078
          %v3087 = vcombine.high %v3062, %v3078
          %v3088 = vcombine.low %v3069, %v3085
          %v3089 = vcombine.high %v3069, %v3085
          %v3090 = vcombine.low %v2586, %v2593
          %v3092 = vunpack.c.l.s4 1983009808
          %v3093 = vunpack.c.0.s8 %v3092
          %v3094 = vlaneseq
          %v3095 = vshrl.u32 %v3094, 7
          %v3096 = vsub.s32 %v3093, %v3095
          %v3097 = vrot.slane %v3090, %v3096
          %v3098 = vcombine.low %v2610, %v2611
          %v3100 = vunpack.c.l.s4 1983009808
          %v3101 = vunpack.c.0.s8 %v3100
          %v3102 = vlaneseq
          %v3103 = vshrl.u32 %v3102, 7
          %v3104 = vsub.s32 %v3101, %v3103
          %v3105 = vrot.slane %v3098, %v3104
          %v3106 = vcombine.low %v2602, %v2609
          %v3108 = vunpack.c.l.s4 1983009808
          %v3109 = vunpack.c.0.s8 %v3108
          %v3110 = vlaneseq
          %v3111 = vshrl.u32 %v3110, 7
          %v3112 = vsub.s32 %v3109, %v3111
          %v3113 = vrot.slane %v3106, %v3112
          %v3114 = vcombine.low %v2612, %v2613
          %v3116 = vunpack.c.l.s4 1983009808
          %v3117 = vunpack.c.0.s8 %v3116
          %v3118 = vlaneseq
          %v3119 = vshrl.u32 %v3118, 7
          %v3120 = vsub.s32 %v3117, %v3119
          %v3121 = vrot.slane %v3114, %v3120
          %v3122 = vcombine.low %v3097, %v3105
          %v3123 = vcombine.high %v3097, %v3105
          %v3125 = vunpack.c.l.s4 1934713408
          %v3126 = vunpack.c.0.s8 %v3125
          %v3127 = vlaneseq
          %v3128 = vshrl.u32 %v3127, 7
          %v3129 = vsub.s32 %v3126, %v3128
          %v3130 = vrot.slane %v3122, %v3129
          %v3132 = vunpack.c.l.s4 1934713408
          %v3133 = vunpack.c.0.s8 %v3132
          %v3134 = vlaneseq
          %v3135 = vshrl.u32 %v3134, 7
          %v3136 = vsub.s32 %v3133, %v3135
          %v3137 = vrot.slane %v3123, %v3136
          %v3138 = vcombine.low %v3113, %v3121
          %v3139 = vcombine.high %v3113, %v3121
          %v3141 = vunpack.c.l.s4 1934713408
          %v3142 = vunpack.c.0.s8 %v3141
          %v3143 = vlaneseq
          %v3144 = vshrl.u32 %v3143, 7
          %v3145 = vsub.s32 %v3142, %v3144
          %v3146 = vrot.slane %v3138, %v3145
          %v3148 = vunpack.c.l.s4 1934713408
          %v3149 = vunpack.c.0.s8 %v3148
          %v3150 = vlaneseq
          %v3151 = vshrl.u32 %v3150, 7
          %v3152 = vsub.s32 %v3149, %v3151
          %v3153 = vrot.slane %v3139, %v3152
          %v3154 = vcombine.low %v3130, %v3146
          %v3155 = vcombine.high %v3130, %v3146
          %v3156 = vcombine.low %v3137, %v3153
          %v3157 = vcombine.high %v3137, %v3153
          %v3158 = vcombine.low %v2654, %v2661
          %v3160 = vunpack.c.l.s4 1983009808
          %v3161 = vunpack.c.0.s8 %v3160
          %v3162 = vlaneseq
          %v3163 = vshrl.u32 %v3162, 7
          %v3164 = vsub.s32 %v3161, %v3163
          %v3165 = vrot.slane %v3158, %v3164
          %v3166 = vcombine.low %v2678, %v2679
          %v3168 = vunpack.c.l.s4 1983009808
          %v3169 = vunpack.c.0.s8 %v3168
          %v3170 = vlaneseq
          %v3171 = vshrl.u32 %v3170, 7
          %v3172 = vsub.s32 %v3169, %v3171
          %v3173 = vrot.slane %v3166, %v3172
          %v3174 = vcombine.low %v2670, %v2677
          %v3176 = vunpack.c.l.s4 1983009808
          %v3177 = vunpack.c.0.s8 %v3176
          %v3178 = vlaneseq
          %v3179 = vshrl.u32 %v3178, 7
          %v3180 = vsub.s32 %v3177, %v3179
          %v3181 = vrot.slane %v3174, %v3180
          %v3182 = vcombine.low %v2680, %v2681
          %v3184 = vunpack.c.l.s4 1983009808
          %v3185 = vunpack.c.0.s8 %v3184
          %v3186 = vlaneseq
          %v3187 = vshrl.u32 %v3186, 7
          %v3188 = vsub.s32 %v3185, %v3187
          %v3189 = vrot.slane %v3182, %v3188
          %v3190 = vcombine.low %v3165, %v3173
          %v3191 = vcombine.high %v3165, %v3173
          %v3193 = vunpack.c.l.s4 1934713408
          %v3194 = vunpack.c.0.s8 %v3193
          %v3195 = vlaneseq
          %v3196 = vshrl.u32 %v3195, 7
          %v3197 = vsub.s32 %v3194, %v3196
          %v3198 = vrot.slane %v3190, %v3197
          %v3200 = vunpack.c.l.s4 1934713408
          %v3201 = vunpack.c.0.s8 %v3200
          %v3202 = vlaneseq
          %v3203 = vshrl.u32 %v3202, 7
          %v3204 = vsub.s32 %v3201, %v3203
          %v3205 = vrot.slane %v3191, %v3204
          %v3206 = vcombine.low %v3181, %v3189
          %v3207 = vcombine.high %v3181, %v3189
          %v3209 = vunpack.c.l.s4 1934713408
          %v3210 = vunpack.c.0.s8 %v3209
          %v3211 = vlaneseq
          %v3212 = vshrl.u32 %v3211, 7
          %v3213 = vsub.s32 %v3210, %v3212
          %v3214 = vrot.slane %v3206, %v3213
          %v3216 = vunpack.c.l.s4 1934713408
          %v3217 = vunpack.c.0.s8 %v3216
          %v3218 = vlaneseq
          %v3219 = vshrl.u32 %v3218, 7
          %v3220 = vsub.s32 %v3217, %v3219
          %v3221 = vrot.slane %v3207, %v3220
          %v3222 = vcombine.low %v3198, %v3214
          %v3223 = vcombine.high %v3198, %v3214
          %v3224 = vcombine.low %v3205, %v3221
          %v3225 = vcombine.high %v3205, %v3221
          %v3226 = vcombine.low %v2722, %v2729
          %v3228 = vunpack.c.l.s4 1983009808
          %v3229 = vunpack.c.0.s8 %v3228
          %v3230 = vlaneseq
          %v3231 = vshrl.u32 %v3230, 7
          %v3232 = vsub.s32 %v3229, %v3231
          %v3233 = vrot.slane %v3226, %v3232
          %v3234 = vcombine.low %v2746, %v2747
          %v3236 = vunpack.c.l.s4 1983009808
          %v3237 = vunpack.c.0.s8 %v3236
          %v3238 = vlaneseq
          %v3239 = vshrl.u32 %v3238, 7
          %v3240 = vsub.s32 %v3237, %v3239
          %v3241 = vrot.slane %v3234, %v3240
          %v3242 = vcombine.low %v2738, %v2745
          %v3244 = vunpack.c.l.s4 1983009808
          %v3245 = vunpack.c.0.s8 %v3244
          %v3246 = vlaneseq
          %v3247 = vshrl.u32 %v3246, 7
          %v3248 = vsub.s32 %v3245, %v3247
          %v3249 = vrot.slane %v3242, %v3248
          %v3250 = vcombine.low %v2748, %v2749
          %v3252 = vunpack.c.l.s4 1983009808
          %v3253 = vunpack.c.0.s8 %v3252
          %v3254 = vlaneseq
          %v3255 = vshrl.u32 %v3254, 7
          %v3256 = vsub.s32 %v3253, %v3255
          %v3257 = vrot.slane %v3250, %v3256
          %v3258 = vcombine.low %v3233, %v3241
          %v3259 = vcombine.high %v3233, %v3241
          %v3261 = vunpack.c.l.s4 1934713408
          %v3262 = vunpack.c.0.s8 %v3261
          %v3263 = vlaneseq
          %v3264 = vshrl.u32 %v3263, 7
          %v3265 = vsub.s32 %v3262, %v3264
          %v3266 = vrot.slane %v3258, %v3265
          %v3268 = vunpack.c.l.s4 1934713408
          %v3269 = vunpack.c.0.s8 %v3268
          %v3270 = vlaneseq
          %v3271 = vshrl.u32 %v3270, 7
          %v3272 = vsub.s32 %v3269, %v3271
          %v3273 = vrot.slane %v3259, %v3272
          %v3274 = vcombine.low %v3249, %v3257
          %v3275 = vcombine.high %v3249, %v3257
          %v3277 = vunpack.c.l.s4 1934713408
          %v3278 = vunpack.c.0.s8 %v3277
          %v3279 = vlaneseq
          %v3280 = vshrl.u32 %v3279, 7
          %v3281 = vsub.s32 %v3278, %v3280
          %v3282 = vrot.slane %v3274, %v3281
          %v3284 = vunpack.c.l.s4 1934713408
          %v3285 = vunpack.c.0.s8 %v3284
          %v3286 = vlaneseq
          %v3287 = vshrl.u32 %v3286, 7
          %v3288 = vsub.s32 %v3285, %v3287
          %v3289 = vrot.slane %v3275, %v3288
          %v3290 = vcombine.low %v3266, %v3282
          %v3291 = vcombine.high %v3266, %v3282
          %v3292 = vcombine.low %v3273, %v3289
          %v3293 = vcombine.high %v3273, %v3289
          %v3294 = vcombine.low %v2790, %v2797
          %v3296 = vunpack.c.l.s4 1983009808
          %v3297 = vunpack.c.0.s8 %v3296
          %v3298 = vlaneseq
          %v3299 = vshrl.u32 %v3298, 7
          %v3300 = vsub.s32 %v3297, %v3299
          %v3301 = vrot.slane %v3294, %v3300
          %v3302 = vcombine.low %v2814, %v2815
          %v3304 = vunpack.c.l.s4 1983009808
          %v3305 = vunpack.c.0.s8 %v3304
          %v3306 = vlaneseq
          %v3307 = vshrl.u32 %v3306, 7
          %v3308 = vsub.s32 %v3305, %v3307
          %v3309 = vrot.slane %v3302, %v3308
          %v3310 = vcombine.low %v2806, %v2813
          %v3312 = vunpack.c.l.s4 1983009808
          %v3313 = vunpack.c.0.s8 %v3312
          %v3314 = vlaneseq
          %v3315 = vshrl.u32 %v3314, 7
          %v3316 = vsub.s32 %v3313, %v3315
          %v3317 = vrot.slane %v3310, %v3316
          %v3318 = vcombine.low %v2816, %v2817
          %v3320 = vunpack.c.l.s4 1983009808
          %v3321 = vunpack.c.0.s8 %v3320
          %v3322 = vlaneseq
          %v3323 = vshrl.u32 %v3322, 7
          %v3324 = vsub.s32 %v3321, %v3323
          %v3325 = vrot.slane %v3318, %v3324
          %v3326 = vcombine.low %v3301, %v3309
          %v3327 = vcombine.high %v3301, %v3309
          %v3329 = vunpack.c.l.s4 1934713408
          %v3330 = vunpack.c.0.s8 %v3329
          %v3331 = vlaneseq
          %v3332 = vshrl.u32 %v3331, 7
          %v3333 = vsub.s32 %v3330, %v3332
          %v3334 = vrot.slane %v3326, %v3333
          %v3336 = vunpack.c.l.s4 1934713408
          %v3337 = vunpack.c.0.s8 %v3336
          %v3338 = vlaneseq
          %v3339 = vshrl.u32 %v3338, 7
          %v3340 = vsub.s32 %v3337, %v3339
          %v3341 = vrot.slane %v3327, %v3340
          %v3342 = vcombine.low %v3317, %v3325
          %v3343 = vcombine.high %v3317, %v3325
          %v3345 = vunpack.c.l.s4 1934713408
          %v3346 = vunpack.c.0.s8 %v3345
          %v3347 = vlaneseq
          %v3348 = vshrl.u32 %v3347, 7
          %v3349 = vsub.s32 %v3346, %v3348
          %v3350 = vrot.slane %v3342, %v3349
          %v3352 = vunpack.c.l.s4 1934713408
          %v3353 = vunpack.c.0.s8 %v3352
          %v3354 = vlaneseq
          %v3355 = vshrl.u32 %v3354, 7
          %v3356 = vsub.s32 %v3353, %v3355
          %v3357 = vrot.slane %v3343, %v3356
          %v3358 = vcombine.low %v3334, %v3350
          %v3359 = vcombine.high %v3334, %v3350
          %v3360 = vcombine.low %v3341, %v3357
          %v3361 = vcombine.high %v3341, %v3357
          %v3362 = vcombine.low %v2858, %v2865
          %v3364 = vunpack.c.l.s4 1983009808
          %v3365 = vunpack.c.0.s8 %v3364
          %v3366 = vlaneseq
          %v3367 = vshrl.u32 %v3366, 7
          %v3368 = vsub.s32 %v3365, %v3367
          %v3369 = vrot.slane %v3362, %v3368
          %v3370 = vcombine.low %v2882, %v2883
          %v3372 = vunpack.c.l.s4 1983009808
          %v3373 = vunpack.c.0.s8 %v3372
          %v3374 = vlaneseq
          %v3375 = vshrl.u32 %v3374, 7
          %v3376 = vsub.s32 %v3373, %v3375
          %v3377 = vrot.slane %v3370, %v3376
          %v3378 = vcombine.low %v2874, %v2881
          %v3380 = vunpack.c.l.s4 1983009808
          %v3381 = vunpack.c.0.s8 %v3380
          %v3382 = vlaneseq
          %v3383 = vshrl.u32 %v3382, 7
          %v3384 = vsub.s32 %v3381, %v3383
          %v3385 = vrot.slane %v3378, %v3384
          %v3386 = vcombine.low %v2884, %v2885
          %v3388 = vunpack.c.l.s4 1983009808
          %v3389 = vunpack.c.0.s8 %v3388
          %v3390 = vlaneseq
          %v3391 = vshrl.u32 %v3390, 7
          %v3392 = vsub.s32 %v3389, %v3391
          %v3393 = vrot.slane %v3386, %v3392
          %v3394 = vcombine.low %v3369, %v3377
          %v3395 = vcombine.high %v3369, %v3377
          %v3397 = vunpack.c.l.s4 1934713408
          %v3398 = vunpack.c.0.s8 %v3397
          %v3399 = vlaneseq
          %v3400 = vshrl.u32 %v3399, 7
          %v3401 = vsub.s32 %v3398, %v3400
          %v3402 = vrot.slane %v3394, %v3401
          %v3404 = vunpack.c.l.s4 1934713408
          %v3405 = vunpack.c.0.s8 %v3404
          %v3406 = vlaneseq
          %v3407 = vshrl.u32 %v3406, 7
          %v3408 = vsub.s32 %v3405, %v3407
          %v3409 = vrot.slane %v3395, %v3408
          %v3410 = vcombine.low %v3385, %v3393
          %v3411 = vcombine.high %v3385, %v3393
          %v3413 = vunpack.c.l.s4 1934713408
          %v3414 = vunpack.c.0.s8 %v3413
          %v3415 = vlaneseq
          %v3416 = vshrl.u32 %v3415, 7
          %v3417 = vsub.s32 %v3414, %v3416
          %v3418 = vrot.slane %v3410, %v3417
          %v3420 = vunpack.c.l.s4 1934713408
          %v3421 = vunpack.c.0.s8 %v3420
          %v3422 = vlaneseq
          %v3423 = vshrl.u32 %v3422, 7
          %v3424 = vsub.s32 %v3421, %v3423
          %v3425 = vrot.slane %v3411, %v3424
          %v3426 = vcombine.low %v3402, %v3418
          %v3427 = vcombine.high %v3402, %v3418
          %v3428 = vcombine.low %v3409, %v3425
          %v3429 = vcombine.high %v3409, %v3425
          %v3430 = vpack.c.bf16 %v3018, %v2950
          %v3431 = vpack.c.bf16 %v3154, %v3086
          %v3432 = vpack.c.bf16 %v3290, %v3222
          %v3433 = vpack.c.bf16 %v3426, %v3358
          %v3434 = vpack.c.bf16 %v3019, %v2951
          %v3435 = vpack.c.bf16 %v3155, %v3087
          %v3436 = vpack.c.bf16 %v3291, %v3223
          %v3437 = vpack.c.bf16 %v3427, %v3359
          %v3438 = vpack.c.bf16 %v3020, %v2952
          %v3439 = vpack.c.bf16 %v3156, %v3088
          %v3440 = vpack.c.bf16 %v3292, %v3224
          %v3441 = vpack.c.bf16 %v3428, %v3360
          %v3442 = vpack.c.bf16 %v3021, %v2953
          %v3443 = vpack.c.bf16 %v3157, %v3089
          %v3444 = vpack.c.bf16 %v3293, %v3225
          %v3445 = vpack.c.bf16 %v3429, %v3361
          %v3462 = vunpack.c.l.b16 %v3430
          %v3463 = vunpack.c.h.b16 %v3430
          %v3464 = vunpack.c.l.b16 %v3431
          %v3465 = vunpack.c.h.b16 %v3431
          %v3466 = vunpack.c.l.b16 %v3432
          %v3467 = vunpack.c.h.b16 %v3432
          %v3468 = vunpack.c.l.b16 %v3433
          %v3469 = vunpack.c.h.b16 %v3433
          %v3470 = vunpack.c.l.b16 %v3434
          %v3471 = vunpack.c.h.b16 %v3434
          %v3472 = vunpack.c.l.b16 %v3435
          %v3473 = vunpack.c.h.b16 %v3435
          %v3474 = vunpack.c.l.b16 %v3436
          %v3475 = vunpack.c.h.b16 %v3436
          %v3476 = vunpack.c.l.b16 %v3437
          %v3477 = vunpack.c.h.b16 %v3437
          %v3478 = vunpack.c.l.b16 %v3438
          %v3479 = vunpack.c.h.b16 %v3438
          %v3480 = vunpack.c.l.b16 %v3439
          %v3481 = vunpack.c.h.b16 %v3439
          %v3482 = vunpack.c.l.b16 %v3440
          %v3483 = vunpack.c.h.b16 %v3440
          %v3484 = vunpack.c.l.b16 %v3441
          %v3485 = vunpack.c.h.b16 %v3441
          %v3486 = vunpack.c.l.b16 %v3442
          %v3487 = vunpack.c.h.b16 %v3442
          %v3488 = vunpack.c.l.b16 %v3443
          %v3489 = vunpack.c.h.b16 %v3443
          %v3490 = vunpack.c.l.b16 %v3444
          %v3491 = vunpack.c.h.b16 %v3444
          %v3492 = vunpack.c.l.b16 %v3445
          %v3493 = vunpack.c.h.b16 %v3445
          %v3494 = vpack.c.b16 %v3462, %v3462
          %v3495 = vpack.c.b16 %v3463, %v3463
          %v3496 = vpack.c.b16 %v3464, %v3464
          %v3497 = vpack.c.b16 %v3465, %v3465
          %v3498 = vpack.c.b16 %v3466, %v3466
          %v3499 = vpack.c.b16 %v3467, %v3467
          %v3500 = vpack.c.b16 %v3468, %v3468
          %v3501 = vpack.c.b16 %v3469, %v3469
          %v3502 = vpack.c.b16 %v3470, %v3470
          %v3503 = vpack.c.b16 %v3471, %v3471
          %v3504 = vpack.c.b16 %v3472, %v3472
          %v3505 = vpack.c.b16 %v3473, %v3473
          %v3506 = vpack.c.b16 %v3474, %v3474
          %v3507 = vpack.c.b16 %v3475, %v3475
          %v3508 = vpack.c.b16 %v3476, %v3476
          %v3509 = vpack.c.b16 %v3477, %v3477
          %v3510 = vpack.c.b16 %v3478, %v3478
          %v3511 = vpack.c.b16 %v3479, %v3479
          %v3512 = vpack.c.b16 %v3480, %v3480
          %v3513 = vpack.c.b16 %v3481, %v3481
          %v3514 = vpack.c.b16 %v3482, %v3482
          %v3515 = vpack.c.b16 %v3483, %v3483
          %v3516 = vpack.c.b16 %v3484, %v3484
          %v3517 = vpack.c.b16 %v3485, %v3485
          %v3518 = vpack.c.b16 %v3486, %v3486
          %v3519 = vpack.c.b16 %v3487, %v3487
          %v3520 = vpack.c.b16 %v3488, %v3488
          %v3521 = vpack.c.b16 %v3489, %v3489
          %v3522 = vpack.c.b16 %v3490, %v3490
          %v3523 = vpack.c.b16 %v3491, %v3491
          %v3524 = vpack.c.b16 %v3492, %v3492
          %v3525 = vpack.c.b16 %v3493, %v3493
          %3558 = vst.msk [vmem:[#allocation3] sm:$0xf] %vm2229, %v3494
          %3559 = vst.msk [vmem:[#allocation3 + $0x4] sm:$0xf] %vm2229, %v3495
          %3560 = vst.msk [vmem:[#allocation3 + $0x8] sm:$0xf] %vm2229, %v3496
          %3561 = vst.msk [vmem:[#allocation3 + $0xc] sm:$0xf] %vm2229, %v3497
          %3562 = vst.msk [vmem:[#allocation3 + $0x10] sm:$0xf] %vm2229, %v3498
          %3563 = vst.msk [vmem:[#allocation3 + $0x14] sm:$0xf] %vm2229, %v3499
          %3564 = vst.msk [vmem:[#allocation3 + $0x18] sm:$0xf] %vm2229, %v3500
          %3565 = vst.msk [vmem:[#allocation3 + $0x1c] sm:$0xf] %vm2229, %v3501
          %3566 = vst.msk [vmem:[#allocation3 + $0x20] sm:$0xf] %vm2229, %v3502
          %3567 = vst.msk [vmem:[#allocation3 + $0x24] sm:$0xf] %vm2229, %v3503
          %3568 = vst.msk [vmem:[#allocation3 + $0x28] sm:$0xf] %vm2229, %v3504
          %3569 = vst.msk [vmem:[#allocation3 + $0x2c] sm:$0xf] %vm2229, %v3505
          %3570 = vst.msk [vmem:[#allocation3 + $0x30] sm:$0xf] %vm2229, %v3506
          %3571 = vst.msk [vmem:[#allocation3 + $0x34] sm:$0xf] %vm2229, %v3507
          %3572 = vst.msk [vmem:[#allocation3 + $0x38] sm:$0xf] %vm2229, %v3508
          %3573 = vst.msk [vmem:[#allocation3 + $0x3c] sm:$0xf] %vm2229, %v3509
          %3574 = vst.msk [vmem:[#allocation3 + $0x40] sm:$0xf] %vm2229, %v3510
          %3575 = vst.msk [vmem:[#allocation3 + $0x44] sm:$0xf] %vm2229, %v3511
          %3576 = vst.msk [vmem:[#allocation3 + $0x48] sm:$0xf] %vm2229, %v3512
          %3577 = vst.msk [vmem:[#allocation3 + $0x4c] sm:$0xf] %vm2229, %v3513
          %3578 = vst.msk [vmem:[#allocation3 + $0x50] sm:$0xf] %vm2229, %v3514
          %3579 = vst.msk [vmem:[#allocation3 + $0x54] sm:$0xf] %vm2229, %v3515
          %3580 = vst.msk [vmem:[#allocation3 + $0x58] sm:$0xf] %vm2229, %v3516
          %3581 = vst.msk [vmem:[#allocation3 + $0x5c] sm:$0xf] %vm2229, %v3517
          %3582 = vst.msk [vmem:[#allocation3 + $0x60] sm:$0xf] %vm2229, %v3518
          %3583 = vst.msk [vmem:[#allocation3 + $0x64] sm:$0xf] %vm2229, %v3519
          %3584 = vst.msk [vmem:[#allocation3 + $0x68] sm:$0xf] %vm2229, %v3520
          %3585 = vst.msk [vmem:[#allocation3 + $0x6c] sm:$0xf] %vm2229, %v3521
          %3586 = vst.msk [vmem:[#allocation3 + $0x70] sm:$0xf] %vm2229, %v3522
          %3587 = vst.msk [vmem:[#allocation3 + $0x74] sm:$0xf] %vm2229, %v3523
          %3588 = vst.msk [vmem:[#allocation3 + $0x78] sm:$0xf] %vm2229, %v3524
          %3589 = vst.msk [vmem:[#allocation3 + $0x7c] sm:$0xf] %vm2229, %v3525
        $region112: #{tpu_custom_call.1} parent=75 // pred_fallthru
          _
        %v3590 = vld [vmem:[%s553] sm:$0xff]
        %v3591 = vld [vmem:[%s553 + $0x8] sm:$0xff]
        %v3592 = vpack.c.bf16 %v3591, %v3590
        %v3593 = vld [vmem:[#allocation11] sm:$0xf]
        %v3594 = vld [vmem:[#allocation11 + $0x4] sm:$0xf]
        %v3595 = vld [vmem:[#allocation11 + $0x8] sm:$0xf]
        %v3596 = vld [vmem:[#allocation11 + $0xc] sm:$0xf]
        %v3597 = vld [vmem:[#allocation11 + $0x10] sm:$0xf]
        %v3598 = vld [vmem:[#allocation11 + $0x14] sm:$0xf]
        %v3599 = vld [vmem:[#allocation11 + $0x18] sm:$0xf]
        %v3600 = vld [vmem:[#allocation11 + $0x1c] sm:$0xf]
        %v3601 = vld [vmem:[#allocation11 + $0x20] sm:$0xf]
        %v3602 = vld [vmem:[#allocation11 + $0x24] sm:$0xf]
        %v3603 = vld [vmem:[#allocation11 + $0x28] sm:$0xf]
        %v3604 = vld [vmem:[#allocation11 + $0x2c] sm:$0xf]
        %v3605 = vld [vmem:[#allocation11 + $0x30] sm:$0xf]
        %v3606 = vld [vmem:[#allocation11 + $0x34] sm:$0xf]
        %v3607 = vld [vmem:[#allocation11 + $0x38] sm:$0xf]
        %v3608 = vld [vmem:[#allocation11 + $0x3c] sm:$0xf]
        %v3625 = vunpack.c.l.b16 %v3593
        %v3626 = vunpack.c.l.b16 %v3594
        %v3627 = vunpack.c.l.b16 %v3595
        %v3628 = vunpack.c.l.b16 %v3596
        %v3629 = vunpack.c.l.b16 %v3597
        %v3630 = vunpack.c.l.b16 %v3598
        %v3631 = vunpack.c.l.b16 %v3599
        %v3632 = vunpack.c.l.b16 %v3600
        %v3633 = vunpack.c.l.b16 %v3601
        %v3634 = vunpack.c.l.b16 %v3602
        %v3635 = vunpack.c.l.b16 %v3603
        %v3636 = vunpack.c.l.b16 %v3604
        %v3637 = vunpack.c.l.b16 %v3605
        %v3638 = vunpack.c.l.b16 %v3606
        %v3639 = vunpack.c.l.b16 %v3607
        %v3640 = vunpack.c.l.b16 %v3608
        %v3641 = vpack.c.b16 %v3626, %v3625
        %v3642 = vpack.c.b16 %v3628, %v3627
        %v3643 = vpack.c.b16 %v3630, %v3629
        %v3644 = vpack.c.b16 %v3632, %v3631
        %v3645 = vpack.c.b16 %v3634, %v3633
        %v3646 = vpack.c.b16 %v3636, %v3635
        %v3647 = vpack.c.b16 %v3638, %v3637
        %v3648 = vpack.c.b16 %v3640, %v3639
        %3657 = vmatprep.subr.bf16.mxu0 0
        %3658 = vmatpush1.bf16.msra.mxu0 %v3648
        %3659 = vmatprep.subr.bf16.mxu0 0
        %3660 = vmatpush1.bf16.msra.mxu0 %v3647
        %3661 = vmatprep.subr.bf16.mxu0 0
        %3662 = vmatpush1.bf16.msra.mxu0 %v3646
        %3663 = vmatprep.subr.bf16.mxu0 0
        %3664 = vmatpush1.bf16.msra.mxu0 %v3645
        %3665 = vmatprep.subr.bf16.mxu0 0
        %3666 = vmatpush1.bf16.msra.mxu0 %v3644
        %3667 = vmatprep.subr.bf16.mxu0 0
        %3668 = vmatpush1.bf16.msra.mxu0 %v3643
        %3669 = vmatprep.subr.bf16.mxu0 0
        %3670 = vmatpush1.bf16.msra.mxu0 %v3642
        %3671 = vmatprep.subr.bf16.mxu0 0
        %3672 = vmatpush1.bf16.msra.mxu0 %v3641
        %3673 = vmatprep.subr.bf16.mxu0 0
        %3674 = vmatpush2.bf16.msra.mxu0 0
        %3675 = vmatprep.subr.bf16.mxu0 0
        %3676 = vmatpush2.bf16.msra.mxu0 0
        %3677 = vmatprep.subr.bf16.mxu0 0
        %3678 = vmatpush2.bf16.msra.mxu0 0
        %3679 = vmatprep.subr.bf16.mxu0 0
        %3680 = vmatpush2.bf16.msra.mxu0 0
        %3681 = vmatprep.subr.bf16.mxu0 0
        %3682 = vmatpush2.bf16.msra.mxu0 0
        %3683 = vmatprep.subr.bf16.mxu0 0
        %3684 = vmatpush2.bf16.msra.mxu0 0
        %3685 = vmatprep.subr.bf16.mxu0 0
        %3686 = vmatpush2.bf16.msra.mxu0 0
        %3687 = vmatprep.subr.bf16.mxu0 0
        %3688 = vmatpush2.bf16.msra.mxu0 0
        %3689 = vmatprep.mubr.bf16.mxu0 0
        %3690 = vmatmul.mubr.bf16.gmra.mxu0 %v3592
        %v3691 = vpop.f32.mrf.mxu0
        %v3692 = vadd.f32 0.0, %v3691
        %v3693 = vpop.f32.mrf.mxu0
        %v3694 = vpop.f32.mrf.mxu0
        %v3695 = vadd.f32 0.0, %v3694
        %v3696 = vpop.f32.mrf.mxu0
        %3697 = vdwg.mxu0
        %3700 = vrot.lane.b32.xlu0 %v3692, 96
        %v3701 = vpop.permute.xlu0 %3700
        %3702 = vrot.lane.b32.xlu0 %v3695, 96
        %v3703 = vpop.permute.xlu0 %3702
        %3706 = vrot.lane.b32.xlu0 %v3692, 64
        %v3707 = vpop.permute.xlu0 %3706
        %3708 = vrot.lane.b32.xlu0 %v3695, 64
        %v3709 = vpop.permute.xlu0 %3708
        %3712 = vrot.lane.b32.xlu0 %v3692, 32
        %v3713 = vpop.permute.xlu0 %3712
        %3714 = vrot.lane.b32.xlu0 %v3695, 32
        %v3715 = vpop.permute.xlu0 %3714
        %v3718 = vcombine.low %v3692, %v3707
        %v3719 = vcombine.high %v3692, %v3707
        %v3721 = vunpack.c.l.s4 1983009808
        %v3722 = vunpack.c.0.s8 %v3721
        %v3723 = vlaneseq
        %v3724 = vshrl.u32 %v3723, 7
        %v3725 = vsub.s32 %v3722, %v3724
        %v3726 = vrot.slane %v3718, %v3725
        %v3728 = vunpack.c.l.s4 1983009808
        %v3729 = vunpack.c.0.s8 %v3728
        %v3730 = vlaneseq
        %v3731 = vshrl.u32 %v3730, 7
        %v3732 = vsub.s32 %v3729, %v3731
        %v3733 = vrot.slane %v3719, %v3732
        %v3734 = vcombine.low %v3701, %v3713
        %v3735 = vcombine.high %v3701, %v3713
        %v3737 = vunpack.c.l.s4 1983009808
        %v3738 = vunpack.c.0.s8 %v3737
        %v3739 = vlaneseq
        %v3740 = vshrl.u32 %v3739, 7
        %v3741 = vsub.s32 %v3738, %v3740
        %v3742 = vrot.slane %v3734, %v3741
        %v3744 = vunpack.c.l.s4 1983009808
        %v3745 = vunpack.c.0.s8 %v3744
        %v3746 = vlaneseq
        %v3747 = vshrl.u32 %v3746, 7
        %v3748 = vsub.s32 %v3745, %v3747
        %v3749 = vrot.slane %v3735, %v3748
        %v3750 = vcombine.low %v3726, %v3742
        %v3751 = vcombine.high %v3726, %v3742
        %v3753 = vunpack.c.l.s4 1934713408
        %v3754 = vunpack.c.0.s8 %v3753
        %v3755 = vlaneseq
        %v3756 = vshrl.u32 %v3755, 7
        %v3757 = vsub.s32 %v3754, %v3756
        %v3758 = vrot.slane %v3750, %v3757
        %v3760 = vunpack.c.l.s4 1934713408
        %v3761 = vunpack.c.0.s8 %v3760
        %v3762 = vlaneseq
        %v3763 = vshrl.u32 %v3762, 7
        %v3764 = vsub.s32 %v3761, %v3763
        %v3765 = vrot.slane %v3751, %v3764
        %v3766 = vcombine.low %v3733, %v3749
        %v3767 = vcombine.high %v3733, %v3749
        %v3769 = vunpack.c.l.s4 1934713408
        %v3770 = vunpack.c.0.s8 %v3769
        %v3771 = vlaneseq
        %v3772 = vshrl.u32 %v3771, 7
        %v3773 = vsub.s32 %v3770, %v3772
        %v3774 = vrot.slane %v3766, %v3773
        %v3776 = vunpack.c.l.s4 1934713408
        %v3777 = vunpack.c.0.s8 %v3776
        %v3778 = vlaneseq
        %v3779 = vshrl.u32 %v3778, 7
        %v3780 = vsub.s32 %v3777, %v3779
        %v3781 = vrot.slane %v3767, %v3780
        %v3782 = vcombine.high %v3758, 0.0
        %v3783 = vcombine.high %v3765, 0.0
        %v3784 = vcombine.high %v3774, 0.0
        %v3785 = vcombine.high %v3781, 0.0
        %v3786 = vcombine.low %v3695, %v3709
        %v3787 = vcombine.high %v3695, %v3709
        %v3789 = vunpack.c.l.s4 1983009808
        %v3790 = vunpack.c.0.s8 %v3789
        %v3791 = vlaneseq
        %v3792 = vshrl.u32 %v3791, 7
        %v3793 = vsub.s32 %v3790, %v3792
        %v3794 = vrot.slane %v3786, %v3793
        %v3796 = vunpack.c.l.s4 1983009808
        %v3797 = vunpack.c.0.s8 %v3796
        %v3798 = vlaneseq
        %v3799 = vshrl.u32 %v3798, 7
        %v3800 = vsub.s32 %v3797, %v3799
        %v3801 = vrot.slane %v3787, %v3800
        %v3802 = vcombine.low %v3703, %v3715
        %v3803 = vcombine.high %v3703, %v3715
        %v3805 = vunpack.c.l.s4 1983009808
        %v3806 = vunpack.c.0.s8 %v3805
        %v3807 = vlaneseq
        %v3808 = vshrl.u32 %v3807, 7
        %v3809 = vsub.s32 %v3806, %v3808
        %v3810 = vrot.slane %v3802, %v3809
        %v3812 = vunpack.c.l.s4 1983009808
        %v3813 = vunpack.c.0.s8 %v3812
        %v3814 = vlaneseq
        %v3815 = vshrl.u32 %v3814, 7
        %v3816 = vsub.s32 %v3813, %v3815
        %v3817 = vrot.slane %v3803, %v3816
        %v3818 = vcombine.low %v3794, %v3810
        %v3819 = vcombine.high %v3794, %v3810
        %v3821 = vunpack.c.l.s4 1934713408
        %v3822 = vunpack.c.0.s8 %v3821
        %v3823 = vlaneseq
        %v3824 = vshrl.u32 %v3823, 7
        %v3825 = vsub.s32 %v3822, %v3824
        %v3826 = vrot.slane %v3818, %v3825
        %v3828 = vunpack.c.l.s4 1934713408
        %v3829 = vunpack.c.0.s8 %v3828
        %v3830 = vlaneseq
        %v3831 = vshrl.u32 %v3830, 7
        %v3832 = vsub.s32 %v3829, %v3831
        %v3833 = vrot.slane %v3819, %v3832
        %v3834 = vcombine.low %v3801, %v3817
        %v3835 = vcombine.high %v3801, %v3817
        %v3837 = vunpack.c.l.s4 1934713408
        %v3838 = vunpack.c.0.s8 %v3837
        %v3839 = vlaneseq
        %v3840 = vshrl.u32 %v3839, 7
        %v3841 = vsub.s32 %v3838, %v3840
        %v3842 = vrot.slane %v3834, %v3841
        %v3844 = vunpack.c.l.s4 1934713408
        %v3845 = vunpack.c.0.s8 %v3844
        %v3846 = vlaneseq
        %v3847 = vshrl.u32 %v3846, 7
        %v3848 = vsub.s32 %v3845, %v3847
        %v3849 = vrot.slane %v3835, %v3848
        %v3850 = vcombine.high %v3826, 0.0
        %v3851 = vcombine.high %v3833, 0.0
        %v3852 = vcombine.high %v3842, 0.0
        %v3853 = vcombine.high %v3849, 0.0
        %v3854 = vcombine.low %v3758, %v3765
        %v3856 = vunpack.c.l.s4 1983009808
        %v3857 = vunpack.c.0.s8 %v3856
        %v3858 = vlaneseq
        %v3859 = vshrl.u32 %v3858, 7
        %v3860 = vsub.s32 %v3857, %v3859
        %v3861 = vrot.slane %v3854, %v3860
        %v3862 = vcombine.low %v3782, %v3783
        %v3864 = vunpack.c.l.s4 1983009808
        %v3865 = vunpack.c.0.s8 %v3864
        %v3866 = vlaneseq
        %v3867 = vshrl.u32 %v3866, 7
        %v3868 = vsub.s32 %v3865, %v3867
        %v3869 = vrot.slane %v3862, %v3868
        %v3870 = vcombine.low %v3774, %v3781
        %v3872 = vunpack.c.l.s4 1983009808
        %v3873 = vunpack.c.0.s8 %v3872
        %v3874 = vlaneseq
        %v3875 = vshrl.u32 %v3874, 7
        %v3876 = vsub.s32 %v3873, %v3875
        %v3877 = vrot.slane %v3870, %v3876
        %v3878 = vcombine.low %v3784, %v3785
        %v3880 = vunpack.c.l.s4 1983009808
        %v3881 = vunpack.c.0.s8 %v3880
        %v3882 = vlaneseq
        %v3883 = vshrl.u32 %v3882, 7
        %v3884 = vsub.s32 %v3881, %v3883
        %v3885 = vrot.slane %v3878, %v3884
        %v3886 = vcombine.low %v3861, %v3869
        %v3887 = vcombine.high %v3861, %v3869
        %v3889 = vunpack.c.l.s4 1934713408
        %v3890 = vunpack.c.0.s8 %v3889
        %v3891 = vlaneseq
        %v3892 = vshrl.u32 %v3891, 7
        %v3893 = vsub.s32 %v3890, %v3892
        %v3894 = vrot.slane %v3886, %v3893
        %v3896 = vunpack.c.l.s4 1934713408
        %v3897 = vunpack.c.0.s8 %v3896
        %v3898 = vlaneseq
        %v3899 = vshrl.u32 %v3898, 7
        %v3900 = vsub.s32 %v3897, %v3899
        %v3901 = vrot.slane %v3887, %v3900
        %v3902 = vcombine.low %v3877, %v3885
        %v3903 = vcombine.high %v3877, %v3885
        %v3905 = vunpack.c.l.s4 1934713408
        %v3906 = vunpack.c.0.s8 %v3905
        %v3907 = vlaneseq
        %v3908 = vshrl.u32 %v3907, 7
        %v3909 = vsub.s32 %v3906, %v3908
        %v3910 = vrot.slane %v3902, %v3909
        %v3912 = vunpack.c.l.s4 1934713408
        %v3913 = vunpack.c.0.s8 %v3912
        %v3914 = vlaneseq
        %v3915 = vshrl.u32 %v3914, 7
        %v3916 = vsub.s32 %v3913, %v3915
        %v3917 = vrot.slane %v3903, %v3916
        %v3918 = vcombine.low %v3894, %v3910
        %v3919 = vcombine.high %v3894, %v3910
        %v3920 = vcombine.low %v3901, %v3917
        %v3921 = vcombine.high %v3901, %v3917
        %v3922 = vcombine.low %v3826, %v3833
        %v3924 = vunpack.c.l.s4 1983009808
        %v3925 = vunpack.c.0.s8 %v3924
        %v3926 = vlaneseq
        %v3927 = vshrl.u32 %v3926, 7
        %v3928 = vsub.s32 %v3925, %v3927
        %v3929 = vrot.slane %v3922, %v3928
        %v3930 = vcombine.low %v3850, %v3851
        %v3932 = vunpack.c.l.s4 1983009808
        %v3933 = vunpack.c.0.s8 %v3932
        %v3934 = vlaneseq
        %v3935 = vshrl.u32 %v3934, 7
        %v3936 = vsub.s32 %v3933, %v3935
        %v3937 = vrot.slane %v3930, %v3936
        %v3938 = vcombine.low %v3842, %v3849
        %v3940 = vunpack.c.l.s4 1983009808
        %v3941 = vunpack.c.0.s8 %v3940
        %v3942 = vlaneseq
        %v3943 = vshrl.u32 %v3942, 7
        %v3944 = vsub.s32 %v3941, %v3943
        %v3945 = vrot.slane %v3938, %v3944
        %v3946 = vcombine.low %v3852, %v3853
        %v3948 = vunpack.c.l.s4 1983009808
        %v3949 = vunpack.c.0.s8 %v3948
        %v3950 = vlaneseq
        %v3951 = vshrl.u32 %v3950, 7
        %v3952 = vsub.s32 %v3949, %v3951
        %v3953 = vrot.slane %v3946, %v3952
        %v3954 = vcombine.low %v3929, %v3937
        %v3955 = vcombine.high %v3929, %v3937
        %v3957 = vunpack.c.l.s4 1934713408
        %v3958 = vunpack.c.0.s8 %v3957
        %v3959 = vlaneseq
        %v3960 = vshrl.u32 %v3959, 7
        %v3961 = vsub.s32 %v3958, %v3960
        %v3962 = vrot.slane %v3954, %v3961
        %v3964 = vunpack.c.l.s4 1934713408
        %v3965 = vunpack.c.0.s8 %v3964
        %v3966 = vlaneseq
        %v3967 = vshrl.u32 %v3966, 7
        %v3968 = vsub.s32 %v3965, %v3967
        %v3969 = vrot.slane %v3955, %v3968
        %v3970 = vcombine.low %v3945, %v3953
        %v3971 = vcombine.high %v3945, %v3953
        %v3973 = vunpack.c.l.s4 1934713408
        %v3974 = vunpack.c.0.s8 %v3973
        %v3975 = vlaneseq
        %v3976 = vshrl.u32 %v3975, 7
        %v3977 = vsub.s32 %v3974, %v3976
        %v3978 = vrot.slane %v3970, %v3977
        %v3980 = vunpack.c.l.s4 1934713408
        %v3981 = vunpack.c.0.s8 %v3980
        %v3982 = vlaneseq
        %v3983 = vshrl.u32 %v3982, 7
        %v3984 = vsub.s32 %v3981, %v3983
        %v3985 = vrot.slane %v3971, %v3984
        %v3986 = vcombine.low %v3962, %v3978
        %v3987 = vcombine.high %v3962, %v3978
        %v3988 = vcombine.low %v3969, %v3985
        %v3989 = vcombine.high %v3969, %v3985
        %v3990 = vpack.c.bf16 %v3986, %v3918
        %v3991 = vpack.c.bf16 %v3987, %v3919
        %v3992 = vpack.c.bf16 %v3988, %v3920
        %v3993 = vpack.c.bf16 %v3989, %v3921
        %v3994 = vld [vmem:[#allocation2] sm:$0xf]
        %v3995 = vld [vmem:[#allocation2 + $0x4] sm:$0xf]
        %v3996 = vld [vmem:[#allocation2 + $0x8] sm:$0xf]
        %v3997 = vld [vmem:[#allocation2 + $0xc] sm:$0xf]
        %v3998 = vld [vmem:[#allocation2 + $0x10] sm:$0xf]
        %v3999 = vld [vmem:[#allocation2 + $0x14] sm:$0xf]
        %v4000 = vld [vmem:[#allocation2 + $0x18] sm:$0xf]
        %v4001 = vld [vmem:[#allocation2 + $0x1c] sm:$0xf]
        %v4002 = vld [vmem:[#allocation2 + $0x20] sm:$0xf]
        %v4003 = vld [vmem:[#allocation2 + $0x24] sm:$0xf]
        %v4004 = vld [vmem:[#allocation2 + $0x28] sm:$0xf]
        %v4005 = vld [vmem:[#allocation2 + $0x2c] sm:$0xf]
        %v4006 = vld [vmem:[#allocation2 + $0x30] sm:$0xf]
        %v4007 = vld [vmem:[#allocation2 + $0x34] sm:$0xf]
        %v4008 = vld [vmem:[#allocation2 + $0x38] sm:$0xf]
        %v4009 = vld [vmem:[#allocation2 + $0x3c] sm:$0xf]
        %v4010 = vld [vmem:[#allocation2 + $0x40] sm:$0xf]
        %v4011 = vld [vmem:[#allocation2 + $0x44] sm:$0xf]
        %v4012 = vld [vmem:[#allocation2 + $0x48] sm:$0xf]
        %v4013 = vld [vmem:[#allocation2 + $0x4c] sm:$0xf]
        %v4014 = vld [vmem:[#allocation2 + $0x50] sm:$0xf]
        %v4015 = vld [vmem:[#allocation2 + $0x54] sm:$0xf]
        %v4016 = vld [vmem:[#allocation2 + $0x58] sm:$0xf]
        %v4017 = vld [vmem:[#allocation2 + $0x5c] sm:$0xf]
        %v4018 = vld [vmem:[#allocation2 + $0x60] sm:$0xf]
        %v4019 = vld [vmem:[#allocation2 + $0x64] sm:$0xf]
        %v4020 = vld [vmem:[#allocation2 + $0x68] sm:$0xf]
        %v4021 = vld [vmem:[#allocation2 + $0x6c] sm:$0xf]
        %v4022 = vld [vmem:[#allocation2 + $0x70] sm:$0xf]
        %v4023 = vld [vmem:[#allocation2 + $0x74] sm:$0xf]
        %v4024 = vld [vmem:[#allocation2 + $0x78] sm:$0xf]
        %v4025 = vld [vmem:[#allocation2 + $0x7c] sm:$0xf]
        %v4034 = vunpack.c.l.b16 %v3994
        %v4035 = vunpack.c.l.b16 %v3995
        %v4036 = vunpack.c.l.b16 %v3996
        %v4037 = vunpack.c.l.b16 %v3997
        %v4038 = vunpack.c.l.b16 %v3998
        %v4039 = vunpack.c.l.b16 %v3999
        %v4040 = vunpack.c.l.b16 %v4000
        %v4041 = vunpack.c.l.b16 %v4001
        %v4042 = vpack.c.b16 %v4035, %v4034
        %v4043 = vpack.c.b16 %v4037, %v4036
        %v4044 = vpack.c.b16 %v4039, %v4038
        %v4045 = vpack.c.b16 %v4041, %v4040
        %vm4046 = vcmask 261120
        %v4048 = vsel %vm4046, %v3990, 0
        %v4051 = vsel %vm4046, %v4042, 0
        %v4054 = vsel %vm4046, %v4043, 0
        %v4057 = vsel %vm4046, %v4044, 0
        %v4060 = vsel %vm4046, %v4045, 0
        %4062 = vmatprep.subr.bf16.mxu0 0
        %4063 = vmatpush1.bf16.xpose.msra.mxu0 0
        %4064 = vmatprep.subr.bf16.mxu0 0
        %4065 = vmatpush1.bf16.xpose.msra.mxu0 0
        %4066 = vmatprep.subr.bf16.mxu0 0
        %4067 = vmatpush1.bf16.xpose.msra.mxu0 0
        %4068 = vmatprep.subr.bf16.mxu0 0
        %4069 = vmatpush1.bf16.xpose.msra.mxu0 0
        %4070 = vmatprep.subr.bf16.mxu0 0
        %4071 = vmatpush1.bf16.xpose.msra.mxu0 %v4060
        %4072 = vmatprep.subr.bf16.mxu0 0
        %4073 = vmatpush1.bf16.xpose.msra.mxu0 %v4057
        %4074 = vmatprep.subr.bf16.mxu0 0
        %4075 = vmatpush1.bf16.xpose.msra.mxu0 %v4054
        %4076 = vmatprep.subr.bf16.mxu0 0
        %4077 = vmatpush1.bf16.xpose.msra.mxu0 %v4051
        %4078 = vmatprep.subr.bf16.mxu0 0
        %4079 = vmatpush2.bf16.xpose.msra.mxu0 0
        %4080 = vmatprep.subr.bf16.mxu0 0
        %4081 = vmatpush2.bf16.xpose.msra.mxu0 0
        %4082 = vmatprep.subr.bf16.mxu0 0
        %4083 = vmatpush2.bf16.xpose.msra.mxu0 0
        %4084 = vmatprep.subr.bf16.mxu0 0
        %4085 = vmatpush2.bf16.xpose.msra.mxu0 0
        %4086 = vmatprep.subr.bf16.mxu0 0
        %4087 = vmatpush2.bf16.xpose.msra.mxu0 0
        %4088 = vmatprep.subr.bf16.mxu0 0
        %4089 = vmatpush2.bf16.xpose.msra.mxu0 0
        %4090 = vmatprep.subr.bf16.mxu0 0
        %4091 = vmatpush2.bf16.xpose.msra.mxu0 0
        %4092 = vmatprep.subr.bf16.mxu0 0
        %4093 = vmatpush2.bf16.xpose.msra.mxu0 0
        %4094 = vmatprep.mubr.bf16.mxu0 0
        %4095 = vmatmul.mubr.bf16.gmra.mxu0 %v4048
        %v4096 = vpop.f32.mrf.mxu0
        %v4097 = vadd.f32 0.0, %v4096
        %v4098 = vpop.f32.mrf.mxu0
        %v4099 = vpop.f32.mrf.mxu0
        %v4100 = vadd.f32 0.0, %v4099
        %v4101 = vpop.f32.mrf.mxu0
        %4102 = vdwg.mxu0
        %v4111 = vunpack.c.l.b16 %v4002
        %v4112 = vunpack.c.l.b16 %v4003
        %v4113 = vunpack.c.l.b16 %v4004
        %v4114 = vunpack.c.l.b16 %v4005
        %v4115 = vunpack.c.l.b16 %v4006
        %v4116 = vunpack.c.l.b16 %v4007
        %v4117 = vunpack.c.l.b16 %v4008
        %v4118 = vunpack.c.l.b16 %v4009
        %v4119 = vpack.c.b16 %v4112, %v4111
        %v4120 = vpack.c.b16 %v4114, %v4113
        %v4121 = vpack.c.b16 %v4116, %v4115
        %v4122 = vpack.c.b16 %v4118, %v4117
        %v4124 = vsel %vm4046, %v3991, 0
        %v4127 = vsel %vm4046, %v4119, 0
        %v4130 = vsel %vm4046, %v4120, 0
        %v4133 = vsel %vm4046, %v4121, 0
        %v4136 = vsel %vm4046, %v4122, 0
        %4138 = vmatprep.subr.bf16.mxu0 0
        %4139 = vmatpush1.bf16.xpose.msra.mxu0 0
        %4140 = vmatprep.subr.bf16.mxu0 0
        %4141 = vmatpush1.bf16.xpose.msra.mxu0 0
        %4142 = vmatprep.subr.bf16.mxu0 0
        %4143 = vmatpush1.bf16.xpose.msra.mxu0 0
        %4144 = vmatprep.subr.bf16.mxu0 0
        %4145 = vmatpush1.bf16.xpose.msra.mxu0 0
        %4146 = vmatprep.subr.bf16.mxu0 0
        %4147 = vmatpush1.bf16.xpose.msra.mxu0 %v4136
        %4148 = vmatprep.subr.bf16.mxu0 0
        %4149 = vmatpush1.bf16.xpose.msra.mxu0 %v4133
        %4150 = vmatprep.subr.bf16.mxu0 0
        %4151 = vmatpush1.bf16.xpose.msra.mxu0 %v4130
        %4152 = vmatprep.subr.bf16.mxu0 0
        %4153 = vmatpush1.bf16.xpose.msra.mxu0 %v4127
        %4154 = vmatprep.subr.bf16.mxu0 0
        %4155 = vmatpush2.bf16.xpose.msra.mxu0 0
        %4156 = vmatprep.subr.bf16.mxu0 0
        %4157 = vmatpush2.bf16.xpose.msra.mxu0 0
        %4158 = vmatprep.subr.bf16.mxu0 0
        %4159 = vmatpush2.bf16.xpose.msra.mxu0 0
        %4160 = vmatprep.subr.bf16.mxu0 0
        %4161 = vmatpush2.bf16.xpose.msra.mxu0 0
        %4162 = vmatprep.subr.bf16.mxu0 0
        %4163 = vmatpush2.bf16.xpose.msra.mxu0 0
        %4164 = vmatprep.subr.bf16.mxu0 0
        %4165 = vmatpush2.bf16.xpose.msra.mxu0 0
        %4166 = vmatprep.subr.bf16.mxu0 0
        %4167 = vmatpush2.bf16.xpose.msra.mxu0 0
        %4168 = vmatprep.subr.bf16.mxu0 0
        %4169 = vmatpush2.bf16.xpose.msra.mxu0 0
        %4170 = vmatprep.mubr.bf16.mxu0 0
        %4171 = vmatmul.mubr.bf16.gmra.mxu0 %v4124
        %v4172 = vpop.f32.mrf.mxu0
        %v4173 = vadd.f32 0.0, %v4172
        %v4174 = vpop.f32.mrf.mxu0
        %v4175 = vpop.f32.mrf.mxu0
        %v4176 = vadd.f32 0.0, %v4175
        %v4177 = vpop.f32.mrf.mxu0
        %4178 = vdwg.mxu0
        %v4187 = vunpack.c.l.b16 %v4010
        %v4188 = vunpack.c.l.b16 %v4011
        %v4189 = vunpack.c.l.b16 %v4012
        %v4190 = vunpack.c.l.b16 %v4013
        %v4191 = vunpack.c.l.b16 %v4014
        %v4192 = vunpack.c.l.b16 %v4015
        %v4193 = vunpack.c.l.b16 %v4016
        %v4194 = vunpack.c.l.b16 %v4017
        %v4195 = vpack.c.b16 %v4188, %v4187
        %v4196 = vpack.c.b16 %v4190, %v4189
        %v4197 = vpack.c.b16 %v4192, %v4191
        %v4198 = vpack.c.b16 %v4194, %v4193
        %v4200 = vsel %vm4046, %v3992, 0
        %v4203 = vsel %vm4046, %v4195, 0
        %v4206 = vsel %vm4046, %v4196, 0
        %v4209 = vsel %vm4046, %v4197, 0
        %v4212 = vsel %vm4046, %v4198, 0
        %4214 = vmatprep.subr.bf16.mxu0 0
        %4215 = vmatpush1.bf16.xpose.msra.mxu0 0
        %4216 = vmatprep.subr.bf16.mxu0 0
        %4217 = vmatpush1.bf16.xpose.msra.mxu0 0
        %4218 = vmatprep.subr.bf16.mxu0 0
        %4219 = vmatpush1.bf16.xpose.msra.mxu0 0
        %4220 = vmatprep.subr.bf16.mxu0 0
        %4221 = vmatpush1.bf16.xpose.msra.mxu0 0
        %4222 = vmatprep.subr.bf16.mxu0 0
        %4223 = vmatpush1.bf16.xpose.msra.mxu0 %v4212
        %4224 = vmatprep.subr.bf16.mxu0 0
        %4225 = vmatpush1.bf16.xpose.msra.mxu0 %v4209
        %4226 = vmatprep.subr.bf16.mxu0 0
        %4227 = vmatpush1.bf16.xpose.msra.mxu0 %v4206
        %4228 = vmatprep.subr.bf16.mxu0 0
        %4229 = vmatpush1.bf16.xpose.msra.mxu0 %v4203
        %4230 = vmatprep.subr.bf16.mxu0 0
        %4231 = vmatpush2.bf16.xpose.msra.mxu0 0
        %4232 = vmatprep.subr.bf16.mxu0 0
        %4233 = vmatpush2.bf16.xpose.msra.mxu0 0
        %4234 = vmatprep.subr.bf16.mxu0 0
        %4235 = vmatpush2.bf16.xpose.msra.mxu0 0
        %4236 = vmatprep.subr.bf16.mxu0 0
        %4237 = vmatpush2.bf16.xpose.msra.mxu0 0
        %4238 = vmatprep.subr.bf16.mxu0 0
        %4239 = vmatpush2.bf16.xpose.msra.mxu0 0
        %4240 = vmatprep.subr.bf16.mxu0 0
        %4241 = vmatpush2.bf16.xpose.msra.mxu0 0
        %4242 = vmatprep.subr.bf16.mxu0 0
        %4243 = vmatpush2.bf16.xpose.msra.mxu0 0
        %4244 = vmatprep.subr.bf16.mxu0 0
        %4245 = vmatpush2.bf16.xpose.msra.mxu0 0
        %4246 = vmatprep.mubr.bf16.mxu0 0
        %4247 = vmatmul.mubr.bf16.gmra.mxu0 %v4200
        %v4248 = vpop.f32.mrf.mxu0
        %v4249 = vadd.f32 0.0, %v4248
        %v4250 = vpop.f32.mrf.mxu0
        %v4251 = vpop.f32.mrf.mxu0
        %v4252 = vadd.f32 0.0, %v4251
        %v4253 = vpop.f32.mrf.mxu0
        %4254 = vdwg.mxu0
        %v4263 = vunpack.c.l.b16 %v4018
        %v4264 = vunpack.c.l.b16 %v4019
        %v4265 = vunpack.c.l.b16 %v4020
        %v4266 = vunpack.c.l.b16 %v4021
        %v4267 = vunpack.c.l.b16 %v4022
        %v4268 = vunpack.c.l.b16 %v4023
        %v4269 = vunpack.c.l.b16 %v4024
        %v4270 = vunpack.c.l.b16 %v4025
        %v4271 = vpack.c.b16 %v4264, %v4263
        %v4272 = vpack.c.b16 %v4266, %v4265
        %v4273 = vpack.c.b16 %v4268, %v4267
        %v4274 = vpack.c.b16 %v4270, %v4269
        %v4276 = vsel %vm4046, %v3993, 0
        %v4279 = vsel %vm4046, %v4271, 0
        %v4282 = vsel %vm4046, %v4272, 0
        %v4285 = vsel %vm4046, %v4273, 0
        %v4288 = vsel %vm4046, %v4274, 0
        %4290 = vmatprep.subr.bf16.mxu0 0
        %4291 = vmatpush1.bf16.xpose.msra.mxu0 0
        %4292 = vmatprep.subr.bf16.mxu0 0
        %4293 = vmatpush1.bf16.xpose.msra.mxu0 0
        %4294 = vmatprep.subr.bf16.mxu0 0
        %4295 = vmatpush1.bf16.xpose.msra.mxu0 0
        %4296 = vmatprep.subr.bf16.mxu0 0
        %4297 = vmatpush1.bf16.xpose.msra.mxu0 0
        %4298 = vmatprep.subr.bf16.mxu0 0
        %4299 = vmatpush1.bf16.xpose.msra.mxu0 %v4288
        %4300 = vmatprep.subr.bf16.mxu0 0
        %4301 = vmatpush1.bf16.xpose.msra.mxu0 %v4285
        %4302 = vmatprep.subr.bf16.mxu0 0
        %4303 = vmatpush1.bf16.xpose.msra.mxu0 %v4282
        %4304 = vmatprep.subr.bf16.mxu0 0
        %4305 = vmatpush1.bf16.xpose.msra.mxu0 %v4279
        %4306 = vmatprep.subr.bf16.mxu0 0
        %4307 = vmatpush2.bf16.xpose.msra.mxu0 0
        %4308 = vmatprep.subr.bf16.mxu0 0
        %4309 = vmatpush2.bf16.xpose.msra.mxu0 0
        %4310 = vmatprep.subr.bf16.mxu0 0
        %4311 = vmatpush2.bf16.xpose.msra.mxu0 0
        %4312 = vmatprep.subr.bf16.mxu0 0
        %4313 = vmatpush2.bf16.xpose.msra.mxu0 0
        %4314 = vmatprep.subr.bf16.mxu0 0
        %4315 = vmatpush2.bf16.xpose.msra.mxu0 0
        %4316 = vmatprep.subr.bf16.mxu0 0
        %4317 = vmatpush2.bf16.xpose.msra.mxu0 0
        %4318 = vmatprep.subr.bf16.mxu0 0
        %4319 = vmatpush2.bf16.xpose.msra.mxu0 0
        %4320 = vmatprep.subr.bf16.mxu0 0
        %4321 = vmatpush2.bf16.xpose.msra.mxu0 0
        %4322 = vmatprep.mubr.bf16.mxu0 0
        %4323 = vmatmul.mubr.bf16.gmra.mxu0 %v4276
        %v4324 = vpop.f32.mrf.mxu0
        %v4325 = vadd.f32 0.0, %v4324
        %v4326 = vpop.f32.mrf.mxu0
        %v4327 = vpop.f32.mrf.mxu0
        %v4328 = vadd.f32 0.0, %v4327
        %v4329 = vpop.f32.mrf.mxu0
        %4330 = vdwg.mxu0
        %v4331 = vlaneseq
        %v4332 = vand.u32 %v4331, 127
        %s4333 = sld [smem:[#allocation5 + %s46]]
        %v4334 = vstv %s4333
        %vm4335 = vcmp.lt.s32.totalorder %v4332, %v4334
        %v4336 = vsel %vm4335, 1, 0
        %vm4337 = vcmp.eq.s32.totalorder %v4336, 1
        %v4338 = vsel %vm4337, %v4097, -1000000.0
        %v4339 = vsel %vm4337, %v4100, -1000000.0
        %v4340 = vsel %vm4337, %v4173, -1000000.0
        %v4341 = vsel %vm4337, %v4176, -1000000.0
        %v4342 = vsel %vm4337, %v4249, -1000000.0
        %v4343 = vsel %vm4337, %v4252, -1000000.0
        %v4344 = vsel %vm4337, %v4325, -1000000.0
        %v4345 = vsel %vm4337, %v4328, -1000000.0
        %vm4346 = vcmask 523264
        %v4347 = vsel %vm4346, %v4338, -inf
        %4348 = vmax.xlane.f32.xlu0 %v4347
        %v4349 = vpop.xlane.xlu0 %4348
        %v4350 = vsel %vm4346, %v4339, -inf
        %4351 = vmax.xlane.f32.xlu0 %v4350
        %v4352 = vpop.xlane.xlu0 %4351
        %v4353 = vsel %vm4346, %v4340, -inf
        %4354 = vmax.xlane.f32.xlu0 %v4353
        %v4355 = vpop.xlane.xlu0 %4354
        %v4356 = vsel %vm4346, %v4341, -inf
        %4357 = vmax.xlane.f32.xlu0 %v4356
        %v4358 = vpop.xlane.xlu0 %4357
        %v4359 = vsel %vm4346, %v4342, -inf
        %4360 = vmax.xlane.f32.xlu0 %v4359
        %v4361 = vpop.xlane.xlu0 %4360
        %v4362 = vsel %vm4346, %v4343, -inf
        %4363 = vmax.xlane.f32.xlu0 %v4362
        %v4364 = vpop.xlane.xlu0 %4363
        %v4365 = vsel %vm4346, %v4344, -inf
        %4366 = vmax.xlane.f32.xlu0 %v4365
        %v4367 = vpop.xlane.xlu0 %4366
        %v4368 = vsel %vm4346, %v4345, -inf
        %4369 = vmax.xlane.f32.xlu0 %v4368
        %v4370 = vpop.xlane.xlu0 %4369
        %v4371 = vsub.f32 %v4338, %v4349
        %v4372 = vsub.f32 %v4339, %v4352
        %v4373 = vsub.f32 %v4340, %v4355
        %v4374 = vsub.f32 %v4341, %v4358
        %v4375 = vsub.f32 %v4342, %v4361
        %v4376 = vsub.f32 %v4343, %v4364
        %v4377 = vsub.f32 %v4344, %v4367
        %v4378 = vsub.f32 %v4345, %v4370
        %v4379 = vmul.f32 %v4371, 1.442695
        %v4380 = vpow.pop %v4379
        %v4381 = vmul.f32 %v4372, 1.442695
        %v4382 = vpow.pop %v4381
        %v4383 = vmul.f32 %v4373, 1.442695
        %v4384 = vpow.pop %v4383
        %v4385 = vmul.f32 %v4374, 1.442695
        %v4386 = vpow.pop %v4385
        %v4387 = vmul.f32 %v4375, 1.442695
        %v4388 = vpow.pop %v4387
        %v4389 = vmul.f32 %v4376, 1.442695
        %v4390 = vpow.pop %v4389
        %v4391 = vmul.f32 %v4377, 1.442695
        %v4392 = vpow.pop %v4391
        %v4393 = vmul.f32 %v4378, 1.442695
        %v4394 = vpow.pop %v4393
        %v4395 = vsel %vm4346, %v4380, 0.0
        %4396 = vadd.xlane.f32.xlu0 %v4395
        %v4397 = vpop.xlane.xlu0 %4396
        %v4398 = vsel %vm4346, %v4382, 0.0
        %4399 = vadd.xlane.f32.xlu0 %v4398
        %v4400 = vpop.xlane.xlu0 %4399
        %v4401 = vsel %vm4346, %v4384, 0.0
        %4402 = vadd.xlane.f32.xlu0 %v4401
        %v4403 = vpop.xlane.xlu0 %4402
        %v4404 = vsel %vm4346, %v4386, 0.0
        %4405 = vadd.xlane.f32.xlu0 %v4404
        %v4406 = vpop.xlane.xlu0 %4405
        %v4407 = vsel %vm4346, %v4388, 0.0
        %4408 = vadd.xlane.f32.xlu0 %v4407
        %v4409 = vpop.xlane.xlu0 %4408
        %v4410 = vsel %vm4346, %v4390, 0.0
        %4411 = vadd.xlane.f32.xlu0 %v4410
        %v4412 = vpop.xlane.xlu0 %4411
        %v4413 = vsel %vm4346, %v4392, 0.0
        %4414 = vadd.xlane.f32.xlu0 %v4413
        %v4415 = vpop.xlane.xlu0 %4414
        %v4416 = vsel %vm4346, %v4394, 0.0
        %4417 = vadd.xlane.f32.xlu0 %v4416
        %v4418 = vpop.xlane.xlu0 %4417
        %v4419 = vrcp.pop %v4397
        %v4420 = vrcp.pop %v4400
        %v4421 = vrcp.pop %v4403
        %v4422 = vrcp.pop %v4406
        %v4423 = vrcp.pop %v4409
        %v4424 = vrcp.pop %v4412
        %v4425 = vrcp.pop %v4415
        %v4426 = vrcp.pop %v4418
        %v4427 = vmul.f32 %v4380, %v4419
        %v4428 = vmul.f32 %v4382, %v4420
        %v4429 = vmul.f32 %v4384, %v4421
        %v4430 = vmul.f32 %v4386, %v4422
        %v4431 = vmul.f32 %v4388, %v4423
        %v4432 = vmul.f32 %v4390, %v4424
        %v4433 = vmul.f32 %v4392, %v4425
        %v4434 = vmul.f32 %v4394, %v4426
        %v4435 = vpack.c.bf16 %v4428, %v4427
        %v4436 = vpack.c.bf16 %v4430, %v4429
        %v4437 = vpack.c.bf16 %v4432, %v4431
        %v4438 = vpack.c.bf16 %v4434, %v4433
        %v4439 = vld [vmem:[#allocation3] sm:$0xf]
        %v4440 = vld [vmem:[#allocation3 + $0x4] sm:$0xf]
        %v4441 = vld [vmem:[#allocation3 + $0x8] sm:$0xf]
        %v4442 = vld [vmem:[#allocation3 + $0xc] sm:$0xf]
        %v4443 = vld [vmem:[#allocation3 + $0x10] sm:$0xf]
        %v4444 = vld [vmem:[#allocation3 + $0x14] sm:$0xf]
        %v4445 = vld [vmem:[#allocation3 + $0x18] sm:$0xf]
        %v4446 = vld [vmem:[#allocation3 + $0x1c] sm:$0xf]
        %v4447 = vld [vmem:[#allocation3 + $0x20] sm:$0xf]
        %v4448 = vld [vmem:[#allocation3 + $0x24] sm:$0xf]
        %v4449 = vld [vmem:[#allocation3 + $0x28] sm:$0xf]
        %v4450 = vld [vmem:[#allocation3 + $0x2c] sm:$0xf]
        %v4451 = vld [vmem:[#allocation3 + $0x30] sm:$0xf]
        %v4452 = vld [vmem:[#allocation3 + $0x34] sm:$0xf]
        %v4453 = vld [vmem:[#allocation3 + $0x38] sm:$0xf]
        %v4454 = vld [vmem:[#allocation3 + $0x3c] sm:$0xf]
        %v4455 = vld [vmem:[#allocation3 + $0x40] sm:$0xf]
        %v4456 = vld [vmem:[#allocation3 + $0x44] sm:$0xf]
        %v4457 = vld [vmem:[#allocation3 + $0x48] sm:$0xf]
        %v4458 = vld [vmem:[#allocation3 + $0x4c] sm:$0xf]
        %v4459 = vld [vmem:[#allocation3 + $0x50] sm:$0xf]
        %v4460 = vld [vmem:[#allocation3 + $0x54] sm:$0xf]
        %v4461 = vld [vmem:[#allocation3 + $0x58] sm:$0xf]
        %v4462 = vld [vmem:[#allocation3 + $0x5c] sm:$0xf]
        %v4463 = vld [vmem:[#allocation3 + $0x60] sm:$0xf]
        %v4464 = vld [vmem:[#allocation3 + $0x64] sm:$0xf]
        %v4465 = vld [vmem:[#allocation3 + $0x68] sm:$0xf]
        %v4466 = vld [vmem:[#allocation3 + $0x6c] sm:$0xf]
        %v4467 = vld [vmem:[#allocation3 + $0x70] sm:$0xf]
        %v4468 = vld [vmem:[#allocation3 + $0x74] sm:$0xf]
        %v4469 = vld [vmem:[#allocation3 + $0x78] sm:$0xf]
        %v4470 = vld [vmem:[#allocation3 + $0x7c] sm:$0xf]
        %v4479 = vunpack.c.l.b16 %v4439
        %v4480 = vunpack.c.l.b16 %v4440
        %v4481 = vunpack.c.l.b16 %v4441
        %v4482 = vunpack.c.l.b16 %v4442
        %v4483 = vunpack.c.l.b16 %v4443
        %v4484 = vunpack.c.l.b16 %v4444
        %v4485 = vunpack.c.l.b16 %v4445
        %v4486 = vunpack.c.l.b16 %v4446
        %v4487 = vpack.c.b16 %v4480, %v4479
        %v4488 = vpack.c.b16 %v4482, %v4481
        %v4489 = vpack.c.b16 %v4484, %v4483
        %v4490 = vpack.c.b16 %v4486, %v4485
        %v4496 = vsel %vm4346, %v4435, 0
        %4498 = vmatprep.subr.bf16.mxu0 0
        %4499 = vmatpush1.bf16.msra.mxu0 0
        %4500 = vmatprep.subr.bf16.mxu0 0
        %4501 = vmatpush1.bf16.msra.mxu0 0
        %4502 = vmatprep.subr.bf16.mxu0 0
        %4503 = vmatpush1.bf16.msra.mxu0 0
        %4504 = vmatprep.subr.bf16.mxu0 0
        %4505 = vmatpush1.bf16.msra.mxu0 0
        %4506 = vmatprep.subr.bf16.mxu0 0
        %4507 = vmatpush1.bf16.msra.mxu0 %v4490
        %4508 = vmatprep.subr.bf16.mxu0 0
        %4509 = vmatpush1.bf16.msra.mxu0 %v4489
        %4510 = vmatprep.subr.bf16.mxu0 0
        %4511 = vmatpush1.bf16.msra.mxu0 %v4488
        %4512 = vmatprep.subr.bf16.mxu0 0
        %4513 = vmatpush1.bf16.msra.mxu0 %v4487
        %4514 = vmatprep.subr.bf16.mxu0 0
        %4515 = vmatpush2.bf16.msra.mxu0 0
        %4516 = vmatprep.subr.bf16.mxu0 0
        %4517 = vmatpush2.bf16.msra.mxu0 0
        %4518 = vmatprep.subr.bf16.mxu0 0
        %4519 = vmatpush2.bf16.msra.mxu0 0
        %4520 = vmatprep.subr.bf16.mxu0 0
        %4521 = vmatpush2.bf16.msra.mxu0 0
        %4522 = vmatprep.subr.bf16.mxu0 0
        %4523 = vmatpush2.bf16.msra.mxu0 0
        %4524 = vmatprep.subr.bf16.mxu0 0
        %4525 = vmatpush2.bf16.msra.mxu0 0
        %4526 = vmatprep.subr.bf16.mxu0 0
        %4527 = vmatpush2.bf16.msra.mxu0 0
        %4528 = vmatprep.subr.bf16.mxu0 0
        %4529 = vmatpush2.bf16.msra.mxu0 0
        %4530 = vmatprep.mubr.bf16.mxu0 0
        %4531 = vmatmul.mubr.bf16.gmra.mxu0 %v4496
        %v4532 = vpop.f32.mrf.mxu0
        %v4533 = vadd.f32 0.0, %v4532
        %v4534 = vpop.f32.mrf.mxu0
        %v4535 = vpop.f32.mrf.mxu0
        %v4536 = vadd.f32 0.0, %v4535
        %v4537 = vpop.f32.mrf.mxu0
        %4538 = vdwg.mxu0
        %v4547 = vunpack.c.l.b16 %v4447
        %v4548 = vunpack.c.l.b16 %v4448
        %v4549 = vunpack.c.l.b16 %v4449
        %v4550 = vunpack.c.l.b16 %v4450
        %v4551 = vunpack.c.l.b16 %v4451
        %v4552 = vunpack.c.l.b16 %v4452
        %v4553 = vunpack.c.l.b16 %v4453
        %v4554 = vunpack.c.l.b16 %v4454
        %v4555 = vpack.c.b16 %v4548, %v4547
        %v4556 = vpack.c.b16 %v4550, %v4549
        %v4557 = vpack.c.b16 %v4552, %v4551
        %v4558 = vpack.c.b16 %v4554, %v4553
        %v4564 = vsel %vm4346, %v4436, 0
        %4566 = vmatprep.subr.bf16.mxu0 0
        %4567 = vmatpush1.bf16.msra.mxu0 0
        %4568 = vmatprep.subr.bf16.mxu0 0
        %4569 = vmatpush1.bf16.msra.mxu0 0
        %4570 = vmatprep.subr.bf16.mxu0 0
        %4571 = vmatpush1.bf16.msra.mxu0 0
        %4572 = vmatprep.subr.bf16.mxu0 0
        %4573 = vmatpush1.bf16.msra.mxu0 0
        %4574 = vmatprep.subr.bf16.mxu0 0
        %4575 = vmatpush1.bf16.msra.mxu0 %v4558
        %4576 = vmatprep.subr.bf16.mxu0 0
        %4577 = vmatpush1.bf16.msra.mxu0 %v4557
        %4578 = vmatprep.subr.bf16.mxu0 0
        %4579 = vmatpush1.bf16.msra.mxu0 %v4556
        %4580 = vmatprep.subr.bf16.mxu0 0
        %4581 = vmatpush1.bf16.msra.mxu0 %v4555
        %4582 = vmatprep.subr.bf16.mxu0 0
        %4583 = vmatpush2.bf16.msra.mxu0 0
        %4584 = vmatprep.subr.bf16.mxu0 0
        %4585 = vmatpush2.bf16.msra.mxu0 0
        %4586 = vmatprep.subr.bf16.mxu0 0
        %4587 = vmatpush2.bf16.msra.mxu0 0
        %4588 = vmatprep.subr.bf16.mxu0 0
        %4589 = vmatpush2.bf16.msra.mxu0 0
        %4590 = vmatprep.subr.bf16.mxu0 0
        %4591 = vmatpush2.bf16.msra.mxu0 0
        %4592 = vmatprep.subr.bf16.mxu0 0
        %4593 = vmatpush2.bf16.msra.mxu0 0
        %4594 = vmatprep.subr.bf16.mxu0 0
        %4595 = vmatpush2.bf16.msra.mxu0 0
        %4596 = vmatprep.subr.bf16.mxu0 0
        %4597 = vmatpush2.bf16.msra.mxu0 0
        %4598 = vmatprep.mubr.bf16.mxu0 0
        %4599 = vmatmul.mubr.bf16.gmra.mxu0 %v4564
        %v4600 = vpop.f32.mrf.mxu0
        %v4601 = vadd.f32 0.0, %v4600
        %v4602 = vpop.f32.mrf.mxu0
        %v4603 = vpop.f32.mrf.mxu0
        %v4604 = vadd.f32 0.0, %v4603
        %v4605 = vpop.f32.mrf.mxu0
        %4606 = vdwg.mxu0
        %v4615 = vunpack.c.l.b16 %v4455
        %v4616 = vunpack.c.l.b16 %v4456
        %v4617 = vunpack.c.l.b16 %v4457
        %v4618 = vunpack.c.l.b16 %v4458
        %v4619 = vunpack.c.l.b16 %v4459
        %v4620 = vunpack.c.l.b16 %v4460
        %v4621 = vunpack.c.l.b16 %v4461
        %v4622 = vunpack.c.l.b16 %v4462
        %v4623 = vpack.c.b16 %v4616, %v4615
        %v4624 = vpack.c.b16 %v4618, %v4617
        %v4625 = vpack.c.b16 %v4620, %v4619
        %v4626 = vpack.c.b16 %v4622, %v4621
        %v4632 = vsel %vm4346, %v4437, 0
        %4634 = vmatprep.subr.bf16.mxu0 0
        %4635 = vmatpush1.bf16.msra.mxu0 0
        %4636 = vmatprep.subr.bf16.mxu0 0
        %4637 = vmatpush1.bf16.msra.mxu0 0
        %4638 = vmatprep.subr.bf16.mxu0 0
        %4639 = vmatpush1.bf16.msra.mxu0 0
        %4640 = vmatprep.subr.bf16.mxu0 0
        %4641 = vmatpush1.bf16.msra.mxu0 0
        %4642 = vmatprep.subr.bf16.mxu0 0
        %4643 = vmatpush1.bf16.msra.mxu0 %v4626
        %4644 = vmatprep.subr.bf16.mxu0 0
        %4645 = vmatpush1.bf16.msra.mxu0 %v4625
        %4646 = vmatprep.subr.bf16.mxu0 0
        %4647 = vmatpush1.bf16.msra.mxu0 %v4624
        %4648 = vmatprep.subr.bf16.mxu0 0
        %4649 = vmatpush1.bf16.msra.mxu0 %v4623
        %4650 = vmatprep.subr.bf16.mxu0 0
        %4651 = vmatpush2.bf16.msra.mxu0 0
        %4652 = vmatprep.subr.bf16.mxu0 0
        %4653 = vmatpush2.bf16.msra.mxu0 0
        %4654 = vmatprep.subr.bf16.mxu0 0
        %4655 = vmatpush2.bf16.msra.mxu0 0
        %4656 = vmatprep.subr.bf16.mxu0 0
        %4657 = vmatpush2.bf16.msra.mxu0 0
        %4658 = vmatprep.subr.bf16.mxu0 0
        %4659 = vmatpush2.bf16.msra.mxu0 0
        %4660 = vmatprep.subr.bf16.mxu0 0
        %4661 = vmatpush2.bf16.msra.mxu0 0
        %4662 = vmatprep.subr.bf16.mxu0 0
        %4663 = vmatpush2.bf16.msra.mxu0 0
        %4664 = vmatprep.subr.bf16.mxu0 0
        %4665 = vmatpush2.bf16.msra.mxu0 0
        %4666 = vmatprep.mubr.bf16.mxu0 0
        %4667 = vmatmul.mubr.bf16.gmra.mxu0 %v4632
        %v4668 = vpop.f32.mrf.mxu0
        %v4669 = vadd.f32 0.0, %v4668
        %v4670 = vpop.f32.mrf.mxu0
        %v4671 = vpop.f32.mrf.mxu0
        %v4672 = vadd.f32 0.0, %v4671
        %v4673 = vpop.f32.mrf.mxu0
        %4674 = vdwg.mxu0
        %v4683 = vunpack.c.l.b16 %v4463
        %v4684 = vunpack.c.l.b16 %v4464
        %v4685 = vunpack.c.l.b16 %v4465
        %v4686 = vunpack.c.l.b16 %v4466
        %v4687 = vunpack.c.l.b16 %v4467
        %v4688 = vunpack.c.l.b16 %v4468
        %v4689 = vunpack.c.l.b16 %v4469
        %v4690 = vunpack.c.l.b16 %v4470
        %v4691 = vpack.c.b16 %v4684, %v4683
        %v4692 = vpack.c.b16 %v4686, %v4685
        %v4693 = vpack.c.b16 %v4688, %v4687
        %v4694 = vpack.c.b16 %v4690, %v4689
        %v4700 = vsel %vm4346, %v4438, 0
        %4702 = vmatprep.subr.bf16.mxu0 0
        %4703 = vmatpush1.bf16.msra.mxu0 0
        %4704 = vmatprep.subr.bf16.mxu0 0
        %4705 = vmatpush1.bf16.msra.mxu0 0
        %4706 = vmatprep.subr.bf16.mxu0 0
        %4707 = vmatpush1.bf16.msra.mxu0 0
        %4708 = vmatprep.subr.bf16.mxu0 0
        %4709 = vmatpush1.bf16.msra.mxu0 0
        %4710 = vmatprep.subr.bf16.mxu0 0
        %4711 = vmatpush1.bf16.msra.mxu0 %v4694
        %4712 = vmatprep.subr.bf16.mxu0 0
        %4713 = vmatpush1.bf16.msra.mxu0 %v4693
        %4714 = vmatprep.subr.bf16.mxu0 0
        %4715 = vmatpush1.bf16.msra.mxu0 %v4692
        %4716 = vmatprep.subr.bf16.mxu0 0
        %4717 = vmatpush1.bf16.msra.mxu0 %v4691
        %4718 = vmatprep.subr.bf16.mxu0 0
        %4719 = vmatpush2.bf16.msra.mxu0 0
        %4720 = vmatprep.subr.bf16.mxu0 0
        %4721 = vmatpush2.bf16.msra.mxu0 0
        %4722 = vmatprep.subr.bf16.mxu0 0
        %4723 = vmatpush2.bf16.msra.mxu0 0
        %4724 = vmatprep.subr.bf16.mxu0 0
        %4725 = vmatpush2.bf16.msra.mxu0 0
        %4726 = vmatprep.subr.bf16.mxu0 0
        %4727 = vmatpush2.bf16.msra.mxu0 0
        %4728 = vmatprep.subr.bf16.mxu0 0
        %4729 = vmatpush2.bf16.msra.mxu0 0
        %4730 = vmatprep.subr.bf16.mxu0 0
        %4731 = vmatpush2.bf16.msra.mxu0 0
        %4732 = vmatprep.subr.bf16.mxu0 0
        %4733 = vmatpush2.bf16.msra.mxu0 0
        %4734 = vmatprep.mubr.bf16.mxu0 0
        %4735 = vmatmul.mubr.bf16.gmra.mxu0 %v4700
        %v4736 = vpop.f32.mrf.mxu0
        %v4737 = vadd.f32 0.0, %v4736
        %v4738 = vpop.f32.mrf.mxu0
        %v4739 = vpop.f32.mrf.mxu0
        %v4740 = vadd.f32 0.0, %v4739
        %v4741 = vpop.f32.mrf.mxu0
        %4742 = vdwg.mxu0
        %v4743 = vcombine.low %v4533, %v4669
        %v4744 = vcombine.high %v4533, %v4669
        %v4746 = vunpack.c.l.s4 1983009808
        %v4747 = vunpack.c.0.s8 %v4746
        %v4748 = vlaneseq
        %v4749 = vshrl.u32 %v4748, 7
        %v4750 = vsub.s32 %v4747, %v4749
        %v4751 = vrot.slane %v4743, %v4750
        %v4753 = vunpack.c.l.s4 1983009808
        %v4754 = vunpack.c.0.s8 %v4753
        %v4755 = vlaneseq
        %v4756 = vshrl.u32 %v4755, 7
        %v4757 = vsub.s32 %v4754, %v4756
        %v4758 = vrot.slane %v4744, %v4757
        %v4759 = vcombine.low %v4601, %v4737
        %v4760 = vcombine.high %v4601, %v4737
        %v4762 = vunpack.c.l.s4 1983009808
        %v4763 = vunpack.c.0.s8 %v4762
        %v4764 = vlaneseq
        %v4765 = vshrl.u32 %v4764, 7
        %v4766 = vsub.s32 %v4763, %v4765
        %v4767 = vrot.slane %v4759, %v4766
        %v4769 = vunpack.c.l.s4 1983009808
        %v4770 = vunpack.c.0.s8 %v4769
        %v4771 = vlaneseq
        %v4772 = vshrl.u32 %v4771, 7
        %v4773 = vsub.s32 %v4770, %v4772
        %v4774 = vrot.slane %v4760, %v4773
        %v4775 = vcombine.low %v4751, %v4767
        %v4776 = vcombine.high %v4751, %v4767
        %v4778 = vunpack.c.l.s4 1934713408
        %v4779 = vunpack.c.0.s8 %v4778
        %v4780 = vlaneseq
        %v4781 = vshrl.u32 %v4780, 7
        %v4782 = vsub.s32 %v4779, %v4781
        %v4783 = vrot.slane %v4775, %v4782
        %v4785 = vunpack.c.l.s4 1934713408
        %v4786 = vunpack.c.0.s8 %v4785
        %v4787 = vlaneseq
        %v4788 = vshrl.u32 %v4787, 7
        %v4789 = vsub.s32 %v4786, %v4788
        %v4790 = vrot.slane %v4776, %v4789
        %v4791 = vcombine.low %v4758, %v4774
        %v4792 = vcombine.high %v4758, %v4774
        %v4794 = vunpack.c.l.s4 1934713408
        %v4795 = vunpack.c.0.s8 %v4794
        %v4796 = vlaneseq
        %v4797 = vshrl.u32 %v4796, 7
        %v4798 = vsub.s32 %v4795, %v4797
        %v4799 = vrot.slane %v4791, %v4798
        %v4801 = vunpack.c.l.s4 1934713408
        %v4802 = vunpack.c.0.s8 %v4801
        %v4803 = vlaneseq
        %v4804 = vshrl.u32 %v4803, 7
        %v4805 = vsub.s32 %v4802, %v4804
        %v4806 = vrot.slane %v4792, %v4805
        %v4807 = vcombine.high %v4783, 0.0
        %v4808 = vcombine.high %v4790, 0.0
        %v4809 = vcombine.high %v4799, 0.0
        %v4810 = vcombine.high %v4806, 0.0
        %v4811 = vcombine.low %v4536, %v4672
        %v4812 = vcombine.high %v4536, %v4672
        %v4814 = vunpack.c.l.s4 1983009808
        %v4815 = vunpack.c.0.s8 %v4814
        %v4816 = vlaneseq
        %v4817 = vshrl.u32 %v4816, 7
        %v4818 = vsub.s32 %v4815, %v4817
        %v4819 = vrot.slane %v4811, %v4818
        %v4821 = vunpack.c.l.s4 1983009808
        %v4822 = vunpack.c.0.s8 %v4821
        %v4823 = vlaneseq
        %v4824 = vshrl.u32 %v4823, 7
        %v4825 = vsub.s32 %v4822, %v4824
        %v4826 = vrot.slane %v4812, %v4825
        %v4827 = vcombine.low %v4604, %v4740
        %v4828 = vcombine.high %v4604, %v4740
        %v4830 = vunpack.c.l.s4 1983009808
        %v4831 = vunpack.c.0.s8 %v4830
        %v4832 = vlaneseq
        %v4833 = vshrl.u32 %v4832, 7
        %v4834 = vsub.s32 %v4831, %v4833
        %v4835 = vrot.slane %v4827, %v4834
        %v4837 = vunpack.c.l.s4 1983009808
        %v4838 = vunpack.c.0.s8 %v4837
        %v4839 = vlaneseq
        %v4840 = vshrl.u32 %v4839, 7
        %v4841 = vsub.s32 %v4838, %v4840
        %v4842 = vrot.slane %v4828, %v4841
        %v4843 = vcombine.low %v4819, %v4835
        %v4844 = vcombine.high %v4819, %v4835
        %v4846 = vunpack.c.l.s4 1934713408
        %v4847 = vunpack.c.0.s8 %v4846
        %v4848 = vlaneseq
        %v4849 = vshrl.u32 %v4848, 7
        %v4850 = vsub.s32 %v4847, %v4849
        %v4851 = vrot.slane %v4843, %v4850
        %v4853 = vunpack.c.l.s4 1934713408
        %v4854 = vunpack.c.0.s8 %v4853
        %v4855 = vlaneseq
        %v4856 = vshrl.u32 %v4855, 7
        %v4857 = vsub.s32 %v4854, %v4856
        %v4858 = vrot.slane %v4844, %v4857
        %v4859 = vcombine.low %v4826, %v4842
        %v4860 = vcombine.high %v4826, %v4842
        %v4862 = vunpack.c.l.s4 1934713408
        %v4863 = vunpack.c.0.s8 %v4862
        %v4864 = vlaneseq
        %v4865 = vshrl.u32 %v4864, 7
        %v4866 = vsub.s32 %v4863, %v4865
        %v4867 = vrot.slane %v4859, %v4866
        %v4869 = vunpack.c.l.s4 1934713408
        %v4870 = vunpack.c.0.s8 %v4869
        %v4871 = vlaneseq
        %v4872 = vshrl.u32 %v4871, 7
        %v4873 = vsub.s32 %v4870, %v4872
        %v4874 = vrot.slane %v4860, %v4873
        %v4875 = vcombine.high %v4851, 0.0
        %v4876 = vcombine.high %v4858, 0.0
        %v4877 = vcombine.high %v4867, 0.0
        %v4878 = vcombine.high %v4874, 0.0
        %v4879 = vcombine.low %v4783, %v4790
        %v4881 = vunpack.c.l.s4 1983009808
        %v4882 = vunpack.c.0.s8 %v4881
        %v4883 = vlaneseq
        %v4884 = vshrl.u32 %v4883, 7
        %v4885 = vsub.s32 %v4882, %v4884
        %v4886 = vrot.slane %v4879, %v4885
        %v4887 = vcombine.low %v4807, %v4808
        %v4889 = vunpack.c.l.s4 1983009808
        %v4890 = vunpack.c.0.s8 %v4889
        %v4891 = vlaneseq
        %v4892 = vshrl.u32 %v4891, 7
        %v4893 = vsub.s32 %v4890, %v4892
        %v4894 = vrot.slane %v4887, %v4893
        %v4895 = vcombine.low %v4799, %v4806
        %v4897 = vunpack.c.l.s4 1983009808
        %v4898 = vunpack.c.0.s8 %v4897
        %v4899 = vlaneseq
        %v4900 = vshrl.u32 %v4899, 7
        %v4901 = vsub.s32 %v4898, %v4900
        %v4902 = vrot.slane %v4895, %v4901
        %v4903 = vcombine.low %v4809, %v4810
        %v4905 = vunpack.c.l.s4 1983009808
        %v4906 = vunpack.c.0.s8 %v4905
        %v4907 = vlaneseq
        %v4908 = vshrl.u32 %v4907, 7
        %v4909 = vsub.s32 %v4906, %v4908
        %v4910 = vrot.slane %v4903, %v4909
        %v4911 = vcombine.low %v4886, %v4894
        %v4912 = vcombine.high %v4886, %v4894
        %v4914 = vunpack.c.l.s4 1934713408
        %v4915 = vunpack.c.0.s8 %v4914
        %v4916 = vlaneseq
        %v4917 = vshrl.u32 %v4916, 7
        %v4918 = vsub.s32 %v4915, %v4917
        %v4919 = vrot.slane %v4911, %v4918
        %v4921 = vunpack.c.l.s4 1934713408
        %v4922 = vunpack.c.0.s8 %v4921
        %v4923 = vlaneseq
        %v4924 = vshrl.u32 %v4923, 7
        %v4925 = vsub.s32 %v4922, %v4924
        %v4926 = vrot.slane %v4912, %v4925
        %v4927 = vcombine.low %v4902, %v4910
        %v4928 = vcombine.high %v4902, %v4910
        %v4930 = vunpack.c.l.s4 1934713408
        %v4931 = vunpack.c.0.s8 %v4930
        %v4932 = vlaneseq
        %v4933 = vshrl.u32 %v4932, 7
        %v4934 = vsub.s32 %v4931, %v4933
        %v4935 = vrot.slane %v4927, %v4934
        %v4937 = vunpack.c.l.s4 1934713408
        %v4938 = vunpack.c.0.s8 %v4937
        %v4939 = vlaneseq
        %v4940 = vshrl.u32 %v4939, 7
        %v4941 = vsub.s32 %v4938, %v4940
        %v4942 = vrot.slane %v4928, %v4941
        %v4943 = vcombine.low %v4919, %v4935
        %v4944 = vcombine.high %v4919, %v4935
        %v4945 = vcombine.low %v4926, %v4942
        %v4946 = vcombine.high %v4926, %v4942
        %v4947 = vcombine.low %v4851, %v4858
        %v4949 = vunpack.c.l.s4 1983009808
        %v4950 = vunpack.c.0.s8 %v4949
        %v4951 = vlaneseq
        %v4952 = vshrl.u32 %v4951, 7
        %v4953 = vsub.s32 %v4950, %v4952
        %v4954 = vrot.slane %v4947, %v4953
        %v4955 = vcombine.low %v4875, %v4876
        %v4957 = vunpack.c.l.s4 1983009808
        %v4958 = vunpack.c.0.s8 %v4957
        %v4959 = vlaneseq
        %v4960 = vshrl.u32 %v4959, 7
        %v4961 = vsub.s32 %v4958, %v4960
        %v4962 = vrot.slane %v4955, %v4961
        %v4963 = vcombine.low %v4867, %v4874
        %v4965 = vunpack.c.l.s4 1983009808
        %v4966 = vunpack.c.0.s8 %v4965
        %v4967 = vlaneseq
        %v4968 = vshrl.u32 %v4967, 7
        %v4969 = vsub.s32 %v4966, %v4968
        %v4970 = vrot.slane %v4963, %v4969
        %v4971 = vcombine.low %v4877, %v4878
        %v4973 = vunpack.c.l.s4 1983009808
        %v4974 = vunpack.c.0.s8 %v4973
        %v4975 = vlaneseq
        %v4976 = vshrl.u32 %v4975, 7
        %v4977 = vsub.s32 %v4974, %v4976
        %v4978 = vrot.slane %v4971, %v4977
        %v4979 = vcombine.low %v4954, %v4962
        %v4980 = vcombine.high %v4954, %v4962
        %v4982 = vunpack.c.l.s4 1934713408
        %v4983 = vunpack.c.0.s8 %v4982
        %v4984 = vlaneseq
        %v4985 = vshrl.u32 %v4984, 7
        %v4986 = vsub.s32 %v4983, %v4985
        %v4987 = vrot.slane %v4979, %v4986
        %v4989 = vunpack.c.l.s4 1934713408
        %v4990 = vunpack.c.0.s8 %v4989
        %v4991 = vlaneseq
        %v4992 = vshrl.u32 %v4991, 7
        %v4993 = vsub.s32 %v4990, %v4992
        %v4994 = vrot.slane %v4980, %v4993
        %v4995 = vcombine.low %v4970, %v4978
        %v4996 = vcombine.high %v4970, %v4978
        %v4998 = vunpack.c.l.s4 1934713408
        %v4999 = vunpack.c.0.s8 %v4998
        %v5000 = vlaneseq
        %v5001 = vshrl.u32 %v5000, 7
        %v5002 = vsub.s32 %v4999, %v5001
        %v5003 = vrot.slane %v4995, %v5002
        %v5005 = vunpack.c.l.s4 1934713408
        %v5006 = vunpack.c.0.s8 %v5005
        %v5007 = vlaneseq
        %v5008 = vshrl.u32 %v5007, 7
        %v5009 = vsub.s32 %v5006, %v5008
        %v5010 = vrot.slane %v4996, %v5009
        %v5011 = vcombine.low %v4987, %v5003
        %v5012 = vcombine.high %v4987, %v5003
        %v5013 = vcombine.low %v4994, %v5010
        %v5014 = vcombine.high %v4994, %v5010
        %5017 = vrot.lane.b32.xlu0 %v4944, 32
        %v5018 = vpop.permute.xlu0 %5017
        %5019 = vrot.lane.b32.xlu0 %v5012, 32
        %v5020 = vpop.permute.xlu0 %5019
        %5025 = vrot.lane.b32.xlu0 %v4945, 64
        %v5026 = vpop.permute.xlu0 %5025
        %5027 = vrot.lane.b32.xlu0 %v5013, 64
        %v5028 = vpop.permute.xlu0 %5027
        %5033 = vrot.lane.b32.xlu0 %v4946, 96
        %v5034 = vpop.permute.xlu0 %5033
        %5035 = vrot.lane.b32.xlu0 %v5014, 96
        %v5036 = vpop.permute.xlu0 %5035
        %v5039 = vsel %vm4046, %v4943, %v5018
        %v5040 = vsel %vm4046, %v5011, %v5020
        %v5041 = vsel %vm4346, %v5039, %v5026
        %v5042 = vsel %vm4346, %v5040, %v5028
        %vm5043 = vcmask 785408
        %v5044 = vsel %vm5043, %v5041, %v5034
        %v5045 = vsel %vm5043, %v5042, %v5036
        %v5046 = vpack.c.bf16 %v5045, %v5044
        %v5047 = vld [vmem:[#allocation15] sm:$0xf]
        %v5048 = vld [vmem:[#allocation15 + $0x4] sm:$0xf]
        %v5049 = vld [vmem:[#allocation15 + $0x8] sm:$0xf]
        %v5050 = vld [vmem:[#allocation15 + $0xc] sm:$0xf]
        %v5051 = vld [vmem:[#allocation15 + $0x10] sm:$0xf]
        %v5052 = vld [vmem:[#allocation15 + $0x14] sm:$0xf]
        %v5053 = vld [vmem:[#allocation15 + $0x18] sm:$0xf]
        %v5054 = vld [vmem:[#allocation15 + $0x1c] sm:$0xf]
        %v5055 = vld [vmem:[#allocation15 + $0x20] sm:$0xf]
        %v5056 = vld [vmem:[#allocation15 + $0x24] sm:$0xf]
        %v5057 = vld [vmem:[#allocation15 + $0x28] sm:$0xf]
        %v5058 = vld [vmem:[#allocation15 + $0x2c] sm:$0xf]
        %v5059 = vld [vmem:[#allocation15 + $0x30] sm:$0xf]
        %v5060 = vld [vmem:[#allocation15 + $0x34] sm:$0xf]
        %v5061 = vld [vmem:[#allocation15 + $0x38] sm:$0xf]
        %v5062 = vld [vmem:[#allocation15 + $0x3c] sm:$0xf]
        %v5079 = vunpack.c.l.b16 %v5047
        %v5080 = vunpack.c.l.b16 %v5048
        %v5081 = vunpack.c.l.b16 %v5049
        %v5082 = vunpack.c.l.b16 %v5050
        %v5083 = vunpack.c.l.b16 %v5051
        %v5084 = vunpack.c.l.b16 %v5052
        %v5085 = vunpack.c.l.b16 %v5053
        %v5086 = vunpack.c.l.b16 %v5054
        %v5087 = vunpack.c.l.b16 %v5055
        %v5088 = vunpack.c.l.b16 %v5056
        %v5089 = vunpack.c.l.b16 %v5057
        %v5090 = vunpack.c.l.b16 %v5058
        %v5091 = vunpack.c.l.b16 %v5059
        %v5092 = vunpack.c.l.b16 %v5060
        %v5093 = vunpack.c.l.b16 %v5061
        %v5094 = vunpack.c.l.b16 %v5062
        %v5095 = vpack.c.b16 %v5080, %v5079
        %v5096 = vpack.c.b16 %v5082, %v5081
        %v5097 = vpack.c.b16 %v5084, %v5083
        %v5098 = vpack.c.b16 %v5086, %v5085
        %v5099 = vpack.c.b16 %v5088, %v5087
        %v5100 = vpack.c.b16 %v5090, %v5089
        %v5101 = vpack.c.b16 %v5092, %v5091
        %v5102 = vpack.c.b16 %v5094, %v5093
        %5111 = vmatprep.subr.bf16.mxu0 0
        %5112 = vmatpush1.bf16.msra.mxu0 %v5102
        %5113 = vmatprep.subr.bf16.mxu0 0
        %5114 = vmatpush1.bf16.msra.mxu0 %v5101
        %5115 = vmatprep.subr.bf16.mxu0 0
        %5116 = vmatpush1.bf16.msra.mxu0 %v5100
        %5117 = vmatprep.subr.bf16.mxu0 0
        %5118 = vmatpush1.bf16.msra.mxu0 %v5099
        %5119 = vmatprep.subr.bf16.mxu0 0
        %5120 = vmatpush1.bf16.msra.mxu0 %v5098
        %5121 = vmatprep.subr.bf16.mxu0 0
        %5122 = vmatpush1.bf16.msra.mxu0 %v5097
        %5123 = vmatprep.subr.bf16.mxu0 0
        %5124 = vmatpush1.bf16.msra.mxu0 %v5096
        %5125 = vmatprep.subr.bf16.mxu0 0
        %5126 = vmatpush1.bf16.msra.mxu0 %v5095
        %5127 = vmatprep.subr.bf16.mxu0 0
        %5128 = vmatpush2.bf16.msra.mxu0 0
        %5129 = vmatprep.subr.bf16.mxu0 0
        %5130 = vmatpush2.bf16.msra.mxu0 0
        %5131 = vmatprep.subr.bf16.mxu0 0
        %5132 = vmatpush2.bf16.msra.mxu0 0
        %5133 = vmatprep.subr.bf16.mxu0 0
        %5134 = vmatpush2.bf16.msra.mxu0 0
        %5135 = vmatprep.subr.bf16.mxu0 0
        %5136 = vmatpush2.bf16.msra.mxu0 0
        %5137 = vmatprep.subr.bf16.mxu0 0
        %5138 = vmatpush2.bf16.msra.mxu0 0
        %5139 = vmatprep.subr.bf16.mxu0 0
        %5140 = vmatpush2.bf16.msra.mxu0 0
        %5141 = vmatprep.subr.bf16.mxu0 0
        %5142 = vmatpush2.bf16.msra.mxu0 0
        %5143 = vmatprep.mubr.bf16.mxu0 0
        %5144 = vmatmul.mubr.bf16.gmra.mxu0 %v5046
        %v5145 = vpop.f32.mrf.mxu0
        %v5146 = vadd.f32 %v3590, %v5145
        %v5147 = vpop.f32.mrf.mxu0
        %v5148 = vpop.f32.mrf.mxu0
        %v5149 = vadd.f32 %v3591, %v5148
        %v5150 = vpop.f32.mrf.mxu0
        %5151 = vdwg.mxu0
        %5152 = vadd.xlane.f32.xlu0 %v5146
        %v5153 = vpop.xlane.xlu0 %5152
        %5154 = vadd.xlane.f32.xlu0 %v5149
        %v5155 = vpop.xlane.xlu0 %5154
        %v5156 = vrcp.pop 128.0
        %v5157 = vmul.f32 %v5153, %v5156
        %v5158 = vmul.f32 %v5155, %v5156
        %v5159 = vsub.f32 %v5146, %v5157
        %v5160 = vsub.f32 %v5149, %v5158
        %v5161 = vmul.f32 %v5159, %v5159
        %v5162 = vmul.f32 %v5160, %v5160
        %5163 = vadd.xlane.f32.xlu0 %v5161
        %v5164 = vpop.xlane.xlu0 %5163
        %5165 = vadd.xlane.f32.xlu0 %v5162
        %v5166 = vpop.xlane.xlu0 %5165
        %v5167 = vmul.f32 %v5164, %v5156
        %v5168 = vmul.f32 %v5166, %v5156
        %v5169 = vadd.f32 %v5167, 1e-05
        %v5170 = vadd.f32 %v5168, 1e-05
        %v5171 = vrsqrt.pop %v5169
        %v5172 = vrsqrt.pop %v5170
        %v5173 = vmul.f32 %v5159, %v5171
        %v5174 = vmul.f32 %v5160, %v5172
        %v5175 = vld [vmem:[%s7] sm:$0x1]
        %v5177 = vlaneseq
        %v5178 = vshrl.u32 %v5177, 7
        %v5179 = vsub.s32 0, %v5178
        %v5180 = vrot.slane %v5175, %v5179
        %v5182 = vmul.f32 %v5173, %v5180
        %v5183 = vmul.f32 %v5174, %v5180
        %v5184 = vld [vmem:[%s8] sm:$0x1]
        %v5186 = vlaneseq
        %v5187 = vshrl.u32 %v5186, 7
        %v5188 = vsub.s32 0, %v5187
        %v5189 = vrot.slane %v5184, %v5188
        %v5191 = vadd.f32 %v5182, %v5189
        %v5192 = vadd.f32 %v5183, %v5189
        %v5193 = vpack.c.bf16 %v5192, %v5191
        %v5194 = vld [vmem:[#allocation17] sm:$0xff]
        %v5195 = vld [vmem:[#allocation17 + $0x8] sm:$0xff]
        %v5196 = vld [vmem:[#allocation17 + $0x10] sm:$0xff]
        %v5197 = vld [vmem:[#allocation17 + $0x18] sm:$0xff]
        %v5198 = vld [vmem:[#allocation17 + $0x20] sm:$0xff]
        %v5199 = vld [vmem:[#allocation17 + $0x28] sm:$0xff]
        %v5200 = vld [vmem:[#allocation17 + $0x30] sm:$0xff]
        %v5201 = vld [vmem:[#allocation17 + $0x38] sm:$0xff]
        %v5202 = vld [vmem:[#allocation17 + $0x40] sm:$0xff]
        %v5203 = vld [vmem:[#allocation17 + $0x48] sm:$0xff]
        %v5204 = vld [vmem:[#allocation17 + $0x50] sm:$0xff]
        %v5205 = vld [vmem:[#allocation17 + $0x58] sm:$0xff]
        %v5206 = vld [vmem:[#allocation17 + $0x60] sm:$0xff]
        %v5207 = vld [vmem:[#allocation17 + $0x68] sm:$0xff]
        %v5208 = vld [vmem:[#allocation17 + $0x70] sm:$0xff]
        %v5209 = vld [vmem:[#allocation17 + $0x78] sm:$0xff]
        %v5210 = vld [vmem:[%s12] sm:$0x3]
        %v5212 = vlaneseq
        %v5213 = vshrl.u32 %v5212, 7
        %v5214 = vsub.s32 0, %v5213
        %v5215 = vrot.slane %v5210, %v5214
        %v5216 = vlaneseq
        %v5217 = vshrl.u32 %v5216, 7
        %v5218 = vsub.s32 1, %v5217
        %v5219 = vrot.slane %v5210, %v5218
        %v5238 = vunpack.c.l.b16 %v5194
        %v5239 = vunpack.c.h.b16 %v5194
        %v5240 = vunpack.c.l.b16 %v5195
        %v5241 = vunpack.c.h.b16 %v5195
        %v5242 = vunpack.c.l.b16 %v5196
        %v5243 = vunpack.c.h.b16 %v5196
        %v5244 = vunpack.c.l.b16 %v5197
        %v5245 = vunpack.c.h.b16 %v5197
        %v5246 = vunpack.c.l.b16 %v5198
        %v5247 = vunpack.c.h.b16 %v5198
        %v5248 = vunpack.c.l.b16 %v5199
        %v5249 = vunpack.c.h.b16 %v5199
        %v5250 = vunpack.c.l.b16 %v5200
        %v5251 = vunpack.c.h.b16 %v5200
        %v5252 = vunpack.c.l.b16 %v5201
        %v5253 = vunpack.c.h.b16 %v5201
        %v5254 = vunpack.c.l.b16 %v5202
        %v5255 = vunpack.c.h.b16 %v5202
        %v5256 = vunpack.c.l.b16 %v5203
        %v5257 = vunpack.c.h.b16 %v5203
        %v5258 = vunpack.c.l.b16 %v5204
        %v5259 = vunpack.c.h.b16 %v5204
        %v5260 = vunpack.c.l.b16 %v5205
        %v5261 = vunpack.c.h.b16 %v5205
        %v5262 = vunpack.c.l.b16 %v5206
        %v5263 = vunpack.c.h.b16 %v5206
        %v5264 = vunpack.c.l.b16 %v5207
        %v5265 = vunpack.c.h.b16 %v5207
        %v5266 = vunpack.c.l.b16 %v5208
        %v5267 = vunpack.c.h.b16 %v5208
        %v5268 = vunpack.c.l.b16 %v5209
        %v5269 = vunpack.c.h.b16 %v5209
        %v5270 = vpack.c.b16 %v5240, %v5238
        %v5271 = vpack.c.b16 %v5241, %v5239
        %v5272 = vpack.c.b16 %v5244, %v5242
        %v5273 = vpack.c.b16 %v5245, %v5243
        %v5274 = vpack.c.b16 %v5248, %v5246
        %v5275 = vpack.c.b16 %v5249, %v5247
        %v5276 = vpack.c.b16 %v5252, %v5250
        %v5277 = vpack.c.b16 %v5253, %v5251
        %v5278 = vpack.c.b16 %v5256, %v5254
        %v5279 = vpack.c.b16 %v5257, %v5255
        %v5280 = vpack.c.b16 %v5260, %v5258
        %v5281 = vpack.c.b16 %v5261, %v5259
        %v5282 = vpack.c.b16 %v5264, %v5262
        %v5283 = vpack.c.b16 %v5265, %v5263
        %v5284 = vpack.c.b16 %v5268, %v5266
        %v5285 = vpack.c.b16 %v5269, %v5267
        %5302 = vmatprep.subr.bf16.mxu0 %v5285
        %5303 = vmatpush1.bf16.msra.mxu0 %v5284
        %5304 = vmatprep.subr.bf16.mxu0 %v5283
        %5305 = vmatpush1.bf16.msra.mxu0 %v5282
        %5306 = vmatprep.subr.bf16.mxu0 %v5281
        %5307 = vmatpush1.bf16.msra.mxu0 %v5280
        %5308 = vmatprep.subr.bf16.mxu0 %v5279
        %5309 = vmatpush1.bf16.msra.mxu0 %v5278
        %5310 = vmatprep.subr.bf16.mxu0 %v5277
        %5311 = vmatpush1.bf16.msra.mxu0 %v5276
        %5312 = vmatprep.subr.bf16.mxu0 %v5275
        %5313 = vmatpush1.bf16.msra.mxu0 %v5274
        %5314 = vmatprep.subr.bf16.mxu0 %v5273
        %5315 = vmatpush1.bf16.msra.mxu0 %v5272
        %5316 = vmatprep.subr.bf16.mxu0 %v5271
        %5317 = vmatpush1.bf16.msra.mxu0 %v5270
        %5318 = vmatprep.subr.bf16.mxu0 0
        %5319 = vmatpush2.bf16.msra.mxu0 0
        %5320 = vmatprep.subr.bf16.mxu0 0
        %5321 = vmatpush2.bf16.msra.mxu0 0
        %5322 = vmatprep.subr.bf16.mxu0 0
        %5323 = vmatpush2.bf16.msra.mxu0 0
        %5324 = vmatprep.subr.bf16.mxu0 0
        %5325 = vmatpush2.bf16.msra.mxu0 0
        %5326 = vmatprep.subr.bf16.mxu0 0
        %5327 = vmatpush2.bf16.msra.mxu0 0
        %5328 = vmatprep.subr.bf16.mxu0 0
        %5329 = vmatpush2.bf16.msra.mxu0 0
        %5330 = vmatprep.subr.bf16.mxu0 0
        %5331 = vmatpush2.bf16.msra.mxu0 0
        %5332 = vmatprep.subr.bf16.mxu0 0
        %5333 = vmatpush2.bf16.msra.mxu0 0
        %5334 = vmatprep.mubr.bf16.mxu0 0
        %5335 = vmatmul.mubr.bf16.gmra.mxu0 %v5193
        %v5336 = vpop.f32.mrf.mxu0
        %v5337 = vadd.f32 %v5215, %v5336
        %v5338 = vpop.f32.mrf.mxu0
        %v5339 = vadd.f32 %v5219, %v5338
        %v5340 = vpop.f32.mrf.mxu0
        %v5341 = vadd.f32 %v5215, %v5340
        %v5342 = vpop.f32.mrf.mxu0
        %v5343 = vadd.f32 %v5219, %v5342
        %5344 = vdwg.mxu0
        %v5345 = vmax.f32 %v5337, 0.0
        %v5346 = vmax.f32 %v5339, 0.0
        %v5347 = vmax.f32 %v5341, 0.0
        %v5348 = vmax.f32 %v5343, 0.0
        %v5349 = vpack.c.bf16 %v5347, %v5345
        %v5350 = vpack.c.bf16 %v5348, %v5346
        %v5351 = vld [vmem:[#allocation18] sm:$0xf]
        %v5352 = vld [vmem:[#allocation18 + $0x4] sm:$0xf]
        %v5353 = vld [vmem:[#allocation18 + $0x8] sm:$0xf]
        %v5354 = vld [vmem:[#allocation18 + $0xc] sm:$0xf]
        %v5355 = vld [vmem:[#allocation18 + $0x10] sm:$0xf]
        %v5356 = vld [vmem:[#allocation18 + $0x14] sm:$0xf]
        %v5357 = vld [vmem:[#allocation18 + $0x18] sm:$0xf]
        %v5358 = vld [vmem:[#allocation18 + $0x1c] sm:$0xf]
        %v5359 = vld [vmem:[#allocation18 + $0x20] sm:$0xf]
        %v5360 = vld [vmem:[#allocation18 + $0x24] sm:$0xf]
        %v5361 = vld [vmem:[#allocation18 + $0x28] sm:$0xf]
        %v5362 = vld [vmem:[#allocation18 + $0x2c] sm:$0xf]
        %v5363 = vld [vmem:[#allocation18 + $0x30] sm:$0xf]
        %v5364 = vld [vmem:[#allocation18 + $0x34] sm:$0xf]
        %v5365 = vld [vmem:[#allocation18 + $0x38] sm:$0xf]
        %v5366 = vld [vmem:[#allocation18 + $0x3c] sm:$0xf]
        %v5367 = vld [vmem:[#allocation18 + $0x40] sm:$0xf]
        %v5368 = vld [vmem:[#allocation18 + $0x44] sm:$0xf]
        %v5369 = vld [vmem:[#allocation18 + $0x48] sm:$0xf]
        %v5370 = vld [vmem:[#allocation18 + $0x4c] sm:$0xf]
        %v5371 = vld [vmem:[#allocation18 + $0x50] sm:$0xf]
        %v5372 = vld [vmem:[#allocation18 + $0x54] sm:$0xf]
        %v5373 = vld [vmem:[#allocation18 + $0x58] sm:$0xf]
        %v5374 = vld [vmem:[#allocation18 + $0x5c] sm:$0xf]
        %v5375 = vld [vmem:[#allocation18 + $0x60] sm:$0xf]
        %v5376 = vld [vmem:[#allocation18 + $0x64] sm:$0xf]
        %v5377 = vld [vmem:[#allocation18 + $0x68] sm:$0xf]
        %v5378 = vld [vmem:[#allocation18 + $0x6c] sm:$0xf]
        %v5379 = vld [vmem:[#allocation18 + $0x70] sm:$0xf]
        %v5380 = vld [vmem:[#allocation18 + $0x74] sm:$0xf]
        %v5381 = vld [vmem:[#allocation18 + $0x78] sm:$0xf]
        %v5382 = vld [vmem:[#allocation18 + $0x7c] sm:$0xf]
        %v5383 = vld [vmem:[%s14] sm:$0x1]
        %v5385 = vlaneseq
        %v5386 = vshrl.u32 %v5385, 7
        %v5387 = vsub.s32 0, %v5386
        %v5388 = vrot.slane %v5383, %v5387
        %v5422 = vunpack.c.l.b16 %v5351
        %v5423 = vunpack.c.l.b16 %v5352
        %v5424 = vunpack.c.l.b16 %v5353
        %v5425 = vunpack.c.l.b16 %v5354
        %v5426 = vunpack.c.l.b16 %v5355
        %v5427 = vunpack.c.l.b16 %v5356
        %v5428 = vunpack.c.l.b16 %v5357
        %v5429 = vunpack.c.l.b16 %v5358
        %v5430 = vunpack.c.l.b16 %v5359
        %v5431 = vunpack.c.l.b16 %v5360
        %v5432 = vunpack.c.l.b16 %v5361
        %v5433 = vunpack.c.l.b16 %v5362
        %v5434 = vunpack.c.l.b16 %v5363
        %v5435 = vunpack.c.l.b16 %v5364
        %v5436 = vunpack.c.l.b16 %v5365
        %v5437 = vunpack.c.l.b16 %v5366
        %v5438 = vunpack.c.l.b16 %v5367
        %v5439 = vunpack.c.l.b16 %v5368
        %v5440 = vunpack.c.l.b16 %v5369
        %v5441 = vunpack.c.l.b16 %v5370
        %v5442 = vunpack.c.l.b16 %v5371
        %v5443 = vunpack.c.l.b16 %v5372
        %v5444 = vunpack.c.l.b16 %v5373
        %v5445 = vunpack.c.l.b16 %v5374
        %v5446 = vunpack.c.l.b16 %v5375
        %v5447 = vunpack.c.l.b16 %v5376
        %v5448 = vunpack.c.l.b16 %v5377
        %v5449 = vunpack.c.l.b16 %v5378
        %v5450 = vunpack.c.l.b16 %v5379
        %v5451 = vunpack.c.l.b16 %v5380
        %v5452 = vunpack.c.l.b16 %v5381
        %v5453 = vunpack.c.l.b16 %v5382
        %v5454 = vpack.c.b16 %v5423, %v5422
        %v5455 = vpack.c.b16 %v5425, %v5424
        %v5456 = vpack.c.b16 %v5427, %v5426
        %v5457 = vpack.c.b16 %v5429, %v5428
        %v5458 = vpack.c.b16 %v5431, %v5430
        %v5459 = vpack.c.b16 %v5433, %v5432
        %v5460 = vpack.c.b16 %v5435, %v5434
        %v5461 = vpack.c.b16 %v5437, %v5436
        %v5462 = vpack.c.b16 %v5439, %v5438
        %v5463 = vpack.c.b16 %v5441, %v5440
        %v5464 = vpack.c.b16 %v5443, %v5442
        %v5465 = vpack.c.b16 %v5445, %v5444
        %v5466 = vpack.c.b16 %v5447, %v5446
        %v5467 = vpack.c.b16 %v5449, %v5448
        %v5468 = vpack.c.b16 %v5451, %v5450
        %v5469 = vpack.c.b16 %v5453, %v5452
        %5486 = vmatprep.subr.bf16.mxu0 0
        %5487 = vmatpush1.bf16.msra.mxu0 %v5461
        %5488 = vmatprep.subr.bf16.mxu0 0
        %5489 = vmatpush1.bf16.msra.mxu0 %v5460
        %5490 = vmatprep.subr.bf16.mxu0 0
        %5491 = vmatpush1.bf16.msra.mxu0 %v5459
        %5492 = vmatprep.subr.bf16.mxu0 0
        %5493 = vmatpush1.bf16.msra.mxu0 %v5458
        %5494 = vmatprep.subr.bf16.mxu0 0
        %5495 = vmatpush1.bf16.msra.mxu0 %v5457
        %5496 = vmatprep.subr.bf16.mxu0 0
        %5497 = vmatpush1.bf16.msra.mxu0 %v5456
        %5498 = vmatprep.subr.bf16.mxu0 0
        %5499 = vmatpush1.bf16.msra.mxu0 %v5455
        %5500 = vmatprep.subr.bf16.mxu0 0
        %5501 = vmatpush1.bf16.msra.mxu0 %v5454
        %5502 = vmatprep.subr.bf16.mxu0 0
        %5503 = vmatpush2.bf16.msra.mxu0 %v5469
        %5504 = vmatprep.subr.bf16.mxu0 0
        %5505 = vmatpush2.bf16.msra.mxu0 %v5468
        %5506 = vmatprep.subr.bf16.mxu0 0
        %5507 = vmatpush2.bf16.msra.mxu0 %v5467
        %5508 = vmatprep.subr.bf16.mxu0 0
        %5509 = vmatpush2.bf16.msra.mxu0 %v5466
        %5510 = vmatprep.subr.bf16.mxu0 0
        %5511 = vmatpush2.bf16.msra.mxu0 %v5465
        %5512 = vmatprep.subr.bf16.mxu0 0
        %5513 = vmatpush2.bf16.msra.mxu0 %v5464
        %5514 = vmatprep.subr.bf16.mxu0 0
        %5515 = vmatpush2.bf16.msra.mxu0 %v5463
        %5516 = vmatprep.subr.bf16.mxu0 0
        %5517 = vmatpush2.bf16.msra.mxu0 %v5462
        %5518 = vmatprep.mubr.bf16.mxu0 %v5350
        %5519 = vmatmul.mubr.bf16.gmra.mxu0 %v5349
        %v5520 = vpop.f32.mrf.mxu0
        %v5521 = vadd.f32 %v5388, %v5520
        %v5522 = vpop.f32.mrf.mxu0
        %v5523 = vpop.f32.mrf.mxu0
        %v5524 = vadd.f32 %v5388, %v5523
        %v5525 = vpop.f32.mrf.mxu0
        %5526 = vdwg.mxu0
        %v5527 = vadd.f32 %v5521, %v5191
        %v5528 = vadd.f32 %v5524, %v5192
        %5529 = vadd.xlane.f32.xlu0 %v5527
        %v5530 = vpop.xlane.xlu0 %5529
        %5531 = vadd.xlane.f32.xlu0 %v5528
        %v5532 = vpop.xlane.xlu0 %5531
        %v5533 = vmul.f32 %v5530, %v5156
        %v5534 = vmul.f32 %v5532, %v5156
        %v5535 = vsub.f32 %v5527, %v5533
        %v5536 = vsub.f32 %v5528, %v5534
        %v5537 = vmul.f32 %v5535, %v5535
        %v5538 = vmul.f32 %v5536, %v5536
        %5539 = vadd.xlane.f32.xlu0 %v5537
        %v5540 = vpop.xlane.xlu0 %5539
        %5541 = vadd.xlane.f32.xlu0 %v5538
        %v5542 = vpop.xlane.xlu0 %5541
        %v5543 = vmul.f32 %v5540, %v5156
        %v5544 = vmul.f32 %v5542, %v5156
        %v5545 = vadd.f32 %v5543, 1e-05
        %v5546 = vadd.f32 %v5544, 1e-05
        %v5547 = vrsqrt.pop %v5545
        %v5548 = vrsqrt.pop %v5546
        %v5549 = vmul.f32 %v5535, %v5547
        %v5550 = vmul.f32 %v5536, %v5548
        %v5551 = vld [vmem:[%s9] sm:$0x1]
        %v5553 = vlaneseq
        %v5554 = vshrl.u32 %v5553, 7
        %v5555 = vsub.s32 0, %v5554
        %v5556 = vrot.slane %v5551, %v5555
        %v5558 = vmul.f32 %v5549, %v5556
        %v5559 = vmul.f32 %v5550, %v5556
        %v5560 = vld [vmem:[%s10] sm:$0x1]
        %v5562 = vlaneseq
        %v5563 = vshrl.u32 %v5562, 7
        %v5564 = vsub.s32 0, %v5563
        %v5565 = vrot.slane %v5560, %v5564
        %v5567 = vadd.f32 %v5558, %v5565
        %v5568 = vadd.f32 %v5559, %v5565
        %5569 = vst [vmem:[%s635] sm:$0xff] %v5567
        %5570 = vst [vmem:[%s635 + $0x8] sm:$0xff] %v5568
        %s5571 = sand.u32 %s370, 1
        %s5572 = scalar_lea.sflag [#allocation8], %s5571
        %s5573 = sand.u32 %s370, 1
        %s5574 = smul.addr %s5573, 16
        %s5575 = scalar_lea.vmem [#allocation20], %s5574
        // Predicated region
        $region113: #{tpu_custom_call.1} parent=75 // pred_check
          %p5576 = pneg %p380
        $region114: #{tpu_custom_call.1} parent=75 // pred_check_branch
          %5578 = sbr.rel (%p5576) target = $region116
        $region115: #{tpu_custom_call.1} parent=75 // pred_region
          %s5579 = smul.u32 2, %s47
          %s5581 = ssub.s32 256, 256
          %5582 = vsyncadd %s5572, %s5581
          %s5583 = smul.addr %s46, 8
          %s5584 = sadd.s32 %s5579, %s5583
          %s5585 = smul.addr %s5584, 128
          %s5586 = scalar_lea.hbm %s15, %s5585
          %s5587 = sshll.u32 %s5575, 4
          %s5588 = int_to_ptr.vmem [resolvable:$true] %s5587
          %5593 = dma.vmem_to_hbm [thread:$0]  %s5588, 256, %s5586, %s5572, 128, 128, 8
        $region116: #{tpu_custom_call.1} parent=75 // pred_fallthru
          _
      $region76: #{tpu_custom_call.1} parent=5 // pred_fallthru
        _
      %p5594 = scmp.le.s32.totalorder 2, %s37
      // Predicated region
      $region117: #{tpu_custom_call.1} parent=5 // pred_check
        %p5595 = pneg %p5594
      $region118: #{tpu_custom_call.1} parent=5 // pred_check_branch
        %5597 = sbr.rel (%p5595) target = $region120
      $region119: #{tpu_custom_call.1} parent=5 // pred_region
        %s5598 = ssub.s32 %s37, 2
        // Predicated region
        $region121: #{tpu_custom_call.1} parent=119 // pred_check
          %p5599 = pneg %p386
        $region122: #{tpu_custom_call.1} parent=119 // pred_check_branch
          %5601 = sbr.rel (%p5599) target = $region124
        $region123: #{tpu_custom_call.1} parent=119 // pred_region
          %s5602 = sand.u32 %s371, 1
          %s5603 = scalar_lea.sflag [#allocation8], %s5602
          %s5604 = sand.u32 %s371, 1
          %s5605 = smul.addr %s5604, 16
          %s5606 = scalar_lea.vmem [#allocation20], %s5605
          %5607 = dma.done %s5603, 256
        $region124: #{tpu_custom_call.1} parent=119 // pred_fallthru
          _
      $region120: #{tpu_custom_call.1} parent=5 // pred_fallthru
        _
    $region6: #{tpu_custom_call.1} parent=1 // loop_footer
      %s41 = sadd.s32 1, %s37
    $region7: #{tpu_custom_call.1} parent=1 // loop_footer_branch
      %36 = sbr.rel target = $region3
    $region8: #{tpu_custom_call.1} parent=1 // loop_exit
      _
    %5608 = vsyncpa [#allocation7], 1
    %s5609 = scalar_lea.sflag [#allocation7], 1
    %5610 = vsyncpa %s5609, 1
    %5611 = vsyncpa [#allocation10], 1
    %s5612 = scalar_lea.sflag [#allocation10], 1
    %5613 = vsyncpa %s5612, 1
    %5614 = vsyncpa [#allocation13], 1
    %5615 = vsyncpa [#allocation16], 1
    %5616 = vsyncpa [#allocation19], 1
    %5617 = vsyncpa [#allocation8], 1
    %s5618 = scalar_lea.sflag [#allocation8], 1
    %5619 = vsyncpa %s5618, 1

// kernel: tpu_custom_call.1
$region0: #{tpu_custom_call.1}
  #allocation0 [shape = 'u32[]', space=smem, size = 0x4, offset = 0x4, fixed_abs, tag = 'smem constant byte address 0x4 - core index']
  #allocation1 [shape = 'u32[144,128]{1,0:T(1,128)}', space=vmem, size = 0x12000, scoped, tag = 'internal scratch']
  #allocation2 [shape = 'bf16[4,64,32]{2,1,0:T(8,128)(2,1)}', space=vmem, size = 0x10000, scoped, tag = 'scratch operand']
  #allocation3 [shape = 'bf16[4,64,32]{2,1,0:T(8,128)(2,1)}', space=vmem, size = 0x10000, scoped, tag = 'scratch operand']
  #allocation4 [shape = 's32[1]{0}', space=sflag, size = 0x4, scoped, tag = 'scoped memory for tpu_custom_call.1']
  #allocation5 [shape = 'u8[512]{0}', space=smem, size = 0x200, scoped, tag = 'prefetched SMEM operand 0']
  %s0 = inlined_call_operand.hbm [shape: s32[2], index: 0, kind: input, shape index: {}]
  %s1 = inlined_call_operand.hbm [shape: f32[2,64,128], index: 1, kind: input, shape index: {}]
  %s2 = inlined_call_operand.hbm [shape: bf16[2,64,128], index: 2, kind: input, shape index: {}]
  %s3 = inlined_call_operand.hbm [shape: bf16[128,128], index: 3, kind: input, shape index: {}]
  %s4 = inlined_call_operand.hbm [shape: bf16[128,128], index: 4, kind: input, shape index: {}]
  %s5 = inlined_call_operand.hbm [shape: bf16[128,128], index: 5, kind: input, shape index: {}]
  %s6 = inlined_call_operand.hbm [shape: bf16[128,128], index: 6, kind: input, shape index: {}]
  %s7 = inlined_call_operand.vmem [shape: f32[1,128], index: 7, kind: input, shape index: {}]
  %s8 = inlined_call_operand.vmem [shape: f32[1,128], index: 8, kind: input, shape index: {}]
  %s9 = inlined_call_operand.vmem [shape: f32[1,128], index: 9, kind: input, shape index: {}]
  %s10 = inlined_call_operand.vmem [shape: f32[1,128], index: 10, kind: input, shape index: {}]
  %s11 = inlined_call_operand.hbm [shape: bf16[128,256], index: 11, kind: input, shape index: {}]
  %s12 = inlined_call_operand.vmem [shape: f32[1,256], index: 12, kind: input, shape index: {}]
  %s13 = inlined_call_operand.hbm [shape: bf16[256,128], index: 13, kind: input, shape index: {}]
  %s14 = inlined_call_operand.vmem [shape: f32[1,128], index: 14, kind: input, shape index: {}]
  %s15 = inlined_call_operand.hbm [shape: f32[2,64,128], index: 15, kind: output, shape index: {}]
  %s16 = sld [smem:[#allocation0]]
  $region125: #{tpu_custom_call.1} parent=0
    _
  %s18 = ssub.s32 1, %s16
  %s19 = scalar_select 0, %s18, %s16
  %21 = dma.hbm_to_smem %s0, 16, [#allocation5], [#allocation4]
  %22 = dma.done [#allocation4], 16
  %23 = sfence
  $region1: #{tpu_custom_call.1} parent=0
    #allocation6 [shape = 'u8[16384]{0}', space=vmem, size = 0x4000, scoped, tag = 'input window, operand 1']
    #allocation7 [shape = 's32[2]{0}', space=sflag, size = 0x8, scoped, tag = 'scoped memory for tpu_custom_call.1']
    #allocation8 [shape = 's32[2]{0}', space=sflag, size = 0x8, scoped, tag = 'scoped memory for tpu_custom_call.1']
    #allocation9 [shape = 'u8[32768]{0}', space=vmem, size = 0x8000, scoped, tag = 'input window, operand 2']
    #allocation10 [shape = 's32[2]{0}', space=sflag, size = 0x8, scoped, tag = 'scoped memory for tpu_custom_call.1']
    #allocation11 [shape = 'u8[32768]{0}', space=vmem, size = 0x8000, scoped, tag = 'input window, operand 3, single buffered']
    #allocation12 [shape = 'u8[32768]{0}', space=vmem, size = 0x8000, scoped, tag = 'input window, operand 4, single buffered']
    #allocation13 [shape = 's32[1]{0}', space=sflag, size = 0x4, scoped, tag = 'scoped memory for tpu_custom_call.1']
    #allocation14 [shape = 'u8[32768]{0}', space=vmem, size = 0x8000, scoped, tag = 'input window, operand 5, single buffered']
    #allocation15 [shape = 'u8[32768]{0}', space=vmem, size = 0x8000, scoped, tag = 'input window, operand 6, single buffered']
    #allocation16 [shape = 's32[1]{0}', space=sflag, size = 0x4, scoped, tag = 'scoped memory for tpu_custom_call.1']
    #allocation17 [shape = 'u8[65536]{0}', space=vmem, size = 0x10000, scoped, tag = 'input window, operand 11, single buffered']
    #allocation18 [shape = 'u8[65536]{0}', space=vmem, size = 0x10000, scoped, tag = 'input window, operand 13, single buffered']
    #allocation19 [shape = 's32[1]{0}', space=sflag, size = 0x4, scoped, tag = 'scoped memory for tpu_custom_call.1']
    #allocation20 [shape = 'u8[16384]{0}', space=vmem, size = 0x4000, scoped, tag = 'output window, operand 0']
    %24 = vsyncpa [#allocation7], 0
    %s25 = scalar_lea.sflag [#allocation7], 1
    %26 = vsyncpa %s25, 0
    %27 = vsyncpa [#allocation10], 0
    %s28 = scalar_lea.sflag [#allocation10], 1
    %29 = vsyncpa %s28, 0
    %30 = vsyncpa [#allocation13], 0
    %31 = vsyncpa [#allocation16], 0
    %32 = vsyncpa [#allocation19], 0
    %33 = vsyncpa [#allocation8], 0
    %s34 = scalar_lea.sflag [#allocation8], 1
    %35 = vsyncpa %s34, 0
    loop: start=0, step=1, limit=10
    $region2: #{tpu_custom_call.1} parent=1 // loop_pre_header
      _
    $region3: #{tpu_custom_call.1} parent=1 // loop_header
      %s37 = sphi 0, %s41
      %p38 = scmp.ge.s32.totalorder %s37, 10
      %s44 = sphi 0, %s56
      %s45 = sphi 0, %s52
      %s46 = sphi 0, %s44
      %s47 = sphi 0, %s45
      %s48 = sphi 0, %s46
      %s49 = sphi 0, %s47
      %s61 = sphi 0, %s63
      %s64 = sphi 0, %s61
      %s65 = sphi 0, %s64
      %s81 = sphi 0, %s65
      %s87 = sphi 0, %s89
      %s90 = sphi 0, %s87
      %s91 = sphi 0, %s90
      %s107 = sphi 0, %s91
      %s111 = sphi 0, %s111
      %s113 = sphi 0, %s111
      %s114 = sphi 0, %s113
      %s128 = sphi 0, %s114
      %s132 = sphi 0, %s132
      %s134 = sphi 0, %s132
      %s135 = sphi 0, %s134
      %s149 = sphi 0, %s135
      %s153 = sphi 0, %s153
      %s155 = sphi 0, %s153
      %s156 = sphi 0, %s155
      %s170 = sphi 0, %s156
      %s174 = sphi 0, %s174
      %s176 = sphi 0, %s174
      %s177 = sphi 0, %s176
      %s191 = sphi 0, %s177
      %s195 = sphi 0, %s195
      %s197 = sphi 0, %s195
      %s198 = sphi 0, %s197
      %s212 = sphi 0, %s198
      %s216 = sphi 0, %s216
      %s218 = sphi 0, %s216
      %s219 = sphi 0, %s218
      %s233 = sphi 0, %s219
      %s237 = sphi 0, %s237
      %s239 = sphi 0, %s237
      %s240 = sphi 0, %s239
      %s254 = sphi 0, %s240
      %s258 = sphi 0, %s258
      %s260 = sphi 0, %s258
      %s261 = sphi 0, %s260
      %s275 = sphi 0, %s261
      %s279 = sphi 0, %s279
      %s281 = sphi 0, %s279
      %s282 = sphi 0, %s281
      %s296 = sphi 0, %s282
      %s300 = sphi 0, %s300
      %s302 = sphi 0, %s300
      %s303 = sphi 0, %s302
      %s317 = sphi 0, %s303
      %s321 = sphi 0, %s321
      %s323 = sphi 0, %s321
      %s324 = sphi 0, %s323
      %s338 = sphi 0, %s324
      %s342 = sphi 0, %s342
      %s344 = sphi 0, %s342
      %s345 = sphi 0, %s344
      %s359 = sphi 0, %s345
      %s367 = sphi 0, %s369
      %s370 = sphi 0, %s367
      %s371 = sphi 0, %s370
      %s387 = sphi 0, %s371
    $region4: #{tpu_custom_call.1} parent=1 // loop_header_branch
      %40 = sbr.rel (%p38) target = $region8
    $region5: #{tpu_custom_call.1} parent=1 // loop_body
      %s42 = ssub.s32 %s37, 1
      %s43 = ssub.s32 %s37, 2
      %s50 = sadd.s32 1, %s45
      %p51 = scmp.ge.s32.totalorder %s50, 4
      %s52 = scalar_select %p51, 0, %s50
      %s53 = sadd.s32 1, %s44
      %s54 = scalar_select %p51, %s53, %s44
      %p55 = scmp.ge.s32.totalorder %s54, 2
      %s56 = scalar_select %p55, 0, %s54
      %s57 = ssub.s32 %s44, %s56
      %s58 = ssub.s32 %s45, %s52
      %s59 = sor.u32 %s57, %s58
      %p60 = scmp.eq.s32.totalorder %s59, 0
      %s62 = sadd.s32 %s61, 1
      %s63 = scalar_select %p60, %s61, %s62
      %p66 = pneg %p60
      %p67 = scmp.eq.s32.totalorder %s37, 7
      %p68 = por %p66, %p67
      %p69 = scmp.ne.s32.totalorder %s61, %s64
      %p70 = scmp.eq.s32.totalorder %s37, 0
      %p71 = por %p69, %p70
      %p72 = scmp.ne.s32.totalorder %s61, %s64
      %p73 = scmp.eq.s32.totalorder %s42, 7
      %p74 = por %p72, %p73
      %p75 = scmp.ne.s32.totalorder %s64, %s65
      %p76 = scmp.eq.s32.totalorder %s42, 0
      %p77 = por %p75, %p76
      %p78 = scmp.ne.s32.totalorder %s64, %s65
      %p79 = scmp.eq.s32.totalorder %s43, 7
      %p80 = por %p78, %p79
      %p82 = scmp.ne.s32.totalorder %s65, %s81
      %p83 = scmp.eq.s32.totalorder %s43, 0
      %p84 = por %p82, %p83
      %s85 = ssub.s32 %s44, %s56
      %p86 = scmp.eq.s32.totalorder %s85, 0
      %s88 = sadd.s32 %s87, 1
      %s89 = scalar_select %p86, %s87, %s88
      %p92 = pneg %p86
      %p93 = scmp.eq.s32.totalorder %s37, 7
      %p94 = por %p92, %p93
      %p95 = scmp.ne.s32.totalorder %s87, %s90
      %p96 = scmp.eq.s32.totalorder %s37, 0
      %p97 = por %p95, %p96
      %p98 = scmp.ne.s32.totalorder %s87, %s90
      %p99 = scmp.eq.s32.totalorder %s42, 7
      %p100 = por %p98, %p99
      %p101 = scmp.ne.s32.totalorder %s90, %s91
      %p102 = scmp.eq.s32.totalorder %s42, 0
      %p103 = por %p101, %p102
      %p104 = scmp.ne.s32.totalorder %s90, %s91
      %p105 = scmp.eq.s32.totalorder %s43, 7
      %p106 = por %p104, %p105
      %p108 = scmp.ne.s32.totalorder %s91, %s107
      %p109 = scmp.eq.s32.totalorder %s43, 0
      %p110 = por %p108, %p109
      %s112 = sadd.s32 %s111, 1
      %p115 = scmp.eq.s32.totalorder %s37, 7
      %p116 = scmp.ne.s32.totalorder %s111, %s113
      %p117 = scmp.eq.s32.totalorder %s37, 0
      %p118 = por %p116, %p117
      %p119 = scmp.ne.s32.totalorder %s111, %s113
      %p120 = scmp.eq.s32.totalorder %s42, 7
      %p121 = por %p119, %p120
      %p122 = scmp.ne.s32.totalorder %s113, %s114
      %p123 = scmp.eq.s32.totalorder %s42, 0
      %p124 = por %p122, %p123
      %p125 = scmp.ne.s32.totalorder %s113, %s114
      %p126 = scmp.eq.s32.totalorder %s43, 7
      %p127 = por %p125, %p126
      %p129 = scmp.ne.s32.totalorder %s114, %s128
      %p130 = scmp.eq.s32.totalorder %s43, 0
      %p131 = por %p129, %p130
      %s133 = sadd.s32 %s132, 1
      %p136 = scmp.eq.s32.totalorder %s37, 7
      %p137 = scmp.ne.s32.totalorder %s132, %s134
      %p138 = scmp.eq.s32.totalorder %s37, 0
      %p139 = por %p137, %p138
      %p140 = scmp.ne.s32.totalorder %s132, %s134
      %p141 = scmp.eq.s32.totalorder %s42, 7
      %p142 = por %p140, %p141
      %p143 = scmp.ne.s32.totalorder %s134, %s135
      %p144 = scmp.eq.s32.totalorder %s42, 0
      %p145 = por %p143, %p144
      %p146 = scmp.ne.s32.totalorder %s134, %s135
      %p147 = scmp.eq.s32.totalorder %s43, 7
      %p148 = por %p146, %p147
      %p150 = scmp.ne.s32.totalorder %s135, %s149
      %p151 = scmp.eq.s32.totalorder %s43, 0
      %p152 = por %p150, %p151
      %s154 = sadd.s32 %s153, 1
      %p157 = scmp.eq.s32.totalorder %s37, 7
      %p158 = scmp.ne.s32.totalorder %s153, %s155
      %p159 = scmp.eq.s32.totalorder %s37, 0
      %p160 = por %p158, %p159
      %p161 = scmp.ne.s32.totalorder %s153, %s155
      %p162 = scmp.eq.s32.totalorder %s42, 7
      %p163 = por %p161, %p162
      %p164 = scmp.ne.s32.totalorder %s155, %s156
      %p165 = scmp.eq.s32.totalorder %s42, 0
      %p166 = por %p164, %p165
      %p167 = scmp.ne.s32.totalorder %s155, %s156
      %p168 = scmp.eq.s32.totalorder %s43, 7
      %p169 = por %p167, %p168
      %p171 = scmp.ne.s32.totalorder %s156, %s170
      %p172 = scmp.eq.s32.totalorder %s43, 0
      %p173 = por %p171, %p172
      %s175 = sadd.s32 %s174, 1
      %p178 = scmp.eq.s32.totalorder %s37, 7
      %p179 = scmp.ne.s32.totalorder %s174, %s176
      %p180 = scmp.eq.s32.totalorder %s37, 0
      %p181 = por %p179, %p180
      %p182 = scmp.ne.s32.totalorder %s174, %s176
      %p183 = scmp.eq.s32.totalorder %s42, 7
      %p184 = por %p182, %p183
      %p185 = scmp.ne.s32.totalorder %s176, %s177
      %p186 = scmp.eq.s32.totalorder %s42, 0
      %p187 = por %p185, %p186
      %p188 = scmp.ne.s32.totalorder %s176, %s177
      %p189 = scmp.eq.s32.totalorder %s43, 7
      %p190 = por %p188, %p189
      %p192 = scmp.ne.s32.totalorder %s177, %s191
      %p193 = scmp.eq.s32.totalorder %s43, 0
      %p194 = por %p192, %p193
      %s196 = sadd.s32 %s195, 1
      %p199 = scmp.eq.s32.totalorder %s37, 7
      %p200 = scmp.ne.s32.totalorder %s195, %s197
      %p201 = scmp.eq.s32.totalorder %s37, 0
      %p202 = por %p200, %p201
      %p203 = scmp.ne.s32.totalorder %s195, %s197
      %p204 = scmp.eq.s32.totalorder %s42, 7
      %p205 = por %p203, %p204
      %p206 = scmp.ne.s32.totalorder %s197, %s198
      %p207 = scmp.eq.s32.totalorder %s42, 0
      %p208 = por %p206, %p207
      %p209 = scmp.ne.s32.totalorder %s197, %s198
      %p210 = scmp.eq.s32.totalorder %s43, 7
      %p211 = por %p209, %p210
      %p213 = scmp.ne.s32.totalorder %s198, %s212
      %p214 = scmp.eq.s32.totalorder %s43, 0
      %p215 = por %p213, %p214
      %s217 = sadd.s32 %s216, 1
      %p220 = scmp.eq.s32.totalorder %s37, 7
      %p221 = scmp.ne.s32.totalorder %s216, %s218
      %p222 = scmp.eq.s32.totalorder %s37, 0
      %p223 = por %p221, %p222
      %p224 = scmp.ne.s32.totalorder %s216, %s218
      %p225 = scmp.eq.s32.totalorder %s42, 7
      %p226 = por %p224, %p225
      %p227 = scmp.ne.s32.totalorder %s218, %s219
      %p228 = scmp.eq.s32.totalorder %s42, 0
      %p229 = por %p227, %p228
      %p230 = scmp.ne.s32.totalorder %s218, %s219
      %p231 = scmp.eq.s32.totalorder %s43, 7
      %p232 = por %p230, %p231
      %p234 = scmp.ne.s32.totalorder %s219, %s233
      %p235 = scmp.eq.s32.totalorder %s43, 0
      %p236 = por %p234, %p235
      %s238 = sadd.s32 %s237, 1
      %p241 = scmp.eq.s32.totalorder %s37, 7
      %p242 = scmp.ne.s32.totalorder %s237, %s239
      %p243 = scmp.eq.s32.totalorder %s37, 0
      %p244 = por %p242, %p243
      %p245 = scmp.ne.s32.totalorder %s237, %s239
      %p246 = scmp.eq.s32.totalorder %s42, 7
      %p247 = por %p245, %p246
      %p248 = scmp.ne.s32.totalorder %s239, %s240
      %p249 = scmp.eq.s32.totalorder %s42, 0
      %p250 = por %p248, %p249
      %p251 = scmp.ne.s32.totalorder %s239, %s240
      %p252 = scmp.eq.s32.totalorder %s43, 7
      %p253 = por %p251, %p252
      %p255 = scmp.ne.s32.totalorder %s240, %s254
      %p256 = scmp.eq.s32.totalorder %s43, 0
      %p257 = por %p255, %p256
      %s259 = sadd.s32 %s258, 1
      %p262 = scmp.eq.s32.totalorder %s37, 7
      %p263 = scmp.ne.s32.totalorder %s258, %s260
      %p264 = scmp.eq.s32.totalorder %s37, 0
      %p265 = por %p263, %p264
      %p266 = scmp.ne.s32.totalorder %s258, %s260
      %p267 = scmp.eq.s32.totalorder %s42, 7
      %p268 = por %p266, %p267
      %p269 = scmp.ne.s32.totalorder %s260, %s261
      %p270 = scmp.eq.s32.totalorder %s42, 0
      %p271 = por %p269, %p270
      %p272 = scmp.ne.s32.totalorder %s260, %s261
      %p273 = scmp.eq.s32.totalorder %s43, 7
      %p274 = por %p272, %p273
      %p276 = scmp.ne.s32.totalorder %s261, %s275
      %p277 = scmp.eq.s32.totalorder %s43, 0
      %p278 = por %p276, %p277
      %s280 = sadd.s32 %s279, 1
      %p283 = scmp.eq.s32.totalorder %s37, 7
      %p284 = scmp.ne.s32.totalorder %s279, %s281
      %p285 = scmp.eq.s32.totalorder %s37, 0
      %p286 = por %p284, %p285
      %p287 = scmp.ne.s32.totalorder %s279, %s281
      %p288 = scmp.eq.s32.totalorder %s42, 7
      %p289 = por %p287, %p288
      %p290 = scmp.ne.s32.totalorder %s281, %s282
      %p291 = scmp.eq.s32.totalorder %s42, 0
      %p292 = por %p290, %p291
      %p293 = scmp.ne.s32.totalorder %s281, %s282
      %p294 = scmp.eq.s32.totalorder %s43, 7
      %p295 = por %p293, %p294
      %p297 = scmp.ne.s32.totalorder %s282, %s296
      %p298 = scmp.eq.s32.totalorder %s43, 0
      %p299 = por %p297, %p298
      %s301 = sadd.s32 %s300, 1
      %p304 = scmp.eq.s32.totalorder %s37, 7
      %p305 = scmp.ne.s32.totalorder %s300, %s302
      %p306 = scmp.eq.s32.totalorder %s37, 0
      %p307 = por %p305, %p306
      %p308 = scmp.ne.s32.totalorder %s300, %s302
      %p309 = scmp.eq.s32.totalorder %s42, 7
      %p310 = por %p308, %p309
      %p311 = scmp.ne.s32.totalorder %s302, %s303
      %p312 = scmp.eq.s32.totalorder %s42, 0
      %p313 = por %p311, %p312
      %p314 = scmp.ne.s32.totalorder %s302, %s303
      %p315 = scmp.eq.s32.totalorder %s43, 7
      %p316 = por %p314, %p315
      %p318 = scmp.ne.s32.totalorder %s303, %s317
      %p319 = scmp.eq.s32.totalorder %s43, 0
      %p320 = por %p318, %p319
      %s322 = sadd.s32 %s321, 1
      %p325 = scmp.eq.s32.totalorder %s37, 7
      %p326 = scmp.ne.s32.totalorder %s321, %s323
      %p327 = scmp.eq.s32.totalorder %s37, 0
      %p328 = por %p326, %p327
      %p329 = scmp.ne.s32.totalorder %s321, %s323
      %p330 = scmp.eq.s32.totalorder %s42, 7
      %p331 = por %p329, %p330
      %p332 = scmp.ne.s32.totalorder %s323, %s324
      %p333 = scmp.eq.s32.totalorder %s42, 0
      %p334 = por %p332, %p333
      %p335 = scmp.ne.s32.totalorder %s323, %s324
      %p336 = scmp.eq.s32.totalorder %s43, 7
      %p337 = por %p335, %p336
      %p339 = scmp.ne.s32.totalorder %s324, %s338
      %p340 = scmp.eq.s32.totalorder %s43, 0
      %p341 = por %p339, %p340
      %s343 = sadd.s32 %s342, 1
      %p346 = scmp.eq.s32.totalorder %s37, 7
      %p347 = scmp.ne.s32.totalorder %s342, %s344
      %p348 = scmp.eq.s32.totalorder %s37, 0
      %p349 = por %p347, %p348
      %p350 = scmp.ne.s32.totalorder %s342, %s344
      %p351 = scmp.eq.s32.totalorder %s42, 7
      %p352 = por %p350, %p351
      %p353 = scmp.ne.s32.totalorder %s344, %s345
      %p354 = scmp.eq.s32.totalorder %s42, 0
      %p355 = por %p353, %p354
      %p356 = scmp.ne.s32.totalorder %s344, %s345
      %p357 = scmp.eq.s32.totalorder %s43, 7
      %p358 = por %p356, %p357
      %p360 = scmp.ne.s32.totalorder %s345, %s359
      %p361 = scmp.eq.s32.totalorder %s43, 0
      %p362 = por %p360, %p361
      %s363 = ssub.s32 %s44, %s56
      %s364 = ssub.s32 %s45, %s52
      %s365 = sor.u32 %s363, %s364
      %p366 = scmp.eq.s32.totalorder %s365, 0
      %s368 = sadd.s32 %s367, 1
      %s369 = scalar_select %p366, %s367, %s368
      %p372 = pneg %p366
      %p373 = scmp.eq.s32.totalorder %s37, 7
      %p374 = por %p372, %p373
      %p375 = scmp.ne.s32.totalorder %s367, %s370
      %p376 = scmp.eq.s32.totalorder %s37, 0
      %p377 = por %p375, %p376
      %p378 = scmp.ne.s32.totalorder %s367, %s370
      %p379 = scmp.eq.s32.totalorder %s42, 7
      %p380 = por %p378, %p379
      %p381 = scmp.ne.s32.totalorder %s370, %s371
      %p382 = scmp.eq.s32.totalorder %s42, 0
      %p383 = por %p381, %p382
      %p384 = scmp.ne.s32.totalorder %s370, %s371
      %p385 = scmp.eq.s32.totalorder %s43, 7
      %p386 = por %p384, %p385
      %p388 = scmp.ne.s32.totalorder %s371, %s387
      %p389 = scmp.eq.s32.totalorder %s43, 0
      %p390 = por %p388, %p389
      %p391 = scmp.le.s32.totalorder 1, %s37
      %p392 = scmp.lt.s32.totalorder %s37, 9
      %p393 = pnand %p391, %p392
      %p394 = pneg %p393
      // Predicated region
      $region9: #{tpu_custom_call.1} parent=5 // pred_check
        _
      $region10: #{tpu_custom_call.1} parent=5 // pred_check_branch
        %396 = sbr.rel (%p393) target = $region12
      $region11: #{tpu_custom_call.1} parent=5 // pred_region
        %s397 = ssub.s32 %s37, 1
        // Predicated region
        $region13: #{tpu_custom_call.1} parent=11 // pred_check
          %p398 = pneg %p124
        $region14: #{tpu_custom_call.1} parent=11 // pred_check_branch
          %400 = sbr.rel (%p398) target = $region16
        $region15: #{tpu_custom_call.1} parent=11 // pred_region
          %s402 = ssub.s32 1024, 1024
          %403 = vsyncadd [#allocation10], %s402
          %s404 = sshll.u32 [#allocation11], 4
          %s405 = int_to_ptr.vmem [resolvable:$true] %s404
          %410 = dma.hbm_to_vmem [thread:$0]  %s3, 1024, %s405, [#allocation10], 64, 64, 4
        $region16: #{tpu_custom_call.1} parent=11 // pred_fallthru
          _
        // Predicated region
        $region17: #{tpu_custom_call.1} parent=11 // pred_check
          %p411 = pneg %p145
        $region18: #{tpu_custom_call.1} parent=11 // pred_check_branch
          %413 = sbr.rel (%p411) target = $region20
        $region19: #{tpu_custom_call.1} parent=11 // pred_region
          %s415 = ssub.s32 1024, 1024
          %416 = vsyncadd [#allocation13], %s415
          %s417 = sshll.u32 [#allocation12], 4
          %s418 = int_to_ptr.vmem [resolvable:$true] %s417
          %423 = dma.hbm_to_vmem [thread:$0]  %s4, 1024, %s418, [#allocation13], 64, 64, 4
        $region20: #{tpu_custom_call.1} parent=11 // pred_fallthru
          _
        // Predicated region
        $region21: #{tpu_custom_call.1} parent=11 // pred_check
          %p424 = pneg %p166
        $region22: #{tpu_custom_call.1} parent=11 // pred_check_branch
          %426 = sbr.rel (%p424) target = $region24
        $region23: #{tpu_custom_call.1} parent=11 // pred_region
          %s428 = ssub.s32 1024, 1024
          %429 = vsyncadd [#allocation13], %s428
          %s430 = sshll.u32 [#allocation14], 4
          %s431 = int_to_ptr.vmem [resolvable:$true] %s430
          %436 = dma.hbm_to_vmem [thread:$0]  %s5, 1024, %s431, [#allocation13], 64, 64, 4
        $region24: #{tpu_custom_call.1} parent=11 // pred_fallthru
          _
        // Predicated region
        $region25: #{tpu_custom_call.1} parent=11 // pred_check
          %p437 = pneg %p187
        $region26: #{tpu_custom_call.1} parent=11 // pred_check_branch
          %439 = sbr.rel (%p437) target = $region28
        $region27: #{tpu_custom_call.1} parent=11 // pred_region
          %s441 = ssub.s32 1024, 1024
          %442 = vsyncadd [#allocation16], %s441
          %s443 = sshll.u32 [#allocation15], 4
          %s444 = int_to_ptr.vmem [resolvable:$true] %s443
          %449 = dma.hbm_to_vmem [thread:$0]  %s6, 1024, %s444, [#allocation16], 64, 64, 4
        $region28: #{tpu_custom_call.1} parent=11 // pred_fallthru
          _
        // Predicated region
        $region29: #{tpu_custom_call.1} parent=11 // pred_check
          %p450 = pneg %p208
        $region30: #{tpu_custom_call.1} parent=11 // pred_check_branch
          %452 = sbr.rel (%p450) target = $region32
        $region31: #{tpu_custom_call.1} parent=11 // pred_region
          _
        $region32: #{tpu_custom_call.1} parent=11 // pred_fallthru
          _
        // Predicated region
        $region33: #{tpu_custom_call.1} parent=11 // pred_check
          %p453 = pneg %p229
        $region34: #{tpu_custom_call.1} parent=11 // pred_check_branch
          %455 = sbr.rel (%p453) target = $region36
        $region35: #{tpu_custom_call.1} parent=11 // pred_region
          _
        $region36: #{tpu_custom_call.1} parent=11 // pred_fallthru
          _
        // Predicated region
        $region37: #{tpu_custom_call.1} parent=11 // pred_check
          %p456 = pneg %p250
        $region38: #{tpu_custom_call.1} parent=11 // pred_check_branch
          %458 = sbr.rel (%p456) target = $region40
        $region39: #{tpu_custom_call.1} parent=11 // pred_region
          _
        $region40: #{tpu_custom_call.1} parent=11 // pred_fallthru
          _
        // Predicated region
        $region41: #{tpu_custom_call.1} parent=11 // pred_check
          %p459 = pneg %p271
        $region42: #{tpu_custom_call.1} parent=11 // pred_check_branch
          %461 = sbr.rel (%p459) target = $region44
        $region43: #{tpu_custom_call.1} parent=11 // pred_region
          _
        $region44: #{tpu_custom_call.1} parent=11 // pred_fallthru
          _
        // Predicated region
        $region45: #{tpu_custom_call.1} parent=11 // pred_check
          %p462 = pneg %p292
        $region46: #{tpu_custom_call.1} parent=11 // pred_check_branch
          %464 = sbr.rel (%p462) target = $region48
        $region47: #{tpu_custom_call.1} parent=11 // pred_region
          %s466 = ssub.s32 2048, 2048
          %467 = vsyncadd [#allocation16], %s466
          %s468 = sshll.u32 [#allocation17], 4
          %s469 = int_to_ptr.vmem [resolvable:$true] %s468
          %474 = dma.hbm_to_vmem [thread:$0]  %s11, 2048, %s469, [#allocation16], 128, 128, 8
        $region48: #{tpu_custom_call.1} parent=11 // pred_fallthru
          _
        // Predicated region
        $region49: #{tpu_custom_call.1} parent=11 // pred_check
          %p475 = pneg %p313
        $region50: #{tpu_custom_call.1} parent=11 // pred_check_branch
          %477 = sbr.rel (%p475) target = $region52
        $region51: #{tpu_custom_call.1} parent=11 // pred_region
          _
        $region52: #{tpu_custom_call.1} parent=11 // pred_fallthru
          _
        // Predicated region
        $region53: #{tpu_custom_call.1} parent=11 // pred_check
          %p478 = pneg %p334
        $region54: #{tpu_custom_call.1} parent=11 // pred_check_branch
          %480 = sbr.rel (%p478) target = $region56
        $region55: #{tpu_custom_call.1} parent=11 // pred_region
          %s482 = ssub.s32 2048, 2048
          %483 = vsyncadd [#allocation19], %s482
          %s484 = sshll.u32 [#allocation18], 4
          %s485 = int_to_ptr.vmem [resolvable:$true] %s484
          %490 = dma.hbm_to_vmem [thread:$0]  %s13, 2048, %s485, [#allocation19], 64, 64, 4
        $region56: #{tpu_custom_call.1} parent=11 // pred_fallthru
          _
        // Predicated region
        $region57: #{tpu_custom_call.1} parent=11 // pred_check
          %p491 = pneg %p355
        $region58: #{tpu_custom_call.1} parent=11 // pred_check_branch
          %493 = sbr.rel (%p491) target = $region60
        $region59: #{tpu_custom_call.1} parent=11 // pred_region
          _
        $region60: #{tpu_custom_call.1} parent=11 // pred_fallthru
          _
      $region12: #{tpu_custom_call.1} parent=5 // pred_fallthru
        _
      %p494 = scmp.lt.s32.totalorder %s37, 8
      // Predicated region
      $region61: #{tpu_custom_call.1} parent=5 // pred_check
        %p495 = pneg %p494
      $region62: #{tpu_custom_call.1} parent=5 // pred_check_branch
        %497 = sbr.rel (%p495) target = $region64
      $region63: #{tpu_custom_call.1} parent=5 // pred_region
        // Predicated region
        $region65: #{tpu_custom_call.1} parent=63 // pred_check
          %p498 = pneg %p71
        $region66: #{tpu_custom_call.1} parent=63 // pred_check_branch
          %500 = sbr.rel (%p498) target = $region68
        $region67: #{tpu_custom_call.1} parent=63 // pred_region
          %s501 = sand.u32 %s61, 1
          %s502 = scalar_lea.sflag [#allocation7], %s501
          %s503 = sand.u32 %s61, 1
          %s504 = smul.addr %s503, 16
          %s505 = scalar_lea.vmem [#allocation6], %s504
          %s506 = smul.u32 2, %s45
          %s508 = ssub.s32 256, 256
          %509 = vsyncadd %s502, %s508
          %s510 = smul.addr %s44, 8
          %s511 = sadd.s32 %s506, %s510
          %s512 = smul.addr %s511, 128
          %s513 = scalar_lea.hbm %s1, %s512
          %s514 = sshll.u32 %s505, 4
          %s515 = int_to_ptr.vmem [resolvable:$true] %s514
          %520 = dma.hbm_to_vmem [thread:$0]  %s513, 256, %s515, %s502, 128, 128, 8
        $region68: #{tpu_custom_call.1} parent=63 // pred_fallthru
          _
        // Predicated region
        $region69: #{tpu_custom_call.1} parent=63 // pred_check
          %p521 = pneg %p97
        $region70: #{tpu_custom_call.1} parent=63 // pred_check_branch
          %523 = sbr.rel (%p521) target = $region72
        $region71: #{tpu_custom_call.1} parent=63 // pred_region
          %s524 = sand.u32 %s37, 1
          %s525 = scalar_lea.sflag [#allocation10], %s524
          %s526 = sand.u32 %s87, 1
          %s527 = smul.addr %s526, 32
          %s528 = scalar_lea.vmem [#allocation9], %s527
          %s530 = ssub.s32 512, 512
          %531 = vsyncadd %s525, %s530
          %s532 = smul.addr %s44, 8
          %s533 = smul.addr %s532, 64
          %s534 = scalar_lea.hbm %s2, %s533
          %s535 = sshll.u32 %s528, 4
          %s536 = int_to_ptr.vmem [resolvable:$true] %s535
          %541 = dma.hbm_to_vmem [thread:$0]  %s534, 512, %s536, %s525, 64, 64, 4
        $region72: #{tpu_custom_call.1} parent=63 // pred_fallthru
          _
      $region64: #{tpu_custom_call.1} parent=5 // pred_fallthru
        _
      %p542 = scmp.le.s32.totalorder 1, %s37
      %p543 = scmp.lt.s32.totalorder %s37, 9
      %p544 = pnand %p542, %p543
      %p545 = pneg %p544
      // Predicated region
      $region73: #{tpu_custom_call.1} parent=5 // pred_check
        _
      $region74: #{tpu_custom_call.1} parent=5 // pred_check_branch
        %547 = sbr.rel (%p544) target = $region76
      $region75: #{tpu_custom_call.1} parent=5 // pred_region
        %s548 = ssub.s32 %s37, 1
        %s549 = sand.u32 %s64, 1
        %s550 = scalar_lea.sflag [#allocation7], %s549
        %s551 = sand.u32 %s64, 1
        %s552 = smul.addr %s551, 16
        %s553 = scalar_lea.vmem [#allocation6], %s552
        // Predicated region
        $region77: #{tpu_custom_call.1} parent=75 // pred_check
          %p554 = pneg %p77
        $region78: #{tpu_custom_call.1} parent=75 // pred_check_branch
          %556 = sbr.rel (%p554) target = $region80
        $region79: #{tpu_custom_call.1} parent=75 // pred_region
          %557 = dma.done %s550, 256
        $region80: #{tpu_custom_call.1} parent=75 // pred_fallthru
          _
        %s558 = sand.u32 %s42, 1
        %s559 = scalar_lea.sflag [#allocation10], %s558
        %s560 = sand.u32 %s90, 1
        %s561 = smul.addr %s560, 32
        %s562 = scalar_lea.vmem [#allocation9], %s561
        // Predicated region
        $region81: #{tpu_custom_call.1} parent=75 // pred_check
          %p563 = pneg %p103
        $region82: #{tpu_custom_call.1} parent=75 // pred_check_branch
          %565 = sbr.rel (%p563) target = $region84
        $region83: #{tpu_custom_call.1} parent=75 // pred_region
          %566 = dma.done %s559, 512
        $region84: #{tpu_custom_call.1} parent=75 // pred_fallthru
          _
        // Predicated region
        $region85: #{tpu_custom_call.1} parent=75 // pred_check
          %p567 = pneg %p124
        $region86: #{tpu_custom_call.1} parent=75 // pred_check_branch
          %569 = sbr.rel (%p567) target = $region88
        $region87: #{tpu_custom_call.1} parent=75 // pred_region
          %570 = dma.done [#allocation10], 1024
        $region88: #{tpu_custom_call.1} parent=75 // pred_fallthru
          _
        // Predicated region
        $region89: #{tpu_custom_call.1} parent=75 // pred_check
          %p571 = pneg %p145
        $region90: #{tpu_custom_call.1} parent=75 // pred_check_branch
          %573 = sbr.rel (%p571) target = $region92
        $region91: #{tpu_custom_call.1} parent=75 // pred_region
          %574 = dma.done [#allocation13], 1024
        $region92: #{tpu_custom_call.1} parent=75 // pred_fallthru
          _
        // Predicated region
        $region93: #{tpu_custom_call.1} parent=75 // pred_check
          %p575 = pneg %p166
        $region94: #{tpu_custom_call.1} parent=75 // pred_check_branch
          %577 = sbr.rel (%p575) target = $region96
        $region95: #{tpu_custom_call.1} parent=75 // pred_region
          %578 = dma.done [#allocation13], 1024
        $region96: #{tpu_custom_call.1} parent=75 // pred_fallthru
          _
        // Predicated region
        $region97: #{tpu_custom_call.1} parent=75 // pred_check
          %p579 = pneg %p187
        $region98: #{tpu_custom_call.1} parent=75 // pred_check_branch
          %581 = sbr.rel (%p579) target = $region100
        $region99: #{tpu_custom_call.1} parent=75 // pred_region
          %582 = dma.done [#allocation16], 1024
        $region100: #{tpu_custom_call.1} parent=75 // pred_fallthru
          _
        // Predicated region
        $region101: #{tpu_custom_call.1} parent=75 // pred_check
          %p583 = pneg %p292
        $region102: #{tpu_custom_call.1} parent=75 // pred_check_branch
          %585 = sbr.rel (%p583) target = $region104
        $region103: #{tpu_custom_call.1} parent=75 // pred_region
          %586 = dma.done [#allocation16], 2048
        $region104: #{tpu_custom_call.1} parent=75 // pred_fallthru
          _
        // Predicated region
        $region105: #{tpu_custom_call.1} parent=75 // pred_check
          %p587 = pneg %p334
        $region106: #{tpu_custom_call.1} parent=75 // pred_check_branch
          %589 = sbr.rel (%p587) target = $region108
        $region107: #{tpu_custom_call.1} parent=75 // pred_region
          %590 = dma.done [#allocation19], 2048
        $region108: #{tpu_custom_call.1} parent=75 // pred_fallthru
          _
        %s591 = sand.u32 %s64, 1
        %s592 = scalar_lea.sflag [#allocation7], %s591
        %s593 = sand.u32 %s64, 1
        %s594 = smul.addr %s593, 16
        %s595 = scalar_lea.vmem [#allocation6], %s594
        %p596 = pneg %p77
        %p597 = pneg %p74
        %s598 = sand.u32 %s42, 1
        %s599 = scalar_lea.sflag [#allocation10], %s598
        %s600 = sand.u32 %s90, 1
        %s601 = smul.addr %s600, 32
        %s602 = scalar_lea.vmem [#allocation9], %s601
        %p603 = pneg %p103
        %p604 = pneg %p100
        %p605 = pneg %p124
        %p606 = pneg %p121
        %p607 = pneg %p145
        %p608 = pneg %p142
        %p609 = pneg %p166
        %p610 = pneg %p163
        %p611 = pneg %p187
        %p612 = pneg %p184
        %p613 = pneg %p208
        %p614 = pneg %p205
        %p615 = pneg %p229
        %p616 = pneg %p226
        %p617 = pneg %p250
        %p618 = pneg %p247
        %p619 = pneg %p271
        %p620 = pneg %p268
        %p621 = pneg %p292
        %p622 = pneg %p289
        %p623 = pneg %p313
        %p624 = pneg %p310
        %p625 = pneg %p334
        %p626 = pneg %p331
        %p627 = pneg %p355
        %p628 = pneg %p352
        %p629 = pneg %p383
        %p630 = pneg %p380
        %s631 = sand.u32 %s370, 1
        %s632 = scalar_lea.sflag [#allocation8], %s631
        %s633 = sand.u32 %s370, 1
        %s634 = smul.addr %s633, 16
        %s635 = scalar_lea.vmem [#allocation20], %s634
        %s636 = smul.u32 2, %s47
        %s637 = smul.u32 2, %s47
        %p639 = scmp.eq.s32.totalorder %s47, 0
        // Predicated region
        $region109: #{tpu_custom_call.1} parent=75 // pred_check
          %p640 = pneg %p639
        $region110: #{tpu_custom_call.1} parent=75 // pred_check_branch
          %642 = sbr.rel (%p640) target = $region112
        $region111: #{tpu_custom_call.1} parent=75 // pred_region
          %v643 = vld [vmem:[%s562] sm:$0xf]
          %v644 = vld [vmem:[%s562 + $0x4] sm:$0xf]
          %v645 = vld [vmem:[%s562 + $0x8] sm:$0xf]
          %v646 = vld [vmem:[%s562 + $0xc] sm:$0xf]
          %v647 = vld [vmem:[%s562 + $0x10] sm:$0xf]
          %v648 = vld [vmem:[%s562 + $0x14] sm:$0xf]
          %v649 = vld [vmem:[%s562 + $0x18] sm:$0xf]
          %v650 = vld [vmem:[%s562 + $0x1c] sm:$0xf]
          %v651 = vld [vmem:[#allocation12] sm:$0xf]
          %v652 = vld [vmem:[#allocation12 + $0x4] sm:$0xf]
          %v653 = vld [vmem:[#allocation12 + $0x8] sm:$0xf]
          %v654 = vld [vmem:[#allocation12 + $0xc] sm:$0xf]
          %v655 = vld [vmem:[#allocation12 + $0x10] sm:$0xf]
          %v656 = vld [vmem:[#allocation12 + $0x14] sm:$0xf]
          %v657 = vld [vmem:[#allocation12 + $0x18] sm:$0xf]
          %v658 = vld [vmem:[#allocation12 + $0x1c] sm:$0xf]
          %v659 = vld [vmem:[#allocation12 + $0x20] sm:$0xf]
          %v660 = vld [vmem:[#allocation12 + $0x24] sm:$0xf]
          %v661 = vld [vmem:[#allocation12 + $0x28] sm:$0xf]
          %v662 = vld [vmem:[#allocation12 + $0x2c] sm:$0xf]
          %v663 = vld [vmem:[#allocation12 + $0x30] sm:$0xf]
          %v664 = vld [vmem:[#allocation12 + $0x34] sm:$0xf]
          %v665 = vld [vmem:[#allocation12 + $0x38] sm:$0xf]
          %v666 = vld [vmem:[#allocation12 + $0x3c] sm:$0xf]
          %v675 = vunpack.c.l.b16 %v643
          %v676 = vunpack.c.l.b16 %v644
          %v677 = vunpack.c.l.b16 %v645
          %v678 = vunpack.c.l.b16 %v646
          %v679 = vunpack.c.l.b16 %v647
          %v680 = vunpack.c.l.b16 %v648
          %v681 = vunpack.c.l.b16 %v649
          %v682 = vunpack.c.l.b16 %v650
          %v683 = vpack.c.b16 %v676, %v675
          %v684 = vpack.c.b16 %v678, %v677
          %v685 = vpack.c.b16 %v680, %v679
          %v686 = vpack.c.b16 %v682, %v681
          %v707 = vunpack.c.l.b16 %v651
          %v708 = vunpack.c.l.b16 %v652
          %v709 = vunpack.c.l.b16 %v653
          %v710 = vunpack.c.l.b16 %v654
          %v711 = vunpack.c.l.b16 %v655
          %v712 = vunpack.c.l.b16 %v656
          %v713 = vunpack.c.l.b16 %v657
          %v714 = vunpack.c.l.b16 %v658
          %v715 = vunpack.c.l.b16 %v659
          %v716 = vunpack.c.l.b16 %v660
          %v717 = vunpack.c.l.b16 %v661
          %v718 = vunpack.c.l.b16 %v662
          %v719 = vunpack.c.l.b16 %v663
          %v720 = vunpack.c.l.b16 %v664
          %v721 = vunpack.c.l.b16 %v665
          %v722 = vunpack.c.l.b16 %v666
          %v723 = vpack.c.b16 %v708, %v707
          %v724 = vpack.c.b16 %v710, %v709
          %v725 = vpack.c.b16 %v712, %v711
          %v726 = vpack.c.b16 %v714, %v713
          %v727 = vpack.c.b16 %v716, %v715
          %v728 = vpack.c.b16 %v718, %v717
          %v729 = vpack.c.b16 %v720, %v719
          %v730 = vpack.c.b16 %v722, %v721
          %739 = vmatprep.subr.bf16.mxu0 0
          %740 = vmatpush1.bf16.msra.mxu0 %v730
          %741 = vmatprep.subr.bf16.mxu0 0
          %742 = vmatpush1.bf16.msra.mxu0 %v729
          %743 = vmatprep.subr.bf16.mxu0 0
          %744 = vmatpush1.bf16.msra.mxu0 %v728
          %745 = vmatprep.subr.bf16.mxu0 0
          %746 = vmatpush1.bf16.msra.mxu0 %v727
          %747 = vmatprep.subr.bf16.mxu0 0
          %748 = vmatpush1.bf16.msra.mxu0 %v726
          %749 = vmatprep.subr.bf16.mxu0 0
          %750 = vmatpush1.bf16.msra.mxu0 %v725
          %751 = vmatprep.subr.bf16.mxu0 0
          %752 = vmatpush1.bf16.msra.mxu0 %v724
          %753 = vmatprep.subr.bf16.mxu0 0
          %754 = vmatpush1.bf16.msra.mxu0 %v723
          %755 = vmatprep.subr.bf16.mxu0 0
          %756 = vmatpush2.bf16.msra.mxu0 0
          %757 = vmatprep.subr.bf16.mxu0 0
          %758 = vmatpush2.bf16.msra.mxu0 0
          %759 = vmatprep.subr.bf16.mxu0 0
          %760 = vmatpush2.bf16.msra.mxu0 0
          %761 = vmatprep.subr.bf16.mxu0 0
          %762 = vmatpush2.bf16.msra.mxu0 0
          %763 = vmatprep.subr.bf16.mxu0 0
          %764 = vmatpush2.bf16.msra.mxu0 0
          %765 = vmatprep.subr.bf16.mxu0 0
          %766 = vmatpush2.bf16.msra.mxu0 0
          %767 = vmatprep.subr.bf16.mxu0 0
          %768 = vmatpush2.bf16.msra.mxu0 0
          %769 = vmatprep.subr.bf16.mxu0 0
          %770 = vmatpush2.bf16.msra.mxu0 0
          %771 = vmatprep.mubr.bf16.mxu0 0
          %772 = vmatmul.mubr.bf16.gmra.mxu0 %v683
          %v773 = vpop.f32.mrf.mxu0
          %v774 = vadd.f32 0.0, %v773
          %v775 = vpop.f32.mrf.mxu0
          %v776 = vpop.f32.mrf.mxu0
          %v777 = vadd.f32 0.0, %v776
          %v778 = vpop.f32.mrf.mxu0
          %779 = vmatprep.mubr.bf16.mxu0 0
          %780 = vmatmul.mubr.bf16.gmra.mxu0 %v684
          %v781 = vpop.f32.mrf.mxu0
          %v782 = vadd.f32 0.0, %v781
          %v783 = vpop.f32.mrf.mxu0
          %v784 = vpop.f32.mrf.mxu0
          %v785 = vadd.f32 0.0, %v784
          %v786 = vpop.f32.mrf.mxu0
          %787 = vmatprep.mubr.bf16.mxu0 0
          %788 = vmatmul.mubr.bf16.gmra.mxu0 %v685
          %v789 = vpop.f32.mrf.mxu0
          %v790 = vadd.f32 0.0, %v789
          %v791 = vpop.f32.mrf.mxu0
          %v792 = vpop.f32.mrf.mxu0
          %v793 = vadd.f32 0.0, %v792
          %v794 = vpop.f32.mrf.mxu0
          %795 = vmatprep.mubr.bf16.mxu0 0
          %796 = vmatmul.mubr.bf16.gmra.mxu0 %v686
          %v797 = vpop.f32.mrf.mxu0
          %v798 = vadd.f32 0.0, %v797
          %v799 = vpop.f32.mrf.mxu0
          %v800 = vpop.f32.mrf.mxu0
          %v801 = vadd.f32 0.0, %v800
          %v802 = vpop.f32.mrf.mxu0
          %803 = vdwg.mxu0
          %v804 = vld [vmem:[#allocation14] sm:$0xf]
          %v805 = vld [vmem:[#allocation14 + $0x4] sm:$0xf]
          %v806 = vld [vmem:[#allocation14 + $0x8] sm:$0xf]
          %v807 = vld [vmem:[#allocation14 + $0xc] sm:$0xf]
          %v808 = vld [vmem:[#allocation14 + $0x10] sm:$0xf]
          %v809 = vld [vmem:[#allocation14 + $0x14] sm:$0xf]
          %v810 = vld [vmem:[#allocation14 + $0x18] sm:$0xf]
          %v811 = vld [vmem:[#allocation14 + $0x1c] sm:$0xf]
          %v812 = vld [vmem:[#allocation14 + $0x20] sm:$0xf]
          %v813 = vld [vmem:[#allocation14 + $0x24] sm:$0xf]
          %v814 = vld [vmem:[#allocation14 + $0x28] sm:$0xf]
          %v815 = vld [vmem:[#allocation14 + $0x2c] sm:$0xf]
          %v816 = vld [vmem:[#allocation14 + $0x30] sm:$0xf]
          %v817 = vld [vmem:[#allocation14 + $0x34] sm:$0xf]
          %v818 = vld [vmem:[#allocation14 + $0x38] sm:$0xf]
          %v819 = vld [vmem:[#allocation14 + $0x3c] sm:$0xf]
          %v836 = vunpack.c.l.b16 %v804
          %v837 = vunpack.c.l.b16 %v805
          %v838 = vunpack.c.l.b16 %v806
          %v839 = vunpack.c.l.b16 %v807
          %v840 = vunpack.c.l.b16 %v808
          %v841 = vunpack.c.l.b16 %v809
          %v842 = vunpack.c.l.b16 %v810
          %v843 = vunpack.c.l.b16 %v811
          %v844 = vunpack.c.l.b16 %v812
          %v845 = vunpack.c.l.b16 %v813
          %v846 = vunpack.c.l.b16 %v814
          %v847 = vunpack.c.l.b16 %v815
          %v848 = vunpack.c.l.b16 %v816
          %v849 = vunpack.c.l.b16 %v817
          %v850 = vunpack.c.l.b16 %v818
          %v851 = vunpack.c.l.b16 %v819
          %v852 = vpack.c.b16 %v837, %v836
          %v853 = vpack.c.b16 %v839, %v838
          %v854 = vpack.c.b16 %v841, %v840
          %v855 = vpack.c.b16 %v843, %v842
          %v856 = vpack.c.b16 %v845, %v844
          %v857 = vpack.c.b16 %v847, %v846
          %v858 = vpack.c.b16 %v849, %v848
          %v859 = vpack.c.b16 %v851, %v850
          %868 = vmatprep.subr.bf16.mxu0 0
          %869 = vmatpush1.bf16.msra.mxu0 %v859
          %870 = vmatprep.subr.bf16.mxu0 0
          %871 = vmatpush1.bf16.msra.mxu0 %v858
          %872 = vmatprep.subr.bf16.mxu0 0
          %873 = vmatpush1.bf16.msra.mxu0 %v857
          %874 = vmatprep.subr.bf16.mxu0 0
          %875 = vmatpush1.bf16.msra.mxu0 %v856
          %876 = vmatprep.subr.bf16.mxu0 0
          %877 = vmatpush1.bf16.msra.mxu0 %v855
          %878 = vmatprep.subr.bf16.mxu0 0
          %879 = vmatpush1.bf16.msra.mxu0 %v854
          %880 = vmatprep.subr.bf16.mxu0 0
          %881 = vmatpush1.bf16.msra.mxu0 %v853
          %882 = vmatprep.subr.bf16.mxu0 0
          %883 = vmatpush1.bf16.msra.mxu0 %v852
          %884 = vmatprep.subr.bf16.mxu0 0
          %885 = vmatpush2.bf16.msra.mxu0 0
          %886 = vmatprep.subr.bf16.mxu0 0
          %887 = vmatpush2.bf16.msra.mxu0 0
          %888 = vmatprep.subr.bf16.mxu0 0
          %889 = vmatpush2.bf16.msra.mxu0 0
          %890 = vmatprep.subr.bf16.mxu0 0
          %891 = vmatpush2.bf16.msra.mxu0 0
          %892 = vmatprep.subr.bf16.mxu0 0
          %893 = vmatpush2.bf16.msra.mxu0 0
          %894 = vmatprep.subr.bf16.mxu0 0
          %895 = vmatpush2.bf16.msra.mxu0 0
          %896 = vmatprep.subr.bf16.mxu0 0
          %897 = vmatpush2.bf16.msra.mxu0 0
          %898 = vmatprep.subr.bf16.mxu0 0
          %899 = vmatpush2.bf16.msra.mxu0 0
          %900 = vmatprep.mubr.bf16.mxu0 0
          %901 = vmatmul.mubr.bf16.gmra.mxu0 %v683
          %v902 = vpop.f32.mrf.mxu0
          %v903 = vadd.f32 0.0, %v902
          %v904 = vpop.f32.mrf.mxu0
          %v905 = vpop.f32.mrf.mxu0
          %v906 = vadd.f32 0.0, %v905
          %v907 = vpop.f32.mrf.mxu0
          %908 = vmatprep.mubr.bf16.mxu0 0
          %909 = vmatmul.mubr.bf16.gmra.mxu0 %v684
          %v910 = vpop.f32.mrf.mxu0
          %v911 = vadd.f32 0.0, %v910
          %v912 = vpop.f32.mrf.mxu0
          %v913 = vpop.f32.mrf.mxu0
          %v914 = vadd.f32 0.0, %v913
          %v915 = vpop.f32.mrf.mxu0
          %916 = vmatprep.mubr.bf16.mxu0 0
          %917 = vmatmul.mubr.bf16.gmra.mxu0 %v685
          %v918 = vpop.f32.mrf.mxu0
          %v919 = vadd.f32 0.0, %v918
          %v920 = vpop.f32.mrf.mxu0
          %v921 = vpop.f32.mrf.mxu0
          %v922 = vadd.f32 0.0, %v921
          %v923 = vpop.f32.mrf.mxu0
          %924 = vmatprep.mubr.bf16.mxu0 0
          %925 = vmatmul.mubr.bf16.gmra.mxu0 %v686
          %v926 = vpop.f32.mrf.mxu0
          %v927 = vadd.f32 0.0, %v926
          %v928 = vpop.f32.mrf.mxu0
          %v929 = vpop.f32.mrf.mxu0
          %v930 = vadd.f32 0.0, %v929
          %v931 = vpop.f32.mrf.mxu0
          %932 = vdwg.mxu0
          %941 = vrot.lane.b32.xlu0 %v774, 96
          %v942 = vpop.permute.xlu0 %941
          %943 = vrot.lane.b32.xlu0 %v777, 96
          %v944 = vpop.permute.xlu0 %943
          %945 = vrot.lane.b32.xlu0 %v782, 96
          %v946 = vpop.permute.xlu0 %945
          %947 = vrot.lane.b32.xlu0 %v785, 96
          %v948 = vpop.permute.xlu0 %947
          %949 = vrot.lane.b32.xlu0 %v790, 96
          %v950 = vpop.permute.xlu0 %949
          %951 = vrot.lane.b32.xlu0 %v793, 96
          %v952 = vpop.permute.xlu0 %951
          %953 = vrot.lane.b32.xlu0 %v798, 96
          %v954 = vpop.permute.xlu0 %953
          %955 = vrot.lane.b32.xlu0 %v801, 96
          %v956 = vpop.permute.xlu0 %955
          %965 = vrot.lane.b32.xlu0 %v774, 64
          %v966 = vpop.permute.xlu0 %965
          %967 = vrot.lane.b32.xlu0 %v777, 64
          %v968 = vpop.permute.xlu0 %967
          %969 = vrot.lane.b32.xlu0 %v782, 64
          %v970 = vpop.permute.xlu0 %969
          %971 = vrot.lane.b32.xlu0 %v785, 64
          %v972 = vpop.permute.xlu0 %971
          %973 = vrot.lane.b32.xlu0 %v790, 64
          %v974 = vpop.permute.xlu0 %973
          %975 = vrot.lane.b32.xlu0 %v793, 64
          %v976 = vpop.permute.xlu0 %975
          %977 = vrot.lane.b32.xlu0 %v798, 64
          %v978 = vpop.permute.xlu0 %977
          %979 = vrot.lane.b32.xlu0 %v801, 64
          %v980 = vpop.permute.xlu0 %979
          %989 = vrot.lane.b32.xlu0 %v774, 32
          %v990 = vpop.permute.xlu0 %989
          %991 = vrot.lane.b32.xlu0 %v777, 32
          %v992 = vpop.permute.xlu0 %991
          %993 = vrot.lane.b32.xlu0 %v782, 32
          %v994 = vpop.permute.xlu0 %993
          %995 = vrot.lane.b32.xlu0 %v785, 32
          %v996 = vpop.permute.xlu0 %995
          %997 = vrot.lane.b32.xlu0 %v790, 32
          %v998 = vpop.permute.xlu0 %997
          %999 = vrot.lane.b32.xlu0 %v793, 32
          %v1000 = vpop.permute.xlu0 %999
          %1001 = vrot.lane.b32.xlu0 %v798, 32
          %v1002 = vpop.permute.xlu0 %1001
          %1003 = vrot.lane.b32.xlu0 %v801, 32
          %v1004 = vpop.permute.xlu0 %1003
          %v1013 = vcombine.low %v774, %v966
          %v1014 = vcombine.high %v774, %v966
          %v1016 = vunpack.c.l.s4 1983009808
          %v1017 = vunpack.c.0.s8 %v1016
          %v1018 = vlaneseq
          %v1019 = vshrl.u32 %v1018, 7
          %v1020 = vsub.s32 %v1017, %v1019
          %v1021 = vrot.slane %v1013, %v1020
          %v1023 = vunpack.c.l.s4 1983009808
          %v1024 = vunpack.c.0.s8 %v1023
          %v1025 = vlaneseq
          %v1026 = vshrl.u32 %v1025, 7
          %v1027 = vsub.s32 %v1024, %v1026
          %v1028 = vrot.slane %v1014, %v1027
          %v1029 = vcombine.low %v942, %v990
          %v1030 = vcombine.high %v942, %v990
          %v1032 = vunpack.c.l.s4 1983009808
          %v1033 = vunpack.c.0.s8 %v1032
          %v1034 = vlaneseq
          %v1035 = vshrl.u32 %v1034, 7
          %v1036 = vsub.s32 %v1033, %v1035
          %v1037 = vrot.slane %v1029, %v1036
          %v1039 = vunpack.c.l.s4 1983009808
          %v1040 = vunpack.c.0.s8 %v1039
          %v1041 = vlaneseq
          %v1042 = vshrl.u32 %v1041, 7
          %v1043 = vsub.s32 %v1040, %v1042
          %v1044 = vrot.slane %v1030, %v1043
          %v1045 = vcombine.low %v1021, %v1037
          %v1046 = vcombine.high %v1021, %v1037
          %v1048 = vunpack.c.l.s4 1934713408
          %v1049 = vunpack.c.0.s8 %v1048
          %v1050 = vlaneseq
          %v1051 = vshrl.u32 %v1050, 7
          %v1052 = vsub.s32 %v1049, %v1051
          %v1053 = vrot.slane %v1045, %v1052
          %v1055 = vunpack.c.l.s4 1934713408
          %v1056 = vunpack.c.0.s8 %v1055
          %v1057 = vlaneseq
          %v1058 = vshrl.u32 %v1057, 7
          %v1059 = vsub.s32 %v1056, %v1058
          %v1060 = vrot.slane %v1046, %v1059
          %v1061 = vcombine.low %v1028, %v1044
          %v1062 = vcombine.high %v1028, %v1044
          %v1064 = vunpack.c.l.s4 1934713408
          %v1065 = vunpack.c.0.s8 %v1064
          %v1066 = vlaneseq
          %v1067 = vshrl.u32 %v1066, 7
          %v1068 = vsub.s32 %v1065, %v1067
          %v1069 = vrot.slane %v1061, %v1068
          %v1071 = vunpack.c.l.s4 1934713408
          %v1072 = vunpack.c.0.s8 %v1071
          %v1073 = vlaneseq
          %v1074 = vshrl.u32 %v1073, 7
          %v1075 = vsub.s32 %v1072, %v1074
          %v1076 = vrot.slane %v1062, %v1075
          %v1077 = vcombine.high %v1053, 0.0
          %v1078 = vcombine.high %v1060, 0.0
          %v1079 = vcombine.high %v1069, 0.0
          %v1080 = vcombine.high %v1076, 0.0
          %v1081 = vcombine.low %v777, %v968
          %v1082 = vcombine.high %v777, %v968
          %v1084 = vunpack.c.l.s4 1983009808
          %v1085 = vunpack.c.0.s8 %v1084
          %v1086 = vlaneseq
          %v1087 = vshrl.u32 %v1086, 7
          %v1088 = vsub.s32 %v1085, %v1087
          %v1089 = vrot.slane %v1081, %v1088
          %v1091 = vunpack.c.l.s4 1983009808
          %v1092 = vunpack.c.0.s8 %v1091
          %v1093 = vlaneseq
          %v1094 = vshrl.u32 %v1093, 7
          %v1095 = vsub.s32 %v1092, %v1094
          %v1096 = vrot.slane %v1082, %v1095
          %v1097 = vcombine.low %v944, %v992
          %v1098 = vcombine.high %v944, %v992
          %v1100 = vunpack.c.l.s4 1983009808
          %v1101 = vunpack.c.0.s8 %v1100
          %v1102 = vlaneseq
          %v1103 = vshrl.u32 %v1102, 7
          %v1104 = vsub.s32 %v1101, %v1103
          %v1105 = vrot.slane %v1097, %v1104
          %v1107 = vunpack.c.l.s4 1983009808
          %v1108 = vunpack.c.0.s8 %v1107
          %v1109 = vlaneseq
          %v1110 = vshrl.u32 %v1109, 7
          %v1111 = vsub.s32 %v1108, %v1110
          %v1112 = vrot.slane %v1098, %v1111
          %v1113 = vcombine.low %v1089, %v1105
          %v1114 = vcombine.high %v1089, %v1105
          %v1116 = vunpack.c.l.s4 1934713408
          %v1117 = vunpack.c.0.s8 %v1116
          %v1118 = vlaneseq
          %v1119 = vshrl.u32 %v1118, 7
          %v1120 = vsub.s32 %v1117, %v1119
          %v1121 = vrot.slane %v1113, %v1120
          %v1123 = vunpack.c.l.s4 1934713408
          %v1124 = vunpack.c.0.s8 %v1123
          %v1125 = vlaneseq
          %v1126 = vshrl.u32 %v1125, 7
          %v1127 = vsub.s32 %v1124, %v1126
          %v1128 = vrot.slane %v1114, %v1127
          %v1129 = vcombine.low %v1096, %v1112
          %v1130 = vcombine.high %v1096, %v1112
          %v1132 = vunpack.c.l.s4 1934713408
          %v1133 = vunpack.c.0.s8 %v1132
          %v1134 = vlaneseq
          %v1135 = vshrl.u32 %v1134, 7
          %v1136 = vsub.s32 %v1133, %v1135
          %v1137 = vrot.slane %v1129, %v1136
          %v1139 = vunpack.c.l.s4 1934713408
          %v1140 = vunpack.c.0.s8 %v1139
          %v1141 = vlaneseq
          %v1142 = vshrl.u32 %v1141, 7
          %v1143 = vsub.s32 %v1140, %v1142
          %v1144 = vrot.slane %v1130, %v1143
          %v1145 = vcombine.high %v1121, 0.0
          %v1146 = vcombine.high %v1128, 0.0
          %v1147 = vcombine.high %v1137, 0.0
          %v1148 = vcombine.high %v1144, 0.0
          %v1149 = vcombine.low %v782, %v970
          %v1150 = vcombine.high %v782, %v970
          %v1152 = vunpack.c.l.s4 1983009808
          %v1153 = vunpack.c.0.s8 %v1152
          %v1154 = vlaneseq
          %v1155 = vshrl.u32 %v1154, 7
          %v1156 = vsub.s32 %v1153, %v1155
          %v1157 = vrot.slane %v1149, %v1156
          %v1159 = vunpack.c.l.s4 1983009808
          %v1160 = vunpack.c.0.s8 %v1159
          %v1161 = vlaneseq
          %v1162 = vshrl.u32 %v1161, 7
          %v1163 = vsub.s32 %v1160, %v1162
          %v1164 = vrot.slane %v1150, %v1163
          %v1165 = vcombine.low %v946, %v994
          %v1166 = vcombine.high %v946, %v994
          %v1168 = vunpack.c.l.s4 1983009808
          %v1169 = vunpack.c.0.s8 %v1168
          %v1170 = vlaneseq
          %v1171 = vshrl.u32 %v1170, 7
          %v1172 = vsub.s32 %v1169, %v1171
          %v1173 = vrot.slane %v1165, %v1172
          %v1175 = vunpack.c.l.s4 1983009808
          %v1176 = vunpack.c.0.s8 %v1175
          %v1177 = vlaneseq
          %v1178 = vshrl.u32 %v1177, 7
          %v1179 = vsub.s32 %v1176, %v1178
          %v1180 = vrot.slane %v1166, %v1179
          %v1181 = vcombine.low %v1157, %v1173
          %v1182 = vcombine.high %v1157, %v1173
          %v1184 = vunpack.c.l.s4 1934713408
          %v1185 = vunpack.c.0.s8 %v1184
          %v1186 = vlaneseq
          %v1187 = vshrl.u32 %v1186, 7
          %v1188 = vsub.s32 %v1185, %v1187
          %v1189 = vrot.slane %v1181, %v1188
          %v1191 = vunpack.c.l.s4 1934713408
          %v1192 = vunpack.c.0.s8 %v1191
          %v1193 = vlaneseq
          %v1194 = vshrl.u32 %v1193, 7
          %v1195 = vsub.s32 %v1192, %v1194
          %v1196 = vrot.slane %v1182, %v1195
          %v1197 = vcombine.low %v1164, %v1180
          %v1198 = vcombine.high %v1164, %v1180
          %v1200 = vunpack.c.l.s4 1934713408
          %v1201 = vunpack.c.0.s8 %v1200
          %v1202 = vlaneseq
          %v1203 = vshrl.u32 %v1202, 7
          %v1204 = vsub.s32 %v1201, %v1203
          %v1205 = vrot.slane %v1197, %v1204
          %v1207 = vunpack.c.l.s4 1934713408
          %v1208 = vunpack.c.0.s8 %v1207
          %v1209 = vlaneseq
          %v1210 = vshrl.u32 %v1209, 7
          %v1211 = vsub.s32 %v1208, %v1210
          %v1212 = vrot.slane %v1198, %v1211
          %v1213 = vcombine.high %v1189, 0.0
          %v1214 = vcombine.high %v1196, 0.0
          %v1215 = vcombine.high %v1205, 0.0
          %v1216 = vcombine.high %v1212, 0.0
          %v1217 = vcombine.low %v785, %v972
          %v1218 = vcombine.high %v785, %v972
          %v1220 = vunpack.c.l.s4 1983009808
          %v1221 = vunpack.c.0.s8 %v1220
          %v1222 = vlaneseq
          %v1223 = vshrl.u32 %v1222, 7
          %v1224 = vsub.s32 %v1221, %v1223
          %v1225 = vrot.slane %v1217, %v1224
          %v1227 = vunpack.c.l.s4 1983009808
          %v1228 = vunpack.c.0.s8 %v1227
          %v1229 = vlaneseq
          %v1230 = vshrl.u32 %v1229, 7
          %v1231 = vsub.s32 %v1228, %v1230
          %v1232 = vrot.slane %v1218, %v1231
          %v1233 = vcombine.low %v948, %v996
          %v1234 = vcombine.high %v948, %v996
          %v1236 = vunpack.c.l.s4 1983009808
          %v1237 = vunpack.c.0.s8 %v1236
          %v1238 = vlaneseq
          %v1239 = vshrl.u32 %v1238, 7
          %v1240 = vsub.s32 %v1237, %v1239
          %v1241 = vrot.slane %v1233, %v1240
          %v1243 = vunpack.c.l.s4 1983009808
          %v1244 = vunpack.c.0.s8 %v1243
          %v1245 = vlaneseq
          %v1246 = vshrl.u32 %v1245, 7
          %v1247 = vsub.s32 %v1244, %v1246
          %v1248 = vrot.slane %v1234, %v1247
          %v1249 = vcombine.low %v1225, %v1241
          %v1250 = vcombine.high %v1225, %v1241
          %v1252 = vunpack.c.l.s4 1934713408
          %v1253 = vunpack.c.0.s8 %v1252
          %v1254 = vlaneseq
          %v1255 = vshrl.u32 %v1254, 7
          %v1256 = vsub.s32 %v1253, %v1255
          %v1257 = vrot.slane %v1249, %v1256
          %v1259 = vunpack.c.l.s4 1934713408
          %v1260 = vunpack.c.0.s8 %v1259
          %v1261 = vlaneseq
          %v1262 = vshrl.u32 %v1261, 7
          %v1263 = vsub.s32 %v1260, %v1262
          %v1264 = vrot.slane %v1250, %v1263
          %v1265 = vcombine.low %v1232, %v1248
          %v1266 = vcombine.high %v1232, %v1248
          %v1268 = vunpack.c.l.s4 1934713408
          %v1269 = vunpack.c.0.s8 %v1268
          %v1270 = vlaneseq
          %v1271 = vshrl.u32 %v1270, 7
          %v1272 = vsub.s32 %v1269, %v1271
          %v1273 = vrot.slane %v1265, %v1272
          %v1275 = vunpack.c.l.s4 1934713408
          %v1276 = vunpack.c.0.s8 %v1275
          %v1277 = vlaneseq
          %v1278 = vshrl.u32 %v1277, 7
          %v1279 = vsub.s32 %v1276, %v1278
          %v1280 = vrot.slane %v1266, %v1279
          %v1281 = vcombine.high %v1257, 0.0
          %v1282 = vcombine.high %v1264, 0.0
          %v1283 = vcombine.high %v1273, 0.0
          %v1284 = vcombine.high %v1280, 0.0
          %v1285 = vcombine.low %v790, %v974
          %v1286 = vcombine.high %v790, %v974
          %v1288 = vunpack.c.l.s4 1983009808
          %v1289 = vunpack.c.0.s8 %v1288
          %v1290 = vlaneseq
          %v1291 = vshrl.u32 %v1290, 7
          %v1292 = vsub.s32 %v1289, %v1291
          %v1293 = vrot.slane %v1285, %v1292
          %v1295 = vunpack.c.l.s4 1983009808
          %v1296 = vunpack.c.0.s8 %v1295
          %v1297 = vlaneseq
          %v1298 = vshrl.u32 %v1297, 7
          %v1299 = vsub.s32 %v1296, %v1298
          %v1300 = vrot.slane %v1286, %v1299
          %v1301 = vcombine.low %v950, %v998
          %v1302 = vcombine.high %v950, %v998
          %v1304 = vunpack.c.l.s4 1983009808
          %v1305 = vunpack.c.0.s8 %v1304
          %v1306 = vlaneseq
          %v1307 = vshrl.u32 %v1306, 7
          %v1308 = vsub.s32 %v1305, %v1307
          %v1309 = vrot.slane %v1301, %v1308
          %v1311 = vunpack.c.l.s4 1983009808
          %v1312 = vunpack.c.0.s8 %v1311
          %v1313 = vlaneseq
          %v1314 = vshrl.u32 %v1313, 7
          %v1315 = vsub.s32 %v1312, %v1314
          %v1316 = vrot.slane %v1302, %v1315
          %v1317 = vcombine.low %v1293, %v1309
          %v1318 = vcombine.high %v1293, %v1309
          %v1320 = vunpack.c.l.s4 1934713408
          %v1321 = vunpack.c.0.s8 %v1320
          %v1322 = vlaneseq
          %v1323 = vshrl.u32 %v1322, 7
          %v1324 = vsub.s32 %v1321, %v1323
          %v1325 = vrot.slane %v1317, %v1324
          %v1327 = vunpack.c.l.s4 1934713408
          %v1328 = vunpack.c.0.s8 %v1327
          %v1329 = vlaneseq
          %v1330 = vshrl.u32 %v1329, 7
          %v1331 = vsub.s32 %v1328, %v1330
          %v1332 = vrot.slane %v1318, %v1331
          %v1333 = vcombine.low %v1300, %v1316
          %v1334 = vcombine.high %v1300, %v1316
          %v1336 = vunpack.c.l.s4 1934713408
          %v1337 = vunpack.c.0.s8 %v1336
          %v1338 = vlaneseq
          %v1339 = vshrl.u32 %v1338, 7
          %v1340 = vsub.s32 %v1337, %v1339
          %v1341 = vrot.slane %v1333, %v1340
          %v1343 = vunpack.c.l.s4 1934713408
          %v1344 = vunpack.c.0.s8 %v1343
          %v1345 = vlaneseq
          %v1346 = vshrl.u32 %v1345, 7
          %v1347 = vsub.s32 %v1344, %v1346
          %v1348 = vrot.slane %v1334, %v1347
          %v1349 = vcombine.high %v1325, 0.0
          %v1350 = vcombine.high %v1332, 0.0
          %v1351 = vcombine.high %v1341, 0.0
          %v1352 = vcombine.high %v1348, 0.0
          %v1353 = vcombine.low %v793, %v976
          %v1354 = vcombine.high %v793, %v976
          %v1356 = vunpack.c.l.s4 1983009808
          %v1357 = vunpack.c.0.s8 %v1356
          %v1358 = vlaneseq
          %v1359 = vshrl.u32 %v1358, 7
          %v1360 = vsub.s32 %v1357, %v1359
          %v1361 = vrot.slane %v1353, %v1360
          %v1363 = vunpack.c.l.s4 1983009808
          %v1364 = vunpack.c.0.s8 %v1363
          %v1365 = vlaneseq
          %v1366 = vshrl.u32 %v1365, 7
          %v1367 = vsub.s32 %v1364, %v1366
          %v1368 = vrot.slane %v1354, %v1367
          %v1369 = vcombine.low %v952, %v1000
          %v1370 = vcombine.high %v952, %v1000
          %v1372 = vunpack.c.l.s4 1983009808
          %v1373 = vunpack.c.0.s8 %v1372
          %v1374 = vlaneseq
          %v1375 = vshrl.u32 %v1374, 7
          %v1376 = vsub.s32 %v1373, %v1375
          %v1377 = vrot.slane %v1369, %v1376
          %v1379 = vunpack.c.l.s4 1983009808
          %v1380 = vunpack.c.0.s8 %v1379
          %v1381 = vlaneseq
          %v1382 = vshrl.u32 %v1381, 7
          %v1383 = vsub.s32 %v1380, %v1382
          %v1384 = vrot.slane %v1370, %v1383
          %v1385 = vcombine.low %v1361, %v1377
          %v1386 = vcombine.high %v1361, %v1377
          %v1388 = vunpack.c.l.s4 1934713408
          %v1389 = vunpack.c.0.s8 %v1388
          %v1390 = vlaneseq
          %v1391 = vshrl.u32 %v1390, 7
          %v1392 = vsub.s32 %v1389, %v1391
          %v1393 = vrot.slane %v1385, %v1392
          %v1395 = vunpack.c.l.s4 1934713408
          %v1396 = vunpack.c.0.s8 %v1395
          %v1397 = vlaneseq
          %v1398 = vshrl.u32 %v1397, 7
          %v1399 = vsub.s32 %v1396, %v1398
          %v1400 = vrot.slane %v1386, %v1399
          %v1401 = vcombine.low %v1368, %v1384
          %v1402 = vcombine.high %v1368, %v1384
          %v1404 = vunpack.c.l.s4 1934713408
          %v1405 = vunpack.c.0.s8 %v1404
          %v1406 = vlaneseq
          %v1407 = vshrl.u32 %v1406, 7
          %v1408 = vsub.s32 %v1405, %v1407
          %v1409 = vrot.slane %v1401, %v1408
          %v1411 = vunpack.c.l.s4 1934713408
          %v1412 = vunpack.c.0.s8 %v1411
          %v1413 = vlaneseq
          %v1414 = vshrl.u32 %v1413, 7
          %v1415 = vsub.s32 %v1412, %v1414
          %v1416 = vrot.slane %v1402, %v1415
          %v1417 = vcombine.high %v1393, 0.0
          %v1418 = vcombine.high %v1400, 0.0
          %v1419 = vcombine.high %v1409, 0.0
          %v1420 = vcombine.high %v1416, 0.0
          %v1421 = vcombine.low %v798, %v978
          %v1422 = vcombine.high %v798, %v978
          %v1424 = vunpack.c.l.s4 1983009808
          %v1425 = vunpack.c.0.s8 %v1424
          %v1426 = vlaneseq
          %v1427 = vshrl.u32 %v1426, 7
          %v1428 = vsub.s32 %v1425, %v1427
          %v1429 = vrot.slane %v1421, %v1428
          %v1431 = vunpack.c.l.s4 1983009808
          %v1432 = vunpack.c.0.s8 %v1431
          %v1433 = vlaneseq
          %v1434 = vshrl.u32 %v1433, 7
          %v1435 = vsub.s32 %v1432, %v1434
          %v1436 = vrot.slane %v1422, %v1435
          %v1437 = vcombine.low %v954, %v1002
          %v1438 = vcombine.high %v954, %v1002
          %v1440 = vunpack.c.l.s4 1983009808
          %v1441 = vunpack.c.0.s8 %v1440
          %v1442 = vlaneseq
          %v1443 = vshrl.u32 %v1442, 7
          %v1444 = vsub.s32 %v1441, %v1443
          %v1445 = vrot.slane %v1437, %v1444
          %v1447 = vunpack.c.l.s4 1983009808
          %v1448 = vunpack.c.0.s8 %v1447
          %v1449 = vlaneseq
          %v1450 = vshrl.u32 %v1449, 7
          %v1451 = vsub.s32 %v1448, %v1450
          %v1452 = vrot.slane %v1438, %v1451
          %v1453 = vcombine.low %v1429, %v1445
          %v1454 = vcombine.high %v1429, %v1445
          %v1456 = vunpack.c.l.s4 1934713408
          %v1457 = vunpack.c.0.s8 %v1456
          %v1458 = vlaneseq
          %v1459 = vshrl.u32 %v1458, 7
          %v1460 = vsub.s32 %v1457, %v1459
          %v1461 = vrot.slane %v1453, %v1460
          %v1463 = vunpack.c.l.s4 1934713408
          %v1464 = vunpack.c.0.s8 %v1463
          %v1465 = vlaneseq
          %v1466 = vshrl.u32 %v1465, 7
          %v1467 = vsub.s32 %v1464, %v1466
          %v1468 = vrot.slane %v1454, %v1467
          %v1469 = vcombine.low %v1436, %v1452
          %v1470 = vcombine.high %v1436, %v1452
          %v1472 = vunpack.c.l.s4 1934713408
          %v1473 = vunpack.c.0.s8 %v1472
          %v1474 = vlaneseq
          %v1475 = vshrl.u32 %v1474, 7
          %v1476 = vsub.s32 %v1473, %v1475
          %v1477 = vrot.slane %v1469, %v1476
          %v1479 = vunpack.c.l.s4 1934713408
          %v1480 = vunpack.c.0.s8 %v1479
          %v1481 = vlaneseq
          %v1482 = vshrl.u32 %v1481, 7
          %v1483 = vsub.s32 %v1480, %v1482
          %v1484 = vrot.slane %v1470, %v1483
          %v1485 = vcombine.high %v1461, 0.0
          %v1486 = vcombine.high %v1468, 0.0
          %v1487 = vcombine.high %v1477, 0.0
          %v1488 = vcombine.high %v1484, 0.0
          %v1489 = vcombine.low %v801, %v980
          %v1490 = vcombine.high %v801, %v980
          %v1492 = vunpack.c.l.s4 1983009808
          %v1493 = vunpack.c.0.s8 %v1492
          %v1494 = vlaneseq
          %v1495 = vshrl.u32 %v1494, 7
          %v1496 = vsub.s32 %v1493, %v1495
          %v1497 = vrot.slane %v1489, %v1496
          %v1499 = vunpack.c.l.s4 1983009808
          %v1500 = vunpack.c.0.s8 %v1499
          %v1501 = vlaneseq
          %v1502 = vshrl.u32 %v1501, 7
          %v1503 = vsub.s32 %v1500, %v1502
          %v1504 = vrot.slane %v1490, %v1503
          %v1505 = vcombine.low %v956, %v1004
          %v1506 = vcombine.high %v956, %v1004
          %v1508 = vunpack.c.l.s4 1983009808
          %v1509 = vunpack.c.0.s8 %v1508
          %v1510 = vlaneseq
          %v1511 = vshrl.u32 %v1510, 7
          %v1512 = vsub.s32 %v1509, %v1511
          %v1513 = vrot.slane %v1505, %v1512
          %v1515 = vunpack.c.l.s4 1983009808
          %v1516 = vunpack.c.0.s8 %v1515
          %v1517 = vlaneseq
          %v1518 = vshrl.u32 %v1517, 7
          %v1519 = vsub.s32 %v1516, %v1518
          %v1520 = vrot.slane %v1506, %v1519
          %v1521 = vcombine.low %v1497, %v1513
          %v1522 = vcombine.high %v1497, %v1513
          %v1524 = vunpack.c.l.s4 1934713408
          %v1525 = vunpack.c.0.s8 %v1524
          %v1526 = vlaneseq
          %v1527 = vshrl.u32 %v1526, 7
          %v1528 = vsub.s32 %v1525, %v1527
          %v1529 = vrot.slane %v1521, %v1528
          %v1531 = vunpack.c.l.s4 1934713408
          %v1532 = vunpack.c.0.s8 %v1531
          %v1533 = vlaneseq
          %v1534 = vshrl.u32 %v1533, 7
          %v1535 = vsub.s32 %v1532, %v1534
          %v1536 = vrot.slane %v1522, %v1535
          %v1537 = vcombine.low %v1504, %v1520
          %v1538 = vcombine.high %v1504, %v1520
          %v1540 = vunpack.c.l.s4 1934713408
          %v1541 = vunpack.c.0.s8 %v1540
          %v1542 = vlaneseq
          %v1543 = vshrl.u32 %v1542, 7
          %v1544 = vsub.s32 %v1541, %v1543
          %v1545 = vrot.slane %v1537, %v1544
          %v1547 = vunpack.c.l.s4 1934713408
          %v1548 = vunpack.c.0.s8 %v1547
          %v1549 = vlaneseq
          %v1550 = vshrl.u32 %v1549, 7
          %v1551 = vsub.s32 %v1548, %v1550
          %v1552 = vrot.slane %v1538, %v1551
          %v1553 = vcombine.high %v1529, 0.0
          %v1554 = vcombine.high %v1536, 0.0
          %v1555 = vcombine.high %v1545, 0.0
          %v1556 = vcombine.high %v1552, 0.0
          %v1557 = vcombine.low %v1053, %v1060
          %v1559 = vunpack.c.l.s4 1983009808
          %v1560 = vunpack.c.0.s8 %v1559
          %v1561 = vlaneseq
          %v1562 = vshrl.u32 %v1561, 7
          %v1563 = vsub.s32 %v1560, %v1562
          %v1564 = vrot.slane %v1557, %v1563
          %v1565 = vcombine.low %v1077, %v1078
          %v1567 = vunpack.c.l.s4 1983009808
          %v1568 = vunpack.c.0.s8 %v1567
          %v1569 = vlaneseq
          %v1570 = vshrl.u32 %v1569, 7
          %v1571 = vsub.s32 %v1568, %v1570
          %v1572 = vrot.slane %v1565, %v1571
          %v1573 = vcombine.low %v1069, %v1076
          %v1575 = vunpack.c.l.s4 1983009808
          %v1576 = vunpack.c.0.s8 %v1575
          %v1577 = vlaneseq
          %v1578 = vshrl.u32 %v1577, 7
          %v1579 = vsub.s32 %v1576, %v1578
          %v1580 = vrot.slane %v1573, %v1579
          %v1581 = vcombine.low %v1079, %v1080
          %v1583 = vunpack.c.l.s4 1983009808
          %v1584 = vunpack.c.0.s8 %v1583
          %v1585 = vlaneseq
          %v1586 = vshrl.u32 %v1585, 7
          %v1587 = vsub.s32 %v1584, %v1586
          %v1588 = vrot.slane %v1581, %v1587
          %v1589 = vcombine.low %v1564, %v1572
          %v1590 = vcombine.high %v1564, %v1572
          %v1592 = vunpack.c.l.s4 1934713408
          %v1593 = vunpack.c.0.s8 %v1592
          %v1594 = vlaneseq
          %v1595 = vshrl.u32 %v1594, 7
          %v1596 = vsub.s32 %v1593, %v1595
          %v1597 = vrot.slane %v1589, %v1596
          %v1599 = vunpack.c.l.s4 1934713408
          %v1600 = vunpack.c.0.s8 %v1599
          %v1601 = vlaneseq
          %v1602 = vshrl.u32 %v1601, 7
          %v1603 = vsub.s32 %v1600, %v1602
          %v1604 = vrot.slane %v1590, %v1603
          %v1605 = vcombine.low %v1580, %v1588
          %v1606 = vcombine.high %v1580, %v1588
          %v1608 = vunpack.c.l.s4 1934713408
          %v1609 = vunpack.c.0.s8 %v1608
          %v1610 = vlaneseq
          %v1611 = vshrl.u32 %v1610, 7
          %v1612 = vsub.s32 %v1609, %v1611
          %v1613 = vrot.slane %v1605, %v1612
          %v1615 = vunpack.c.l.s4 1934713408
          %v1616 = vunpack.c.0.s8 %v1615
          %v1617 = vlaneseq
          %v1618 = vshrl.u32 %v1617, 7
          %v1619 = vsub.s32 %v1616, %v1618
          %v1620 = vrot.slane %v1606, %v1619
          %v1621 = vcombine.low %v1597, %v1613
          %v1622 = vcombine.high %v1597, %v1613
          %v1623 = vcombine.low %v1604, %v1620
          %v1624 = vcombine.high %v1604, %v1620
          %v1625 = vcombine.low %v1121, %v1128
          %v1627 = vunpack.c.l.s4 1983009808
          %v1628 = vunpack.c.0.s8 %v1627
          %v1629 = vlaneseq
          %v1630 = vshrl.u32 %v1629, 7
          %v1631 = vsub.s32 %v1628, %v1630
          %v1632 = vrot.slane %v1625, %v1631
          %v1633 = vcombine.low %v1145, %v1146
          %v1635 = vunpack.c.l.s4 1983009808
          %v1636 = vunpack.c.0.s8 %v1635
          %v1637 = vlaneseq
          %v1638 = vshrl.u32 %v1637, 7
          %v1639 = vsub.s32 %v1636, %v1638
          %v1640 = vrot.slane %v1633, %v1639
          %v1641 = vcombine.low %v1137, %v1144
          %v1643 = vunpack.c.l.s4 1983009808
          %v1644 = vunpack.c.0.s8 %v1643
          %v1645 = vlaneseq
          %v1646 = vshrl.u32 %v1645, 7
          %v1647 = vsub.s32 %v1644, %v1646
          %v1648 = vrot.slane %v1641, %v1647
          %v1649 = vcombine.low %v1147, %v1148
          %v1651 = vunpack.c.l.s4 1983009808
          %v1652 = vunpack.c.0.s8 %v1651
          %v1653 = vlaneseq
          %v1654 = vshrl.u32 %v1653, 7
          %v1655 = vsub.s32 %v1652, %v1654
          %v1656 = vrot.slane %v1649, %v1655
          %v1657 = vcombine.low %v1632, %v1640
          %v1658 = vcombine.high %v1632, %v1640
          %v1660 = vunpack.c.l.s4 1934713408
          %v1661 = vunpack.c.0.s8 %v1660
          %v1662 = vlaneseq
          %v1663 = vshrl.u32 %v1662, 7
          %v1664 = vsub.s32 %v1661, %v1663
          %v1665 = vrot.slane %v1657, %v1664
          %v1667 = vunpack.c.l.s4 1934713408
          %v1668 = vunpack.c.0.s8 %v1667
          %v1669 = vlaneseq
          %v1670 = vshrl.u32 %v1669, 7
          %v1671 = vsub.s32 %v1668, %v1670
          %v1672 = vrot.slane %v1658, %v1671
          %v1673 = vcombine.low %v1648, %v1656
          %v1674 = vcombine.high %v1648, %v1656
          %v1676 = vunpack.c.l.s4 1934713408
          %v1677 = vunpack.c.0.s8 %v1676
          %v1678 = vlaneseq
          %v1679 = vshrl.u32 %v1678, 7
          %v1680 = vsub.s32 %v1677, %v1679
          %v1681 = vrot.slane %v1673, %v1680
          %v1683 = vunpack.c.l.s4 1934713408
          %v1684 = vunpack.c.0.s8 %v1683
          %v1685 = vlaneseq
          %v1686 = vshrl.u32 %v1685, 7
          %v1687 = vsub.s32 %v1684, %v1686
          %v1688 = vrot.slane %v1674, %v1687
          %v1689 = vcombine.low %v1665, %v1681
          %v1690 = vcombine.high %v1665, %v1681
          %v1691 = vcombine.low %v1672, %v1688
          %v1692 = vcombine.high %v1672, %v1688
          %v1693 = vcombine.low %v1189, %v1196
          %v1695 = vunpack.c.l.s4 1983009808
          %v1696 = vunpack.c.0.s8 %v1695
          %v1697 = vlaneseq
          %v1698 = vshrl.u32 %v1697, 7
          %v1699 = vsub.s32 %v1696, %v1698
          %v1700 = vrot.slane %v1693, %v1699
          %v1701 = vcombine.low %v1213, %v1214
          %v1703 = vunpack.c.l.s4 1983009808
          %v1704 = vunpack.c.0.s8 %v1703
          %v1705 = vlaneseq
          %v1706 = vshrl.u32 %v1705, 7
          %v1707 = vsub.s32 %v1704, %v1706
          %v1708 = vrot.slane %v1701, %v1707
          %v1709 = vcombine.low %v1205, %v1212
          %v1711 = vunpack.c.l.s4 1983009808
          %v1712 = vunpack.c.0.s8 %v1711
          %v1713 = vlaneseq
          %v1714 = vshrl.u32 %v1713, 7
          %v1715 = vsub.s32 %v1712, %v1714
          %v1716 = vrot.slane %v1709, %v1715
          %v1717 = vcombine.low %v1215, %v1216
          %v1719 = vunpack.c.l.s4 1983009808
          %v1720 = vunpack.c.0.s8 %v1719
          %v1721 = vlaneseq
          %v1722 = vshrl.u32 %v1721, 7
          %v1723 = vsub.s32 %v1720, %v1722
          %v1724 = vrot.slane %v1717, %v1723
          %v1725 = vcombine.low %v1700, %v1708
          %v1726 = vcombine.high %v1700, %v1708
          %v1728 = vunpack.c.l.s4 1934713408
          %v1729 = vunpack.c.0.s8 %v1728
          %v1730 = vlaneseq
          %v1731 = vshrl.u32 %v1730, 7
          %v1732 = vsub.s32 %v1729, %v1731
          %v1733 = vrot.slane %v1725, %v1732
          %v1735 = vunpack.c.l.s4 1934713408
          %v1736 = vunpack.c.0.s8 %v1735
          %v1737 = vlaneseq
          %v1738 = vshrl.u32 %v1737, 7
          %v1739 = vsub.s32 %v1736, %v1738
          %v1740 = vrot.slane %v1726, %v1739
          %v1741 = vcombine.low %v1716, %v1724
          %v1742 = vcombine.high %v1716, %v1724
          %v1744 = vunpack.c.l.s4 1934713408
          %v1745 = vunpack.c.0.s8 %v1744
          %v1746 = vlaneseq
          %v1747 = vshrl.u32 %v1746, 7
          %v1748 = vsub.s32 %v1745, %v1747
          %v1749 = vrot.slane %v1741, %v1748
          %v1751 = vunpack.c.l.s4 1934713408
          %v1752 = vunpack.c.0.s8 %v1751
          %v1753 = vlaneseq
          %v1754 = vshrl.u32 %v1753, 7
          %v1755 = vsub.s32 %v1752, %v1754
          %v1756 = vrot.slane %v1742, %v1755
          %v1757 = vcombine.low %v1733, %v1749
          %v1758 = vcombine.high %v1733, %v1749
          %v1759 = vcombine.low %v1740, %v1756
          %v1760 = vcombine.high %v1740, %v1756
          %v1761 = vcombine.low %v1257, %v1264
          %v1763 = vunpack.c.l.s4 1983009808
          %v1764 = vunpack.c.0.s8 %v1763
          %v1765 = vlaneseq
          %v1766 = vshrl.u32 %v1765, 7
          %v1767 = vsub.s32 %v1764, %v1766
          %v1768 = vrot.slane %v1761, %v1767
          %v1769 = vcombine.low %v1281, %v1282
          %v1771 = vunpack.c.l.s4 1983009808
          %v1772 = vunpack.c.0.s8 %v1771
          %v1773 = vlaneseq
          %v1774 = vshrl.u32 %v1773, 7
          %v1775 = vsub.s32 %v1772, %v1774
          %v1776 = vrot.slane %v1769, %v1775
          %v1777 = vcombine.low %v1273, %v1280
          %v1779 = vunpack.c.l.s4 1983009808
          %v1780 = vunpack.c.0.s8 %v1779
          %v1781 = vlaneseq
          %v1782 = vshrl.u32 %v1781, 7
          %v1783 = vsub.s32 %v1780, %v1782
          %v1784 = vrot.slane %v1777, %v1783
          %v1785 = vcombine.low %v1283, %v1284
          %v1787 = vunpack.c.l.s4 1983009808
          %v1788 = vunpack.c.0.s8 %v1787
          %v1789 = vlaneseq
          %v1790 = vshrl.u32 %v1789, 7
          %v1791 = vsub.s32 %v1788, %v1790
          %v1792 = vrot.slane %v1785, %v1791
          %v1793 = vcombine.low %v1768, %v1776
          %v1794 = vcombine.high %v1768, %v1776
          %v1796 = vunpack.c.l.s4 1934713408
          %v1797 = vunpack.c.0.s8 %v1796
          %v1798 = vlaneseq
          %v1799 = vshrl.u32 %v1798, 7
          %v1800 = vsub.s32 %v1797, %v1799
          %v1801 = vrot.slane %v1793, %v1800
          %v1803 = vunpack.c.l.s4 1934713408
          %v1804 = vunpack.c.0.s8 %v1803
          %v1805 = vlaneseq
          %v1806 = vshrl.u32 %v1805, 7
          %v1807 = vsub.s32 %v1804, %v1806
          %v1808 = vrot.slane %v1794, %v1807
          %v1809 = vcombine.low %v1784, %v1792
          %v1810 = vcombine.high %v1784, %v1792
          %v1812 = vunpack.c.l.s4 1934713408
          %v1813 = vunpack.c.0.s8 %v1812
          %v1814 = vlaneseq
          %v1815 = vshrl.u32 %v1814, 7
          %v1816 = vsub.s32 %v1813, %v1815
          %v1817 = vrot.slane %v1809, %v1816
          %v1819 = vunpack.c.l.s4 1934713408
          %v1820 = vunpack.c.0.s8 %v1819
          %v1821 = vlaneseq
          %v1822 = vshrl.u32 %v1821, 7
          %v1823 = vsub.s32 %v1820, %v1822
          %v1824 = vrot.slane %v1810, %v1823
          %v1825 = vcombine.low %v1801, %v1817
          %v1826 = vcombine.high %v1801, %v1817
          %v1827 = vcombine.low %v1808, %v1824
          %v1828 = vcombine.high %v1808, %v1824
          %v1829 = vcombine.low %v1325, %v1332
          %v1831 = vunpack.c.l.s4 1983009808
          %v1832 = vunpack.c.0.s8 %v1831
          %v1833 = vlaneseq
          %v1834 = vshrl.u32 %v1833, 7
          %v1835 = vsub.s32 %v1832, %v1834
          %v1836 = vrot.slane %v1829, %v1835
          %v1837 = vcombine.low %v1349, %v1350
          %v1839 = vunpack.c.l.s4 1983009808
          %v1840 = vunpack.c.0.s8 %v1839
          %v1841 = vlaneseq
          %v1842 = vshrl.u32 %v1841, 7
          %v1843 = vsub.s32 %v1840, %v1842
          %v1844 = vrot.slane %v1837, %v1843
          %v1845 = vcombine.low %v1341, %v1348
          %v1847 = vunpack.c.l.s4 1983009808
          %v1848 = vunpack.c.0.s8 %v1847
          %v1849 = vlaneseq
          %v1850 = vshrl.u32 %v1849, 7
          %v1851 = vsub.s32 %v1848, %v1850
          %v1852 = vrot.slane %v1845, %v1851
          %v1853 = vcombine.low %v1351, %v1352
          %v1855 = vunpack.c.l.s4 1983009808
          %v1856 = vunpack.c.0.s8 %v1855
          %v1857 = vlaneseq
          %v1858 = vshrl.u32 %v1857, 7
          %v1859 = vsub.s32 %v1856, %v1858
          %v1860 = vrot.slane %v1853, %v1859
          %v1861 = vcombine.low %v1836, %v1844
          %v1862 = vcombine.high %v1836, %v1844
          %v1864 = vunpack.c.l.s4 1934713408
          %v1865 = vunpack.c.0.s8 %v1864
          %v1866 = vlaneseq
          %v1867 = vshrl.u32 %v1866, 7
          %v1868 = vsub.s32 %v1865, %v1867
          %v1869 = vrot.slane %v1861, %v1868
          %v1871 = vunpack.c.l.s4 1934713408
          %v1872 = vunpack.c.0.s8 %v1871
          %v1873 = vlaneseq
          %v1874 = vshrl.u32 %v1873, 7
          %v1875 = vsub.s32 %v1872, %v1874
          %v1876 = vrot.slane %v1862, %v1875
          %v1877 = vcombine.low %v1852, %v1860
          %v1878 = vcombine.high %v1852, %v1860
          %v1880 = vunpack.c.l.s4 1934713408
          %v1881 = vunpack.c.0.s8 %v1880
          %v1882 = vlaneseq
          %v1883 = vshrl.u32 %v1882, 7
          %v1884 = vsub.s32 %v1881, %v1883
          %v1885 = vrot.slane %v1877, %v1884
          %v1887 = vunpack.c.l.s4 1934713408
          %v1888 = vunpack.c.0.s8 %v1887
          %v1889 = vlaneseq
          %v1890 = vshrl.u32 %v1889, 7
          %v1891 = vsub.s32 %v1888, %v1890
          %v1892 = vrot.slane %v1878, %v1891
          %v1893 = vcombine.low %v1869, %v1885
          %v1894 = vcombine.high %v1869, %v1885
          %v1895 = vcombine.low %v1876, %v1892
          %v1896 = vcombine.high %v1876, %v1892
          %v1897 = vcombine.low %v1393, %v1400
          %v1899 = vunpack.c.l.s4 1983009808
          %v1900 = vunpack.c.0.s8 %v1899
          %v1901 = vlaneseq
          %v1902 = vshrl.u32 %v1901, 7
          %v1903 = vsub.s32 %v1900, %v1902
          %v1904 = vrot.slane %v1897, %v1903
          %v1905 = vcombine.low %v1417, %v1418
          %v1907 = vunpack.c.l.s4 1983009808
          %v1908 = vunpack.c.0.s8 %v1907
          %v1909 = vlaneseq
          %v1910 = vshrl.u32 %v1909, 7
          %v1911 = vsub.s32 %v1908, %v1910
          %v1912 = vrot.slane %v1905, %v1911
          %v1913 = vcombine.low %v1409, %v1416
          %v1915 = vunpack.c.l.s4 1983009808
          %v1916 = vunpack.c.0.s8 %v1915
          %v1917 = vlaneseq
          %v1918 = vshrl.u32 %v1917, 7
          %v1919 = vsub.s32 %v1916, %v1918
          %v1920 = vrot.slane %v1913, %v1919
          %v1921 = vcombine.low %v1419, %v1420
          %v1923 = vunpack.c.l.s4 1983009808
          %v1924 = vunpack.c.0.s8 %v1923
          %v1925 = vlaneseq
          %v1926 = vshrl.u32 %v1925, 7
          %v1927 = vsub.s32 %v1924, %v1926
          %v1928 = vrot.slane %v1921, %v1927
          %v1929 = vcombine.low %v1904, %v1912
          %v1930 = vcombine.high %v1904, %v1912
          %v1932 = vunpack.c.l.s4 1934713408
          %v1933 = vunpack.c.0.s8 %v1932
          %v1934 = vlaneseq
          %v1935 = vshrl.u32 %v1934, 7
          %v1936 = vsub.s32 %v1933, %v1935
          %v1937 = vrot.slane %v1929, %v1936
          %v1939 = vunpack.c.l.s4 1934713408
          %v1940 = vunpack.c.0.s8 %v1939
          %v1941 = vlaneseq
          %v1942 = vshrl.u32 %v1941, 7
          %v1943 = vsub.s32 %v1940, %v1942
          %v1944 = vrot.slane %v1930, %v1943
          %v1945 = vcombine.low %v1920, %v1928
          %v1946 = vcombine.high %v1920, %v1928
          %v1948 = vunpack.c.l.s4 1934713408
          %v1949 = vunpack.c.0.s8 %v1948
          %v1950 = vlaneseq
          %v1951 = vshrl.u32 %v1950, 7
          %v1952 = vsub.s32 %v1949, %v1951
          %v1953 = vrot.slane %v1945, %v1952
          %v1955 = vunpack.c.l.s4 1934713408
          %v1956 = vunpack.c.0.s8 %v1955
          %v1957 = vlaneseq
          %v1958 = vshrl.u32 %v1957, 7
          %v1959 = vsub.s32 %v1956, %v1958
          %v1960 = vrot.slane %v1946, %v1959
          %v1961 = vcombine.low %v1937, %v1953
          %v1962 = vcombine.high %v1937, %v1953
          %v1963 = vcombine.low %v1944, %v1960
          %v1964 = vcombine.high %v1944, %v1960
          %v1965 = vcombine.low %v1461, %v1468
          %v1967 = vunpack.c.l.s4 1983009808
          %v1968 = vunpack.c.0.s8 %v1967
          %v1969 = vlaneseq
          %v1970 = vshrl.u32 %v1969, 7
          %v1971 = vsub.s32 %v1968, %v1970
          %v1972 = vrot.slane %v1965, %v1971
          %v1973 = vcombine.low %v1485, %v1486
          %v1975 = vunpack.c.l.s4 1983009808
          %v1976 = vunpack.c.0.s8 %v1975
          %v1977 = vlaneseq
          %v1978 = vshrl.u32 %v1977, 7
          %v1979 = vsub.s32 %v1976, %v1978
          %v1980 = vrot.slane %v1973, %v1979
          %v1981 = vcombine.low %v1477, %v1484
          %v1983 = vunpack.c.l.s4 1983009808
          %v1984 = vunpack.c.0.s8 %v1983
          %v1985 = vlaneseq
          %v1986 = vshrl.u32 %v1985, 7
          %v1987 = vsub.s32 %v1984, %v1986
          %v1988 = vrot.slane %v1981, %v1987
          %v1989 = vcombine.low %v1487, %v1488
          %v1991 = vunpack.c.l.s4 1983009808
          %v1992 = vunpack.c.0.s8 %v1991
          %v1993 = vlaneseq
          %v1994 = vshrl.u32 %v1993, 7
          %v1995 = vsub.s32 %v1992, %v1994
          %v1996 = vrot.slane %v1989, %v1995
          %v1997 = vcombine.low %v1972, %v1980
          %v1998 = vcombine.high %v1972, %v1980
          %v2000 = vunpack.c.l.s4 1934713408
          %v2001 = vunpack.c.0.s8 %v2000
          %v2002 = vlaneseq
          %v2003 = vshrl.u32 %v2002, 7
          %v2004 = vsub.s32 %v2001, %v2003
          %v2005 = vrot.slane %v1997, %v2004
          %v2007 = vunpack.c.l.s4 1934713408
          %v2008 = vunpack.c.0.s8 %v2007
          %v2009 = vlaneseq
          %v2010 = vshrl.u32 %v2009, 7
          %v2011 = vsub.s32 %v2008, %v2010
          %v2012 = vrot.slane %v1998, %v2011
          %v2013 = vcombine.low %v1988, %v1996
          %v2014 = vcombine.high %v1988, %v1996
          %v2016 = vunpack.c.l.s4 1934713408
          %v2017 = vunpack.c.0.s8 %v2016
          %v2018 = vlaneseq
          %v2019 = vshrl.u32 %v2018, 7
          %v2020 = vsub.s32 %v2017, %v2019
          %v2021 = vrot.slane %v2013, %v2020
          %v2023 = vunpack.c.l.s4 1934713408
          %v2024 = vunpack.c.0.s8 %v2023
          %v2025 = vlaneseq
          %v2026 = vshrl.u32 %v2025, 7
          %v2027 = vsub.s32 %v2024, %v2026
          %v2028 = vrot.slane %v2014, %v2027
          %v2029 = vcombine.low %v2005, %v2021
          %v2030 = vcombine.high %v2005, %v2021
          %v2031 = vcombine.low %v2012, %v2028
          %v2032 = vcombine.high %v2012, %v2028
          %v2033 = vcombine.low %v1529, %v1536
          %v2035 = vunpack.c.l.s4 1983009808
          %v2036 = vunpack.c.0.s8 %v2035
          %v2037 = vlaneseq
          %v2038 = vshrl.u32 %v2037, 7
          %v2039 = vsub.s32 %v2036, %v2038
          %v2040 = vrot.slane %v2033, %v2039
          %v2041 = vcombine.low %v1553, %v1554
          %v2043 = vunpack.c.l.s4 1983009808
          %v2044 = vunpack.c.0.s8 %v2043
          %v2045 = vlaneseq
          %v2046 = vshrl.u32 %v2045, 7
          %v2047 = vsub.s32 %v2044, %v2046
          %v2048 = vrot.slane %v2041, %v2047
          %v2049 = vcombine.low %v1545, %v1552
          %v2051 = vunpack.c.l.s4 1983009808
          %v2052 = vunpack.c.0.s8 %v2051
          %v2053 = vlaneseq
          %v2054 = vshrl.u32 %v2053, 7
          %v2055 = vsub.s32 %v2052, %v2054
          %v2056 = vrot.slane %v2049, %v2055
          %v2057 = vcombine.low %v1555, %v1556
          %v2059 = vunpack.c.l.s4 1983009808
          %v2060 = vunpack.c.0.s8 %v2059
          %v2061 = vlaneseq
          %v2062 = vshrl.u32 %v2061, 7
          %v2063 = vsub.s32 %v2060, %v2062
          %v2064 = vrot.slane %v2057, %v2063
          %v2065 = vcombine.low %v2040, %v2048
          %v2066 = vcombine.high %v2040, %v2048
          %v2068 = vunpack.c.l.s4 1934713408
          %v2069 = vunpack.c.0.s8 %v2068
          %v2070 = vlaneseq
          %v2071 = vshrl.u32 %v2070, 7
          %v2072 = vsub.s32 %v2069, %v2071
          %v2073 = vrot.slane %v2065, %v2072
          %v2075 = vunpack.c.l.s4 1934713408
          %v2076 = vunpack.c.0.s8 %v2075
          %v2077 = vlaneseq
          %v2078 = vshrl.u32 %v2077, 7
          %v2079 = vsub.s32 %v2076, %v2078
          %v2080 = vrot.slane %v2066, %v2079
          %v2081 = vcombine.low %v2056, %v2064
          %v2082 = vcombine.high %v2056, %v2064
          %v2084 = vunpack.c.l.s4 1934713408
          %v2085 = vunpack.c.0.s8 %v2084
          %v2086 = vlaneseq
          %v2087 = vshrl.u32 %v2086, 7
          %v2088 = vsub.s32 %v2085, %v2087
          %v2089 = vrot.slane %v2081, %v2088
          %v2091 = vunpack.c.l.s4 1934713408
          %v2092 = vunpack.c.0.s8 %v2091
          %v2093 = vlaneseq
          %v2094 = vshrl.u32 %v2093, 7
          %v2095 = vsub.s32 %v2092, %v2094
          %v2096 = vrot.slane %v2082, %v2095
          %v2097 = vcombine.low %v2073, %v2089
          %v2098 = vcombine.high %v2073, %v2089
          %v2099 = vcombine.low %v2080, %v2096
          %v2100 = vcombine.high %v2080, %v2096
          %v2101 = vpack.c.bf16 %v1689, %v1621
          %v2102 = vpack.c.bf16 %v1825, %v1757
          %v2103 = vpack.c.bf16 %v1961, %v1893
          %v2104 = vpack.c.bf16 %v2097, %v2029
          %v2105 = vpack.c.bf16 %v1690, %v1622
          %v2106 = vpack.c.bf16 %v1826, %v1758
          %v2107 = vpack.c.bf16 %v1962, %v1894
          %v2108 = vpack.c.bf16 %v2098, %v2030
          %v2109 = vpack.c.bf16 %v1691, %v1623
          %v2110 = vpack.c.bf16 %v1827, %v1759
          %v2111 = vpack.c.bf16 %v1963, %v1895
          %v2112 = vpack.c.bf16 %v2099, %v2031
          %v2113 = vpack.c.bf16 %v1692, %v1624
          %v2114 = vpack.c.bf16 %v1828, %v1760
          %v2115 = vpack.c.bf16 %v1964, %v1896
          %v2116 = vpack.c.bf16 %v2100, %v2032
          %v2133 = vunpack.c.l.b16 %v2101
          %v2134 = vunpack.c.h.b16 %v2101
          %v2135 = vunpack.c.l.b16 %v2102
          %v2136 = vunpack.c.h.b16 %v2102
          %v2137 = vunpack.c.l.b16 %v2103
          %v2138 = vunpack.c.h.b16 %v2103
          %v2139 = vunpack.c.l.b16 %v2104
          %v2140 = vunpack.c.h.b16 %v2104
          %v2141 = vunpack.c.l.b16 %v2105
          %v2142 = vunpack.c.h.b16 %v2105
          %v2143 = vunpack.c.l.b16 %v2106
          %v2144 = vunpack.c.h.b16 %v2106
          %v2145 = vunpack.c.l.b16 %v2107
          %v2146 = vunpack.c.h.b16 %v2107
          %v2147 = vunpack.c.l.b16 %v2108
          %v2148 = vunpack.c.h.b16 %v2108
          %v2149 = vunpack.c.l.b16 %v2109
          %v2150 = vunpack.c.h.b16 %v2109
          %v2151 = vunpack.c.l.b16 %v2110
          %v2152 = vunpack.c.h.b16 %v2110
          %v2153 = vunpack.c.l.b16 %v2111
          %v2154 = vunpack.c.h.b16 %v2111
          %v2155 = vunpack.c.l.b16 %v2112
          %v2156 = vunpack.c.h.b16 %v2112
          %v2157 = vunpack.c.l.b16 %v2113
          %v2158 = vunpack.c.h.b16 %v2113
          %v2159 = vunpack.c.l.b16 %v2114
          %v2160 = vunpack.c.h.b16 %v2114
          %v2161 = vunpack.c.l.b16 %v2115
          %v2162 = vunpack.c.h.b16 %v2115
          %v2163 = vunpack.c.l.b16 %v2116
          %v2164 = vunpack.c.h.b16 %v2116
          %v2165 = vpack.c.b16 %v2133, %v2133
          %v2166 = vpack.c.b16 %v2134, %v2134
          %v2167 = vpack.c.b16 %v2135, %v2135
          %v2168 = vpack.c.b16 %v2136, %v2136
          %v2169 = vpack.c.b16 %v2137, %v2137
          %v2170 = vpack.c.b16 %v2138, %v2138
          %v2171 = vpack.c.b16 %v2139, %v2139
          %v2172 = vpack.c.b16 %v2140, %v2140
          %v2173 = vpack.c.b16 %v2141, %v2141
          %v2174 = vpack.c.b16 %v2142, %v2142
          %v2175 = vpack.c.b16 %v2143, %v2143
          %v2176 = vpack.c.b16 %v2144, %v2144
          %v2177 = vpack.c.b16 %v2145, %v2145
          %v2178 = vpack.c.b16 %v2146, %v2146
          %v2179 = vpack.c.b16 %v2147, %v2147
          %v2180 = vpack.c.b16 %v2148, %v2148
          %v2181 = vpack.c.b16 %v2149, %v2149
          %v2182 = vpack.c.b16 %v2150, %v2150
          %v2183 = vpack.c.b16 %v2151, %v2151
          %v2184 = vpack.c.b16 %v2152, %v2152
          %v2185 = vpack.c.b16 %v2153, %v2153
          %v2186 = vpack.c.b16 %v2154, %v2154
          %v2187 = vpack.c.b16 %v2155, %v2155
          %v2188 = vpack.c.b16 %v2156, %v2156
          %v2189 = vpack.c.b16 %v2157, %v2157
          %v2190 = vpack.c.b16 %v2158, %v2158
          %v2191 = vpack.c.b16 %v2159, %v2159
          %v2192 = vpack.c.b16 %v2160, %v2160
          %v2193 = vpack.c.b16 %v2161, %v2161
          %v2194 = vpack.c.b16 %v2162, %v2162
          %v2195 = vpack.c.b16 %v2163, %v2163
          %v2196 = vpack.c.b16 %v2164, %v2164
          %vm2229 = vcmask 257024
          %2230 = vst.msk [vmem:[#allocation2] sm:$0xf] %vm2229, %v2165
          %2231 = vst.msk [vmem:[#allocation2 + $0x4] sm:$0xf] %vm2229, %v2166
          %2232 = vst.msk [vmem:[#allocation2 + $0x8] sm:$0xf] %vm2229, %v2167
          %2233 = vst.msk [vmem:[#allocation2 + $0xc] sm:$0xf] %vm2229, %v2168
          %2234 = vst.msk [vmem:[#allocation2 + $0x10] sm:$0xf] %vm2229, %v2169
          %2235 = vst.msk [vmem:[#allocation2 + $0x14] sm:$0xf] %vm2229, %v2170
          %2236 = vst.msk [vmem:[#allocation2 + $0x18] sm:$0xf] %vm2229, %v2171
          %2237 = vst.msk [vmem:[#allocation2 + $0x1c] sm:$0xf] %vm2229, %v2172
          %2238 = vst.msk [vmem:[#allocation2 + $0x20] sm:$0xf] %vm2229, %v2173
          %2239 = vst.msk [vmem:[#allocation2 + $0x24] sm:$0xf] %vm2229, %v2174
          %2240 = vst.msk [vmem:[#allocation2 + $0x28] sm:$0xf] %vm2229, %v2175
          %2241 = vst.msk [vmem:[#allocation2 + $0x2c] sm:$0xf] %vm2229, %v2176
          %2242 = vst.msk [vmem:[#allocation2 + $0x30] sm:$0xf] %vm2229, %v2177
          %2243 = vst.msk [vmem:[#allocation2 + $0x34] sm:$0xf] %vm2229, %v2178
          %2244 = vst.msk [vmem:[#allocation2 + $0x38] sm:$0xf] %vm2229, %v2179
          %2245 = vst.msk [vmem:[#allocation2 + $0x3c] sm:$0xf] %vm2229, %v2180
          %2246 = vst.msk [vmem:[#allocation2 + $0x40] sm:$0xf] %vm2229, %v2181
          %2247 = vst.msk [vmem:[#allocation2 + $0x44] sm:$0xf] %vm2229, %v2182
          %2248 = vst.msk [vmem:[#allocation2 + $0x48] sm:$0xf] %vm2229, %v2183
          %2249 = vst.msk [vmem:[#allocation2 + $0x4c] sm:$0xf] %vm2229, %v2184
          %2250 = vst.msk [vmem:[#allocation2 + $0x50] sm:$0xf] %vm2229, %v2185
          %2251 = vst.msk [vmem:[#allocation2 + $0x54] sm:$0xf] %vm2229, %v2186
          %2252 = vst.msk [vmem:[#allocation2 + $0x58] sm:$0xf] %vm2229, %v2187
          %2253 = vst.msk [vmem:[#allocation2 + $0x5c] sm:$0xf] %vm2229, %v2188
          %2254 = vst.msk [vmem:[#allocation2 + $0x60] sm:$0xf] %vm2229, %v2189
          %2255 = vst.msk [vmem:[#allocation2 + $0x64] sm:$0xf] %vm2229, %v2190
          %2256 = vst.msk [vmem:[#allocation2 + $0x68] sm:$0xf] %vm2229, %v2191
          %2257 = vst.msk [vmem:[#allocation2 + $0x6c] sm:$0xf] %vm2229, %v2192
          %2258 = vst.msk [vmem:[#allocation2 + $0x70] sm:$0xf] %vm2229, %v2193
          %2259 = vst.msk [vmem:[#allocation2 + $0x74] sm:$0xf] %vm2229, %v2194
          %2260 = vst.msk [vmem:[#allocation2 + $0x78] sm:$0xf] %vm2229, %v2195
          %2261 = vst.msk [vmem:[#allocation2 + $0x7c] sm:$0xf] %vm2229, %v2196
          %2270 = vrot.lane.b32.xlu0 %v903, 96
          %v2271 = vpop.permute.xlu0 %2270
          %2272 = vrot.lane.b32.xlu0 %v906, 96
          %v2273 = vpop.permute.xlu0 %2272
          %2274 = vrot.lane.b32.xlu0 %v911, 96
          %v2275 = vpop.permute.xlu0 %2274
          %2276 = vrot.lane.b32.xlu0 %v914, 96
          %v2277 = vpop.permute.xlu0 %2276
          %2278 = vrot.lane.b32.xlu0 %v919, 96
          %v2279 = vpop.permute.xlu0 %2278
          %2280 = vrot.lane.b32.xlu0 %v922, 96
          %v2281 = vpop.permute.xlu0 %2280
          %2282 = vrot.lane.b32.xlu0 %v927, 96
          %v2283 = vpop.permute.xlu0 %2282
          %2284 = vrot.lane.b32.xlu0 %v930, 96
          %v2285 = vpop.permute.xlu0 %2284
          %2294 = vrot.lane.b32.xlu0 %v903, 64
          %v2295 = vpop.permute.xlu0 %2294
          %2296 = vrot.lane.b32.xlu0 %v906, 64
          %v2297 = vpop.permute.xlu0 %2296
          %2298 = vrot.lane.b32.xlu0 %v911, 64
          %v2299 = vpop.permute.xlu0 %2298
          %2300 = vrot.lane.b32.xlu0 %v914, 64
          %v2301 = vpop.permute.xlu0 %2300
          %2302 = vrot.lane.b32.xlu0 %v919, 64
          %v2303 = vpop.permute.xlu0 %2302
          %2304 = vrot.lane.b32.xlu0 %v922, 64
          %v2305 = vpop.permute.xlu0 %2304
          %2306 = vrot.lane.b32.xlu0 %v927, 64
          %v2307 = vpop.permute.xlu0 %2306
          %2308 = vrot.lane.b32.xlu0 %v930, 64
          %v2309 = vpop.permute.xlu0 %2308
          %2318 = vrot.lane.b32.xlu0 %v903, 32
          %v2319 = vpop.permute.xlu0 %2318
          %2320 = vrot.lane.b32.xlu0 %v906, 32
          %v2321 = vpop.permute.xlu0 %2320
          %2322 = vrot.lane.b32.xlu0 %v911, 32
          %v2323 = vpop.permute.xlu0 %2322
          %2324 = vrot.lane.b32.xlu0 %v914, 32
          %v2325 = vpop.permute.xlu0 %2324
          %2326 = vrot.lane.b32.xlu0 %v919, 32
          %v2327 = vpop.permute.xlu0 %2326
          %2328 = vrot.lane.b32.xlu0 %v922, 32
          %v2329 = vpop.permute.xlu0 %2328
          %2330 = vrot.lane.b32.xlu0 %v927, 32
          %v2331 = vpop.permute.xlu0 %2330
          %2332 = vrot.lane.b32.xlu0 %v930, 32
          %v2333 = vpop.permute.xlu0 %2332
          %v2342 = vcombine.low %v903, %v2295
          %v2343 = vcombine.high %v903, %v2295
          %v2345 = vunpack.c.l.s4 1983009808
          %v2346 = vunpack.c.0.s8 %v2345
          %v2347 = vlaneseq
          %v2348 = vshrl.u32 %v2347, 7
          %v2349 = vsub.s32 %v2346, %v2348
          %v2350 = vrot.slane %v2342, %v2349
          %v2352 = vunpack.c.l.s4 1983009808
          %v2353 = vunpack.c.0.s8 %v2352
          %v2354 = vlaneseq
          %v2355 = vshrl.u32 %v2354, 7
          %v2356 = vsub.s32 %v2353, %v2355
          %v2357 = vrot.slane %v2343, %v2356
          %v2358 = vcombine.low %v2271, %v2319
          %v2359 = vcombine.high %v2271, %v2319
          %v2361 = vunpack.c.l.s4 1983009808
          %v2362 = vunpack.c.0.s8 %v2361
          %v2363 = vlaneseq
          %v2364 = vshrl.u32 %v2363, 7
          %v2365 = vsub.s32 %v2362, %v2364
          %v2366 = vrot.slane %v2358, %v2365
          %v2368 = vunpack.c.l.s4 1983009808
          %v2369 = vunpack.c.0.s8 %v2368
          %v2370 = vlaneseq
          %v2371 = vshrl.u32 %v2370, 7
          %v2372 = vsub.s32 %v2369, %v2371
          %v2373 = vrot.slane %v2359, %v2372
          %v2374 = vcombine.low %v2350, %v2366
          %v2375 = vcombine.high %v2350, %v2366
          %v2377 = vunpack.c.l.s4 1934713408
          %v2378 = vunpack.c.0.s8 %v2377
          %v2379 = vlaneseq
          %v2380 = vshrl.u32 %v2379, 7
          %v2381 = vsub.s32 %v2378, %v2380
          %v2382 = vrot.slane %v2374, %v2381
          %v2384 = vunpack.c.l.s4 1934713408
          %v2385 = vunpack.c.0.s8 %v2384
          %v2386 = vlaneseq
          %v2387 = vshrl.u32 %v2386, 7
          %v2388 = vsub.s32 %v2385, %v2387
          %v2389 = vrot.slane %v2375, %v2388
          %v2390 = vcombine.low %v2357, %v2373
          %v2391 = vcombine.high %v2357, %v2373
          %v2393 = vunpack.c.l.s4 1934713408
          %v2394 = vunpack.c.0.s8 %v2393
          %v2395 = vlaneseq
          %v2396 = vshrl.u32 %v2395, 7
          %v2397 = vsub.s32 %v2394, %v2396
          %v2398 = vrot.slane %v2390, %v2397
          %v2400 = vunpack.c.l.s4 1934713408
          %v2401 = vunpack.c.0.s8 %v2400
          %v2402 = vlaneseq
          %v2403 = vshrl.u32 %v2402, 7
          %v2404 = vsub.s32 %v2401, %v2403
          %v2405 = vrot.slane %v2391, %v2404
          %v2406 = vcombine.high %v2382, 0.0
          %v2407 = vcombine.high %v2389, 0.0
          %v2408 = vcombine.high %v2398, 0.0
          %v2409 = vcombine.high %v2405, 0.0
          %v2410 = vcombine.low %v906, %v2297
          %v2411 = vcombine.high %v906, %v2297
          %v2413 = vunpack.c.l.s4 1983009808
          %v2414 = vunpack.c.0.s8 %v2413
          %v2415 = vlaneseq
          %v2416 = vshrl.u32 %v2415, 7
          %v2417 = vsub.s32 %v2414, %v2416
          %v2418 = vrot.slane %v2410, %v2417
          %v2420 = vunpack.c.l.s4 1983009808
          %v2421 = vunpack.c.0.s8 %v2420
          %v2422 = vlaneseq
          %v2423 = vshrl.u32 %v2422, 7
          %v2424 = vsub.s32 %v2421, %v2423
          %v2425 = vrot.slane %v2411, %v2424
          %v2426 = vcombine.low %v2273, %v2321
          %v2427 = vcombine.high %v2273, %v2321
          %v2429 = vunpack.c.l.s4 1983009808
          %v2430 = vunpack.c.0.s8 %v2429
          %v2431 = vlaneseq
          %v2432 = vshrl.u32 %v2431, 7
          %v2433 = vsub.s32 %v2430, %v2432
          %v2434 = vrot.slane %v2426, %v2433
          %v2436 = vunpack.c.l.s4 1983009808
          %v2437 = vunpack.c.0.s8 %v2436
          %v2438 = vlaneseq
          %v2439 = vshrl.u32 %v2438, 7
          %v2440 = vsub.s32 %v2437, %v2439
          %v2441 = vrot.slane %v2427, %v2440
          %v2442 = vcombine.low %v2418, %v2434
          %v2443 = vcombine.high %v2418, %v2434
          %v2445 = vunpack.c.l.s4 1934713408
          %v2446 = vunpack.c.0.s8 %v2445
          %v2447 = vlaneseq
          %v2448 = vshrl.u32 %v2447, 7
          %v2449 = vsub.s32 %v2446, %v2448
          %v2450 = vrot.slane %v2442, %v2449
          %v2452 = vunpack.c.l.s4 1934713408
          %v2453 = vunpack.c.0.s8 %v2452
          %v2454 = vlaneseq
          %v2455 = vshrl.u32 %v2454, 7
          %v2456 = vsub.s32 %v2453, %v2455
          %v2457 = vrot.slane %v2443, %v2456
          %v2458 = vcombine.low %v2425, %v2441
          %v2459 = vcombine.high %v2425, %v2441
          %v2461 = vunpack.c.l.s4 1934713408
          %v2462 = vunpack.c.0.s8 %v2461
          %v2463 = vlaneseq
          %v2464 = vshrl.u32 %v2463, 7
          %v2465 = vsub.s32 %v2462, %v2464
          %v2466 = vrot.slane %v2458, %v2465
          %v2468 = vunpack.c.l.s4 1934713408
          %v2469 = vunpack.c.0.s8 %v2468
          %v2470 = vlaneseq
          %v2471 = vshrl.u32 %v2470, 7
          %v2472 = vsub.s32 %v2469, %v2471
          %v2473 = vrot.slane %v2459, %v2472
          %v2474 = vcombine.high %v2450, 0.0
          %v2475 = vcombine.high %v2457, 0.0
          %v2476 = vcombine.high %v2466, 0.0
          %v2477 = vcombine.high %v2473, 0.0
          %v2478 = vcombine.low %v911, %v2299
          %v2479 = vcombine.high %v911, %v2299
          %v2481 = vunpack.c.l.s4 1983009808
          %v2482 = vunpack.c.0.s8 %v2481
          %v2483 = vlaneseq
          %v2484 = vshrl.u32 %v2483, 7
          %v2485 = vsub.s32 %v2482, %v2484
          %v2486 = vrot.slane %v2478, %v2485
          %v2488 = vunpack.c.l.s4 1983009808
          %v2489 = vunpack.c.0.s8 %v2488
          %v2490 = vlaneseq
          %v2491 = vshrl.u32 %v2490, 7
          %v2492 = vsub.s32 %v2489, %v2491
          %v2493 = vrot.slane %v2479, %v2492
          %v2494 = vcombine.low %v2275, %v2323
          %v2495 = vcombine.high %v2275, %v2323
          %v2497 = vunpack.c.l.s4 1983009808
          %v2498 = vunpack.c.0.s8 %v2497
          %v2499 = vlaneseq
          %v2500 = vshrl.u32 %v2499, 7
          %v2501 = vsub.s32 %v2498, %v2500
          %v2502 = vrot.slane %v2494, %v2501
          %v2504 = vunpack.c.l.s4 1983009808
          %v2505 = vunpack.c.0.s8 %v2504
          %v2506 = vlaneseq
          %v2507 = vshrl.u32 %v2506, 7
          %v2508 = vsub.s32 %v2505, %v2507
          %v2509 = vrot.slane %v2495, %v2508
          %v2510 = vcombine.low %v2486, %v2502
          %v2511 = vcombine.high %v2486, %v2502
          %v2513 = vunpack.c.l.s4 1934713408
          %v2514 = vunpack.c.0.s8 %v2513
          %v2515 = vlaneseq
          %v2516 = vshrl.u32 %v2515, 7
          %v2517 = vsub.s32 %v2514, %v2516
          %v2518 = vrot.slane %v2510, %v2517
          %v2520 = vunpack.c.l.s4 1934713408
          %v2521 = vunpack.c.0.s8 %v2520
          %v2522 = vlaneseq
          %v2523 = vshrl.u32 %v2522, 7
          %v2524 = vsub.s32 %v2521, %v2523
          %v2525 = vrot.slane %v2511, %v2524
          %v2526 = vcombine.low %v2493, %v2509
          %v2527 = vcombine.high %v2493, %v2509
          %v2529 = vunpack.c.l.s4 1934713408
          %v2530 = vunpack.c.0.s8 %v2529
          %v2531 = vlaneseq
          %v2532 = vshrl.u32 %v2531, 7
          %v2533 = vsub.s32 %v2530, %v2532
          %v2534 = vrot.slane %v2526, %v2533
          %v2536 = vunpack.c.l.s4 1934713408
          %v2537 = vunpack.c.0.s8 %v2536
          %v2538 = vlaneseq
          %v2539 = vshrl.u32 %v2538, 7
          %v2540 = vsub.s32 %v2537, %v2539
          %v2541 = vrot.slane %v2527, %v2540
          %v2542 = vcombine.high %v2518, 0.0
          %v2543 = vcombine.high %v2525, 0.0
          %v2544 = vcombine.high %v2534, 0.0
          %v2545 = vcombine.high %v2541, 0.0
          %v2546 = vcombine.low %v914, %v2301
          %v2547 = vcombine.high %v914, %v2301
          %v2549 = vunpack.c.l.s4 1983009808
          %v2550 = vunpack.c.0.s8 %v2549
          %v2551 = vlaneseq
          %v2552 = vshrl.u32 %v2551, 7
          %v2553 = vsub.s32 %v2550, %v2552
          %v2554 = vrot.slane %v2546, %v2553
          %v2556 = vunpack.c.l.s4 1983009808
          %v2557 = vunpack.c.0.s8 %v2556
          %v2558 = vlaneseq
          %v2559 = vshrl.u32 %v2558, 7
          %v2560 = vsub.s32 %v2557, %v2559
          %v2561 = vrot.slane %v2547, %v2560
          %v2562 = vcombine.low %v2277, %v2325
          %v2563 = vcombine.high %v2277, %v2325
          %v2565 = vunpack.c.l.s4 1983009808
          %v2566 = vunpack.c.0.s8 %v2565
          %v2567 = vlaneseq
          %v2568 = vshrl.u32 %v2567, 7
          %v2569 = vsub.s32 %v2566, %v2568
          %v2570 = vrot.slane %v2562, %v2569
          %v2572 = vunpack.c.l.s4 1983009808
          %v2573 = vunpack.c.0.s8 %v2572
          %v2574 = vlaneseq
          %v2575 = vshrl.u32 %v2574, 7
          %v2576 = vsub.s32 %v2573, %v2575
          %v2577 = vrot.slane %v2563, %v2576
          %v2578 = vcombine.low %v2554, %v2570
          %v2579 = vcombine.high %v2554, %v2570
          %v2581 = vunpack.c.l.s4 1934713408
          %v2582 = vunpack.c.0.s8 %v2581
          %v2583 = vlaneseq
          %v2584 = vshrl.u32 %v2583, 7
          %v2585 = vsub.s32 %v2582, %v2584
          %v2586 = vrot.slane %v2578, %v2585
          %v2588 = vunpack.c.l.s4 1934713408
          %v2589 = vunpack.c.0.s8 %v2588
          %v2590 = vlaneseq
          %v2591 = vshrl.u32 %v2590, 7
          %v2592 = vsub.s32 %v2589, %v2591
          %v2593 = vrot.slane %v2579, %v2592
          %v2594 = vcombine.low %v2561, %v2577
          %v2595 = vcombine.high %v2561, %v2577
          %v2597 = vunpack.c.l.s4 1934713408
          %v2598 = vunpack.c.0.s8 %v2597
          %v2599 = vlaneseq
          %v2600 = vshrl.u32 %v2599, 7
          %v2601 = vsub.s32 %v2598, %v2600
          %v2602 = vrot.slane %v2594, %v2601
          %v2604 = vunpack.c.l.s4 1934713408
          %v2605 = vunpack.c.0.s8 %v2604
          %v2606 = vlaneseq
          %v2607 = vshrl.u32 %v2606, 7
          %v2608 = vsub.s32 %v2605, %v2607
          %v2609 = vrot.slane %v2595, %v2608
          %v2610 = vcombine.high %v2586, 0.0
          %v2611 = vcombine.high %v2593, 0.0
          %v2612 = vcombine.high %v2602, 0.0
          %v2613 = vcombine.high %v2609, 0.0
          %v2614 = vcombine.low %v919, %v2303
          %v2615 = vcombine.high %v919, %v2303
          %v2617 = vunpack.c.l.s4 1983009808
          %v2618 = vunpack.c.0.s8 %v2617
          %v2619 = vlaneseq
          %v2620 = vshrl.u32 %v2619, 7
          %v2621 = vsub.s32 %v2618, %v2620
          %v2622 = vrot.slane %v2614, %v2621
          %v2624 = vunpack.c.l.s4 1983009808
          %v2625 = vunpack.c.0.s8 %v2624
          %v2626 = vlaneseq
          %v2627 = vshrl.u32 %v2626, 7
          %v2628 = vsub.s32 %v2625, %v2627
          %v2629 = vrot.slane %v2615, %v2628
          %v2630 = vcombine.low %v2279, %v2327
          %v2631 = vcombine.high %v2279, %v2327
          %v2633 = vunpack.c.l.s4 1983009808
          %v2634 = vunpack.c.0.s8 %v2633
          %v2635 = vlaneseq
          %v2636 = vshrl.u32 %v2635, 7
          %v2637 = vsub.s32 %v2634, %v2636
          %v2638 = vrot.slane %v2630, %v2637
          %v2640 = vunpack.c.l.s4 1983009808
          %v2641 = vunpack.c.0.s8 %v2640
          %v2642 = vlaneseq
          %v2643 = vshrl.u32 %v2642, 7
          %v2644 = vsub.s32 %v2641, %v2643
          %v2645 = vrot.slane %v2631, %v2644
          %v2646 = vcombine.low %v2622, %v2638
          %v2647 = vcombine.high %v2622, %v2638
          %v2649 = vunpack.c.l.s4 1934713408
          %v2650 = vunpack.c.0.s8 %v2649
          %v2651 = vlaneseq
          %v2652 = vshrl.u32 %v2651, 7
          %v2653 = vsub.s32 %v2650, %v2652
          %v2654 = vrot.slane %v2646, %v2653
          %v2656 = vunpack.c.l.s4 1934713408
          %v2657 = vunpack.c.0.s8 %v2656
          %v2658 = vlaneseq
          %v2659 = vshrl.u32 %v2658, 7
          %v2660 = vsub.s32 %v2657, %v2659
          %v2661 = vrot.slane %v2647, %v2660
          %v2662 = vcombine.low %v2629, %v2645
          %v2663 = vcombine.high %v2629, %v2645
          %v2665 = vunpack.c.l.s4 1934713408
          %v2666 = vunpack.c.0.s8 %v2665
          %v2667 = vlaneseq
          %v2668 = vshrl.u32 %v2667, 7
          %v2669 = vsub.s32 %v2666, %v2668
          %v2670 = vrot.slane %v2662, %v2669
          %v2672 = vunpack.c.l.s4 1934713408
          %v2673 = vunpack.c.0.s8 %v2672
          %v2674 = vlaneseq
          %v2675 = vshrl.u32 %v2674, 7
          %v2676 = vsub.s32 %v2673, %v2675
          %v2677 = vrot.slane %v2663, %v2676
          %v2678 = vcombine.high %v2654, 0.0
          %v2679 = vcombine.high %v2661, 0.0
          %v2680 = vcombine.high %v2670, 0.0
          %v2681 = vcombine.high %v2677, 0.0
          %v2682 = vcombine.low %v922, %v2305
          %v2683 = vcombine.high %v922, %v2305
          %v2685 = vunpack.c.l.s4 1983009808
          %v2686 = vunpack.c.0.s8 %v2685
          %v2687 = vlaneseq
          %v2688 = vshrl.u32 %v2687, 7
          %v2689 = vsub.s32 %v2686, %v2688
          %v2690 = vrot.slane %v2682, %v2689
          %v2692 = vunpack.c.l.s4 1983009808
          %v2693 = vunpack.c.0.s8 %v2692
          %v2694 = vlaneseq
          %v2695 = vshrl.u32 %v2694, 7
          %v2696 = vsub.s32 %v2693, %v2695
          %v2697 = vrot.slane %v2683, %v2696
          %v2698 = vcombine.low %v2281, %v2329
          %v2699 = vcombine.high %v2281, %v2329
          %v2701 = vunpack.c.l.s4 1983009808
          %v2702 = vunpack.c.0.s8 %v2701
          %v2703 = vlaneseq
          %v2704 = vshrl.u32 %v2703, 7
          %v2705 = vsub.s32 %v2702, %v2704
          %v2706 = vrot.slane %v2698, %v2705
          %v2708 = vunpack.c.l.s4 1983009808
          %v2709 = vunpack.c.0.s8 %v2708
          %v2710 = vlaneseq
          %v2711 = vshrl.u32 %v2710, 7
          %v2712 = vsub.s32 %v2709, %v2711
          %v2713 = vrot.slane %v2699, %v2712
          %v2714 = vcombine.low %v2690, %v2706
          %v2715 = vcombine.high %v2690, %v2706
          %v2717 = vunpack.c.l.s4 1934713408
          %v2718 = vunpack.c.0.s8 %v2717
          %v2719 = vlaneseq
          %v2720 = vshrl.u32 %v2719, 7
          %v2721 = vsub.s32 %v2718, %v2720
          %v2722 = vrot.slane %v2714, %v2721
          %v2724 = vunpack.c.l.s4 1934713408
          %v2725 = vunpack.c.0.s8 %v2724
          %v2726 = vlaneseq
          %v2727 = vshrl.u32 %v2726, 7
          %v2728 = vsub.s32 %v2725, %v2727
          %v2729 = vrot.slane %v2715, %v2728
          %v2730 = vcombine.low %v2697, %v2713
          %v2731 = vcombine.high %v2697, %v2713
          %v2733 = vunpack.c.l.s4 1934713408
          %v2734 = vunpack.c.0.s8 %v2733
          %v2735 = vlaneseq
          %v2736 = vshrl.u32 %v2735, 7
          %v2737 = vsub.s32 %v2734, %v2736
          %v2738 = vrot.slane %v2730, %v2737
          %v2740 = vunpack.c.l.s4 1934713408
          %v2741 = vunpack.c.0.s8 %v2740
          %v2742 = vlaneseq
          %v2743 = vshrl.u32 %v2742, 7
          %v2744 = vsub.s32 %v2741, %v2743
          %v2745 = vrot.slane %v2731, %v2744
          %v2746 = vcombine.high %v2722, 0.0
          %v2747 = vcombine.high %v2729, 0.0
          %v2748 = vcombine.high %v2738, 0.0
          %v2749 = vcombine.high %v2745, 0.0
          %v2750 = vcombine.low %v927, %v2307
          %v2751 = vcombine.high %v927, %v2307
          %v2753 = vunpack.c.l.s4 1983009808
          %v2754 = vunpack.c.0.s8 %v2753
          %v2755 = vlaneseq
          %v2756 = vshrl.u32 %v2755, 7
          %v2757 = vsub.s32 %v2754, %v2756
          %v2758 = vrot.slane %v2750, %v2757
          %v2760 = vunpack.c.l.s4 1983009808
          %v2761 = vunpack.c.0.s8 %v2760
          %v2762 = vlaneseq
          %v2763 = vshrl.u32 %v2762, 7
          %v2764 = vsub.s32 %v2761, %v2763
          %v2765 = vrot.slane %v2751, %v2764
          %v2766 = vcombine.low %v2283, %v2331
          %v2767 = vcombine.high %v2283, %v2331
          %v2769 = vunpack.c.l.s4 1983009808
          %v2770 = vunpack.c.0.s8 %v2769
          %v2771 = vlaneseq
          %v2772 = vshrl.u32 %v2771, 7
          %v2773 = vsub.s32 %v2770, %v2772
          %v2774 = vrot.slane %v2766, %v2773
          %v2776 = vunpack.c.l.s4 1983009808
          %v2777 = vunpack.c.0.s8 %v2776
          %v2778 = vlaneseq
          %v2779 = vshrl.u32 %v2778, 7
          %v2780 = vsub.s32 %v2777, %v2779
          %v2781 = vrot.slane %v2767, %v2780
          %v2782 = vcombine.low %v2758, %v2774
          %v2783 = vcombine.high %v2758, %v2774
          %v2785 = vunpack.c.l.s4 1934713408
          %v2786 = vunpack.c.0.s8 %v2785
          %v2787 = vlaneseq
          %v2788 = vshrl.u32 %v2787, 7
          %v2789 = vsub.s32 %v2786, %v2788
          %v2790 = vrot.slane %v2782, %v2789
          %v2792 = vunpack.c.l.s4 1934713408
          %v2793 = vunpack.c.0.s8 %v2792
          %v2794 = vlaneseq
          %v2795 = vshrl.u32 %v2794, 7
          %v2796 = vsub.s32 %v2793, %v2795
          %v2797 = vrot.slane %v2783, %v2796
          %v2798 = vcombine.low %v2765, %v2781
          %v2799 = vcombine.high %v2765, %v2781
          %v2801 = vunpack.c.l.s4 1934713408
          %v2802 = vunpack.c.0.s8 %v2801
          %v2803 = vlaneseq
          %v2804 = vshrl.u32 %v2803, 7
          %v2805 = vsub.s32 %v2802, %v2804
          %v2806 = vrot.slane %v2798, %v2805
          %v2808 = vunpack.c.l.s4 1934713408
          %v2809 = vunpack.c.0.s8 %v2808
          %v2810 = vlaneseq
          %v2811 = vshrl.u32 %v2810, 7
          %v2812 = vsub.s32 %v2809, %v2811
          %v2813 = vrot.slane %v2799, %v2812
          %v2814 = vcombine.high %v2790, 0.0
          %v2815 = vcombine.high %v2797, 0.0
          %v2816 = vcombine.high %v2806, 0.0
          %v2817 = vcombine.high %v2813, 0.0
          %v2818 = vcombine.low %v930, %v2309
          %v2819 = vcombine.high %v930, %v2309
          %v2821 = vunpack.c.l.s4 1983009808
          %v2822 = vunpack.c.0.s8 %v2821
          %v2823 = vlaneseq
          %v2824 = vshrl.u32 %v2823, 7
          %v2825 = vsub.s32 %v2822, %v2824
          %v2826 = vrot.slane %v2818, %v2825
          %v2828 = vunpack.c.l.s4 1983009808
          %v2829 = vunpack.c.0.s8 %v2828
          %v2830 = vlaneseq
          %v2831 = vshrl.u32 %v2830, 7
          %v2832 = vsub.s32 %v2829, %v2831
          %v2833 = vrot.slane %v2819, %v2832
          %v2834 = vcombine.low %v2285, %v2333
          %v2835 = vcombine.high %v2285, %v2333
          %v2837 = vunpack.c.l.s4 1983009808
          %v2838 = vunpack.c.0.s8 %v2837
          %v2839 = vlaneseq
          %v2840 = vshrl.u32 %v2839, 7
          %v2841 = vsub.s32 %v2838, %v2840
          %v2842 = vrot.slane %v2834, %v2841
          %v2844 = vunpack.c.l.s4 1983009808
          %v2845 = vunpack.c.0.s8 %v2844
          %v2846 = vlaneseq
          %v2847 = vshrl.u32 %v2846, 7
          %v2848 = vsub.s32 %v2845, %v2847
          %v2849 = vrot.slane %v2835, %v2848
          %v2850 = vcombine.low %v2826, %v2842
          %v2851 = vcombine.high %v2826, %v2842
          %v2853 = vunpack.c.l.s4 1934713408
          %v2854 = vunpack.c.0.s8 %v2853
          %v2855 = vlaneseq
          %v2856 = vshrl.u32 %v2855, 7
          %v2857 = vsub.s32 %v2854, %v2856
          %v2858 = vrot.slane %v2850, %v2857
          %v2860 = vunpack.c.l.s4 1934713408
          %v2861 = vunpack.c.0.s8 %v2860
          %v2862 = vlaneseq
          %v2863 = vshrl.u32 %v2862, 7
          %v2864 = vsub.s32 %v2861, %v2863
          %v2865 = vrot.slane %v2851, %v2864
          %v2866 = vcombine.low %v2833, %v2849
          %v2867 = vcombine.high %v2833, %v2849
          %v2869 = vunpack.c.l.s4 1934713408
          %v2870 = vunpack.c.0.s8 %v2869
          %v2871 = vlaneseq
          %v2872 = vshrl.u32 %v2871, 7
          %v2873 = vsub.s32 %v2870, %v2872
          %v2874 = vrot.slane %v2866, %v2873
          %v2876 = vunpack.c.l.s4 1934713408
          %v2877 = vunpack.c.0.s8 %v2876
          %v2878 = vlaneseq
          %v2879 = vshrl.u32 %v2878, 7
          %v2880 = vsub.s32 %v2877, %v2879
          %v2881 = vrot.slane %v2867, %v2880
          %v2882 = vcombine.high %v2858, 0.0
          %v2883 = vcombine.high %v2865, 0.0
          %v2884 = vcombine.high %v2874, 0.0
          %v2885 = vcombine.high %v2881, 0.0
          %v2886 = vcombine.low %v2382, %v2389
          %v2888 = vunpack.c.l.s4 1983009808
          %v2889 = vunpack.c.0.s8 %v2888
          %v2890 = vlaneseq
          %v2891 = vshrl.u32 %v2890, 7
          %v2892 = vsub.s32 %v2889, %v2891
          %v2893 = vrot.slane %v2886, %v2892
          %v2894 = vcombine.low %v2406, %v2407
          %v2896 = vunpack.c.l.s4 1983009808
          %v2897 = vunpack.c.0.s8 %v2896
          %v2898 = vlaneseq
          %v2899 = vshrl.u32 %v2898, 7
          %v2900 = vsub.s32 %v2897, %v2899
          %v2901 = vrot.slane %v2894, %v2900
          %v2902 = vcombine.low %v2398, %v2405
          %v2904 = vunpack.c.l.s4 1983009808
          %v2905 = vunpack.c.0.s8 %v2904
          %v2906 = vlaneseq
          %v2907 = vshrl.u32 %v2906, 7
          %v2908 = vsub.s32 %v2905, %v2907
          %v2909 = vrot.slane %v2902, %v2908
          %v2910 = vcombine.low %v2408, %v2409
          %v2912 = vunpack.c.l.s4 1983009808
          %v2913 = vunpack.c.0.s8 %v2912
          %v2914 = vlaneseq
          %v2915 = vshrl.u32 %v2914, 7
          %v2916 = vsub.s32 %v2913, %v2915
          %v2917 = vrot.slane %v2910, %v2916
          %v2918 = vcombine.low %v2893, %v2901
          %v2919 = vcombine.high %v2893, %v2901
          %v2921 = vunpack.c.l.s4 1934713408
          %v2922 = vunpack.c.0.s8 %v2921
          %v2923 = vlaneseq
          %v2924 = vshrl.u32 %v2923, 7
          %v2925 = vsub.s32 %v2922, %v2924
          %v2926 = vrot.slane %v2918, %v2925
          %v2928 = vunpack.c.l.s4 1934713408
          %v2929 = vunpack.c.0.s8 %v2928
          %v2930 = vlaneseq
          %v2931 = vshrl.u32 %v2930, 7
          %v2932 = vsub.s32 %v2929, %v2931
          %v2933 = vrot.slane %v2919, %v2932
          %v2934 = vcombine.low %v2909, %v2917
          %v2935 = vcombine.high %v2909, %v2917
          %v2937 = vunpack.c.l.s4 1934713408
          %v2938 = vunpack.c.0.s8 %v2937
          %v2939 = vlaneseq
          %v2940 = vshrl.u32 %v2939, 7
          %v2941 = vsub.s32 %v2938, %v2940
          %v2942 = vrot.slane %v2934, %v2941
          %v2944 = vunpack.c.l.s4 1934713408
          %v2945 = vunpack.c.0.s8 %v2944
          %v2946 = vlaneseq
          %v2947 = vshrl.u32 %v2946, 7
          %v2948 = vsub.s32 %v2945, %v2947
          %v2949 = vrot.slane %v2935, %v2948
          %v2950 = vcombine.low %v2926, %v2942
          %v2951 = vcombine.high %v2926, %v2942
          %v2952 = vcombine.low %v2933, %v2949
          %v2953 = vcombine.high %v2933, %v2949
          %v2954 = vcombine.low %v2450, %v2457
          %v2956 = vunpack.c.l.s4 1983009808
          %v2957 = vunpack.c.0.s8 %v2956
          %v2958 = vlaneseq
          %v2959 = vshrl.u32 %v2958, 7
          %v2960 = vsub.s32 %v2957, %v2959
          %v2961 = vrot.slane %v2954, %v2960
          %v2962 = vcombine.low %v2474, %v2475
          %v2964 = vunpack.c.l.s4 1983009808
          %v2965 = vunpack.c.0.s8 %v2964
          %v2966 = vlaneseq
          %v2967 = vshrl.u32 %v2966, 7
          %v2968 = vsub.s32 %v2965, %v2967
          %v2969 = vrot.slane %v2962, %v2968
          %v2970 = vcombine.low %v2466, %v2473
          %v2972 = vunpack.c.l.s4 1983009808
          %v2973 = vunpack.c.0.s8 %v2972
          %v2974 = vlaneseq
          %v2975 = vshrl.u32 %v2974, 7
          %v2976 = vsub.s32 %v2973, %v2975
          %v2977 = vrot.slane %v2970, %v2976
          %v2978 = vcombine.low %v2476, %v2477
          %v2980 = vunpack.c.l.s4 1983009808
          %v2981 = vunpack.c.0.s8 %v2980
          %v2982 = vlaneseq
          %v2983 = vshrl.u32 %v2982, 7
          %v2984 = vsub.s32 %v2981, %v2983
          %v2985 = vrot.slane %v2978, %v2984
          %v2986 = vcombine.low %v2961, %v2969
          %v2987 = vcombine.high %v2961, %v2969
          %v2989 = vunpack.c.l.s4 1934713408
          %v2990 = vunpack.c.0.s8 %v2989
          %v2991 = vlaneseq
          %v2992 = vshrl.u32 %v2991, 7
          %v2993 = vsub.s32 %v2990, %v2992
          %v2994 = vrot.slane %v2986, %v2993
          %v2996 = vunpack.c.l.s4 1934713408
          %v2997 = vunpack.c.0.s8 %v2996
          %v2998 = vlaneseq
          %v2999 = vshrl.u32 %v2998, 7
          %v3000 = vsub.s32 %v2997, %v2999
          %v3001 = vrot.slane %v2987, %v3000
          %v3002 = vcombine.low %v2977, %v2985
          %v3003 = vcombine.high %v2977, %v2985
          %v3005 = vunpack.c.l.s4 1934713408
          %v3006 = vunpack.c.0.s8 %v3005
          %v3007 = vlaneseq
          %v3008 = vshrl.u32 %v3007, 7
          %v3009 = vsub.s32 %v3006, %v3008
          %v3010 = vrot.slane %v3002, %v3009
          %v3012 = vunpack.c.l.s4 1934713408
          %v3013 = vunpack.c.0.s8 %v3012
          %v3014 = vlaneseq
          %v3015 = vshrl.u32 %v3014, 7
          %v3016 = vsub.s32 %v3013, %v3015
          %v3017 = vrot.slane %v3003, %v3016
          %v3018 = vcombine.low %v2994, %v3010
          %v3019 = vcombine.high %v2994, %v3010
          %v3020 = vcombine.low %v3001, %v3017
          %v3021 = vcombine.high %v3001, %v3017
          %v3022 = vcombine.low %v2518, %v2525
          %v3024 = vunpack.c.l.s4 1983009808
          %v3025 = vunpack.c.0.s8 %v3024
          %v3026 = vlaneseq
          %v3027 = vshrl.u32 %v3026, 7
          %v3028 = vsub.s32 %v3025, %v3027
          %v3029 = vrot.slane %v3022, %v3028
          %v3030 = vcombine.low %v2542, %v2543
          %v3032 = vunpack.c.l.s4 1983009808
          %v3033 = vunpack.c.0.s8 %v3032
          %v3034 = vlaneseq
          %v3035 = vshrl.u32 %v3034, 7
          %v3036 = vsub.s32 %v3033, %v3035
          %v3037 = vrot.slane %v3030, %v3036
          %v3038 = vcombine.low %v2534, %v2541
          %v3040 = vunpack.c.l.s4 1983009808
          %v3041 = vunpack.c.0.s8 %v3040
          %v3042 = vlaneseq
          %v3043 = vshrl.u32 %v3042, 7
          %v3044 = vsub.s32 %v3041, %v3043
          %v3045 = vrot.slane %v3038, %v3044
          %v3046 = vcombine.low %v2544, %v2545
          %v3048 = vunpack.c.l.s4 1983009808
          %v3049 = vunpack.c.0.s8 %v3048
          %v3050 = vlaneseq
          %v3051 = vshrl.u32 %v3050, 7
          %v3052 = vsub.s32 %v3049, %v3051
          %v3053 = vrot.slane %v3046, %v3052
          %v3054 = vcombine.low %v3029, %v3037
          %v3055 = vcombine.high %v3029, %v3037
          %v3057 = vunpack.c.l.s4 1934713408
          %v3058 = vunpack.c.0.s8 %v3057
          %v3059 = vlaneseq
          %v3060 = vshrl.u32 %v3059, 7
          %v3061 = vsub.s32 %v3058, %v3060
          %v3062 = vrot.slane %v3054, %v3061
          %v3064 = vunpack.c.l.s4 1934713408
          %v3065 = vunpack.c.0.s8 %v3064
          %v3066 = vlaneseq
          %v3067 = vshrl.u32 %v3066, 7
          %v3068 = vsub.s32 %v3065, %v3067
          %v3069 = vrot.slane %v3055, %v3068
          %v3070 = vcombine.low %v3045, %v3053
          %v3071 = vcombine.high %v3045, %v3053
          %v3073 = vunpack.c.l.s4 1934713408
          %v3074 = vunpack.c.0.s8 %v3073
          %v3075 = vlaneseq
          %v3076 = vshrl.u32 %v3075, 7
          %v3077 = vsub.s32 %v3074, %v3076
          %v3078 = vrot.slane %v3070, %v3077
          %v3080 = vunpack.c.l.s4 1934713408
          %v3081 = vunpack.c.0.s8 %v3080
          %v3082 = vlaneseq
          %v3083 = vshrl.u32 %v3082, 7
          %v3084 = vsub.s32 %v3081, %v3083
          %v3085 = vrot.slane %v3071, %v3084
          %v3086 = vcombine.low %v3062, %v3078
          %v3087 = vcombine.high %v3062, %v3078
          %v3088 = vcombine.low %v3069, %v3085
          %v3089 = vcombine.high %v3069, %v3085
          %v3090 = vcombine.low %v2586, %v2593
          %v3092 = vunpack.c.l.s4 1983009808
          %v3093 = vunpack.c.0.s8 %v3092
          %v3094 = vlaneseq
          %v3095 = vshrl.u32 %v3094, 7
          %v3096 = vsub.s32 %v3093, %v3095
          %v3097 = vrot.slane %v3090, %v3096
          %v3098 = vcombine.low %v2610, %v2611
          %v3100 = vunpack.c.l.s4 1983009808
          %v3101 = vunpack.c.0.s8 %v3100
          %v3102 = vlaneseq
          %v3103 = vshrl.u32 %v3102, 7
          %v3104 = vsub.s32 %v3101, %v3103
          %v3105 = vrot.slane %v3098, %v3104
          %v3106 = vcombine.low %v2602, %v2609
          %v3108 = vunpack.c.l.s4 1983009808
          %v3109 = vunpack.c.0.s8 %v3108
          %v3110 = vlaneseq
          %v3111 = vshrl.u32 %v3110, 7
          %v3112 = vsub.s32 %v3109, %v3111
          %v3113 = vrot.slane %v3106, %v3112
          %v3114 = vcombine.low %v2612, %v2613
          %v3116 = vunpack.c.l.s4 1983009808
          %v3117 = vunpack.c.0.s8 %v3116
          %v3118 = vlaneseq
          %v3119 = vshrl.u32 %v3118, 7
          %v3120 = vsub.s32 %v3117, %v3119
          %v3121 = vrot.slane %v3114, %v3120
          %v3122 = vcombine.low %v3097, %v3105
          %v3123 = vcombine.high %v3097, %v3105
          %v3125 = vunpack.c.l.s4 1934713408
          %v3126 = vunpack.c.0.s8 %v3125
          %v3127 = vlaneseq
          %v3128 = vshrl.u32 %v3127, 7
          %v3129 = vsub.s32 %v3126, %v3128
          %v3130 = vrot.slane %v3122, %v3129
          %v3132 = vunpack.c.l.s4 1934713408
          %v3133 = vunpack.c.0.s8 %v3132
          %v3134 = vlaneseq
          %v3135 = vshrl.u32 %v3134, 7
          %v3136 = vsub.s32 %v3133, %v3135
          %v3137 = vrot.slane %v3123, %v3136
          %v3138 = vcombine.low %v3113, %v3121
          %v3139 = vcombine.high %v3113, %v3121
          %v3141 = vunpack.c.l.s4 1934713408
          %v3142 = vunpack.c.0.s8 %v3141
          %v3143 = vlaneseq
          %v3144 = vshrl.u32 %v3143, 7
          %v3145 = vsub.s32 %v3142, %v3144
          %v3146 = vrot.slane %v3138, %v3145
          %v3148 = vunpack.c.l.s4 1934713408
          %v3149 = vunpack.c.0.s8 %v3148
          %v3150 = vlaneseq
          %v3151 = vshrl.u32 %v3150, 7
          %v3152 = vsub.s32 %v3149, %v3151
          %v3153 = vrot.slane %v3139, %v3152
          %v3154 = vcombine.low %v3130, %v3146
          %v3155 = vcombine.high %v3130, %v3146
          %v3156 = vcombine.low %v3137, %v3153
          %v3157 = vcombine.high %v3137, %v3153
          %v3158 = vcombine.low %v2654, %v2661
          %v3160 = vunpack.c.l.s4 1983009808
          %v3161 = vunpack.c.0.s8 %v3160
          %v3162 = vlaneseq
          %v3163 = vshrl.u32 %v3162, 7
          %v3164 = vsub.s32 %v3161, %v3163
          %v3165 = vrot.slane %v3158, %v3164
          %v3166 = vcombine.low %v2678, %v2679
          %v3168 = vunpack.c.l.s4 1983009808
          %v3169 = vunpack.c.0.s8 %v3168
          %v3170 = vlaneseq
          %v3171 = vshrl.u32 %v3170, 7
          %v3172 = vsub.s32 %v3169, %v3171
          %v3173 = vrot.slane %v3166, %v3172
          %v3174 = vcombine.low %v2670, %v2677
          %v3176 = vunpack.c.l.s4 1983009808
          %v3177 = vunpack.c.0.s8 %v3176
          %v3178 = vlaneseq
          %v3179 = vshrl.u32 %v3178, 7
          %v3180 = vsub.s32 %v3177, %v3179
          %v3181 = vrot.slane %v3174, %v3180
          %v3182 = vcombine.low %v2680, %v2681
          %v3184 = vunpack.c.l.s4 1983009808
          %v3185 = vunpack.c.0.s8 %v3184
          %v3186 = vlaneseq
          %v3187 = vshrl.u32 %v3186, 7
          %v3188 = vsub.s32 %v3185, %v3187
          %v3189 = vrot.slane %v3182, %v3188
          %v3190 = vcombine.low %v3165, %v3173
          %v3191 = vcombine.high %v3165, %v3173
          %v3193 = vunpack.c.l.s4 1934713408
          %v3194 = vunpack.c.0.s8 %v3193
          %v3195 = vlaneseq
          %v3196 = vshrl.u32 %v3195, 7
          %v3197 = vsub.s32 %v3194, %v3196
          %v3198 = vrot.slane %v3190, %v3197
          %v3200 = vunpack.c.l.s4 1934713408
          %v3201 = vunpack.c.0.s8 %v3200
          %v3202 = vlaneseq
          %v3203 = vshrl.u32 %v3202, 7
          %v3204 = vsub.s32 %v3201, %v3203
          %v3205 = vrot.slane %v3191, %v3204
          %v3206 = vcombine.low %v3181, %v3189
          %v3207 = vcombine.high %v3181, %v3189
          %v3209 = vunpack.c.l.s4 1934713408
          %v3210 = vunpack.c.0.s8 %v3209
          %v3211 = vlaneseq
          %v3212 = vshrl.u32 %v3211, 7
          %v3213 = vsub.s32 %v3210, %v3212
          %v3214 = vrot.slane %v3206, %v3213
          %v3216 = vunpack.c.l.s4 1934713408
          %v3217 = vunpack.c.0.s8 %v3216
          %v3218 = vlaneseq
          %v3219 = vshrl.u32 %v3218, 7
          %v3220 = vsub.s32 %v3217, %v3219
          %v3221 = vrot.slane %v3207, %v3220
          %v3222 = vcombine.low %v3198, %v3214
          %v3223 = vcombine.high %v3198, %v3214
          %v3224 = vcombine.low %v3205, %v3221
          %v3225 = vcombine.high %v3205, %v3221
          %v3226 = vcombine.low %v2722, %v2729
          %v3228 = vunpack.c.l.s4 1983009808
          %v3229 = vunpack.c.0.s8 %v3228
          %v3230 = vlaneseq
          %v3231 = vshrl.u32 %v3230, 7
          %v3232 = vsub.s32 %v3229, %v3231
          %v3233 = vrot.slane %v3226, %v3232
          %v3234 = vcombine.low %v2746, %v2747
          %v3236 = vunpack.c.l.s4 1983009808
          %v3237 = vunpack.c.0.s8 %v3236
          %v3238 = vlaneseq
          %v3239 = vshrl.u32 %v3238, 7
          %v3240 = vsub.s32 %v3237, %v3239
          %v3241 = vrot.slane %v3234, %v3240
          %v3242 = vcombine.low %v2738, %v2745
          %v3244 = vunpack.c.l.s4 1983009808
          %v3245 = vunpack.c.0.s8 %v3244
          %v3246 = vlaneseq
          %v3247 = vshrl.u32 %v3246, 7
          %v3248 = vsub.s32 %v3245, %v3247
          %v3249 = vrot.slane %v3242, %v3248
          %v3250 = vcombine.low %v2748, %v2749
          %v3252 = vunpack.c.l.s4 1983009808
          %v3253 = vunpack.c.0.s8 %v3252
          %v3254 = vlaneseq
          %v3255 = vshrl.u32 %v3254, 7
          %v3256 = vsub.s32 %v3253, %v3255
          %v3257 = vrot.slane %v3250, %v3256
          %v3258 = vcombine.low %v3233, %v3241
          %v3259 = vcombine.high %v3233, %v3241
          %v3261 = vunpack.c.l.s4 1934713408
          %v3262 = vunpack.c.0.s8 %v3261
          %v3263 = vlaneseq
          %v3264 = vshrl.u32 %v3263, 7
          %v3265 = vsub.s32 %v3262, %v3264
          %v3266 = vrot.slane %v3258, %v3265
          %v3268 = vunpack.c.l.s4 1934713408
          %v3269 = vunpack.c.0.s8 %v3268
          %v3270 = vlaneseq
          %v3271 = vshrl.u32 %v3270, 7
          %v3272 = vsub.s32 %v3269, %v3271
          %v3273 = vrot.slane %v3259, %v3272
          %v3274 = vcombine.low %v3249, %v3257
          %v3275 = vcombine.high %v3249, %v3257
          %v3277 = vunpack.c.l.s4 1934713408
          %v3278 = vunpack.c.0.s8 %v3277
          %v3279 = vlaneseq
          %v3280 = vshrl.u32 %v3279, 7
          %v3281 = vsub.s32 %v3278, %v3280
          %v3282 = vrot.slane %v3274, %v3281
          %v3284 = vunpack.c.l.s4 1934713408
          %v3285 = vunpack.c.0.s8 %v3284
          %v3286 = vlaneseq
          %v3287 = vshrl.u32 %v3286, 7
          %v3288 = vsub.s32 %v3285, %v3287
          %v3289 = vrot.slane %v3275, %v3288
          %v3290 = vcombine.low %v3266, %v3282
          %v3291 = vcombine.high %v3266, %v3282
          %v3292 = vcombine.low %v3273, %v3289
          %v3293 = vcombine.high %v3273, %v3289
          %v3294 = vcombine.low %v2790, %v2797
          %v3296 = vunpack.c.l.s4 1983009808
          %v3297 = vunpack.c.0.s8 %v3296
          %v3298 = vlaneseq
          %v3299 = vshrl.u32 %v3298, 7
          %v3300 = vsub.s32 %v3297, %v3299
          %v3301 = vrot.slane %v3294, %v3300
          %v3302 = vcombine.low %v2814, %v2815
          %v3304 = vunpack.c.l.s4 1983009808
          %v3305 = vunpack.c.0.s8 %v3304
          %v3306 = vlaneseq
          %v3307 = vshrl.u32 %v3306, 7
          %v3308 = vsub.s32 %v3305, %v3307
          %v3309 = vrot.slane %v3302, %v3308
          %v3310 = vcombine.low %v2806, %v2813
          %v3312 = vunpack.c.l.s4 1983009808
          %v3313 = vunpack.c.0.s8 %v3312
          %v3314 = vlaneseq
          %v3315 = vshrl.u32 %v3314, 7
          %v3316 = vsub.s32 %v3313, %v3315
          %v3317 = vrot.slane %v3310, %v3316
          %v3318 = vcombine.low %v2816, %v2817
          %v3320 = vunpack.c.l.s4 1983009808
          %v3321 = vunpack.c.0.s8 %v3320
          %v3322 = vlaneseq
          %v3323 = vshrl.u32 %v3322, 7
          %v3324 = vsub.s32 %v3321, %v3323
          %v3325 = vrot.slane %v3318, %v3324
          %v3326 = vcombine.low %v3301, %v3309
          %v3327 = vcombine.high %v3301, %v3309
          %v3329 = vunpack.c.l.s4 1934713408
          %v3330 = vunpack.c.0.s8 %v3329
          %v3331 = vlaneseq
          %v3332 = vshrl.u32 %v3331, 7
          %v3333 = vsub.s32 %v3330, %v3332
          %v3334 = vrot.slane %v3326, %v3333
          %v3336 = vunpack.c.l.s4 1934713408
          %v3337 = vunpack.c.0.s8 %v3336
          %v3338 = vlaneseq
          %v3339 = vshrl.u32 %v3338, 7
          %v3340 = vsub.s32 %v3337, %v3339
          %v3341 = vrot.slane %v3327, %v3340
          %v3342 = vcombine.low %v3317, %v3325
          %v3343 = vcombine.high %v3317, %v3325
          %v3345 = vunpack.c.l.s4 1934713408
          %v3346 = vunpack.c.0.s8 %v3345
          %v3347 = vlaneseq
          %v3348 = vshrl.u32 %v3347, 7
          %v3349 = vsub.s32 %v3346, %v3348
          %v3350 = vrot.slane %v3342, %v3349
          %v3352 = vunpack.c.l.s4 1934713408
          %v3353 = vunpack.c.0.s8 %v3352
          %v3354 = vlaneseq
          %v3355 = vshrl.u32 %v3354, 7
          %v3356 = vsub.s32 %v3353, %v3355
          %v3357 = vrot.slane %v3343, %v3356
          %v3358 = vcombine.low %v3334, %v3350
          %v3359 = vcombine.high %v3334, %v3350
          %v3360 = vcombine.low %v3341, %v3357
          %v3361 = vcombine.high %v3341, %v3357
          %v3362 = vcombine.low %v2858, %v2865
          %v3364 = vunpack.c.l.s4 1983009808
          %v3365 = vunpack.c.0.s8 %v3364
          %v3366 = vlaneseq
          %v3367 = vshrl.u32 %v3366, 7
          %v3368 = vsub.s32 %v3365, %v3367
          %v3369 = vrot.slane %v3362, %v3368
          %v3370 = vcombine.low %v2882, %v2883
          %v3372 = vunpack.c.l.s4 1983009808
          %v3373 = vunpack.c.0.s8 %v3372
          %v3374 = vlaneseq
          %v3375 = vshrl.u32 %v3374, 7
          %v3376 = vsub.s32 %v3373, %v3375
          %v3377 = vrot.slane %v3370, %v3376
          %v3378 = vcombine.low %v2874, %v2881
          %v3380 = vunpack.c.l.s4 1983009808
          %v3381 = vunpack.c.0.s8 %v3380
          %v3382 = vlaneseq
          %v3383 = vshrl.u32 %v3382, 7
          %v3384 = vsub.s32 %v3381, %v3383
          %v3385 = vrot.slane %v3378, %v3384
          %v3386 = vcombine.low %v2884, %v2885
          %v3388 = vunpack.c.l.s4 1983009808
          %v3389 = vunpack.c.0.s8 %v3388
          %v3390 = vlaneseq
          %v3391 = vshrl.u32 %v3390, 7
          %v3392 = vsub.s32 %v3389, %v3391
          %v3393 = vrot.slane %v3386, %v3392
          %v3394 = vcombine.low %v3369, %v3377
          %v3395 = vcombine.high %v3369, %v3377
          %v3397 = vunpack.c.l.s4 1934713408
          %v3398 = vunpack.c.0.s8 %v3397
          %v3399 = vlaneseq
          %v3400 = vshrl.u32 %v3399, 7
          %v3401 = vsub.s32 %v3398, %v3400
          %v3402 = vrot.slane %v3394, %v3401
          %v3404 = vunpack.c.l.s4 1934713408
          %v3405 = vunpack.c.0.s8 %v3404
          %v3406 = vlaneseq
          %v3407 = vshrl.u32 %v3406, 7
          %v3408 = vsub.s32 %v3405, %v3407
          %v3409 = vrot.slane %v3395, %v3408
          %v3410 = vcombine.low %v3385, %v3393
          %v3411 = vcombine.high %v3385, %v3393
          %v3413 = vunpack.c.l.s4 1934713408
          %v3414 = vunpack.c.0.s8 %v3413
          %v3415 = vlaneseq
          %v3416 = vshrl.u32 %v3415, 7
          %v3417 = vsub.s32 %v3414, %v3416
          %v3418 = vrot.slane %v3410, %v3417
          %v3420 = vunpack.c.l.s4 1934713408
          %v3421 = vunpack.c.0.s8 %v3420
          %v3422 = vlaneseq
          %v3423 = vshrl.u32 %v3422, 7
          %v3424 = vsub.s32 %v3421, %v3423
          %v3425 = vrot.slane %v3411, %v3424
          %v3426 = vcombine.low %v3402, %v3418
          %v3427 = vcombine.high %v3402, %v3418
          %v3428 = vcombine.low %v3409, %v3425
          %v3429 = vcombine.high %v3409, %v3425
          %v3430 = vpack.c.bf16 %v3018, %v2950
          %v3431 = vpack.c.bf16 %v3154, %v3086
          %v3432 = vpack.c.bf16 %v3290, %v3222
          %v3433 = vpack.c.bf16 %v3426, %v3358
          %v3434 = vpack.c.bf16 %v3019, %v2951
          %v3435 = vpack.c.bf16 %v3155, %v3087
          %v3436 = vpack.c.bf16 %v3291, %v3223
          %v3437 = vpack.c.bf16 %v3427, %v3359
          %v3438 = vpack.c.bf16 %v3020, %v2952
          %v3439 = vpack.c.bf16 %v3156, %v3088
          %v3440 = vpack.c.bf16 %v3292, %v3224
          %v3441 = vpack.c.bf16 %v3428, %v3360
          %v3442 = vpack.c.bf16 %v3021, %v2953
          %v3443 = vpack.c.bf16 %v3157, %v3089
          %v3444 = vpack.c.bf16 %v3293, %v3225
          %v3445 = vpack.c.bf16 %v3429, %v3361
          %v3462 = vunpack.c.l.b16 %v3430
          %v3463 = vunpack.c.h.b16 %v3430
          %v3464 = vunpack.c.l.b16 %v3431
          %v3465 = vunpack.c.h.b16 %v3431
          %v3466 = vunpack.c.l.b16 %v3432
          %v3467 = vunpack.c.h.b16 %v3432
          %v3468 = vunpack.c.l.b16 %v3433
          %v3469 = vunpack.c.h.b16 %v3433
          %v3470 = vunpack.c.l.b16 %v3434
          %v3471 = vunpack.c.h.b16 %v3434
          %v3472 = vunpack.c.l.b16 %v3435
          %v3473 = vunpack.c.h.b16 %v3435
          %v3474 = vunpack.c.l.b16 %v3436
          %v3475 = vunpack.c.h.b16 %v3436
          %v3476 = vunpack.c.l.b16 %v3437
          %v3477 = vunpack.c.h.b16 %v3437
          %v3478 = vunpack.c.l.b16 %v3438
          %v3479 = vunpack.c.h.b16 %v3438
          %v3480 = vunpack.c.l.b16 %v3439
          %v3481 = vunpack.c.h.b16 %v3439
          %v3482 = vunpack.c.l.b16 %v3440
          %v3483 = vunpack.c.h.b16 %v3440
          %v3484 = vunpack.c.l.b16 %v3441
          %v3485 = vunpack.c.h.b16 %v3441
          %v3486 = vunpack.c.l.b16 %v3442
          %v3487 = vunpack.c.h.b16 %v3442
          %v3488 = vunpack.c.l.b16 %v3443
          %v3489 = vunpack.c.h.b16 %v3443
          %v3490 = vunpack.c.l.b16 %v3444
          %v3491 = vunpack.c.h.b16 %v3444
          %v3492 = vunpack.c.l.b16 %v3445
          %v3493 = vunpack.c.h.b16 %v3445
          %v3494 = vpack.c.b16 %v3462, %v3462
          %v3495 = vpack.c.b16 %v3463, %v3463
          %v3496 = vpack.c.b16 %v3464, %v3464
          %v3497 = vpack.c.b16 %v3465, %v3465
          %v3498 = vpack.c.b16 %v3466, %v3466
          %v3499 = vpack.c.b16 %v3467, %v3467
          %v3500 = vpack.c.b16 %v3468, %v3468
          %v3501 = vpack.c.b16 %v3469, %v3469
          %v3502 = vpack.c.b16 %v3470, %v3470
          %v3503 = vpack.c.b16 %v3471, %v3471
          %v3504 = vpack.c.b16 %v3472, %v3472
          %v3505 = vpack.c.b16 %v3473, %v3473
          %v3506 = vpack.c.b16 %v3474, %v3474
          %v3507 = vpack.c.b16 %v3475, %v3475
          %v3508 = vpack.c.b16 %v3476, %v3476
          %v3509 = vpack.c.b16 %v3477, %v3477
          %v3510 = vpack.c.b16 %v3478, %v3478
          %v3511 = vpack.c.b16 %v3479, %v3479
          %v3512 = vpack.c.b16 %v3480, %v3480
          %v3513 = vpack.c.b16 %v3481, %v3481
          %v3514 = vpack.c.b16 %v3482, %v3482
          %v3515 = vpack.c.b16 %v3483, %v3483
          %v3516 = vpack.c.b16 %v3484, %v3484
          %v3517 = vpack.c.b16 %v3485, %v3485
          %v3518 = vpack.c.b16 %v3486, %v3486
          %v3519 = vpack.c.b16 %v3487, %v3487
          %v3520 = vpack.c.b16 %v3488, %v3488
          %v3521 = vpack.c.b16 %v3489, %v3489
          %v3522 = vpack.c.b16 %v3490, %v3490
          %v3523 = vpack.c.b16 %v3491, %v3491
          %v3524 = vpack.c.b16 %v3492, %v3492
          %v3525 = vpack.c.b16 %v3493, %v3493
          %3558 = vst.msk [vmem:[#allocation3] sm:$0xf] %vm2229, %v3494
          %3559 = vst.msk [vmem:[#allocation3 + $0x4] sm:$0xf] %vm2229, %v3495
          %3560 = vst.msk [vmem:[#allocation3 + $0x8] sm:$0xf] %vm2229, %v3496
          %3561 = vst.msk [vmem:[#allocation3 + $0xc] sm:$0xf] %vm2229, %v3497
          %3562 = vst.msk [vmem:[#allocation3 + $0x10] sm:$0xf] %vm2229, %v3498
          %3563 = vst.msk [vmem:[#allocation3 + $0x14] sm:$0xf] %vm2229, %v3499
          %3564 = vst.msk [vmem:[#allocation3 + $0x18] sm:$0xf] %vm2229, %v3500
          %3565 = vst.msk [vmem:[#allocation3 + $0x1c] sm:$0xf] %vm2229, %v3501
          %3566 = vst.msk [vmem:[#allocation3 + $0x20] sm:$0xf] %vm2229, %v3502
          %3567 = vst.msk [vmem:[#allocation3 + $0x24] sm:$0xf] %vm2229, %v3503
          %3568 = vst.msk [vmem:[#allocation3 + $0x28] sm:$0xf] %vm2229, %v3504
          %3569 = vst.msk [vmem:[#allocation3 + $0x2c] sm:$0xf] %vm2229, %v3505
          %3570 = vst.msk [vmem:[#allocation3 + $0x30] sm:$0xf] %vm2229, %v3506
          %3571 = vst.msk [vmem:[#allocation3 + $0x34] sm:$0xf] %vm2229, %v3507
          %3572 = vst.msk [vmem:[#allocation3 + $0x38] sm:$0xf] %vm2229, %v3508
          %3573 = vst.msk [vmem:[#allocation3 + $0x3c] sm:$0xf] %vm2229, %v3509
          %3574 = vst.msk [vmem:[#allocation3 + $0x40] sm:$0xf] %vm2229, %v3510
          %3575 = vst.msk [vmem:[#allocation3 + $0x44] sm:$0xf] %vm2229, %v3511
          %3576 = vst.msk [vmem:[#allocation3 + $0x48] sm:$0xf] %vm2229, %v3512
          %3577 = vst.msk [vmem:[#allocation3 + $0x4c] sm:$0xf] %vm2229, %v3513
          %3578 = vst.msk [vmem:[#allocation3 + $0x50] sm:$0xf] %vm2229, %v3514
          %3579 = vst.msk [vmem:[#allocation3 + $0x54] sm:$0xf] %vm2229, %v3515
          %3580 = vst.msk [vmem:[#allocation3 + $0x58] sm:$0xf] %vm2229, %v3516
          %3581 = vst.msk [vmem:[#allocation3 + $0x5c] sm:$0xf] %vm2229, %v3517
          %3582 = vst.msk [vmem:[#allocation3 + $0x60] sm:$0xf] %vm2229, %v3518
          %3583 = vst.msk [vmem:[#allocation3 + $0x64] sm:$0xf] %vm2229, %v3519
          %3584 = vst.msk [vmem:[#allocation3 + $0x68] sm:$0xf] %vm2229, %v3520
          %3585 = vst.msk [vmem:[#allocation3 + $0x6c] sm:$0xf] %vm2229, %v3521
          %3586 = vst.msk [vmem:[#allocation3 + $0x70] sm:$0xf] %vm2229, %v3522
          %3587 = vst.msk [vmem:[#allocation3 + $0x74] sm:$0xf] %vm2229, %v3523
          %3588 = vst.msk [vmem:[#allocation3 + $0x78] sm:$0xf] %vm2229, %v3524
          %3589 = vst.msk [vmem:[#allocation3 + $0x7c] sm:$0xf] %vm2229, %v3525
        $region112: #{tpu_custom_call.1} parent=75 // pred_fallthru
          _
        %v3590 = vld [vmem:[%s553] sm:$0xff]
        %v3591 = vld [vmem:[%s553 + $0x8] sm:$0xff]
        %v3592 = vpack.c.bf16 %v3591, %v3590
        %v3593 = vld [vmem:[#allocation11] sm:$0xf]
        %v3594 = vld [vmem:[#allocation11 + $0x4] sm:$0xf]
        %v3595 = vld [vmem:[#allocation11 + $0x8] sm:$0xf]
        %v3596 = vld [vmem:[#allocation11 + $0xc] sm:$0xf]
        %v3597 = vld [vmem:[#allocation11 + $0x10] sm:$0xf]
        %v3598 = vld [vmem:[#allocation11 + $0x14] sm:$0xf]
        %v3599 = vld [vmem:[#allocation11 + $0x18] sm:$0xf]
        %v3600 = vld [vmem:[#allocation11 + $0x1c] sm:$0xf]
        %v3601 = vld [vmem:[#allocation11 + $0x20] sm:$0xf]
        %v3602 = vld [vmem:[#allocation11 + $0x24] sm:$0xf]
        %v3603 = vld [vmem:[#allocation11 + $0x28] sm:$0xf]
        %v3604 = vld [vmem:[#allocation11 + $0x2c] sm:$0xf]
        %v3605 = vld [vmem:[#allocation11 + $0x30] sm:$0xf]
        %v3606 = vld [vmem:[#allocation11 + $0x34] sm:$0xf]
        %v3607 = vld [vmem:[#allocation11 + $0x38] sm:$0xf]
        %v3608 = vld [vmem:[#allocation11 + $0x3c] sm:$0xf]
        %v3625 = vunpack.c.l.b16 %v3593
        %v3626 = vunpack.c.l.b16 %v3594
        %v3627 = vunpack.c.l.b16 %v3595
        %v3628 = vunpack.c.l.b16 %v3596
        %v3629 = vunpack.c.l.b16 %v3597
        %v3630 = vunpack.c.l.b16 %v3598
        %v3631 = vunpack.c.l.b16 %v3599
        %v3632 = vunpack.c.l.b16 %v3600
        %v3633 = vunpack.c.l.b16 %v3601
        %v3634 = vunpack.c.l.b16 %v3602
        %v3635 = vunpack.c.l.b16 %v3603
        %v3636 = vunpack.c.l.b16 %v3604
        %v3637 = vunpack.c.l.b16 %v3605
        %v3638 = vunpack.c.l.b16 %v3606
        %v3639 = vunpack.c.l.b16 %v3607
        %v3640 = vunpack.c.l.b16 %v3608
        %v3641 = vpack.c.b16 %v3626, %v3625
        %v3642 = vpack.c.b16 %v3628, %v3627
        %v3643 = vpack.c.b16 %v3630, %v3629
        %v3644 = vpack.c.b16 %v3632, %v3631
        %v3645 = vpack.c.b16 %v3634, %v3633
        %v3646 = vpack.c.b16 %v3636, %v3635
        %v3647 = vpack.c.b16 %v3638, %v3637
        %v3648 = vpack.c.b16 %v3640, %v3639
        %3657 = vmatprep.subr.bf16.mxu0 0
        %3658 = vmatpush1.bf16.msra.mxu0 %v3648
        %3659 = vmatprep.subr.bf16.mxu0 0
        %3660 = vmatpush1.bf16.msra.mxu0 %v3647
        %3661 = vmatprep.subr.bf16.mxu0 0
        %3662 = vmatpush1.bf16.msra.mxu0 %v3646
        %3663 = vmatprep.subr.bf16.mxu0 0
        %3664 = vmatpush1.bf16.msra.mxu0 %v3645
        %3665 = vmatprep.subr.bf16.mxu0 0
        %3666 = vmatpush1.bf16.msra.mxu0 %v3644
        %3667 = vmatprep.subr.bf16.mxu0 0
        %3668 = vmatpush1.bf16.msra.mxu0 %v3643
        %3669 = vmatprep.subr.bf16.mxu0 0
        %3670 = vmatpush1.bf16.msra.mxu0 %v3642
        %3671 = vmatprep.subr.bf16.mxu0 0
        %3672 = vmatpush1.bf16.msra.mxu0 %v3641
        %3673 = vmatprep.subr.bf16.mxu0 0
        %3674 = vmatpush2.bf16.msra.mxu0 0
        %3675 = vmatprep.subr.bf16.mxu0 0
        %3676 = vmatpush2.bf16.msra.mxu0 0
        %3677 = vmatprep.subr.bf16.mxu0 0
        %3678 = vmatpush2.bf16.msra.mxu0 0
        %3679 = vmatprep.subr.bf16.mxu0 0
        %3680 = vmatpush2.bf16.msra.mxu0 0
        %3681 = vmatprep.subr.bf16.mxu0 0
        %3682 = vmatpush2.bf16.msra.mxu0 0
        %3683 = vmatprep.subr.bf16.mxu0 0
        %3684 = vmatpush2.bf16.msra.mxu0 0
        %3685 = vmatprep.subr.bf16.mxu0 0
        %3686 = vmatpush2.bf16.msra.mxu0 0
        %3687 = vmatprep.subr.bf16.mxu0 0
        %3688 = vmatpush2.bf16.msra.mxu0 0
        %3689 = vmatprep.mubr.bf16.mxu0 0
        %3690 = vmatmul.mubr.bf16.gmra.mxu0 %v3592
        %v3691 = vpop.f32.mrf.mxu0
        %v3692 = vadd.f32 0.0, %v3691
        %v3693 = vpop.f32.mrf.mxu0
        %v3694 = vpop.f32.mrf.mxu0
        %v3695 = vadd.f32 0.0, %v3694
        %v3696 = vpop.f32.mrf.mxu0
        %3697 = vdwg.mxu0
        %3700 = vrot.lane.b32.xlu0 %v3692, 96
        %v3701 = vpop.permute.xlu0 %3700
        %3702 = vrot.lane.b32.xlu0 %v3695, 96
        %v3703 = vpop.permute.xlu0 %3702
        %3706 = vrot.lane.b32.xlu0 %v3692, 64
        %v3707 = vpop.permute.xlu0 %3706
        %3708 = vrot.lane.b32.xlu0 %v3695, 64
        %v3709 = vpop.permute.xlu0 %3708
        %3712 = vrot.lane.b32.xlu0 %v3692, 32
        %v3713 = vpop.permute.xlu0 %3712
        %3714 = vrot.lane.b32.xlu0 %v3695, 32
        %v3715 = vpop.permute.xlu0 %3714
        %v3718 = vcombine.low %v3692, %v3707
        %v3719 = vcombine.high %v3692, %v3707
        %v3721 = vunpack.c.l.s4 1983009808
        %v3722 = vunpack.c.0.s8 %v3721
        %v3723 = vlaneseq
        %v3724 = vshrl.u32 %v3723, 7
        %v3725 = vsub.s32 %v3722, %v3724
        %v3726 = vrot.slane %v3718, %v3725
        %v3728 = vunpack.c.l.s4 1983009808
        %v3729 = vunpack.c.0.s8 %v3728
        %v3730 = vlaneseq
        %v3731 = vshrl.u32 %v3730, 7
        %v3732 = vsub.s32 %v3729, %v3731
        %v3733 = vrot.slane %v3719, %v3732
        %v3734 = vcombine.low %v3701, %v3713
        %v3735 = vcombine.high %v3701, %v3713
        %v3737 = vunpack.c.l.s4 1983009808
        %v3738 = vunpack.c.0.s8 %v3737
        %v3739 = vlaneseq
        %v3740 = vshrl.u32 %v3739, 7
        %v3741 = vsub.s32 %v3738, %v3740
        %v3742 = vrot.slane %v3734, %v3741
        %v3744 = vunpack.c.l.s4 1983009808
        %v3745 = vunpack.c.0.s8 %v3744
        %v3746 = vlaneseq
        %v3747 = vshrl.u32 %v3746, 7
        %v3748 = vsub.s32 %v3745, %v3747
        %v3749 = vrot.slane %v3735, %v3748
        %v3750 = vcombine.low %v3726, %v3742
        %v3751 = vcombine.high %v3726, %v3742
        %v3753 = vunpack.c.l.s4 1934713408
        %v3754 = vunpack.c.0.s8 %v3753
        %v3755 = vlaneseq
        %v3756 = vshrl.u32 %v3755, 7
        %v3757 = vsub.s32 %v3754, %v3756
        %v3758 = vrot.slane %v3750, %v3757
        %v3760 = vunpack.c.l.s4 1934713408
        %v3761 = vunpack.c.0.s8 %v3760
        %v3762 = vlaneseq
        %v3763 = vshrl.u32 %v3762, 7
        %v3764 = vsub.s32 %v3761, %v3763
        %v3765 = vrot.slane %v3751, %v3764
        %v3766 = vcombine.low %v3733, %v3749
        %v3767 = vcombine.high %v3733, %v3749
        %v3769 = vunpack.c.l.s4 1934713408
        %v3770 = vunpack.c.0.s8 %v3769
        %v3771 = vlaneseq
        %v3772 = vshrl.u32 %v3771, 7
        %v3773 = vsub.s32 %v3770, %v3772
        %v3774 = vrot.slane %v3766, %v3773
        %v3776 = vunpack.c.l.s4 1934713408
        %v3777 = vunpack.c.0.s8 %v3776
        %v3778 = vlaneseq
        %v3779 = vshrl.u32 %v3778, 7
        %v3780 = vsub.s32 %v3777, %v3779
        %v3781 = vrot.slane %v3767, %v3780
        %v3782 = vcombine.high %v3758, 0.0
        %v3783 = vcombine.high %v3765, 0.0
        %v3784 = vcombine.high %v3774, 0.0
        %v3785 = vcombine.high %v3781, 0.0
        %v3786 = vcombine.low %v3695, %v3709
        %v3787 = vcombine.high %v3695, %v3709
        %v3789 = vunpack.c.l.s4 1983009808
        %v3790 = vunpack.c.0.s8 %v3789
        %v3791 = vlaneseq
        %v3792 = vshrl.u32 %v3791, 7
        %v3793 = vsub.s32 %v3790, %v3792
        %v3794 = vrot.slane %v3786, %v3793
        %v3796 = vunpack.c.l.s4 1983009808
        %v3797 = vunpack.c.0.s8 %v3796
        %v3798 = vlaneseq
        %v3799 = vshrl.u32 %v3798, 7
        %v3800 = vsub.s32 %v3797, %v3799
        %v3801 = vrot.slane %v3787, %v3800
        %v3802 = vcombine.low %v3703, %v3715
        %v3803 = vcombine.high %v3703, %v3715
        %v3805 = vunpack.c.l.s4 1983009808
        %v3806 = vunpack.c.0.s8 %v3805
        %v3807 = vlaneseq
        %v3808 = vshrl.u32 %v3807, 7
        %v3809 = vsub.s32 %v3806, %v3808
        %v3810 = vrot.slane %v3802, %v3809
        %v3812 = vunpack.c.l.s4 1983009808
        %v3813 = vunpack.c.0.s8 %v3812
        %v3814 = vlaneseq
        %v3815 = vshrl.u32 %v3814, 7
        %v3816 = vsub.s32 %v3813, %v3815
        %v3817 = vrot.slane %v3803, %v3816
        %v3818 = vcombine.low %v3794, %v3810
        %v3819 = vcombine.high %v3794, %v3810
        %v3821 = vunpack.c.l.s4 1934713408
        %v3822 = vunpack.c.0.s8 %v3821
        %v3823 = vlaneseq
        %v3824 = vshrl.u32 %v3823, 7
        %v3825 = vsub.s32 %v3822, %v3824
        %v3826 = vrot.slane %v3818, %v3825
        %v3828 = vunpack.c.l.s4 1934713408
        %v3829 = vunpack.c.0.s8 %v3828
        %v3830 = vlaneseq
        %v3831 = vshrl.u32 %v3830, 7
        %v3832 = vsub.s32 %v3829, %v3831
        %v3833 = vrot.slane %v3819, %v3832
        %v3834 = vcombine.low %v3801, %v3817
        %v3835 = vcombine.high %v3801, %v3817
        %v3837 = vunpack.c.l.s4 1934713408
        %v3838 = vunpack.c.0.s8 %v3837
        %v3839 = vlaneseq
        %v3840 = vshrl.u32 %v3839, 7
        %v3841 = vsub.s32 %v3838, %v3840
        %v3842 = vrot.slane %v3834, %v3841
        %v3844 = vunpack.c.l.s4 1934713408
        %v3845 = vunpack.c.0.s8 %v3844
        %v3846 = vlaneseq
        %v3847 = vshrl.u32 %v3846, 7
        %v3848 = vsub.s32 %v3845, %v3847
        %v3849 = vrot.slane %v3835, %v3848
        %v3850 = vcombine.high %v3826, 0.0
        %v3851 = vcombine.high %v3833, 0.0
        %v3852 = vcombine.high %v3842, 0.0
        %v3853 = vcombine.high %v3849, 0.0
        %v3854 = vcombine.low %v3758, %v3765
        %v3856 = vunpack.c.l.s4 1983009808
        %v3857 = vunpack.c.0.s8 %v3856
        %v3858 = vlaneseq
        %v3859 = vshrl.u32 %v3858, 7
        %v3860 = vsub.s32 %v3857, %v3859
        %v3861 = vrot.slane %v3854, %v3860
        %v3862 = vcombine.low %v3782, %v3783
        %v3864 = vunpack.c.l.s4 1983009808
        %v3865 = vunpack.c.0.s8 %v3864
        %v3866 = vlaneseq
        %v3867 = vshrl.u32 %v3866, 7
        %v3868 = vsub.s32 %v3865, %v3867
        %v3869 = vrot.slane %v3862, %v3868
        %v3870 = vcombine.low %v3774, %v3781
        %v3872 = vunpack.c.l.s4 1983009808
        %v3873 = vunpack.c.0.s8 %v3872
        %v3874 = vlaneseq
        %v3875 = vshrl.u32 %v3874, 7
        %v3876 = vsub.s32 %v3873, %v3875
        %v3877 = vrot.slane %v3870, %v3876
        %v3878 = vcombine.low %v3784, %v3785
        %v3880 = vunpack.c.l.s4 1983009808
        %v3881 = vunpack.c.0.s8 %v3880
        %v3882 = vlaneseq
        %v3883 = vshrl.u32 %v3882, 7
        %v3884 = vsub.s32 %v3881, %v3883
        %v3885 = vrot.slane %v3878, %v3884
        %v3886 = vcombine.low %v3861, %v3869
        %v3887 = vcombine.high %v3861, %v3869
        %v3889 = vunpack.c.l.s4 1934713408
        %v3890 = vunpack.c.0.s8 %v3889
        %v3891 = vlaneseq
        %v3892 = vshrl.u32 %v3891, 7
        %v3893 = vsub.s32 %v3890, %v3892
        %v3894 = vrot.slane %v3886, %v3893
        %v3896 = vunpack.c.l.s4 1934713408
        %v3897 = vunpack.c.0.s8 %v3896
        %v3898 = vlaneseq
        %v3899 = vshrl.u32 %v3898, 7
        %v3900 = vsub.s32 %v3897, %v3899
        %v3901 = vrot.slane %v3887, %v3900
        %v3902 = vcombine.low %v3877, %v3885
        %v3903 = vcombine.high %v3877, %v3885
        %v3905 = vunpack.c.l.s4 1934713408
        %v3906 = vunpack.c.0.s8 %v3905
        %v3907 = vlaneseq
        %v3908 = vshrl.u32 %v3907, 7
        %v3909 = vsub.s32 %v3906, %v3908
        %v3910 = vrot.slane %v3902, %v3909
        %v3912 = vunpack.c.l.s4 1934713408
        %v3913 = vunpack.c.0.s8 %v3912
        %v3914 = vlaneseq
        %v3915 = vshrl.u32 %v3914, 7
        %v3916 = vsub.s32 %v3913, %v3915
        %v3917 = vrot.slane %v3903, %v3916
        %v3918 = vcombine.low %v3894, %v3910
        %v3919 = vcombine.high %v3894, %v3910
        %v3920 = vcombine.low %v3901, %v3917
        %v3921 = vcombine.high %v3901, %v3917
        %v3922 = vcombine.low %v3826, %v3833
        %v3924 = vunpack.c.l.s4 1983009808
        %v3925 = vunpack.c.0.s8 %v3924
        %v3926 = vlaneseq
        %v3927 = vshrl.u32 %v3926, 7
        %v3928 = vsub.s32 %v3925, %v3927
        %v3929 = vrot.slane %v3922, %v3928
        %v3930 = vcombine.low %v3850, %v3851
        %v3932 = vunpack.c.l.s4 1983009808
        %v3933 = vunpack.c.0.s8 %v3932
        %v3934 = vlaneseq
        %v3935 = vshrl.u32 %v3934, 7
        %v3936 = vsub.s32 %v3933, %v3935
        %v3937 = vrot.slane %v3930, %v3936
        %v3938 = vcombine.low %v3842, %v3849
        %v3940 = vunpack.c.l.s4 1983009808
        %v3941 = vunpack.c.0.s8 %v3940
        %v3942 = vlaneseq
        %v3943 = vshrl.u32 %v3942, 7
        %v3944 = vsub.s32 %v3941, %v3943
        %v3945 = vrot.slane %v3938, %v3944
        %v3946 = vcombine.low %v3852, %v3853
        %v3948 = vunpack.c.l.s4 1983009808
        %v3949 = vunpack.c.0.s8 %v3948
        %v3950 = vlaneseq
        %v3951 = vshrl.u32 %v3950, 7
        %v3952 = vsub.s32 %v3949, %v3951
        %v3953 = vrot.slane %v3946, %v3952
        %v3954 = vcombine.low %v3929, %v3937
        %v3955 = vcombine.high %v3929, %v3937
        %v3957 = vunpack.c.l.s4 1934713408
        %v3958 = vunpack.c.0.s8 %v3957
        %v3959 = vlaneseq
        %v3960 = vshrl.u32 %v3959, 7
        %v3961 = vsub.s32 %v3958, %v3960
        %v3962 = vrot.slane %v3954, %v3961
        %v3964 = vunpack.c.l.s4 1934713408
        %v3965 = vunpack.c.0.s8 %v3964
        %v3966 = vlaneseq
        %v3967 = vshrl.u32 %v3966, 7
        %v3968 = vsub.s32 %v3965, %v3967
        %v3969 = vrot.slane %v3955, %v3968
        %v3970 = vcombine.low %v3945, %v3953
        %v3971 = vcombine.high %v3945, %v3953
        %v3973 = vunpack.c.l.s4 1934713408
        %v3974 = vunpack.c.0.s8 %v3973
        %v3975 = vlaneseq
        %v3976 = vshrl.u32 %v3975, 7
        %v3977 = vsub.s32 %v3974, %v3976
        %v3978 = vrot.slane %v3970, %v3977
        %v3980 = vunpack.c.l.s4 1934713408
        %v3981 = vunpack.c.0.s8 %v3980
        %v3982 = vlaneseq
        %v3983 = vshrl.u32 %v3982, 7
        %v3984 = vsub.s32 %v3981, %v3983
        %v3985 = vrot.slane %v3971, %v3984
        %v3986 = vcombine.low %v3962, %v3978
        %v3987 = vcombine.high %v3962, %v3978
        %v3988 = vcombine.low %v3969, %v3985
        %v3989 = vcombine.high %v3969, %v3985
        %v3990 = vpack.c.bf16 %v3986, %v3918
        %v3991 = vpack.c.bf16 %v3987, %v3919
        %v3992 = vpack.c.bf16 %v3988, %v3920
        %v3993 = vpack.c.bf16 %v3989, %v3921
        %v3994 = vld [vmem:[#allocation2] sm:$0xf]
        %v3995 = vld [vmem:[#allocation2 + $0x4] sm:$0xf]
        %v3996 = vld [vmem:[#allocation2 + $0x8] sm:$0xf]
        %v3997 = vld [vmem:[#allocation2 + $0xc] sm:$0xf]
        %v3998 = vld [vmem:[#allocation2 + $0x10] sm:$0xf]
        %v3999 = vld [vmem:[#allocation2 + $0x14] sm:$0xf]
        %v4000 = vld [vmem:[#allocation2 + $0x18] sm:$0xf]
        %v4001 = vld [vmem:[#allocation2 + $0x1c] sm:$0xf]
        %v4002 = vld [vmem:[#allocation2 + $0x20] sm:$0xf]
        %v4003 = vld [vmem:[#allocation2 + $0x24] sm:$0xf]
        %v4004 = vld [vmem:[#allocation2 + $0x28] sm:$0xf]
        %v4005 = vld [vmem:[#allocation2 + $0x2c] sm:$0xf]
        %v4006 = vld [vmem:[#allocation2 + $0x30] sm:$0xf]
        %v4007 = vld [vmem:[#allocation2 + $0x34] sm:$0xf]
        %v4008 = vld [vmem:[#allocation2 + $0x38] sm:$0xf]
        %v4009 = vld [vmem:[#allocation2 + $0x3c] sm:$0xf]
        %v4010 = vld [vmem:[#allocation2 + $0x40] sm:$0xf]
        %v4011 = vld [vmem:[#allocation2 + $0x44] sm:$0xf]
        %v4012 = vld [vmem:[#allocation2 + $0x48] sm:$0xf]
        %v4013 = vld [vmem:[#allocation2 + $0x4c] sm:$0xf]
        %v4014 = vld [vmem:[#allocation2 + $0x50] sm:$0xf]
        %v4015 = vld [vmem:[#allocation2 + $0x54] sm:$0xf]
        %v4016 = vld [vmem:[#allocation2 + $0x58] sm:$0xf]
        %v4017 = vld [vmem:[#allocation2 + $0x5c] sm:$0xf]
        %v4018 = vld [vmem:[#allocation2 + $0x60] sm:$0xf]
        %v4019 = vld [vmem:[#allocation2 + $0x64] sm:$0xf]
        %v4020 = vld [vmem:[#allocation2 + $0x68] sm:$0xf]
        %v4021 = vld [vmem:[#allocation2 + $0x6c] sm:$0xf]
        %v4022 = vld [vmem:[#allocation2 + $0x70] sm:$0xf]
        %v4023 = vld [vmem:[#allocation2 + $0x74] sm:$0xf]
        %v4024 = vld [vmem:[#allocation2 + $0x78] sm:$0xf]
        %v4025 = vld [vmem:[#allocation2 + $0x7c] sm:$0xf]
        %v4034 = vunpack.c.l.b16 %v3994
        %v4035 = vunpack.c.l.b16 %v3995
        %v4036 = vunpack.c.l.b16 %v3996
        %v4037 = vunpack.c.l.b16 %v3997
        %v4038 = vunpack.c.l.b16 %v3998
        %v4039 = vunpack.c.l.b16 %v3999
        %v4040 = vunpack.c.l.b16 %v4000
        %v4041 = vunpack.c.l.b16 %v4001
        %v4042 = vpack.c.b16 %v4035, %v4034
        %v4043 = vpack.c.b16 %v4037, %v4036
        %v4044 = vpack.c.b16 %v4039, %v4038
        %v4045 = vpack.c.b16 %v4041, %v4040
        %vm4046 = vcmask 261120
        %v4048 = vsel %vm4046, %v3990, 0
        %v4051 = vsel %vm4046, %v4042, 0
        %v4054 = vsel %vm4046, %v4043, 0
        %v4057 = vsel %vm4046, %v4044, 0
        %v4060 = vsel %vm4046, %v4045, 0
        %4062 = vmatprep.subr.bf16.mxu0 0
        %4063 = vmatpush1.bf16.xpose.msra.mxu0 0
        %4064 = vmatprep.subr.bf16.mxu0 0
        %4065 = vmatpush1.bf16.xpose.msra.mxu0 0
        %4066 = vmatprep.subr.bf16.mxu0 0
        %4067 = vmatpush1.bf16.xpose.msra.mxu0 0
        %4068 = vmatprep.subr.bf16.mxu0 0
        %4069 = vmatpush1.bf16.xpose.msra.mxu0 0
        %4070 = vmatprep.subr.bf16.mxu0 0
        %4071 = vmatpush1.bf16.xpose.msra.mxu0 %v4060
        %4072 = vmatprep.subr.bf16.mxu0 0
        %4073 = vmatpush1.bf16.xpose.msra.mxu0 %v4057
        %4074 = vmatprep.subr.bf16.mxu0 0
        %4075 = vmatpush1.bf16.xpose.msra.mxu0 %v4054
        %4076 = vmatprep.subr.bf16.mxu0 0
        %4077 = vmatpush1.bf16.xpose.msra.mxu0 %v4051
        %4078 = vmatprep.subr.bf16.mxu0 0
        %4079 = vmatpush2.bf16.xpose.msra.mxu0 0
        %4080 = vmatprep.subr.bf16.mxu0 0
        %4081 = vmatpush2.bf16.xpose.msra.mxu0 0
        %4082 = vmatprep.subr.bf16.mxu0 0
        %4083 = vmatpush2.bf16.xpose.msra.mxu0 0
        %4084 = vmatprep.subr.bf16.mxu0 0
        %4085 = vmatpush2.bf16.xpose.msra.mxu0 0
        %4086 = vmatprep.subr.bf16.mxu0 0
        %4087 = vmatpush2.bf16.xpose.msra.mxu0 0
        %4088 = vmatprep.subr.bf16.mxu0 0
        %4089 = vmatpush2.bf16.xpose.msra.mxu0 0
        %4090 = vmatprep.subr.bf16.mxu0 0
        %4091 = vmatpush2.bf16.xpose.msra.mxu0 0
        %4092 = vmatprep.subr.bf16.mxu0 0
        %4093 = vmatpush2.bf16.xpose.msra.mxu0 0
        %4094 = vmatprep.mubr.bf16.mxu0 0
        %4095 = vmatmul.mubr.bf16.gmra.mxu0 %v4048
        %v4096 = vpop.f32.mrf.mxu0
        %v4097 = vadd.f32 0.0, %v4096
        %v4098 = vpop.f32.mrf.mxu0
        %v4099 = vpop.f32.mrf.mxu0
        %v4100 = vadd.f32 0.0, %v4099
        %v4101 = vpop.f32.mrf.mxu0
        %4102 = vdwg.mxu0
        %v4111 = vunpack.c.l.b16 %v4002
        %v4112 = vunpack.c.l.b16 %v4003
        %v4113 = vunpack.c.l.b16 %v4004
        %v4114 = vunpack.c.l.b16 %v4005
        %v4115 = vunpack.c.l.b16 %v4006
        %v4116 = vunpack.c.l.b16 %v4007
        %v4117 = vunpack.c.l.b16 %v4008
        %v4118 = vunpack.c.l.b16 %v4009
        %v4119 = vpack.c.b16 %v4112, %v4111
        %v4120 = vpack.c.b16 %v4114, %v4113
        %v4121 = vpack.c.b16 %v4116, %v4115
        %v4122 = vpack.c.b16 %v4118, %v4117
        %v4124 = vsel %vm4046, %v3991, 0
        %v4127 = vsel %vm4046, %v4119, 0
        %v4130 = vsel %vm4046, %v4120, 0
        %v4133 = vsel %vm4046, %v4121, 0
        %v4136 = vsel %vm4046, %v4122, 0
        %4138 = vmatprep.subr.bf16.mxu0 0
        %4139 = vmatpush1.bf16.xpose.msra.mxu0 0
        %4140 = vmatprep.subr.bf16.mxu0 0
        %4141 = vmatpush1.bf16.xpose.msra.mxu0 0
        %4142 = vmatprep.subr.bf16.mxu0 0
        %4143 = vmatpush1.bf16.xpose.msra.mxu0 0
        %4144 = vmatprep.subr.bf16.mxu0 0
        %4145 = vmatpush1.bf16.xpose.msra.mxu0 0
        %4146 = vmatprep.subr.bf16.mxu0 0
        %4147 = vmatpush1.bf16.xpose.msra.mxu0 %v4136
        %4148 = vmatprep.subr.bf16.mxu0 0
        %4149 = vmatpush1.bf16.xpose.msra.mxu0 %v4133
        %4150 = vmatprep.subr.bf16.mxu0 0
        %4151 = vmatpush1.bf16.xpose.msra.mxu0 %v4130
        %4152 = vmatprep.subr.bf16.mxu0 0
        %4153 = vmatpush1.bf16.xpose.msra.mxu0 %v4127
        %4154 = vmatprep.subr.bf16.mxu0 0
        %4155 = vmatpush2.bf16.xpose.msra.mxu0 0
        %4156 = vmatprep.subr.bf16.mxu0 0
        %4157 = vmatpush2.bf16.xpose.msra.mxu0 0
        %4158 = vmatprep.subr.bf16.mxu0 0
        %4159 = vmatpush2.bf16.xpose.msra.mxu0 0
        %4160 = vmatprep.subr.bf16.mxu0 0
        %4161 = vmatpush2.bf16.xpose.msra.mxu0 0
        %4162 = vmatprep.subr.bf16.mxu0 0
        %4163 = vmatpush2.bf16.xpose.msra.mxu0 0
        %4164 = vmatprep.subr.bf16.mxu0 0
        %4165 = vmatpush2.bf16.xpose.msra.mxu0 0
        %4166 = vmatprep.subr.bf16.mxu0 0
        %4167 = vmatpush2.bf16.xpose.msra.mxu0 0
        %4168 = vmatprep.subr.bf16.mxu0 0
        %4169 = vmatpush2.bf16.xpose.msra.mxu0 0
        %4170 = vmatprep.mubr.bf16.mxu0 0
        %4171 = vmatmul.mubr.bf16.gmra.mxu0 %v4124
        %v4172 = vpop.f32.mrf.mxu0
        %v4173 = vadd.f32 0.0, %v4172
        %v4174 = vpop.f32.mrf.mxu0
        %v4175 = vpop.f32.mrf.mxu0
        %v4176 = vadd.f32 0.0, %v4175
        %v4177 = vpop.f32.mrf.mxu0
        %4178 = vdwg.mxu0
        %v4187 = vunpack.c.l.b16 %v4010
        %v4188 = vunpack.c.l.b16 %v4011
        %v4189 = vunpack.c.l.b16 %v4012
        %v4190 = vunpack.c.l.b16 %v4013
        %v4191 = vunpack.c.l.b16 %v4014
        %v4192 = vunpack.c.l.b16 %v4015
        %v4193 = vunpack.c.l.b16 %v4016
        %v4194 = vunpack.c.l.b16 %v4017
        %v4195 = vpack.c.b16 %v4188, %v4187
        %v4196 = vpack.c.b16 %v4190, %v4189
        %v4197 = vpack.c.b16 %v4192, %v4191
        %v4198 = vpack.c.b16 %v4194, %v4193
        %v4200 = vsel %vm4046, %v3992, 0
        %v4203 = vsel %vm4046, %v4195, 0
        %v4206 = vsel %vm4046, %v4196, 0
        %v4209 = vsel %vm4046, %v4197, 0
        %v4212 = vsel %vm4046, %v4198, 0
        %4214 = vmatprep.subr.bf16.mxu0 0
        %4215 = vmatpush1.bf16.xpose.msra.mxu0 0
        %4216 = vmatprep.subr.bf16.mxu0 0
        %4217 = vmatpush1.bf16.xpose.msra.mxu0 0
        %4218 = vmatprep.subr.bf16.mxu0 0
        %4219 = vmatpush1.bf16.xpose.msra.mxu0 0
        %4220 = vmatprep.subr.bf16.mxu0 0
        %4221 = vmatpush1.bf16.xpose.msra.mxu0 0
        %4222 = vmatprep.subr.bf16.mxu0 0
        %4223 = vmatpush1.bf16.xpose.msra.mxu0 %v4212
        %4224 = vmatprep.subr.bf16.mxu0 0
        %4225 = vmatpush1.bf16.xpose.msra.mxu0 %v4209
        %4226 = vmatprep.subr.bf16.mxu0 0
        %4227 = vmatpush1.bf16.xpose.msra.mxu0 %v4206
        %4228 = vmatprep.subr.bf16.mxu0 0
        %4229 = vmatpush1.bf16.xpose.msra.mxu0 %v4203
        %4230 = vmatprep.subr.bf16.mxu0 0
        %4231 = vmatpush2.bf16.xpose.msra.mxu0 0
        %4232 = vmatprep.subr.bf16.mxu0 0
        %4233 = vmatpush2.bf16.xpose.msra.mxu0 0
        %4234 = vmatprep.subr.bf16.mxu0 0
        %4235 = vmatpush2.bf16.xpose.msra.mxu0 0
        %4236 = vmatprep.subr.bf16.mxu0 0
        %4237 = vmatpush2.bf16.xpose.msra.mxu0 0
        %4238 = vmatprep.subr.bf16.mxu0 0
        %4239 = vmatpush2.bf16.xpose.msra.mxu0 0
        %4240 = vmatprep.subr.bf16.mxu0 0
        %4241 = vmatpush2.bf16.xpose.msra.mxu0 0
        %4242 = vmatprep.subr.bf16.mxu0 0
        %4243 = vmatpush2.bf16.xpose.msra.mxu0 0
        %4244 = vmatprep.subr.bf16.mxu0 0
        %4245 = vmatpush2.bf16.xpose.msra.mxu0 0
        %4246 = vmatprep.mubr.bf16.mxu0 0
        %4247 = vmatmul.mubr.bf16.gmra.mxu0 %v4200
        %v4248 = vpop.f32.mrf.mxu0
        %v4249 = vadd.f32 0.0, %v4248
        %v4250 = vpop.f32.mrf.mxu0
        %v4251 = vpop.f32.mrf.mxu0
        %v4252 = vadd.f32 0.0, %v4251
        %v4253 = vpop.f32.mrf.mxu0
        %4254 = vdwg.mxu0
        %v4263 = vunpack.c.l.b16 %v4018
        %v4264 = vunpack.c.l.b16 %v4019
        %v4265 = vunpack.c.l.b16 %v4020
        %v4266 = vunpack.c.l.b16 %v4021
        %v4267 = vunpack.c.l.b16 %v4022
        %v4268 = vunpack.c.l.b16 %v4023
        %v4269 = vunpack.c.l.b16 %v4024
        %v4270 = vunpack.c.l.b16 %v4025
        %v4271 = vpack.c.b16 %v4264, %v4263
        %v4272 = vpack.c.b16 %v4266, %v4265
        %v4273 = vpack.c.b16 %v4268, %v4267
        %v4274 = vpack.c.b16 %v4270, %v4269
        %v4276 = vsel %vm4046, %v3993, 0
        %v4279 = vsel %vm4046, %v4271, 0
        %v4282 = vsel %vm4046, %v4272, 0
        %v4285 = vsel %vm4046, %v4273, 0
        %v4288 = vsel %vm4046, %v4274, 0
        %4290 = vmatprep.subr.bf16.mxu0 0
        %4291 = vmatpush1.bf16.xpose.msra.mxu0 0
        %4292 = vmatprep.subr.bf16.mxu0 0
        %4293 = vmatpush1.bf16.xpose.msra.mxu0 0
        %4294 = vmatprep.subr.bf16.mxu0 0
        %4295 = vmatpush1.bf16.xpose.msra.mxu0 0
        %4296 = vmatprep.subr.bf16.mxu0 0
        %4297 = vmatpush1.bf16.xpose.msra.mxu0 0
        %4298 = vmatprep.subr.bf16.mxu0 0
        %4299 = vmatpush1.bf16.xpose.msra.mxu0 %v4288
        %4300 = vmatprep.subr.bf16.mxu0 0
        %4301 = vmatpush1.bf16.xpose.msra.mxu0 %v4285
        %4302 = vmatprep.subr.bf16.mxu0 0
        %4303 = vmatpush1.bf16.xpose.msra.mxu0 %v4282
        %4304 = vmatprep.subr.bf16.mxu0 0
        %4305 = vmatpush1.bf16.xpose.msra.mxu0 %v4279
        %4306 = vmatprep.subr.bf16.mxu0 0
        %4307 = vmatpush2.bf16.xpose.msra.mxu0 0
        %4308 = vmatprep.subr.bf16.mxu0 0
        %4309 = vmatpush2.bf16.xpose.msra.mxu0 0
        %4310 = vmatprep.subr.bf16.mxu0 0
        %4311 = vmatpush2.bf16.xpose.msra.mxu0 0
        %4312 = vmatprep.subr.bf16.mxu0 0
        %4313 = vmatpush2.bf16.xpose.msra.mxu0 0
        %4314 = vmatprep.subr.bf16.mxu0 0
        %4315 = vmatpush2.bf16.xpose.msra.mxu0 0
        %4316 = vmatprep.subr.bf16.mxu0 0
        %4317 = vmatpush2.bf16.xpose.msra.mxu0 0
        %4318 = vmatprep.subr.bf16.mxu0 0
        %4319 = vmatpush2.bf16.xpose.msra.mxu0 0
        %4320 = vmatprep.subr.bf16.mxu0 0
        %4321 = vmatpush2.bf16.xpose.msra.mxu0 0
        %4322 = vmatprep.mubr.bf16.mxu0 0
        %4323 = vmatmul.mubr.bf16.gmra.mxu0 %v4276
        %v4324 = vpop.f32.mrf.mxu0
        %v4325 = vadd.f32 0.0, %v4324
        %v4326 = vpop.f32.mrf.mxu0
        %v4327 = vpop.f32.mrf.mxu0
        %v4328 = vadd.f32 0.0, %v4327
        %v4329 = vpop.f32.mrf.mxu0
        %4330 = vdwg.mxu0
        %v4331 = vlaneseq
        %v4332 = vand.u32 %v4331, 127
        %s4333 = sld [smem:[#allocation5 + %s46]]
        %v4334 = vstv %s4333
        %vm4335 = vcmp.lt.s32.totalorder %v4332, %v4334
        %v4336 = vsel %vm4335, 1, 0
        %vm4337 = vcmp.eq.s32.totalorder %v4336, 1
        %v4338 = vsel %vm4337, %v4097, -1000000.0
        %v4339 = vsel %vm4337, %v4100, -1000000.0
        %v4340 = vsel %vm4337, %v4173, -1000000.0
        %v4341 = vsel %vm4337, %v4176, -1000000.0
        %v4342 = vsel %vm4337, %v4249, -1000000.0
        %v4343 = vsel %vm4337, %v4252, -1000000.0
        %v4344 = vsel %vm4337, %v4325, -1000000.0
        %v4345 = vsel %vm4337, %v4328, -1000000.0
        %vm4346 = vcmask 523264
        %v4347 = vsel %vm4346, %v4338, -inf
        %4348 = vmax.xlane.f32.xlu0 %v4347
        %v4349 = vpop.xlane.xlu0 %4348
        %v4350 = vsel %vm4346, %v4339, -inf
        %4351 = vmax.xlane.f32.xlu0 %v4350
        %v4352 = vpop.xlane.xlu0 %4351
        %v4353 = vsel %vm4346, %v4340, -inf
        %4354 = vmax.xlane.f32.xlu0 %v4353
        %v4355 = vpop.xlane.xlu0 %4354
        %v4356 = vsel %vm4346, %v4341, -inf
        %4357 = vmax.xlane.f32.xlu0 %v4356
        %v4358 = vpop.xlane.xlu0 %4357
        %v4359 = vsel %vm4346, %v4342, -inf
        %4360 = vmax.xlane.f32.xlu0 %v4359
        %v4361 = vpop.xlane.xlu0 %4360
        %v4362 = vsel %vm4346, %v4343, -inf
        %4363 = vmax.xlane.f32.xlu0 %v4362
        %v4364 = vpop.xlane.xlu0 %4363
        %v4365 = vsel %vm4346, %v4344, -inf
        %4366 = vmax.xlane.f32.xlu0 %v4365
        %v4367 = vpop.xlane.xlu0 %4366
        %v4368 = vsel %vm4346, %v4345, -inf
        %4369 = vmax.xlane.f32.xlu0 %v4368
        %v4370 = vpop.xlane.xlu0 %4369
        %v4371 = vsub.f32 %v4338, %v4349
        %v4372 = vsub.f32 %v4339, %v4352
        %v4373 = vsub.f32 %v4340, %v4355
        %v4374 = vsub.f32 %v4341, %v4358
        %v4375 = vsub.f32 %v4342, %v4361
        %v4376 = vsub.f32 %v4343, %v4364
        %v4377 = vsub.f32 %v4344, %v4367
        %v4378 = vsub.f32 %v4345, %v4370
        %v4379 = vmul.f32 %v4371, 1.442695
        %v4380 = vpow.pop %v4379
        %v4381 = vmul.f32 %v4372, 1.442695
        %v4382 = vpow.pop %v4381
        %v4383 = vmul.f32 %v4373, 1.442695
        %v4384 = vpow.pop %v4383
        %v4385 = vmul.f32 %v4374, 1.442695
        %v4386 = vpow.pop %v4385
        %v4387 = vmul.f32 %v4375, 1.442695
        %v4388 = vpow.pop %v4387
        %v4389 = vmul.f32 %v4376, 1.442695
        %v4390 = vpow.pop %v4389
        %v4391 = vmul.f32 %v4377, 1.442695
        %v4392 = vpow.pop %v4391
        %v4393 = vmul.f32 %v4378, 1.442695
        %v4394 = vpow.pop %v4393
        %v4395 = vsel %vm4346, %v4380, 0.0
        %4396 = vadd.xlane.f32.xlu0 %v4395
        %v4397 = vpop.xlane.xlu0 %4396
        %v4398 = vsel %vm4346, %v4382, 0.0
        %4399 = vadd.xlane.f32.xlu0 %v4398
        %v4400 = vpop.xlane.xlu0 %4399
        %v4401 = vsel %vm4346, %v4384, 0.0
        %4402 = vadd.xlane.f32.xlu0 %v4401
        %v4403 = vpop.xlane.xlu0 %4402
        %v4404 = vsel %vm4346, %v4386, 0.0
        %4405 = vadd.xlane.f32.xlu0 %v4404
        %v4406 = vpop.xlane.xlu0 %4405
        %v4407 = vsel %vm4346, %v4388, 0.0
        %4408 = vadd.xlane.f32.xlu0 %v4407
        %v4409 = vpop.xlane.xlu0 %4408
        %v4410 = vsel %vm4346, %v4390, 0.0
        %4411 = vadd.xlane.f32.xlu0 %v4410
        %v4412 = vpop.xlane.xlu0 %4411
        %v4413 = vsel %vm4346, %v4392, 0.0
        %4414 = vadd.xlane.f32.xlu0 %v4413
        %v4415 = vpop.xlane.xlu0 %4414
        %v4416 = vsel %vm4346, %v4394, 0.0
        %4417 = vadd.xlane.f32.xlu0 %v4416
        %v4418 = vpop.xlane.xlu0 %4417
        %v4419 = vrcp.pop %v4397
        %v4420 = vrcp.pop %v4400
        %v4421 = vrcp.pop %v4403
        %v4422 = vrcp.pop %v4406
        %v4423 = vrcp.pop %v4409
        %v4424 = vrcp.pop %v4412
        %v4425 = vrcp.pop %v4415
        %v4426 = vrcp.pop %v4418
        %v4427 = vmul.f32 %v4380, %v4419
        %v4428 = vmul.f32 %v4382, %v4420
        %v4429 = vmul.f32 %v4384, %v4421
        %v4430 = vmul.f32 %v4386, %v4422
        %v4431 = vmul.f32 %v4388, %v4423
        %v4432 = vmul.f32 %v4390, %v4424
        %v4433 = vmul.f32 %v4392, %v4425
        %v4434 = vmul.f32 %v4394, %v4426
        %v4435 = vpack.c.bf16 %v4428, %v4427
        %v4436 = vpack.c.bf16 %v4430, %v4429
        %v4437 = vpack.c.bf16 %v4432, %v4431
        %v4438 = vpack.c.bf16 %v4434, %v4433
        %v4439 = vld [vmem:[#allocation3] sm:$0xf]
        %v4440 = vld [vmem:[#allocation3 + $0x4] sm:$0xf]
        %v4441 = vld [vmem:[#allocation3 + $0x8] sm:$0xf]
        %v4442 = vld [vmem:[#allocation3 + $0xc] sm:$0xf]
        %v4443 = vld [vmem:[#allocation3 + $0x10] sm:$0xf]
        %v4444 = vld [vmem:[#allocation3 + $0x14] sm:$0xf]
        %v4445 = vld [vmem:[#allocation3 + $0x18] sm:$0xf]
        %v4446 = vld [vmem:[#allocation3 + $0x1c] sm:$0xf]
        %v4447 = vld [vmem:[#allocation3 + $0x20] sm:$0xf]
        %v4448 = vld [vmem:[#allocation3 + $0x24] sm:$0xf]
        %v4449 = vld [vmem:[#allocation3 + $0x28] sm:$0xf]
        %v4450 = vld [vmem:[#allocation3 + $0x2c] sm:$0xf]
        %v4451 = vld [vmem:[#allocation3 + $0x30] sm:$0xf]
        %v4452 = vld [vmem:[#allocation3 + $0x34] sm:$0xf]
        %v4453 = vld [vmem:[#allocation3 + $0x38] sm:$0xf]
        %v4454 = vld [vmem:[#allocation3 + $0x3c] sm:$0xf]
        %v4455 = vld [vmem:[#allocation3 + $0x40] sm:$0xf]
        %v4456 = vld [vmem:[#allocation3 + $0x44] sm:$0xf]
        %v4457 = vld [vmem:[#allocation3 + $0x48] sm:$0xf]
        %v4458 = vld [vmem:[#allocation3 + $0x4c] sm:$0xf]
        %v4459 = vld [vmem:[#allocation3 + $0x50] sm:$0xf]
        %v4460 = vld [vmem:[#allocation3 + $0x54] sm:$0xf]
        %v4461 = vld [vmem:[#allocation3 + $0x58] sm:$0xf]
        %v4462 = vld [vmem:[#allocation3 + $0x5c] sm:$0xf]
        %v4463 = vld [vmem:[#allocation3 + $0x60] sm:$0xf]
        %v4464 = vld [vmem:[#allocation3 + $0x64] sm:$0xf]
        %v4465 = vld [vmem:[#allocation3 + $0x68] sm:$0xf]
        %v4466 = vld [vmem:[#allocation3 + $0x6c] sm:$0xf]
        %v4467 = vld [vmem:[#allocation3 + $0x70] sm:$0xf]
        %v4468 = vld [vmem:[#allocation3 + $0x74] sm:$0xf]
        %v4469 = vld [vmem:[#allocation3 + $0x78] sm:$0xf]
        %v4470 = vld [vmem:[#allocation3 + $0x7c] sm:$0xf]
        %v4479 = vunpack.c.l.b16 %v4439
        %v4480 = vunpack.c.l.b16 %v4440
        %v4481 = vunpack.c.l.b16 %v4441
        %v4482 = vunpack.c.l.b16 %v4442
        %v4483 = vunpack.c.l.b16 %v4443
        %v4484 = vunpack.c.l.b16 %v4444
        %v4485 = vunpack.c.l.b16 %v4445
        %v4486 = vunpack.c.l.b16 %v4446
        %v4487 = vpack.c.b16 %v4480, %v4479
        %v4488 = vpack.c.b16 %v4482, %v4481
        %v4489 = vpack.c.b16 %v4484, %v4483
        %v4490 = vpack.c.b16 %v4486, %v4485
        %v4496 = vsel %vm4346, %v4435, 0
        %4498 = vmatprep.subr.bf16.mxu0 0
        %4499 = vmatpush1.bf16.msra.mxu0 0
        %4500 = vmatprep.subr.bf16.mxu0 0
        %4501 = vmatpush1.bf16.msra.mxu0 0
        %4502 = vmatprep.subr.bf16.mxu0 0
        %4503 = vmatpush1.bf16.msra.mxu0 0
        %4504 = vmatprep.subr.bf16.mxu0 0
        %4505 = vmatpush1.bf16.msra.mxu0 0
        %4506 = vmatprep.subr.bf16.mxu0 0
        %4507 = vmatpush1.bf16.msra.mxu0 %v4490
        %4508 = vmatprep.subr.bf16.mxu0 0
        %4509 = vmatpush1.bf16.msra.mxu0 %v4489
        %4510 = vmatprep.subr.bf16.mxu0 0
        %4511 = vmatpush1.bf16.msra.mxu0 %v4488
        %4512 = vmatprep.subr.bf16.mxu0 0
        %4513 = vmatpush1.bf16.msra.mxu0 %v4487
        %4514 = vmatprep.subr.bf16.mxu0 0
        %4515 = vmatpush2.bf16.msra.mxu0 0
        %4516 = vmatprep.subr.bf16.mxu0 0
        %4517 = vmatpush2.bf16.msra.mxu0 0
        %4518 = vmatprep.subr.bf16.mxu0 0
        %4519 = vmatpush2.bf16.msra.mxu0 0
        %4520 = vmatprep.subr.bf16.mxu0 0
        %4521 = vmatpush2.bf16.msra.mxu0 0
        %4522 = vmatprep.subr.bf16.mxu0 0
        %4523 = vmatpush2.bf16.msra.mxu0 0
        %4524 = vmatprep.subr.bf16.mxu0 0
        %4525 = vmatpush2.bf16.msra.mxu0 0
        %4526 = vmatprep.subr.bf16.mxu0 0
        %4527 = vmatpush2.bf16.msra.mxu0 0
        %4528 = vmatprep.subr.bf16.mxu0 0
        %4529 = vmatpush2.bf16.msra.mxu0 0
        %4530 = vmatprep.mubr.bf16.mxu0 0
        %4531 = vmatmul.mubr.bf16.gmra.mxu0 %v4496
        %v4532 = vpop.f32.mrf.mxu0
        %v4533 = vadd.f32 0.0, %v4532
        %v4534 = vpop.f32.mrf.mxu0
        %v4535 = vpop.f32.mrf.mxu0
        %v4536 = vadd.f32 0.0, %v4535
        %v4537 = vpop.f32.mrf.mxu0
        %4538 = vdwg.mxu0
        %v4547 = vunpack.c.l.b16 %v4447
        %v4548 = vunpack.c.l.b16 %v4448
        %v4549 = vunpack.c.l.b16 %v4449
        %v4550 = vunpack.c.l.b16 %v4450
        %v4551 = vunpack.c.l.b16 %v4451
        %v4552 = vunpack.c.l.b16 %v4452
        %v4553 = vunpack.c.l.b16 %v4453
        %v4554 = vunpack.c.l.b16 %v4454
        %v4555 = vpack.c.b16 %v4548, %v4547
        %v4556 = vpack.c.b16 %v4550, %v4549
        %v4557 = vpack.c.b16 %v4552, %v4551
        %v4558 = vpack.c.b16 %v4554, %v4553
        %v4564 = vsel %vm4346, %v4436, 0
        %4566 = vmatprep.subr.bf16.mxu0 0
        %4567 = vmatpush1.bf16.msra.mxu0 0
        %4568 = vmatprep.subr.bf16.mxu0 0
        %4569 = vmatpush1.bf16.msra.mxu0 0
        %4570 = vmatprep.subr.bf16.mxu0 0
        %4571 = vmatpush1.bf16.msra.mxu0 0
        %4572 = vmatprep.subr.bf16.mxu0 0
        %4573 = vmatpush1.bf16.msra.mxu0 0
        %4574 = vmatprep.subr.bf16.mxu0 0
        %4575 = vmatpush1.bf16.msra.mxu0 %v4558
        %4576 = vmatprep.subr.bf16.mxu0 0
        %4577 = vmatpush1.bf16.msra.mxu0 %v4557
        %4578 = vmatprep.subr.bf16.mxu0 0
        %4579 = vmatpush1.bf16.msra.mxu0 %v4556
        %4580 = vmatprep.subr.bf16.mxu0 0
        %4581 = vmatpush1.bf16.msra.mxu0 %v4555
        %4582 = vmatprep.subr.bf16.mxu0 0
        %4583 = vmatpush2.bf16.msra.mxu0 0
        %4584 = vmatprep.subr.bf16.mxu0 0
        %4585 = vmatpush2.bf16.msra.mxu0 0
        %4586 = vmatprep.subr.bf16.mxu0 0
        %4587 = vmatpush2.bf16.msra.mxu0 0
        %4588 = vmatprep.subr.bf16.mxu0 0
        %4589 = vmatpush2.bf16.msra.mxu0 0
        %4590 = vmatprep.subr.bf16.mxu0 0
        %4591 = vmatpush2.bf16.msra.mxu0 0
        %4592 = vmatprep.subr.bf16.mxu0 0
        %4593 = vmatpush2.bf16.msra.mxu0 0
        %4594 = vmatprep.subr.bf16.mxu0 0
        %4595 = vmatpush2.bf16.msra.mxu0 0
        %4596 = vmatprep.subr.bf16.mxu0 0
        %4597 = vmatpush2.bf16.msra.mxu0 0
        %4598 = vmatprep.mubr.bf16.mxu0 0
        %4599 = vmatmul.mubr.bf16.gmra.mxu0 %v4564
        %v4600 = vpop.f32.mrf.mxu0
        %v4601 = vadd.f32 0.0, %v4600
        %v4602 = vpop.f32.mrf.mxu0
        %v4603 = vpop.f32.mrf.mxu0
        %v4604 = vadd.f32 0.0, %v4603
        %v4605 = vpop.f32.mrf.mxu0
        %4606 = vdwg.mxu0
        %v4615 = vunpack.c.l.b16 %v4455
        %v4616 = vunpack.c.l.b16 %v4456
        %v4617 = vunpack.c.l.b16 %v4457
        %v4618 = vunpack.c.l.b16 %v4458
        %v4619 = vunpack.c.l.b16 %v4459
        %v4620 = vunpack.c.l.b16 %v4460
        %v4621 = vunpack.c.l.b16 %v4461
        %v4622 = vunpack.c.l.b16 %v4462
        %v4623 = vpack.c.b16 %v4616, %v4615
        %v4624 = vpack.c.b16 %v4618, %v4617
        %v4625 = vpack.c.b16 %v4620, %v4619
        %v4626 = vpack.c.b16 %v4622, %v4621
        %v4632 = vsel %vm4346, %v4437, 0
        %4634 = vmatprep.subr.bf16.mxu0 0
        %4635 = vmatpush1.bf16.msra.mxu0 0
        %4636 = vmatprep.subr.bf16.mxu0 0
        %4637 = vmatpush1.bf16.msra.mxu0 0
        %4638 = vmatprep.subr.bf16.mxu0 0
        %4639 = vmatpush1.bf16.msra.mxu0 0
        %4640 = vmatprep.subr.bf16.mxu0 0
        %4641 = vmatpush1.bf16.msra.mxu0 0
        %4642 = vmatprep.subr.bf16.mxu0 0
        %4643 = vmatpush1.bf16.msra.mxu0 %v4626
        %4644 = vmatprep.subr.bf16.mxu0 0
        %4645 = vmatpush1.bf16.msra.mxu0 %v4625
        %4646 = vmatprep.subr.bf16.mxu0 0
        %4647 = vmatpush1.bf16.msra.mxu0 %v4624
        %4648 = vmatprep.subr.bf16.mxu0 0
        %4649 = vmatpush1.bf16.msra.mxu0 %v4623
        %4650 = vmatprep.subr.bf16.mxu0 0
        %4651 = vmatpush2.bf16.msra.mxu0 0
        %4652 = vmatprep.subr.bf16.mxu0 0
        %4653 = vmatpush2.bf16.msra.mxu0 0
        %4654 = vmatprep.subr.bf16.mxu0 0
        %4655 = vmatpush2.bf16.msra.mxu0 0
        %4656 = vmatprep.subr.bf16.mxu0 0
        %4657 = vmatpush2.bf16.msra.mxu0 0
        %4658 = vmatprep.subr.bf16.mxu0 0
        %4659 = vmatpush2.bf16.msra.mxu0 0
        %4660 = vmatprep.subr.bf16.mxu0 0
        %4661 = vmatpush2.bf16.msra.mxu0 0
        %4662 = vmatprep.subr.bf16.mxu0 0
        %4663 = vmatpush2.bf16.msra.mxu0 0
        %4664 = vmatprep.subr.bf16.mxu0 0
        %4665 = vmatpush2.bf16.msra.mxu0 0
        %4666 = vmatprep.mubr.bf16.mxu0 0
        %4667 = vmatmul.mubr.bf16.gmra.mxu0 %v4632
        %v4668 = vpop.f32.mrf.mxu0
        %v4669 = vadd.f32 0.0, %v4668
        %v4670 = vpop.f32.mrf.mxu0
        %v4671 = vpop.f32.mrf.mxu0
        %v4672 = vadd.f32 0.0, %v4671
        %v4673 = vpop.f32.mrf.mxu0
        %4674 = vdwg.mxu0
        %v4683 = vunpack.c.l.b16 %v4463
        %v4684 = vunpack.c.l.b16 %v4464
        %v4685 = vunpack.c.l.b16 %v4465
        %v4686 = vunpack.c.l.b16 %v4466
        %v4687 = vunpack.c.l.b16 %v4467
        %v4688 = vunpack.c.l.b16 %v4468
        %v4689 = vunpack.c.l.b16 %v4469
        %v4690 = vunpack.c.l.b16 %v4470
        %v4691 = vpack.c.b16 %v4684, %v4683
        %v4692 = vpack.c.b16 %v4686, %v4685
        %v4693 = vpack.c.b16 %v4688, %v4687
        %v4694 = vpack.c.b16 %v4690, %v4689
        %v4700 = vsel %vm4346, %v4438, 0
        %4702 = vmatprep.subr.bf16.mxu0 0
        %4703 = vmatpush1.bf16.msra.mxu0 0
        %4704 = vmatprep.subr.bf16.mxu0 0
        %4705 = vmatpush1.bf16.msra.mxu0 0
        %4706 = vmatprep.subr.bf16.mxu0 0
        %4707 = vmatpush1.bf16.msra.mxu0 0
        %4708 = vmatprep.subr.bf16.mxu0 0
        %4709 = vmatpush1.bf16.msra.mxu0 0
        %4710 = vmatprep.subr.bf16.mxu0 0
        %4711 = vmatpush1.bf16.msra.mxu0 %v4694
        %4712 = vmatprep.subr.bf16.mxu0 0
        %4713 = vmatpush1.bf16.msra.mxu0 %v4693
        %4714 = vmatprep.subr.bf16.mxu0 0
        %4715 = vmatpush1.bf16.msra.mxu0 %v4692
        %4716 = vmatprep.subr.bf16.mxu0 0
        %4717 = vmatpush1.bf16.msra.mxu0 %v4691
        %4718 = vmatprep.subr.bf16.mxu0 0
        %4719 = vmatpush2.bf16.msra.mxu0 0
        %4720 = vmatprep.subr.bf16.mxu0 0
        %4721 = vmatpush2.bf16.msra.mxu0 0
        %4722 = vmatprep.subr.bf16.mxu0 0
        %4723 = vmatpush2.bf16.msra.mxu0 0
        %4724 = vmatprep.subr.bf16.mxu0 0
        %4725 = vmatpush2.bf16.msra.mxu0 0
        %4726 = vmatprep.subr.bf16.mxu0 0
        %4727 = vmatpush2.bf16.msra.mxu0 0
        %4728 = vmatprep.subr.bf16.mxu0 0
        %4729 = vmatpush2.bf16.msra.mxu0 0
        %4730 = vmatprep.subr.bf16.mxu0 0
        %4731 = vmatpush2.bf16.msra.mxu0 0
        %4732 = vmatprep.subr.bf16.mxu0 0
        %4733 = vmatpush2.bf16.msra.mxu0 0
        %4734 = vmatprep.mubr.bf16.mxu0 0
        %4735 = vmatmul.mubr.bf16.gmra.mxu0 %v4700
        %v4736 = vpop.f32.mrf.mxu0
        %v4737 = vadd.f32 0.0, %v4736
        %v4738 = vpop.f32.mrf.mxu0
        %v4739 = vpop.f32.mrf.mxu0
        %v4740 = vadd.f32 0.0, %v4739
        %v4741 = vpop.f32.mrf.mxu0
        %4742 = vdwg.mxu0
        %v4743 = vcombine.low %v4533, %v4669
        %v4744 = vcombine.high %v4533, %v4669
        %v4746 = vunpack.c.l.s4 1983009808
        %v4747 = vunpack.c.0.s8 %v4746
        %v4748 = vlaneseq
        %v4749 = vshrl.u32 %v4748, 7
        %v4750 = vsub.s32 %v4747, %v4749
        %v4751 = vrot.slane %v4743, %v4750
        %v4753 = vunpack.c.l.s4 1983009808
        %v4754 = vunpack.c.0.s8 %v4753
        %v4755 = vlaneseq
        %v4756 = vshrl.u32 %v4755, 7
        %v4757 = vsub.s32 %v4754, %v4756
        %v4758 = vrot.slane %v4744, %v4757
        %v4759 = vcombine.low %v4601, %v4737
        %v4760 = vcombine.high %v4601, %v4737
        %v4762 = vunpack.c.l.s4 1983009808
        %v4763 = vunpack.c.0.s8 %v4762
        %v4764 = vlaneseq
        %v4765 = vshrl.u32 %v4764, 7
        %v4766 = vsub.s32 %v4763, %v4765
        %v4767 = vrot.slane %v4759, %v4766
        %v4769 = vunpack.c.l.s4 1983009808
        %v4770 = vunpack.c.0.s8 %v4769
        %v4771 = vlaneseq
        %v4772 = vshrl.u32 %v4771, 7
        %v4773 = vsub.s32 %v4770, %v4772
        %v4774 = vrot.slane %v4760, %v4773
        %v4775 = vcombine.low %v4751, %v4767
        %v4776 = vcombine.high %v4751, %v4767
        %v4778 = vunpack.c.l.s4 1934713408
        %v4779 = vunpack.c.0.s8 %v4778
        %v4780 = vlaneseq
        %v4781 = vshrl.u32 %v4780, 7
        %v4782 = vsub.s32 %v4779, %v4781
        %v4783 = vrot.slane %v4775, %v4782
        %v4785 = vunpack.c.l.s4 1934713408
        %v4786 = vunpack.c.0.s8 %v4785
        %v4787 = vlaneseq
        %v4788 = vshrl.u32 %v4787, 7
        %v4789 = vsub.s32 %v4786, %v4788
        %v4790 = vrot.slane %v4776, %v4789
        %v4791 = vcombine.low %v4758, %v4774
        %v4792 = vcombine.high %v4758, %v4774
        %v4794 = vunpack.c.l.s4 1934713408
        %v4795 = vunpack.c.0.s8 %v4794
        %v4796 = vlaneseq
        %v4797 = vshrl.u32 %v4796, 7
        %v4798 = vsub.s32 %v4795, %v4797
        %v4799 = vrot.slane %v4791, %v4798
        %v4801 = vunpack.c.l.s4 1934713408
        %v4802 = vunpack.c.0.s8 %v4801
        %v4803 = vlaneseq
        %v4804 = vshrl.u32 %v4803, 7
        %v4805 = vsub.s32 %v4802, %v4804
        %v4806 = vrot.slane %v4792, %v4805
        %v4807 = vcombine.high %v4783, 0.0
        %v4808 = vcombine.high %v4790, 0.0
        %v4809 = vcombine.high %v4799, 0.0
        %v4810 = vcombine.high %v4806, 0.0
        %v4811 = vcombine.low %v4536, %v4672
        %v4812 = vcombine.high %v4536, %v4672
        %v4814 = vunpack.c.l.s4 1983009808
        %v4815 = vunpack.c.0.s8 %v4814
        %v4816 = vlaneseq
        %v4817 = vshrl.u32 %v4816, 7
        %v4818 = vsub.s32 %v4815, %v4817
        %v4819 = vrot.slane %v4811, %v4818
        %v4821 = vunpack.c.l.s4 1983009808
        %v4822 = vunpack.c.0.s8 %v4821
        %v4823 = vlaneseq
        %v4824 = vshrl.u32 %v4823, 7
        %v4825 = vsub.s32 %v4822, %v4824
        %v4826 = vrot.slane %v4812, %v4825
        %v4827 = vcombine.low %v4604, %v4740
        %v4828 = vcombine.high %v4604, %v4740
        %v4830 = vunpack.c.l.s4 1983009808
        %v4831 = vunpack.c.0.s8 %v4830
        %v4832 = vlaneseq
        %v4833 = vshrl.u32 %v4832, 7
        %v4834 = vsub.s32 %v4831, %v4833
        %v4835 = vrot.slane %v4827, %v4834
        %v4837 = vunpack.c.l.s4 1983009808
        %v4838 = vunpack.c.0.s8 %v4837
        %v4839 = vlaneseq
        %v4840 = vshrl.u32 %v4839, 7
        %v4841 = vsub.s32 %v4838, %v4840
        %v4842 = vrot.slane %v4828, %v4841
        %v4843 = vcombine.low %v4819, %v4835
        %v4844 = vcombine.high %v4819, %v4835
        %v4846 = vunpack.c.l.s4 1934713408
        %v4847 = vunpack.c.0.s8 %v4846
        %v4848 = vlaneseq
        %v4849 = vshrl.u32 %v4848, 7
        %v4850 = vsub.s32 %v4847, %v4849
        %v4851 = vrot.slane %v4843, %v4850
        %v4853 = vunpack.c.l.s4 1934713408
        %v4854 = vunpack.c.0.s8 %v4853
        %v4855 = vlaneseq
        %v4856 = vshrl.u32 %v4855, 7
        %v4857 = vsub.s32 %v4854, %v4856
        %v4858 = vrot.slane %v4844, %v4857
        %v4859 = vcombine.low %v4826, %v4842
        %v4860 = vcombine.high %v4826, %v4842
        %v4862 = vunpack.c.l.s4 1934713408
        %v4863 = vunpack.c.0.s8 %v4862
        %v4864 = vlaneseq
        %v4865 = vshrl.u32 %v4864, 7
        %v4866 = vsub.s32 %v4863, %v4865
        %v4867 = vrot.slane %v4859, %v4866
        %v4869 = vunpack.c.l.s4 1934713408
        %v4870 = vunpack.c.0.s8 %v4869
        %v4871 = vlaneseq
        %v4872 = vshrl.u32 %v4871, 7
        %v4873 = vsub.s32 %v4870, %v4872
        %v4874 = vrot.slane %v4860, %v4873
        %v4875 = vcombine.high %v4851, 0.0
        %v4876 = vcombine.high %v4858, 0.0
        %v4877 = vcombine.high %v4867, 0.0
        %v4878 = vcombine.high %v4874, 0.0
        %v4879 = vcombine.low %v4783, %v4790
        %v4881 = vunpack.c.l.s4 1983009808
        %v4882 = vunpack.c.0.s8 %v4881
        %v4883 = vlaneseq
        %v4884 = vshrl.u32 %v4883, 7
        %v4885 = vsub.s32 %v4882, %v4884
        %v4886 = vrot.slane %v4879, %v4885
        %v4887 = vcombine.low %v4807, %v4808
        %v4889 = vunpack.c.l.s4 1983009808
        %v4890 = vunpack.c.0.s8 %v4889
        %v4891 = vlaneseq
        %v4892 = vshrl.u32 %v4891, 7
        %v4893 = vsub.s32 %v4890, %v4892
        %v4894 = vrot.slane %v4887, %v4893
        %v4895 = vcombine.low %v4799, %v4806
        %v4897 = vunpack.c.l.s4 1983009808
        %v4898 = vunpack.c.0.s8 %v4897
        %v4899 = vlaneseq
        %v4900 = vshrl.u32 %v4899, 7
        %v4901 = vsub.s32 %v4898, %v4900
        %v4902 = vrot.slane %v4895, %v4901
        %v4903 = vcombine.low %v4809, %v4810
        %v4905 = vunpack.c.l.s4 1983009808
        %v4906 = vunpack.c.0.s8 %v4905
        %v4907 = vlaneseq
        %v4908 = vshrl.u32 %v4907, 7
        %v4909 = vsub.s32 %v4906, %v4908
        %v4910 = vrot.slane %v4903, %v4909
        %v4911 = vcombine.low %v4886, %v4894
        %v4912 = vcombine.high %v4886, %v4894
        %v4914 = vunpack.c.l.s4 1934713408
        %v4915 = vunpack.c.0.s8 %v4914
        %v4916 = vlaneseq
        %v4917 = vshrl.u32 %v4916, 7
        %v4918 = vsub.s32 %v4915, %v4917
        %v4919 = vrot.slane %v4911, %v4918
        %v4921 = vunpack.c.l.s4 1934713408
        %v4922 = vunpack.c.0.s8 %v4921
        %v4923 = vlaneseq
        %v4924 = vshrl.u32 %v4923, 7
        %v4925 = vsub.s32 %v4922, %v4924
        %v4926 = vrot.slane %v4912, %v4925
        %v4927 = vcombine.low %v4902, %v4910
        %v4928 = vcombine.high %v4902, %v4910
        %v4930 = vunpack.c.l.s4 1934713408
        %v4931 = vunpack.c.0.s8 %v4930
        %v4932 = vlaneseq
        %v4933 = vshrl.u32 %v4932, 7
        %v4934 = vsub.s32 %v4931, %v4933
        %v4935 = vrot.slane %v4927, %v4934
        %v4937 = vunpack.c.l.s4 1934713408
        %v4938 = vunpack.c.0.s8 %v4937
        %v4939 = vlaneseq
        %v4940 = vshrl.u32 %v4939, 7
        %v4941 = vsub.s32 %v4938, %v4940
        %v4942 = vrot.slane %v4928, %v4941
        %v4943 = vcombine.low %v4919, %v4935
        %v4944 = vcombine.high %v4919, %v4935
        %v4945 = vcombine.low %v4926, %v4942
        %v4946 = vcombine.high %v4926, %v4942
        %v4947 = vcombine.low %v4851, %v4858
        %v4949 = vunpack.c.l.s4 1983009808
        %v4950 = vunpack.c.0.s8 %v4949
        %v4951 = vlaneseq
        %v4952 = vshrl.u32 %v4951, 7
        %v4953 = vsub.s32 %v4950, %v4952
        %v4954 = vrot.slane %v4947, %v4953
        %v4955 = vcombine.low %v4875, %v4876
        %v4957 = vunpack.c.l.s4 1983009808
        %v4958 = vunpack.c.0.s8 %v4957
        %v4959 = vlaneseq
        %v4960 = vshrl.u32 %v4959, 7
        %v4961 = vsub.s32 %v4958, %v4960
        %v4962 = vrot.slane %v4955, %v4961
        %v4963 = vcombine.low %v4867, %v4874
        %v4965 = vunpack.c.l.s4 1983009808
        %v4966 = vunpack.c.0.s8 %v4965
        %v4967 = vlaneseq
        %v4968 = vshrl.u32 %v4967, 7
        %v4969 = vsub.s32 %v4966, %v4968
        %v4970 = vrot.slane %v4963, %v4969
        %v4971 = vcombine.low %v4877, %v4878
        %v4973 = vunpack.c.l.s4 1983009808
        %v4974 = vunpack.c.0.s8 %v4973
        %v4975 = vlaneseq
        %v4976 = vshrl.u32 %v4975, 7
        %v4977 = vsub.s32 %v4974, %v4976
        %v4978 = vrot.slane %v4971, %v4977
        %v4979 = vcombine.low %v4954, %v4962
        %v4980 = vcombine.high %v4954, %v4962
        %v4982 = vunpack.c.l.s4 1934713408
        %v4983 = vunpack.c.0.s8 %v4982
        %v4984 = vlaneseq
        %v4985 = vshrl.u32 %v4984, 7
        %v4986 = vsub.s32 %v4983, %v4985
        %v4987 = vrot.slane %v4979, %v4986
        %v4989 = vunpack.c.l.s4 1934713408
        %v4990 = vunpack.c.0.s8 %v4989
        %v4991 = vlaneseq
        %v4992 = vshrl.u32 %v4991, 7
        %v4993 = vsub.s32 %v4990, %v4992
        %v4994 = vrot.slane %v4980, %v4993
        %v4995 = vcombine.low %v4970, %v4978
        %v4996 = vcombine.high %v4970, %v4978
        %v4998 = vunpack.c.l.s4 1934713408
        %v4999 = vunpack.c.0.s8 %v4998
        %v5000 = vlaneseq
        %v5001 = vshrl.u32 %v5000, 7
        %v5002 = vsub.s32 %v4999, %v5001
        %v5003 = vrot.slane %v4995, %v5002
        %v5005 = vunpack.c.l.s4 1934713408
        %v5006 = vunpack.c.0.s8 %v5005
        %v5007 = vlaneseq
        %v5008 = vshrl.u32 %v5007, 7
        %v5009 = vsub.s32 %v5006, %v5008
        %v5010 = vrot.slane %v4996, %v5009
        %v5011 = vcombine.low %v4987, %v5003
        %v5012 = vcombine.high %v4987, %v5003
        %v5013 = vcombine.low %v4994, %v5010
        %v5014 = vcombine.high %v4994, %v5010
        %5017 = vrot.lane.b32.xlu0 %v4944, 32
        %v5018 = vpop.permute.xlu0 %5017
        %5019 = vrot.lane.b32.xlu0 %v5012, 32
        %v5020 = vpop.permute.xlu0 %5019
        %5025 = vrot.lane.b32.xlu0 %v4945, 64
        %v5026 = vpop.permute.xlu0 %5025
        %5027 = vrot.lane.b32.xlu0 %v5013, 64
        %v5028 = vpop.permute.xlu0 %5027
        %5033 = vrot.lane.b32.xlu0 %v4946, 96
        %v5034 = vpop.permute.xlu0 %5033
        %5035 = vrot.lane.b32.xlu0 %v5014, 96
        %v5036 = vpop.permute.xlu0 %5035
        %v5039 = vsel %vm4046, %v4943, %v5018
        %v5040 = vsel %vm4046, %v5011, %v5020
        %v5041 = vsel %vm4346, %v5039, %v5026
        %v5042 = vsel %vm4346, %v5040, %v5028
        %vm5043 = vcmask 785408
        %v5044 = vsel %vm5043, %v5041, %v5034
        %v5045 = vsel %vm5043, %v5042, %v5036
        %v5046 = vpack.c.bf16 %v5045, %v5044
        %v5047 = vld [vmem:[#allocation15] sm:$0xf]
        %v5048 = vld [vmem:[#allocation15 + $0x4] sm:$0xf]
        %v5049 = vld [vmem:[#allocation15 + $0x8] sm:$0xf]
        %v5050 = vld [vmem:[#allocation15 + $0xc] sm:$0xf]
        %v5051 = vld [vmem:[#allocation15 + $0x10] sm:$0xf]
        %v5052 = vld [vmem:[#allocation15 + $0x14] sm:$0xf]
        %v5053 = vld [vmem:[#allocation15 + $0x18] sm:$0xf]
        %v5054 = vld [vmem:[#allocation15 + $0x1c] sm:$0xf]
        %v5055 = vld [vmem:[#allocation15 + $0x20] sm:$0xf]
        %v5056 = vld [vmem:[#allocation15 + $0x24] sm:$0xf]
        %v5057 = vld [vmem:[#allocation15 + $0x28] sm:$0xf]
        %v5058 = vld [vmem:[#allocation15 + $0x2c] sm:$0xf]
        %v5059 = vld [vmem:[#allocation15 + $0x30] sm:$0xf]
        %v5060 = vld [vmem:[#allocation15 + $0x34] sm:$0xf]
        %v5061 = vld [vmem:[#allocation15 + $0x38] sm:$0xf]
        %v5062 = vld [vmem:[#allocation15 + $0x3c] sm:$0xf]
        %v5079 = vunpack.c.l.b16 %v5047
        %v5080 = vunpack.c.l.b16 %v5048
        %v5081 = vunpack.c.l.b16 %v5049
        %v5082 = vunpack.c.l.b16 %v5050
        %v5083 = vunpack.c.l.b16 %v5051
        %v5084 = vunpack.c.l.b16 %v5052
        %v5085 = vunpack.c.l.b16 %v5053
        %v5086 = vunpack.c.l.b16 %v5054
        %v5087 = vunpack.c.l.b16 %v5055
        %v5088 = vunpack.c.l.b16 %v5056
        %v5089 = vunpack.c.l.b16 %v5057
        %v5090 = vunpack.c.l.b16 %v5058
        %v5091 = vunpack.c.l.b16 %v5059
        %v5092 = vunpack.c.l.b16 %v5060
        %v5093 = vunpack.c.l.b16 %v5061
        %v5094 = vunpack.c.l.b16 %v5062
        %v5095 = vpack.c.b16 %v5080, %v5079
        %v5096 = vpack.c.b16 %v5082, %v5081
        %v5097 = vpack.c.b16 %v5084, %v5083
        %v5098 = vpack.c.b16 %v5086, %v5085
        %v5099 = vpack.c.b16 %v5088, %v5087
        %v5100 = vpack.c.b16 %v5090, %v5089
        %v5101 = vpack.c.b16 %v5092, %v5091
        %v5102 = vpack.c.b16 %v5094, %v5093
        %5111 = vmatprep.subr.bf16.mxu0 0
        %5112 = vmatpush1.bf16.msra.mxu0 %v5102
        %5113 = vmatprep.subr.bf16.mxu0 0
        %5114 = vmatpush1.bf16.msra.mxu0 %v5101
        %5115 = vmatprep.subr.bf16.mxu0 0
        %5116 = vmatpush1.bf16.msra.mxu0 %v5100
        %5117 = vmatprep.subr.bf16.mxu0 0
        %5118 = vmatpush1.bf16.msra.mxu0 %v5099
        %5119 = vmatprep.subr.bf16.mxu0 0
        %5120 = vmatpush1.bf16.msra.mxu0 %v5098
        %5121 = vmatprep.subr.bf16.mxu0 0
        %5122 = vmatpush1.bf16.msra.mxu0 %v5097
        %5123 = vmatprep.subr.bf16.mxu0 0
        %5124 = vmatpush1.bf16.msra.mxu0 %v5096
        %5125 = vmatprep.subr.bf16.mxu0 0
        %5126 = vmatpush1.bf16.msra.mxu0 %v5095
        %5127 = vmatprep.subr.bf16.mxu0 0
        %5128 = vmatpush2.bf16.msra.mxu0 0
        %5129 = vmatprep.subr.bf16.mxu0 0
        %5130 = vmatpush2.bf16.msra.mxu0 0
        %5131 = vmatprep.subr.bf16.mxu0 0
        %5132 = vmatpush2.bf16.msra.mxu0 0
        %5133 = vmatprep.subr.bf16.mxu0 0
        %5134 = vmatpush2.bf16.msra.mxu0 0
        %5135 = vmatprep.subr.bf16.mxu0 0
        %5136 = vmatpush2.bf16.msra.mxu0 0
        %5137 = vmatprep.subr.bf16.mxu0 0
        %5138 = vmatpush2.bf16.msra.mxu0 0
        %5139 = vmatprep.subr.bf16.mxu0 0
        %5140 = vmatpush2.bf16.msra.mxu0 0
        %5141 = vmatprep.subr.bf16.mxu0 0
        %5142 = vmatpush2.bf16.msra.mxu0 0
        %5143 = vmatprep.mubr.bf16.mxu0 0
        %5144 = vmatmul.mubr.bf16.gmra.mxu0 %v5046
        %v5145 = vpop.f32.mrf.mxu0
        %v5146 = vadd.f32 %v3590, %v5145
        %v5147 = vpop.f32.mrf.mxu0
        %v5148 = vpop.f32.mrf.mxu0
        %v5149 = vadd.f32 %v3591, %v5148
        %v5150 = vpop.f32.mrf.mxu0
        %5151 = vdwg.mxu0
        %5152 = vadd.xlane.f32.xlu0 %v5146
        %v5153 = vpop.xlane.xlu0 %5152
        %5154 = vadd.xlane.f32.xlu0 %v5149
        %v5155 = vpop.xlane.xlu0 %5154
        %v5156 = vrcp.pop 128.0
        %v5157 = vmul.f32 %v5153, %v5156
        %v5158 = vmul.f32 %v5155, %v5156
        %v5159 = vsub.f32 %v5146, %v5157
        %v5160 = vsub.f32 %v5149, %v5158
        %v5161 = vmul.f32 %v5159, %v5159
        %v5162 = vmul.f32 %v5160, %v5160
        %5163 = vadd.xlane.f32.xlu0 %v5161
        %v5164 = vpop.xlane.xlu0 %5163
        %5165 = vadd.xlane.f32.xlu0 %v5162
        %v5166 = vpop.xlane.xlu0 %5165
        %v5167 = vmul.f32 %v5164, %v5156
        %v5168 = vmul.f32 %v5166, %v5156
        %v5169 = vadd.f32 %v5167, 1e-05
        %v5170 = vadd.f32 %v5168, 1e-05
        %v5171 = vrsqrt.pop %v5169
        %v5172 = vrsqrt.pop %v5170
        %v5173 = vmul.f32 %v5159, %v5171
        %v5174 = vmul.f32 %v5160, %v5172
        %v5175 = vld [vmem:[%s7] sm:$0x1]
        %v5177 = vlaneseq
        %v5178 = vshrl.u32 %v5177, 7
        %v5179 = vsub.s32 0, %v5178
        %v5180 = vrot.slane %v5175, %v5179
        %v5182 = vmul.f32 %v5173, %v5180
        %v5183 = vmul.f32 %v5174, %v5180
        %v5184 = vld [vmem:[%s8] sm:$0x1]
        %v5186 = vlaneseq
        %v5187 = vshrl.u32 %v5186, 7
        %v5188 = vsub.s32 0, %v5187
        %v5189 = vrot.slane %v5184, %v5188
        %v5191 = vadd.f32 %v5182, %v5189
        %v5192 = vadd.f32 %v5183, %v5189
        %v5193 = vpack.c.bf16 %v5192, %v5191
        %v5194 = vld [vmem:[#allocation17] sm:$0xff]
        %v5195 = vld [vmem:[#allocation17 + $0x8] sm:$0xff]
        %v5196 = vld [vmem:[#allocation17 + $0x10] sm:$0xff]
        %v5197 = vld [vmem:[#allocation17 + $0x18] sm:$0xff]
        %v5198 = vld [vmem:[#allocation17 + $0x20] sm:$0xff]
        %v5199 = vld [vmem:[#allocation17 + $0x28] sm:$0xff]
        %v5200 = vld [vmem:[#allocation17 + $0x30] sm:$0xff]
        %v5201 = vld [vmem:[#allocation17 + $0x38] sm:$0xff]
        %v5202 = vld [vmem:[#allocation17 + $0x40] sm:$0xff]
        %v5203 = vld [vmem:[#allocation17 + $0x48] sm:$0xff]
        %v5204 = vld [vmem:[#allocation17 + $0x50] sm:$0xff]
        %v5205 = vld [vmem:[#allocation17 + $0x58] sm:$0xff]
        %v5206 = vld [vmem:[#allocation17 + $0x60] sm:$0xff]
        %v5207 = vld [vmem:[#allocation17 + $0x68] sm:$0xff]
        %v5208 = vld [vmem:[#allocation17 + $0x70] sm:$0xff]
        %v5209 = vld [vmem:[#allocation17 + $0x78] sm:$0xff]
        %v5210 = vld [vmem:[%s12] sm:$0x3]
        %v5212 = vlaneseq
        %v5213 = vshrl.u32 %v5212, 7
        %v5214 = vsub.s32 0, %v5213
        %v5215 = vrot.slane %v5210, %v5214
        %v5216 = vlaneseq
        %v5217 = vshrl.u32 %v5216, 7
        %v5218 = vsub.s32 1, %v5217
        %v5219 = vrot.slane %v5210, %v5218
        %v5238 = vunpack.c.l.b16 %v5194
        %v5239 = vunpack.c.h.b16 %v5194
        %v5240 = vunpack.c.l.b16 %v5195
        %v5241 = vunpack.c.h.b16 %v5195
        %v5242 = vunpack.c.l.b16 %v5196
        %v5243 = vunpack.c.h.b16 %v5196
        %v5244 = vunpack.c.l.b16 %v5197
        %v5245 = vunpack.c.h.b16 %v5197
        %v5246 = vunpack.c.l.b16 %v5198
        %v5247 = vunpack.c.h.b16 %v5198
        %v5248 = vunpack.c.l.b16 %v5199
        %v5249 = vunpack.c.h.b16 %v5199
        %v5250 = vunpack.c.l.b16 %v5200
        %v5251 = vunpack.c.h.b16 %v5200
        %v5252 = vunpack.c.l.b16 %v5201
        %v5253 = vunpack.c.h.b16 %v5201
        %v5254 = vunpack.c.l.b16 %v5202
        %v5255 = vunpack.c.h.b16 %v5202
        %v5256 = vunpack.c.l.b16 %v5203
        %v5257 = vunpack.c.h.b16 %v5203
        %v5258 = vunpack.c.l.b16 %v5204
        %v5259 = vunpack.c.h.b16 %v5204
        %v5260 = vunpack.c.l.b16 %v5205
        %v5261 = vunpack.c.h.b16 %v5205
        %v5262 = vunpack.c.l.b16 %v5206
        %v5263 = vunpack.c.h.b16 %v5206
        %v5264 = vunpack.c.l.b16 %v5207
        %v5265 = vunpack.c.h.b16 %v5207
        %v5266 = vunpack.c.l.b16 %v5208
        %v5267 = vunpack.c.h.b16 %v5208
        %v5268 = vunpack.c.l.b16 %v5209
        %v5269 = vunpack.c.h.b16 %v5209
        %v5270 = vpack.c.b16 %v5240, %v5238
        %v5271 = vpack.c.b16 %v5241, %v5239
        %v5272 = vpack.c.b16 %v5244, %v5242
        %v5273 = vpack.c.b16 %v5245, %v5243
        %v5274 = vpack.c.b16 %v5248, %v5246
        %v5275 = vpack.c.b16 %v5249, %v5247
        %v5276 = vpack.c.b16 %v5252, %v5250
        %v5277 = vpack.c.b16 %v5253, %v5251
        %v5278 = vpack.c.b16 %v5256, %v5254
        %v5279 = vpack.c.b16 %v5257, %v5255
        %v5280 = vpack.c.b16 %v5260, %v5258
        %v5281 = vpack.c.b16 %v5261, %v5259
        %v5282 = vpack.c.b16 %v5264, %v5262
        %v5283 = vpack.c.b16 %v5265, %v5263
        %v5284 = vpack.c.b16 %v5268, %v5266
        %v5285 = vpack.c.b16 %v5269, %v5267
        %5302 = vmatprep.subr.bf16.mxu0 %v5285
        %5303 = vmatpush1.bf16.msra.mxu0 %v5284
        %5304 = vmatprep.subr.bf16.mxu0 %v5283
        %5305 = vmatpush1.bf16.msra.mxu0 %v5282
        %5306 = vmatprep.subr.bf16.mxu0 %v5281
        %5307 = vmatpush1.bf16.msra.mxu0 %v5280
        %5308 = vmatprep.subr.bf16.mxu0 %v5279
        %5309 = vmatpush1.bf16.msra.mxu0 %v5278
        %5310 = vmatprep.subr.bf16.mxu0 %v5277
        %5311 = vmatpush1.bf16.msra.mxu0 %v5276
        %5312 = vmatprep.subr.bf16.mxu0 %v5275
        %5313 = vmatpush1.bf16.msra.mxu0 %v5274
        %5314 = vmatprep.subr.bf16.mxu0 %v5273
        %5315 = vmatpush1.bf16.msra.mxu0 %v5272
        %5316 = vmatprep.subr.bf16.mxu0 %v5271
        %5317 = vmatpush1.bf16.msra.mxu0 %v5270
        %5318 = vmatprep.subr.bf16.mxu0 0
        %5319 = vmatpush2.bf16.msra.mxu0 0
        %5320 = vmatprep.subr.bf16.mxu0 0
        %5321 = vmatpush2.bf16.msra.mxu0 0
        %5322 = vmatprep.subr.bf16.mxu0 0
        %5323 = vmatpush2.bf16.msra.mxu0 0
        %5324 = vmatprep.subr.bf16.mxu0 0
        %5325 = vmatpush2.bf16.msra.mxu0 0
        %5326 = vmatprep.subr.bf16.mxu0 0
        %5327 = vmatpush2.bf16.msra.mxu0 0
        %5328 = vmatprep.subr.bf16.mxu0 0
        %5329 = vmatpush2.bf16.msra.mxu0 0
        %5330 = vmatprep.subr.bf16.mxu0 0
        %5331 = vmatpush2.bf16.msra.mxu0 0
        %5332 = vmatprep.subr.bf16.mxu0 0
        %5333 = vmatpush2.bf16.msra.mxu0 0
        %5334 = vmatprep.mubr.bf16.mxu0 0
        %5335 = vmatmul.mubr.bf16.gmra.mxu0 %v5193
        %v5336 = vpop.f32.mrf.mxu0
        %v5337 = vadd.f32 %v5215, %v5336
        %v5338 = vpop.f32.mrf.mxu0
        %v5339 = vadd.f32 %v5219, %v5338
        %v5340 = vpop.f32.mrf.mxu0
        %v5341 = vadd.f32 %v5215, %v5340
        %v5342 = vpop.f32.mrf.mxu0
        %v5343 = vadd.f32 %v5219, %v5342
        %5344 = vdwg.mxu0
        %v5345 = vmax.f32 %v5337, 0.0
        %v5346 = vmax.f32 %v5339, 0.0
        %v5347 = vmax.f32 %v5341, 0.0
        %v5348 = vmax.f32 %v5343, 0.0
        %v5349 = vpack.c.bf16 %v5347, %v5345
        %v5350 = vpack.c.bf16 %v5348, %v5346
        %v5351 = vld [vmem:[#allocation18] sm:$0xf]
        %v5352 = vld [vmem:[#allocation18 + $0x4] sm:$0xf]
        %v5353 = vld [vmem:[#allocation18 + $0x8] sm:$0xf]
        %v5354 = vld [vmem:[#allocation18 + $0xc] sm:$0xf]
        %v5355 = vld [vmem:[#allocation18 + $0x10] sm:$0xf]
        %v5356 = vld [vmem:[#allocation18 + $0x14] sm:$0xf]
        %v5357 = vld [vmem:[#allocation18 + $0x18] sm:$0xf]
        %v5358 = vld [vmem:[#allocation18 + $0x1c] sm:$0xf]
        %v5359 = vld [vmem:[#allocation18 + $0x20] sm:$0xf]
        %v5360 = vld [vmem:[#allocation18 + $0x24] sm:$0xf]
        %v5361 = vld [vmem:[#allocation18 + $0x28] sm:$0xf]
        %v5362 = vld [vmem:[#allocation18 + $0x2c] sm:$0xf]
        %v5363 = vld [vmem:[#allocation18 + $0x30] sm:$0xf]
        %v5364 = vld [vmem:[#allocation18 + $0x34] sm:$0xf]
        %v5365 = vld [vmem:[#allocation18 + $0x38] sm:$0xf]
        %v5366 = vld [vmem:[#allocation18 + $0x3c] sm:$0xf]
        %v5367 = vld [vmem:[#allocation18 + $0x40] sm:$0xf]
        %v5368 = vld [vmem:[#allocation18 + $0x44] sm:$0xf]
        %v5369 = vld [vmem:[#allocation18 + $0x48] sm:$0xf]
        %v5370 = vld [vmem:[#allocation18 + $0x4c] sm:$0xf]
        %v5371 = vld [vmem:[#allocation18 + $0x50] sm:$0xf]
        %v5372 = vld [vmem:[#allocation18 + $0x54] sm:$0xf]
        %v5373 = vld [vmem:[#allocation18 + $0x58] sm:$0xf]
        %v5374 = vld [vmem:[#allocation18 + $0x5c] sm:$0xf]
        %v5375 = vld [vmem:[#allocation18 + $0x60] sm:$0xf]
        %v5376 = vld [vmem:[#allocation18 + $0x64] sm:$0xf]
        %v5377 = vld [vmem:[#allocation18 + $0x68] sm:$0xf]
        %v5378 = vld [vmem:[#allocation18 + $0x6c] sm:$0xf]
        %v5379 = vld [vmem:[#allocation18 + $0x70] sm:$0xf]
        %v5380 = vld [vmem:[#allocation18 + $0x74] sm:$0xf]
        %v5381 = vld [vmem:[#allocation18 + $0x78] sm:$0xf]
        %v5382 = vld [vmem:[#allocation18 + $0x7c] sm:$0xf]
        %v5383 = vld [vmem:[%s14] sm:$0x1]
        %v5385 = vlaneseq
        %v5386 = vshrl.u32 %v5385, 7
        %v5387 = vsub.s32 0, %v5386
        %v5388 = vrot.slane %v5383, %v5387
        %v5422 = vunpack.c.l.b16 %v5351
        %v5423 = vunpack.c.l.b16 %v5352
        %v5424 = vunpack.c.l.b16 %v5353
        %v5425 = vunpack.c.l.b16 %v5354
        %v5426 = vunpack.c.l.b16 %v5355
        %v5427 = vunpack.c.l.b16 %v5356
        %v5428 = vunpack.c.l.b16 %v5357
        %v5429 = vunpack.c.l.b16 %v5358
        %v5430 = vunpack.c.l.b16 %v5359
        %v5431 = vunpack.c.l.b16 %v5360
        %v5432 = vunpack.c.l.b16 %v5361
        %v5433 = vunpack.c.l.b16 %v5362
        %v5434 = vunpack.c.l.b16 %v5363
        %v5435 = vunpack.c.l.b16 %v5364
        %v5436 = vunpack.c.l.b16 %v5365
        %v5437 = vunpack.c.l.b16 %v5366
        %v5438 = vunpack.c.l.b16 %v5367
        %v5439 = vunpack.c.l.b16 %v5368
        %v5440 = vunpack.c.l.b16 %v5369
        %v5441 = vunpack.c.l.b16 %v5370
        %v5442 = vunpack.c.l.b16 %v5371
        %v5443 = vunpack.c.l.b16 %v5372
        %v5444 = vunpack.c.l.b16 %v5373
        %v5445 = vunpack.c.l.b16 %v5374
        %v5446 = vunpack.c.l.b16 %v5375
        %v5447 = vunpack.c.l.b16 %v5376
        %v5448 = vunpack.c.l.b16 %v5377
        %v5449 = vunpack.c.l.b16 %v5378
        %v5450 = vunpack.c.l.b16 %v5379
        %v5451 = vunpack.c.l.b16 %v5380
        %v5452 = vunpack.c.l.b16 %v5381
        %v5453 = vunpack.c.l.b16 %v5382
        %v5454 = vpack.c.b16 %v5423, %v5422
        %v5455 = vpack.c.b16 %v5425, %v5424
        %v5456 = vpack.c.b16 %v5427, %v5426
        %v5457 = vpack.c.b16 %v5429, %v5428
        %v5458 = vpack.c.b16 %v5431, %v5430
        %v5459 = vpack.c.b16 %v5433, %v5432
        %v5460 = vpack.c.b16 %v5435, %v5434
        %v5461 = vpack.c.b16 %v5437, %v5436
        %v5462 = vpack.c.b16 %v5439, %v5438
        %v5463 = vpack.c.b16 %v5441, %v5440
        %v5464 = vpack.c.b16 %v5443, %v5442
        %v5465 = vpack.c.b16 %v5445, %v5444
        %v5466 = vpack.c.b16 %v5447, %v5446
        %v5467 = vpack.c.b16 %v5449, %v5448
        %v5468 = vpack.c.b16 %v5451, %v5450
        %v5469 = vpack.c.b16 %v5453, %v5452
        %5486 = vmatprep.subr.bf16.mxu0 0
        %5487 = vmatpush1.bf16.msra.mxu0 %v5461
        %5488 = vmatprep.subr.bf16.mxu0 0
        %5489 = vmatpush1.bf16.msra.mxu0 %v5460
        %5490 = vmatprep.subr.bf16.mxu0 0
        %5491 = vmatpush1.bf16.msra.mxu0 %v5459
        %5492 = vmatprep.subr.bf16.mxu0 0
        %5493 = vmatpush1.bf16.msra.mxu0 %v5458
        %5494 = vmatprep.subr.bf16.mxu0 0
        %5495 = vmatpush1.bf16.msra.mxu0 %v5457
        %5496 = vmatprep.subr.bf16.mxu0 0
        %5497 = vmatpush1.bf16.msra.mxu0 %v5456
        %5498 = vmatprep.subr.bf16.mxu0 0
        %5499 = vmatpush1.bf16.msra.mxu0 %v5455
        %5500 = vmatprep.subr.bf16.mxu0 0
        %5501 = vmatpush1.bf16.msra.mxu0 %v5454
        %5502 = vmatprep.subr.bf16.mxu0 0
        %5503 = vmatpush2.bf16.msra.mxu0 %v5469
        %5504 = vmatprep.subr.bf16.mxu0 0
        %5505 = vmatpush2.bf16.msra.mxu0 %v5468
        %5506 = vmatprep.subr.bf16.mxu0 0
        %5507 = vmatpush2.bf16.msra.mxu0 %v5467
        %5508 = vmatprep.subr.bf16.mxu0 0
        %5509 = vmatpush2.bf16.msra.mxu0 %v5466
        %5510 = vmatprep.subr.bf16.mxu0 0
        %5511 = vmatpush2.bf16.msra.mxu0 %v5465
        %5512 = vmatprep.subr.bf16.mxu0 0
        %5513 = vmatpush2.bf16.msra.mxu0 %v5464
        %5514 = vmatprep.subr.bf16.mxu0 0
        %5515 = vmatpush2.bf16.msra.mxu0 %v5463
        %5516 = vmatprep.subr.bf16.mxu0 0
        %5517 = vmatpush2.bf16.msra.mxu0 %v5462
        %5518 = vmatprep.mubr.bf16.mxu0 %v5350
        %5519 = vmatmul.mubr.bf16.gmra.mxu0 %v5349
        %v5520 = vpop.f32.mrf.mxu0
        %v5521 = vadd.f32 %v5388, %v5520
        %v5522 = vpop.f32.mrf.mxu0
        %v5523 = vpop.f32.mrf.mxu0
        %v5524 = vadd.f32 %v5388, %v5523
        %v5525 = vpop.f32.mrf.mxu0
        %5526 = vdwg.mxu0
        %v5527 = vadd.f32 %v5521, %v5191
        %v5528 = vadd.f32 %v5524, %v5192
        %5529 = vadd.xlane.f32.xlu0 %v5527
        %v5530 = vpop.xlane.xlu0 %5529
        %5531 = vadd.xlane.f32.xlu0 %v5528
        %v5532 = vpop.xlane.xlu0 %5531
        %v5533 = vmul.f32 %v5530, %v5156
        %v5534 = vmul.f32 %v5532, %v5156
        %v5535 = vsub.f32 %v5527, %v5533
        %v5536 = vsub.f32 %v5528, %v5534
        %v5537 = vmul.f32 %v5535, %v5535
        %v5538 = vmul.f32 %v5536, %v5536
        %5539 = vadd.xlane.f32.xlu0 %v5537
        %v5540 = vpop.xlane.xlu0 %5539
        %5541 = vadd.xlane.f32.xlu0 %v5538
        %v5542 = vpop.xlane.xlu0 %5541
        %v5543 = vmul.f32 %v5540, %v5156
        %v5544 = vmul.f32 %v5542, %v5156
        %v5545 = vadd.f32 %v5543, 1e-05
        %v5546 = vadd.f32 %v5544, 1e-05
        %v5547 = vrsqrt.pop %v5545
        %v5548 = vrsqrt.pop %v5546
        %v5549 = vmul.f32 %v5535, %v5547
        %v5550 = vmul.f32 %v5536, %v5548
        %v5551 = vld [vmem:[%s9] sm:$0x1]
        %v5553 = vlaneseq
        %v5554 = vshrl.u32 %v5553, 7
        %v5555 = vsub.s32 0, %v5554
        %v5556 = vrot.slane %v5551, %v5555
        %v5558 = vmul.f32 %v5549, %v5556
        %v5559 = vmul.f32 %v5550, %v5556
        %v5560 = vld [vmem:[%s10] sm:$0x1]
        %v5562 = vlaneseq
        %v5563 = vshrl.u32 %v5562, 7
        %v5564 = vsub.s32 0, %v5563
        %v5565 = vrot.slane %v5560, %v5564
        %v5567 = vadd.f32 %v5558, %v5565
        %v5568 = vadd.f32 %v5559, %v5565
        %5569 = vst [vmem:[%s635] sm:$0xff] %v5567
        %5570 = vst [vmem:[%s635 + $0x8] sm:$0xff] %v5568
        %s5571 = sand.u32 %s370, 1
        %s5572 = scalar_lea.sflag [#allocation8], %s5571
        %s5573 = sand.u32 %s370, 1
        %s5574 = smul.addr %s5573, 16
        %s5575 = scalar_lea.vmem [#allocation20], %s5574
        // Predicated region
        $region113: #{tpu_custom_call.1} parent=75 // pred_check
          %p5576 = pneg %p380
        $region114: #{tpu_custom_call.1} parent=75 // pred_check_branch
          %5578 = sbr.rel (%p5576) target = $region116
        $region115: #{tpu_custom_call.1} parent=75 // pred_region
          %s5579 = smul.u32 2, %s47
          %s5581 = ssub.s32 256, 256
          %5582 = vsyncadd %s5572, %s5581
          %s5583 = smul.addr %s46, 8
          %s5584 = sadd.s32 %s5579, %s5583
          %s5585 = smul.addr %s5584, 128
          %s5586 = scalar_lea.hbm %s15, %s5585
          %s5587 = sshll.u32 %s5575, 4
          %s5588 = int_to_ptr.vmem [resolvable:$true] %s5587
          %5593 = dma.vmem_to_hbm [thread:$0]  %s5588, 256, %s5586, %s5572, 128, 128, 8
        $region116: #{tpu_custom_call.1} parent=75 // pred_fallthru
          _
      $region76: #{tpu_custom_call.1} parent=5 // pred_fallthru
        _
      %p5594 = scmp.le.s32.totalorder 2, %s37
      // Predicated region
      $region117: #{tpu_custom_call.1} parent=5 // pred_check
        %p5595 = pneg %p5594
      $region118: #{tpu_custom_call.1} parent=5 // pred_check_branch
        %5597 = sbr.rel (%p5595) target = $region120
      $region119: #{tpu_custom_call.1} parent=5 // pred_region
        %s5598 = ssub.s32 %s37, 2
        // Predicated region
        $region121: #{tpu_custom_call.1} parent=119 // pred_check
          %p5599 = pneg %p386
        $region122: #{tpu_custom_call.1} parent=119 // pred_check_branch
          %5601 = sbr.rel (%p5599) target = $region124
        $region123: #{tpu_custom_call.1} parent=119 // pred_region
          %s5602 = sand.u32 %s371, 1
          %s5603 = scalar_lea.sflag [#allocation8], %s5602
          %s5604 = sand.u32 %s371, 1
          %s5605 = smul.addr %s5604, 16
          %s5606 = scalar_lea.vmem [#allocation20], %s5605
          %5607 = dma.done %s5603, 256
        $region124: #{tpu_custom_call.1} parent=119 // pred_fallthru
          _
      $region120: #{tpu_custom_call.1} parent=5 // pred_fallthru
        _
    $region6: #{tpu_custom_call.1} parent=1 // loop_footer
      %s41 = sadd.s32 1, %s37
    $region7: #{tpu_custom_call.1} parent=1 // loop_footer_branch
      %36 = sbr.rel target = $region3
    $region8: #{tpu_custom_call.1} parent=1 // loop_exit
      _
    %5608 = vsyncpa [#allocation7], 1
    %s5609 = scalar_lea.sflag [#allocation7], 1
    %5610 = vsyncpa %s5609, 1
    %5611 = vsyncpa [#allocation10], 1
    %s5612 = scalar_lea.sflag [#allocation10], 1
    %5613 = vsyncpa %s5612, 1
    %5614 = vsyncpa [#allocation13], 1
    %5615 = vsyncpa [#allocation16], 1
    %5616 = vsyncpa [#allocation19], 1
    %5617 = vsyncpa [#allocation8], 1
    %s5618 = scalar_lea.sflag [#allocation8], 1
    %5619 = vsyncpa %s5618, 1

</llo_original>
